<compile_context>
chip_gen: v6e
topology: v6e:2x2x1
jax: 0.10.0
libtpu: 0.0.40
codegen_flags: <defaults>
</compile_context>

<pallas_src>
from functools import partial

import jax
import jax.numpy as jnp
from jax.experimental import pallas as pl
from jax.experimental.pallas import tpu as pltpu

KSIZE = 3
EPS = 1e-5  # nn.InstanceNorm2d default eps


def _fused_resblock_kernel(xp_ref, w1_ref, w2_ref, o_ref, hpad_ref, *, H, W, Ls):
    # xp_ref:   (1, PL, C)   reflect-padded input, flat rows y*(W+2)+x, lane=C.
    # w1_ref:   (9, C, C)    w[dy*3+dx, cin, cout] for conv block 1.
    # w2_ref:   (9, C, C)    same for conv block 2.
    # o_ref:    (1, Ls, C)   output, flat rows i*(W+2)+j (j>=W columns garbage).
    # hpad_ref: (PL, C)      VMEM scratch holding the reflect-padded h.
    Wp = W + 2
    C = hpad_ref.shape[1]
    cdt = hpad_ref.dtype
    inv_cnt = 1.0 / (H * W)

    # flat-row column index / valid-output mask, generated in-kernel.
    col = jax.lax.broadcasted_iota(jnp.int32, (Ls, 1), 0) % Wp
    valid = col < W

    def conv9(load, w_ref):
        # 3x3 conv as nine row-offset K=C MXU matmuls on a flat padded slab:
        # out[r, o] = sum_{dy,dx,c} src[r + dy*Wp + dx, c] * w[dy*3+dx, c, o]
        acc = jnp.dot(load(0), w_ref[0], preferred_element_type=jnp.float32)
        for t in range(1, KSIZE * KSIZE):
            off = (t // KSIZE) * Wp + (t % KSIZE)
            acc = acc + jnp.dot(load(off), w_ref[t],
                                preferred_element_type=jnp.float32)
        return acc

    def instance_norm(acc):
        # one-pass masked stats (biased var = E[x^2] - E[x]^2, clamped >= 0).
        a = jnp.where(valid, acc, 0.0)
        mean = jnp.sum(a, axis=0, keepdims=True) * inv_cnt
        ex2 = jnp.sum(a * a, axis=0, keepdims=True) * inv_cnt
        var = jnp.maximum(ex2 - mean * mean, 0.0)
        scale = jax.lax.rsqrt(var + EPS)
        return acc * scale - mean * scale

    # ---- block 1: conv3x3 -> InstanceNorm -> ReLU -------------------------
    acc1 = conv9(lambda off: xp_ref[0, pl.ds(off, Ls), :], w1_ref)
    h1 = jnp.maximum(instance_norm(acc1), 0.0).astype(cdt)

    # ---- build reflect-padded h in VMEM (same flat layout as the input) ---
    # destination row Wp + r (r = i*Wp + jp) is padded position (i+1, jp):
    #   jp in [1, W+1): h[i, jp-1] = h1[r-1]   (interior)
    #   jp == 0:        h[i, 1]    = h1[r+1]   (left reflect)
    #   jp == W+1:      h[i, W-2]  = h1[r-3]   (right reflect)
    hpad_ref[pl.ds(Wp + 1, Ls), :] = h1            # stage: h1[q] at row Wp+1+q
    interior = hpad_ref[pl.ds(Wp, Ls), :]          # = h1[r-1]
    left = hpad_ref[pl.ds(Wp + 2, Ls), :]          # = h1[r+1]
    right = hpad_ref[pl.ds(Wp - 2, Ls), :]         # = h1[r-3]
    mid = jnp.where(col == 0, left, jnp.where(col == W + 1, right, interior))
    hpad_ref[pl.ds(Wp, Ls), :] = mid
    # top / bottom reflect rows: padded row 0 = padded row 2, H+1 = H-1.
    hpad_ref[pl.ds(0, Wp), :] = hpad_ref[pl.ds(2 * Wp, Wp), :]
    hpad_ref[pl.ds((H + 1) * Wp, Wp), :] = hpad_ref[pl.ds((H - 1) * Wp, Wp), :]
    # zero the 2 slack rows so garbage-column taps stay finite.
    hpad_ref[pl.ds((H + 2) * Wp, 2), :] = jnp.zeros((2, C), cdt)

    # ---- block 2: conv3x3 -> InstanceNorm, + residual ---------------------
    acc2 = conv9(lambda off: hpad_ref[pl.ds(off, Ls), :], w2_ref)
    y2 = instance_norm(acc2)
    # residual: x[i, j] = xp_flat[(i+1)*Wp + (j+1)] = xp_flat[r + Wp + 1]
    res = xp_ref[0, pl.ds(Wp + 1, Ls), :].astype(jnp.float32)
    o_ref[0] = y2 + res


def _vmem_limit_bytes(PL, Ls, C, csize):
    need = (2 * PL * C * csize            # padded input block, double buffered
            + 4 * KSIZE * KSIZE * C * C * csize   # w1, w2 (double buffered)
            + 2 * Ls * C * 4              # output block, double buffered
            + PL * C * csize              # hpad scratch
            + 8 * Ls * C * 4)             # f32 acc / select temporaries
    try:
        phys = int(getattr(pltpu.get_tpu_info(), "vmem_capacity_bytes", 0))
    except Exception:
        phys = 0
    if not phys:
        phys = 64 << 20                    # assume the smallest (v7x) if unknown
    cap = (phys * 3) // 4                  # ~48 MiB on v7x, ~96 MiB on v5e/v6e
    return int(min(max(int(need * 1.25), 32 << 20), cap))


@partial(jax.jit, static_argnames=("compute_dtype",))
def residual_block(x, params, compute_dtype=jnp.bfloat16):
    N, C, H, W = x.shape
    assert H >= 3 and W >= 3, "reflect pad / tap layout assumes H, W >= 3"
    Wp = W + 2
    Ls = H * Wp                    # flat output rows (padded-width pitch)
    PL = (H + 2) * Wp + 2          # flat padded-image rows + 2 slack rows

    # reflect-pad once in the wrapper; one flat slab per batch, lane = C.
    xp = jnp.pad(x, ((0, 0), (0, 0), (1, 1), (1, 1)), mode="reflect")
    xp_flat = jnp.transpose(xp, (0, 2, 3, 1)).reshape(N, (H + 2) * Wp, C)
    xp_flat = jnp.pad(xp_flat, ((0, 0), (0, PL - (H + 2) * Wp), (0, 0)))
    xp_flat = xp_flat.astype(compute_dtype)

    # weights: w9[dy*3+dx, cin, cout] = weight[cout, cin, dy, dx].
    # conv biases are dropped: affine=False InstanceNorm cancels them exactly.
    def prep_w(w):
        return (jnp.transpose(w, (2, 3, 1, 0))
                .reshape(KSIZE * KSIZE, C, C).astype(compute_dtype))

    w1 = prep_w(params["w1"])
    w2 = prep_w(params["w2"])

    kernel = partial(_fused_resblock_kernel, H=H, W=W, Ls=Ls)
    csize = jnp.dtype(compute_dtype).itemsize

    out = pl.pallas_call(
        kernel,
        out_shape=jax.ShapeDtypeStruct((N, Ls, C), jnp.float32),
        grid_spec=pltpu.PrefetchScalarGridSpec(
            num_scalar_prefetch=0,
            grid=(N,),
            in_specs=[
                pl.BlockSpec((1, PL, C), lambda n: (n, 0, 0)),
                pl.BlockSpec((KSIZE * KSIZE, C, C), lambda n: (0, 0, 0)),
                pl.BlockSpec((KSIZE * KSIZE, C, C), lambda n: (0, 0, 0)),
            ],
            out_specs=pl.BlockSpec((1, Ls, C), lambda n: (n, 0, 0)),
            scratch_shapes=[pltpu.VMEM((PL, C), compute_dtype)],
        ),
        compiler_params=pltpu.CompilerParams(
            dimension_semantics=("parallel",),
            vmem_limit_bytes=_vmem_limit_bytes(PL, Ls, C, csize)),
    )(xp_flat, w1, w2)

    # back to NCHW, dropping the 2 garbage columns of each padded-width row.
    out = out.reshape(N, H, Wp, C)[:, :, :W, :]
    return jnp.transpose(out, (0, 3, 1, 2))


def residual_block_ref(x, params):
    # Pure-JAX reference (same semantics as the PyTorch module, bias included).
    def block(inp, w, b, relu):
        xp = jnp.pad(inp, ((0, 0), (0, 0), (1, 1), (1, 1)), mode="reflect")
        y = jax.lax.conv_general_dilated(
            xp, w, (1, 1), "VALID",
            dimension_numbers=("NCHW", "OIHW", "NCHW"),
            precision=jax.lax.Precision.HIGHEST)
        y = y + b.reshape(1, -1, 1, 1)
        mean = jnp.mean(y, axis=(2, 3), keepdims=True)
        var = jnp.mean(jnp.square(y - mean), axis=(2, 3), keepdims=True)
        y = (y - mean) * jax.lax.rsqrt(var + EPS)
        if relu:
            y = jnp.maximum(y, 0.0)
        return y

    h = block(x, params["w1"], params["b1"], True)
    return block(h, params["w2"], params["b2"], False) + x


if __name__ == "__main__":
    key = jax.random.PRNGKey(0)
    kx, kw1, kb1, kw2, kb2 = jax.random.split(key, 5)
    N, C, H, W = 2, 4, 16, 16
    x = jax.random.normal(kx, (N, C, H, W), jnp.float32)

    # Deterministic synthetic parameters (Conv2d-style uniform init bounds).
    fan_in = C * KSIZE * KSIZE
    bound = 1.0 / (fan_in ** 0.5)
    params = dict(
        w1=jax.random.uniform(kw1, (C, C, KSIZE, KSIZE), jnp.float32, -bound, bound),
        b1=jax.random.uniform(kb1, (C,), jnp.float32, -bound, bound),
        w2=jax.random.uniform(kw2, (C, C, KSIZE, KSIZE), jnp.float32, -bound, bound),
        b2=jax.random.uniform(kb2, (C,), jnp.float32, -bound, bound),
    )

    ref = jax.block_until_ready(residual_block_ref(x, params))

    # f32-operand path: tight structural validation of the fused kernel.
    out_f32 = jax.block_until_ready(
        residual_block(x, params, compute_dtype=jnp.float32))
    assert out_f32.shape == x.shape and out_f32.dtype == jnp.float32
    err_f32 = float(jnp.max(jnp.abs(out_f32 - ref)))
    assert jnp.allclose(out_f32, ref, atol=1e-4, rtol=1e-4), err_f32

    # default fast path: bf16 MXU operands / bf16 residual, f32 stats & output.
    out_bf16 = jax.block_until_ready(residual_block(x, params))
    assert out_bf16.shape == x.shape and out_bf16.dtype == jnp.float32
    err_bf16 = float(jnp.max(jnp.abs(out_bf16 - ref)))
    assert jnp.allclose(out_bf16, ref, atol=5e-2, rtol=5e-2), err_bf16

    print("KERNEL_OK")
</pallas_src>

<mosaic_0001>
module attributes {stable_mosaic.version = 11 : i64} {
  func.func @_fused_resblock_kernel(%arg0: i32, %arg1: memref<1x326x4xf32, #tpu.memory_space<vmem>>, %arg2: memref<9x4x4xf32, #tpu.memory_space<vmem>>, %arg3: memref<9x4x4xf32, #tpu.memory_space<vmem>>, %arg4: memref<1x288x4xf32, #tpu.memory_space<vmem>>, %arg5: memref<326x4xf32, #tpu.memory_space<vmem>>) attributes {dimension_semantics = [#tpu.dimension_semantics<parallel>], iteration_bounds = array<i64: 2>, scalar_prefetch = 0 : i64, scratch_operands = 1 : i64, tpu.core_type = #tpu.core_type<tc>, window_params = [{transform_indices = @transform_0, window_bounds = array<i64: 1, 326, 4>}, {pipeline_mode = #tpu.pipeline_mode<synchronous>, transform_indices = @transform_1, window_bounds = array<i64: 9, 4, 4>}, {pipeline_mode = #tpu.pipeline_mode<synchronous>, transform_indices = @transform_2, window_bounds = array<i64: 9, 4, 4>}, {transform_indices = @transform_3, window_bounds = array<i64: 1, 288, 4>}]} {
    %0 = tpu.iota {dimensions = array<i32: 0>} : vector<288x1xi32>
    %c18_i32 = arith.constant 18 : i32
    %c0_i32 = arith.constant 0 : i32
    %1 = arith.cmpi eq, %c18_i32, %c0_i32 : i32
    %c1_i32 = arith.constant 1 : i32
    %2 = arith.select %1, %c1_i32, %c18_i32 : i32
    %3 = vector.broadcast %2 : i32 to vector<288x1xi32>
    %4 = arith.remsi %0, %3 : vector<288x1xi32>
    %c0_i32_0 = arith.constant 0 : i32
    %5 = vector.broadcast %c0_i32_0 : i32 to vector<288x1xi32>
    %6 = arith.cmpi ne, %4, %5 : vector<288x1xi32>
    %c0_i32_1 = arith.constant 0 : i32
    %7 = vector.broadcast %c0_i32_1 : i32 to vector<288x1xi32>
    %8 = arith.cmpi slt, %4, %7 : vector<288x1xi32>
    %c0_i32_2 = arith.constant 0 : i32
    %9 = arith.cmpi slt, %2, %c0_i32_2 : i32
    %10 = vector.broadcast %9 : i1 to vector<288x1xi1>
    %11 = vector.broadcast %10 : vector<288x1xi1> to vector<288x1xi1>
    %12 = arith.xori %8, %11 : vector<288x1xi1>
    %13 = arith.andi %12, %6 : vector<288x1xi1>
    %14 = vector.broadcast %2 : i32 to vector<288x1xi32>
    %15 = arith.addi %4, %14 : vector<288x1xi32>
    %16 = arith.select %13, %15, %4 : vector<288x1xi1>, vector<288x1xi32>
    %c16_i32 = arith.constant 16 : i32
    %17 = vector.broadcast %c16_i32 : i32 to vector<288x1xi32>
    %18 = arith.cmpi slt, %16, %17 : vector<288x1xi32>
    %c0 = arith.constant 0 : index
    %c0_3 = arith.constant 0 : index
    %c0_4 = arith.constant 0 : index
    %19 = vector.load %arg1[%c0, %c0_3, %c0_4] : memref<1x326x4xf32, #tpu.memory_space<vmem>>, vector<1x288x4xf32>
    %20 = vector.shape_cast %19 : vector<1x288x4xf32> to vector<288x4xf32>
    %c0_5 = arith.constant 0 : index
    %c0_6 = arith.constant 0 : index
    %c0_7 = arith.constant 0 : index
    %21 = vector.load %arg2[%c0_5, %c0_6, %c0_7] : memref<9x4x4xf32, #tpu.memory_space<vmem>>, vector<1x4x4xf32>
    %22 = vector.shape_cast %21 : vector<1x4x4xf32> to vector<4x4xf32>
    %cst = arith.constant dense<0.000000e+00> : vector<288x4xf32>
    %23 = tpu.matmul %20, %22, %cst {dimension_numbers = #tpu.dot_dimension_numbers<[1], [0], [0], [1], [0, 0, 1, 1], [], []>} : vector<288x4xf32>, vector<4x4xf32>, vector<288x4xf32> -> vector<288x4xf32>
    %c0_8 = arith.constant 0 : index
    %c1 = arith.constant 1 : index
    %c0_9 = arith.constant 0 : index
    %24 = vector.load %arg1[%c0_8, %c1, %c0_9] : memref<1x326x4xf32, #tpu.memory_space<vmem>>, vector<1x288x4xf32>
    %25 = vector.shape_cast %24 : vector<1x288x4xf32> to vector<288x4xf32>
    %c1_10 = arith.constant 1 : index
    %c0_11 = arith.constant 0 : index
    %c0_12 = arith.constant 0 : index
    %26 = vector.load %arg2[%c1_10, %c0_11, %c0_12] : memref<9x4x4xf32, #tpu.memory_space<vmem>>, vector<1x4x4xf32>
    %27 = vector.shape_cast %26 : vector<1x4x4xf32> to vector<4x4xf32>
    %cst_13 = arith.constant dense<0.000000e+00> : vector<288x4xf32>
    %28 = tpu.matmul %25, %27, %cst_13 {dimension_numbers = #tpu.dot_dimension_numbers<[1], [0], [0], [1], [0, 0, 1, 1], [], []>} : vector<288x4xf32>, vector<4x4xf32>, vector<288x4xf32> -> vector<288x4xf32>
    %29 = arith.addf %23, %28 : vector<288x4xf32>
    %c0_14 = arith.constant 0 : index
    %c2 = arith.constant 2 : index
    %c0_15 = arith.constant 0 : index
    %30 = vector.load %arg1[%c0_14, %c2, %c0_15] : memref<1x326x4xf32, #tpu.memory_space<vmem>>, vector<1x288x4xf32>
    %31 = vector.shape_cast %30 : vector<1x288x4xf32> to vector<288x4xf32>
    %c2_16 = arith.constant 2 : index
    %c0_17 = arith.constant 0 : index
    %c0_18 = arith.constant 0 : index
    %32 = vector.load %arg2[%c2_16, %c0_17, %c0_18] : memref<9x4x4xf32, #tpu.memory_space<vmem>>, vector<1x4x4xf32>
    %33 = vector.shape_cast %32 : vector<1x4x4xf32> to vector<4x4xf32>
    %cst_19 = arith.constant dense<0.000000e+00> : vector<288x4xf32>
    %34 = tpu.matmul %31, %33, %cst_19 {dimension_numbers = #tpu.dot_dimension_numbers<[1], [0], [0], [1], [0, 0, 1, 1], [], []>} : vector<288x4xf32>, vector<4x4xf32>, vector<288x4xf32> -> vector<288x4xf32>
    %35 = arith.addf %29, %34 : vector<288x4xf32>
    %c0_20 = arith.constant 0 : index
    %c18 = arith.constant 18 : index
    %c0_21 = arith.constant 0 : index
    %36 = vector.load %arg1[%c0_20, %c18, %c0_21] : memref<1x326x4xf32, #tpu.memory_space<vmem>>, vector<1x288x4xf32>
    %37 = vector.shape_cast %36 : vector<1x288x4xf32> to vector<288x4xf32>
    %c3 = arith.constant 3 : index
    %c0_22 = arith.constant 0 : index
    %c0_23 = arith.constant 0 : index
    %38 = vector.load %arg2[%c3, %c0_22, %c0_23] : memref<9x4x4xf32, #tpu.memory_space<vmem>>, vector<1x4x4xf32>
    %39 = vector.shape_cast %38 : vector<1x4x4xf32> to vector<4x4xf32>
    %cst_24 = arith.constant dense<0.000000e+00> : vector<288x4xf32>
    %40 = tpu.matmul %37, %39, %cst_24 {dimension_numbers = #tpu.dot_dimension_numbers<[1], [0], [0], [1], [0, 0, 1, 1], [], []>} : vector<288x4xf32>, vector<4x4xf32>, vector<288x4xf32> -> vector<288x4xf32>
    %41 = arith.addf %35, %40 : vector<288x4xf32>
    %c0_25 = arith.constant 0 : index
    %c19 = arith.constant 19 : index
    %c0_26 = arith.constant 0 : index
    %42 = vector.load %arg1[%c0_25, %c19, %c0_26] : memref<1x326x4xf32, #tpu.memory_space<vmem>>, vector<1x288x4xf32>
    %43 = vector.shape_cast %42 : vector<1x288x4xf32> to vector<288x4xf32>
    %c4 = arith.constant 4 : index
    %c0_27 = arith.constant 0 : index
    %c0_28 = arith.constant 0 : index
    %44 = vector.load %arg2[%c4, %c0_27, %c0_28] : memref<9x4x4xf32, #tpu.memory_space<vmem>>, vector<1x4x4xf32>
    %45 = vector.shape_cast %44 : vector<1x4x4xf32> to vector<4x4xf32>
    %cst_29 = arith.constant dense<0.000000e+00> : vector<288x4xf32>
    %46 = tpu.matmul %43, %45, %cst_29 {dimension_numbers = #tpu.dot_dimension_numbers<[1], [0], [0], [1], [0, 0, 1, 1], [], []>} : vector<288x4xf32>, vector<4x4xf32>, vector<288x4xf32> -> vector<288x4xf32>
    %47 = arith.addf %41, %46 : vector<288x4xf32>
    %c0_30 = arith.constant 0 : index
    %c20 = arith.constant 20 : index
    %c0_31 = arith.constant 0 : index
    %48 = vector.load %arg1[%c0_30, %c20, %c0_31] : memref<1x326x4xf32, #tpu.memory_space<vmem>>, vector<1x288x4xf32>
    %49 = vector.shape_cast %48 : vector<1x288x4xf32> to vector<288x4xf32>
    %c5 = arith.constant 5 : index
    %c0_32 = arith.constant 0 : index
    %c0_33 = arith.constant 0 : index
    %50 = vector.load %arg2[%c5, %c0_32, %c0_33] : memref<9x4x4xf32, #tpu.memory_space<vmem>>, vector<1x4x4xf32>
    %51 = vector.shape_cast %50 : vector<1x4x4xf32> to vector<4x4xf32>
    %cst_34 = arith.constant dense<0.000000e+00> : vector<288x4xf32>
    %52 = tpu.matmul %49, %51, %cst_34 {dimension_numbers = #tpu.dot_dimension_numbers<[1], [0], [0], [1], [0, 0, 1, 1], [], []>} : vector<288x4xf32>, vector<4x4xf32>, vector<288x4xf32> -> vector<288x4xf32>
    %53 = arith.addf %47, %52 : vector<288x4xf32>
    %c0_35 = arith.constant 0 : index
    %c36 = arith.constant 36 : index
    %c0_36 = arith.constant 0 : index
    %54 = vector.load %arg1[%c0_35, %c36, %c0_36] : memref<1x326x4xf32, #tpu.memory_space<vmem>>, vector<1x288x4xf32>
    %55 = vector.shape_cast %54 : vector<1x288x4xf32> to vector<288x4xf32>
    %c6 = arith.constant 6 : index
    %c0_37 = arith.constant 0 : index
    %c0_38 = arith.constant 0 : index
    %56 = vector.load %arg2[%c6, %c0_37, %c0_38] : memref<9x4x4xf32, #tpu.memory_space<vmem>>, vector<1x4x4xf32>
    %57 = vector.shape_cast %56 : vector<1x4x4xf32> to vector<4x4xf32>
    %cst_39 = arith.constant dense<0.000000e+00> : vector<288x4xf32>
    %58 = tpu.matmul %55, %57, %cst_39 {dimension_numbers = #tpu.dot_dimension_numbers<[1], [0], [0], [1], [0, 0, 1, 1], [], []>} : vector<288x4xf32>, vector<4x4xf32>, vector<288x4xf32> -> vector<288x4xf32>
    %59 = arith.addf %53, %58 : vector<288x4xf32>
    %c0_40 = arith.constant 0 : index
    %c37 = arith.constant 37 : index
    %c0_41 = arith.constant 0 : index
    %60 = vector.load %arg1[%c0_40, %c37, %c0_41] : memref<1x326x4xf32, #tpu.memory_space<vmem>>, vector<1x288x4xf32>
    %61 = vector.shape_cast %60 : vector<1x288x4xf32> to vector<288x4xf32>
    %c7 = arith.constant 7 : index
    %c0_42 = arith.constant 0 : index
    %c0_43 = arith.constant 0 : index
    %62 = vector.load %arg2[%c7, %c0_42, %c0_43] : memref<9x4x4xf32, #tpu.memory_space<vmem>>, vector<1x4x4xf32>
    %63 = vector.shape_cast %62 : vector<1x4x4xf32> to vector<4x4xf32>
    %cst_44 = arith.constant dense<0.000000e+00> : vector<288x4xf32>
    %64 = tpu.matmul %61, %63, %cst_44 {dimension_numbers = #tpu.dot_dimension_numbers<[1], [0], [0], [1], [0, 0, 1, 1], [], []>} : vector<288x4xf32>, vector<4x4xf32>, vector<288x4xf32> -> vector<288x4xf32>
    %65 = arith.addf %59, %64 : vector<288x4xf32>
    %c0_45 = arith.constant 0 : index
    %c38 = arith.constant 38 : index
    %c0_46 = arith.constant 0 : index
    %66 = vector.load %arg1[%c0_45, %c38, %c0_46] : memref<1x326x4xf32, #tpu.memory_space<vmem>>, vector<1x288x4xf32>
    %67 = vector.shape_cast %66 : vector<1x288x4xf32> to vector<288x4xf32>
    %c8 = arith.constant 8 : index
    %c0_47 = arith.constant 0 : index
    %c0_48 = arith.constant 0 : index
    %68 = vector.load %arg2[%c8, %c0_47, %c0_48] : memref<9x4x4xf32, #tpu.memory_space<vmem>>, vector<1x4x4xf32>
    %69 = vector.shape_cast %68 : vector<1x4x4xf32> to vector<4x4xf32>
    %cst_49 = arith.constant dense<0.000000e+00> : vector<288x4xf32>
    %70 = tpu.matmul %67, %69, %cst_49 {dimension_numbers = #tpu.dot_dimension_numbers<[1], [0], [0], [1], [0, 0, 1, 1], [], []>} : vector<288x4xf32>, vector<4x4xf32>, vector<288x4xf32> -> vector<288x4xf32>
    %71 = arith.addf %65, %70 : vector<288x4xf32>
    %cst_50 = arith.constant 0.000000e+00 : f32
    %72 = vector.shape_cast %18 : vector<288x1xi1> to vector<288x1xi1>
    %73 = vector.broadcast %72 : vector<288x1xi1> to vector<288x4xi1>
    %74 = vector.broadcast %cst_50 : f32 to vector<288x4xf32>
    %75 = arith.select %73, %71, %74 : vector<288x4xi1>, vector<288x4xf32>
    %cst_51 = arith.constant dense<0.000000e+00> : vector<4xf32>
    %76 = vector.multi_reduction <add>, %75, %cst_51 [0] : vector<288x4xf32> to vector<4xf32>
    %77 = vector.shape_cast %76 : vector<4xf32> to vector<1x4xf32>
    %cst_52 = arith.constant 3.906250e-03 : f32
    %78 = vector.broadcast %cst_52 : f32 to vector<1x4xf32>
    %79 = arith.mulf %77, %78 : vector<1x4xf32>
    %80 = arith.mulf %75, %75 : vector<288x4xf32>
    %cst_53 = arith.constant dense<0.000000e+00> : vector<4xf32>
    %81 = vector.multi_reduction <add>, %80, %cst_53 [0] : vector<288x4xf32> to vector<4xf32>
    %82 = vector.shape_cast %81 : vector<4xf32> to vector<1x4xf32>
    %cst_54 = arith.constant 3.906250e-03 : f32
    %83 = vector.broadcast %cst_54 : f32 to vector<1x4xf32>
    %84 = arith.mulf %82, %83 : vector<1x4xf32>
    %85 = arith.mulf %79, %79 : vector<1x4xf32>
    %86 = arith.subf %84, %85 : vector<1x4xf32>
    %cst_55 = arith.constant 0.000000e+00 : f32
    %87 = vector.broadcast %cst_55 : f32 to vector<1x4xf32>
    %88 = arith.maximumf %86, %87 : vector<1x4xf32>
    %cst_56 = arith.constant 9.99999974E-6 : f32
    %89 = vector.broadcast %cst_56 : f32 to vector<1x4xf32>
    %90 = arith.addf %88, %89 : vector<1x4xf32>
    %91 = math.rsqrt %90 : vector<1x4xf32>
    %92 = vector.broadcast %91 : vector<1x4xf32> to vector<288x4xf32>
    %93 = arith.mulf %71, %92 : vector<288x4xf32>
    %94 = arith.mulf %79, %91 : vector<1x4xf32>
    %95 = vector.broadcast %94 : vector<1x4xf32> to vector<288x4xf32>
    %96 = arith.subf %93, %95 : vector<288x4xf32>
    %cst_57 = arith.constant 0.000000e+00 : f32
    %97 = vector.broadcast %cst_57 : f32 to vector<288x4xf32>
    %98 = arith.maximumf %96, %97 : vector<288x4xf32>
    %c19_58 = arith.constant 19 : index
    %c0_59 = arith.constant 0 : index
    %99 = vector.load %arg5[%c19_58, %c0_59] : memref<326x4xf32, #tpu.memory_space<vmem>>, vector<288x4xf32>
    tpu.vector_store %arg5[%c19_58, %c0_59], %98 {strides = array<i32>} : memref<326x4xf32, #tpu.memory_space<vmem>>, vector<288x4xf32>,
    %c18_60 = arith.constant 18 : index
    %c0_61 = arith.constant 0 : index
    %100 = vector.load %arg5[%c18_60, %c0_61] : memref<326x4xf32, #tpu.memory_space<vmem>>, vector<288x4xf32>
    %c20_62 = arith.constant 20 : index
    %c0_63 = arith.constant 0 : index
    %101 = vector.load %arg5[%c20_62, %c0_63] : memref<326x4xf32, #tpu.memory_space<vmem>>, vector<288x4xf32>
    %c16 = arith.constant 16 : index
    %c0_64 = arith.constant 0 : index
    %102 = vector.load %arg5[%c16, %c0_64] : memref<326x4xf32, #tpu.memory_space<vmem>>, vector<288x4xf32>
    %c0_i32_65 = arith.constant 0 : i32
    %103 = vector.broadcast %c0_i32_65 : i32 to vector<288x1xi32>
    %104 = arith.cmpi eq, %16, %103 : vector<288x1xi32>
    %c17_i32 = arith.constant 17 : i32
    %105 = vector.broadcast %c17_i32 : i32 to vector<288x1xi32>
    %106 = arith.cmpi eq, %16, %105 : vector<288x1xi32>
    %107 = vector.shape_cast %106 : vector<288x1xi1> to vector<288x1xi1>
    %108 = vector.broadcast %107 : vector<288x1xi1> to vector<288x4xi1>
    %109 = arith.select %108, %102, %100 : vector<288x4xi1>, vector<288x4xf32>
    %110 = vector.shape_cast %104 : vector<288x1xi1> to vector<288x1xi1>
    %111 = vector.broadcast %110 : vector<288x1xi1> to vector<288x4xi1>
    %112 = arith.select %111, %101, %109 : vector<288x4xi1>, vector<288x4xf32>
    %c18_66 = arith.constant 18 : index
    %c0_67 = arith.constant 0 : index
    %113 = vector.load %arg5[%c18_66, %c0_67] : memref<326x4xf32, #tpu.memory_space<vmem>>, vector<288x4xf32>
    tpu.vector_store %arg5[%c18_66, %c0_67], %112 {strides = array<i32>} : memref<326x4xf32, #tpu.memory_space<vmem>>, vector<288x4xf32>,
    %c36_68 = arith.constant 36 : index
    %c0_69 = arith.constant 0 : index
    %114 = vector.load %arg5[%c36_68, %c0_69] : memref<326x4xf32, #tpu.memory_space<vmem>>, vector<18x4xf32>
    %c0_70 = arith.constant 0 : index
    %c0_71 = arith.constant 0 : index
    %115 = vector.load %arg5[%c0_70, %c0_71] : memref<326x4xf32, #tpu.memory_space<vmem>>, vector<18x4xf32>
    tpu.vector_store %arg5[%c0_70, %c0_71], %114 {strides = array<i32>} : memref<326x4xf32, #tpu.memory_space<vmem>>, vector<18x4xf32>,
    %c270 = arith.constant 270 : index
    %c0_72 = arith.constant 0 : index
    %116 = vector.load %arg5[%c270, %c0_72] : memref<326x4xf32, #tpu.memory_space<vmem>>, vector<18x4xf32>
    %c306 = arith.constant 306 : index
    %c0_73 = arith.constant 0 : index
    %117 = vector.load %arg5[%c306, %c0_73] : memref<326x4xf32, #tpu.memory_space<vmem>>, vector<18x4xf32>
    tpu.vector_store %arg5[%c306, %c0_73], %116 {strides = array<i32>} : memref<326x4xf32, #tpu.memory_space<vmem>>, vector<18x4xf32>,
    %cst_74 = arith.constant 0.000000e+00 : f32
    %118 = vector.broadcast %cst_74 : f32 to vector<2x4xf32>
    %c324 = arith.constant 324 : index
    %c0_75 = arith.constant 0 : index
    %119 = vector.load %arg5[%c324, %c0_75] : memref<326x4xf32, #tpu.memory_space<vmem>>, vector<2x4xf32>
    tpu.vector_store %arg5[%c324, %c0_75], %118 {strides = array<i32>} : memref<326x4xf32, #tpu.memory_space<vmem>>, vector<2x4xf32>,
    %c0_76 = arith.constant 0 : index
    %c0_77 = arith.constant 0 : index
    %120 = vector.load %arg5[%c0_76, %c0_77] : memref<326x4xf32, #tpu.memory_space<vmem>>, vector<288x4xf32>
    %c0_78 = arith.constant 0 : index
    %c0_79 = arith.constant 0 : index
    %c0_80 = arith.constant 0 : index
    %121 = vector.load %arg3[%c0_78, %c0_79, %c0_80] : memref<9x4x4xf32, #tpu.memory_space<vmem>>, vector<1x4x4xf32>
    %122 = vector.shape_cast %121 : vector<1x4x4xf32> to vector<4x4xf32>
    %cst_81 = arith.constant dense<0.000000e+00> : vector<288x4xf32>
    %123 = tpu.matmul %120, %122, %cst_81 {dimension_numbers = #tpu.dot_dimension_numbers<[1], [0], [0], [1], [0, 0, 1, 1], [], []>} : vector<288x4xf32>, vector<4x4xf32>, vector<288x4xf32> -> vector<288x4xf32>
    %c1_82 = arith.constant 1 : index
    %c0_83 = arith.constant 0 : index
    %124 = vector.load %arg5[%c1_82, %c0_83] : memref<326x4xf32, #tpu.memory_space<vmem>>, vector<288x4xf32>
    %c1_84 = arith.constant 1 : index
    %c0_85 = arith.constant 0 : index
    %c0_86 = arith.constant 0 : index
    %125 = vector.load %arg3[%c1_84, %c0_85, %c0_86] : memref<9x4x4xf32, #tpu.memory_space<vmem>>, vector<1x4x4xf32>
    %126 = vector.shape_cast %125 : vector<1x4x4xf32> to vector<4x4xf32>
    %cst_87 = arith.constant dense<0.000000e+00> : vector<288x4xf32>
    %127 = tpu.matmul %124, %126, %cst_87 {dimension_numbers = #tpu.dot_dimension_numbers<[1], [0], [0], [1], [0, 0, 1, 1], [], []>} : vector<288x4xf32>, vector<4x4xf32>, vector<288x4xf32> -> vector<288x4xf32>
    %128 = arith.addf %123, %127 : vector<288x4xf32>
    %c2_88 = arith.constant 2 : index
    %c0_89 = arith.constant 0 : index
    %129 = vector.load %arg5[%c2_88, %c0_89] : memref<326x4xf32, #tpu.memory_space<vmem>>, vector<288x4xf32>
    %c2_90 = arith.constant 2 : index
    %c0_91 = arith.constant 0 : index
    %c0_92 = arith.constant 0 : index
    %130 = vector.load %arg3[%c2_90, %c0_91, %c0_92] : memref<9x4x4xf32, #tpu.memory_space<vmem>>, vector<1x4x4xf32>
    %131 = vector.shape_cast %130 : vector<1x4x4xf32> to vector<4x4xf32>
    %cst_93 = arith.constant dense<0.000000e+00> : vector<288x4xf32>
    %132 = tpu.matmul %129, %131, %cst_93 {dimension_numbers = #tpu.dot_dimension_numbers<[1], [0], [0], [1], [0, 0, 1, 1], [], []>} : vector<288x4xf32>, vector<4x4xf32>, vector<288x4xf32> -> vector<288x4xf32>
    %133 = arith.addf %128, %132 : vector<288x4xf32>
    %c18_94 = arith.constant 18 : index
    %c0_95 = arith.constant 0 : index
    %134 = vector.load %arg5[%c18_94, %c0_95] : memref<326x4xf32, #tpu.memory_space<vmem>>, vector<288x4xf32>
    %c3_96 = arith.constant 3 : index
    %c0_97 = arith.constant 0 : index
    %c0_98 = arith.constant 0 : index
    %135 = vector.load %arg3[%c3_96, %c0_97, %c0_98] : memref<9x4x4xf32, #tpu.memory_space<vmem>>, vector<1x4x4xf32>
    %136 = vector.shape_cast %135 : vector<1x4x4xf32> to vector<4x4xf32>
    %cst_99 = arith.constant dense<0.000000e+00> : vector<288x4xf32>
    %137 = tpu.matmul %134, %136, %cst_99 {dimension_numbers = #tpu.dot_dimension_numbers<[1], [0], [0], [1], [0, 0, 1, 1], [], []>} : vector<288x4xf32>, vector<4x4xf32>, vector<288x4xf32> -> vector<288x4xf32>
    %138 = arith.addf %133, %137 : vector<288x4xf32>
    %c19_100 = arith.constant 19 : index
    %c0_101 = arith.constant 0 : index
    %139 = vector.load %arg5[%c19_100, %c0_101] : memref<326x4xf32, #tpu.memory_space<vmem>>, vector<288x4xf32>
    %c4_102 = arith.constant 4 : index
    %c0_103 = arith.constant 0 : index
    %c0_104 = arith.constant 0 : index
    %140 = vector.load %arg3[%c4_102, %c0_103, %c0_104] : memref<9x4x4xf32, #tpu.memory_space<vmem>>, vector<1x4x4xf32>
    %141 = vector.shape_cast %140 : vector<1x4x4xf32> to vector<4x4xf32>
    %cst_105 = arith.constant dense<0.000000e+00> : vector<288x4xf32>
    %142 = tpu.matmul %139, %141, %cst_105 {dimension_numbers = #tpu.dot_dimension_numbers<[1], [0], [0], [1], [0, 0, 1, 1], [], []>} : vector<288x4xf32>, vector<4x4xf32>, vector<288x4xf32> -> vector<288x4xf32>
    %143 = arith.addf %138, %142 : vector<288x4xf32>
    %c20_106 = arith.constant 20 : index
    %c0_107 = arith.constant 0 : index
    %144 = vector.load %arg5[%c20_106, %c0_107] : memref<326x4xf32, #tpu.memory_space<vmem>>, vector<288x4xf32>
    %c5_108 = arith.constant 5 : index
    %c0_109 = arith.constant 0 : index
    %c0_110 = arith.constant 0 : index
    %145 = vector.load %arg3[%c5_108, %c0_109, %c0_110] : memref<9x4x4xf32, #tpu.memory_space<vmem>>, vector<1x4x4xf32>
    %146 = vector.shape_cast %145 : vector<1x4x4xf32> to vector<4x4xf32>
    %cst_111 = arith.constant dense<0.000000e+00> : vector<288x4xf32>
    %147 = tpu.matmul %144, %146, %cst_111 {dimension_numbers = #tpu.dot_dimension_numbers<[1], [0], [0], [1], [0, 0, 1, 1], [], []>} : vector<288x4xf32>, vector<4x4xf32>, vector<288x4xf32> -> vector<288x4xf32>
    %148 = arith.addf %143, %147 : vector<288x4xf32>
    %c36_112 = arith.constant 36 : index
    %c0_113 = arith.constant 0 : index
    %149 = vector.load %arg5[%c36_112, %c0_113] : memref<326x4xf32, #tpu.memory_space<vmem>>, vector<288x4xf32>
    %c6_114 = arith.constant 6 : index
    %c0_115 = arith.constant 0 : index
    %c0_116 = arith.constant 0 : index
    %150 = vector.load %arg3[%c6_114, %c0_115, %c0_116] : memref<9x4x4xf32, #tpu.memory_space<vmem>>, vector<1x4x4xf32>
    %151 = vector.shape_cast %150 : vector<1x4x4xf32> to vector<4x4xf32>
    %cst_117 = arith.constant dense<0.000000e+00> : vector<288x4xf32>
    %152 = tpu.matmul %149, %151, %cst_117 {dimension_numbers = #tpu.dot_dimension_numbers<[1], [0], [0], [1], [0, 0, 1, 1], [], []>} : vector<288x4xf32>, vector<4x4xf32>, vector<288x4xf32> -> vector<288x4xf32>
    %153 = arith.addf %148, %152 : vector<288x4xf32>
    %c37_118 = arith.constant 37 : index
    %c0_119 = arith.constant 0 : index
    %154 = vector.load %arg5[%c37_118, %c0_119] : memref<326x4xf32, #tpu.memory_space<vmem>>, vector<288x4xf32>
    %c7_120 = arith.constant 7 : index
    %c0_121 = arith.constant 0 : index
    %c0_122 = arith.constant 0 : index
    %155 = vector.load %arg3[%c7_120, %c0_121, %c0_122] : memref<9x4x4xf32, #tpu.memory_space<vmem>>, vector<1x4x4xf32>
    %156 = vector.shape_cast %155 : vector<1x4x4xf32> to vector<4x4xf32>
    %cst_123 = arith.constant dense<0.000000e+00> : vector<288x4xf32>
    %157 = tpu.matmul %154, %156, %cst_123 {dimension_numbers = #tpu.dot_dimension_numbers<[1], [0], [0], [1], [0, 0, 1, 1], [], []>} : vector<288x4xf32>, vector<4x4xf32>, vector<288x4xf32> -> vector<288x4xf32>
    %158 = arith.addf %153, %157 : vector<288x4xf32>
    %c38_124 = arith.constant 38 : index
    %c0_125 = arith.constant 0 : index
    %159 = vector.load %arg5[%c38_124, %c0_125] : memref<326x4xf32, #tpu.memory_space<vmem>>, vector<288x4xf32>
    %c8_126 = arith.constant 8 : index
    %c0_127 = arith.constant 0 : index
    %c0_128 = arith.constant 0 : index
    %160 = vector.load %arg3[%c8_126, %c0_127, %c0_128] : memref<9x4x4xf32, #tpu.memory_space<vmem>>, vector<1x4x4xf32>
    %161 = vector.shape_cast %160 : vector<1x4x4xf32> to vector<4x4xf32>
    %cst_129 = arith.constant dense<0.000000e+00> : vector<288x4xf32>
    %162 = tpu.matmul %159, %161, %cst_129 {dimension_numbers = #tpu.dot_dimension_numbers<[1], [0], [0], [1], [0, 0, 1, 1], [], []>} : vector<288x4xf32>, vector<4x4xf32>, vector<288x4xf32> -> vector<288x4xf32>
    %163 = arith.addf %158, %162 : vector<288x4xf32>
    %cst_130 = arith.constant 0.000000e+00 : f32
    %164 = vector.shape_cast %18 : vector<288x1xi1> to vector<288x1xi1>
    %165 = vector.broadcast %164 : vector<288x1xi1> to vector<288x4xi1>
    %166 = vector.broadcast %cst_130 : f32 to vector<288x4xf32>
    %167 = arith.select %165, %163, %166 : vector<288x4xi1>, vector<288x4xf32>
    %cst_131 = arith.constant dense<0.000000e+00> : vector<4xf32>
    %168 = vector.multi_reduction <add>, %167, %cst_131 [0] : vector<288x4xf32> to vector<4xf32>
    %169 = vector.shape_cast %168 : vector<4xf32> to vector<1x4xf32>
    %cst_132 = arith.constant 3.906250e-03 : f32
    %170 = vector.broadcast %cst_132 : f32 to vector<1x4xf32>
    %171 = arith.mulf %169, %170 : vector<1x4xf32>
    %172 = arith.mulf %167, %167 : vector<288x4xf32>
    %cst_133 = arith.constant dense<0.000000e+00> : vector<4xf32>
    %173 = vector.multi_reduction <add>, %172, %cst_133 [0] : vector<288x4xf32> to vector<4xf32>
    %174 = vector.shape_cast %173 : vector<4xf32> to vector<1x4xf32>
    %cst_134 = arith.constant 3.906250e-03 : f32
    %175 = vector.broadcast %cst_134 : f32 to vector<1x4xf32>
    %176 = arith.mulf %174, %175 : vector<1x4xf32>
    %177 = arith.mulf %171, %171 : vector<1x4xf32>
    %178 = arith.subf %176, %177 : vector<1x4xf32>
    %cst_135 = arith.constant 0.000000e+00 : f32
    %179 = vector.broadcast %cst_135 : f32 to vector<1x4xf32>
    %180 = arith.maximumf %178, %179 : vector<1x4xf32>
    %cst_136 = arith.constant 9.99999974E-6 : f32
    %181 = vector.broadcast %cst_136 : f32 to vector<1x4xf32>
    %182 = arith.addf %180, %181 : vector<1x4xf32>
    %183 = math.rsqrt %182 : vector<1x4xf32>
    %184 = vector.broadcast %183 : vector<1x4xf32> to vector<288x4xf32>
    %185 = arith.mulf %163, %184 : vector<288x4xf32>
    %186 = arith.mulf %171, %183 : vector<1x4xf32>
    %187 = vector.broadcast %186 : vector<1x4xf32> to vector<288x4xf32>
    %188 = arith.subf %185, %187 : vector<288x4xf32>
    %c0_137 = arith.constant 0 : index
    %c19_138 = arith.constant 19 : index
    %c0_139 = arith.constant 0 : index
    %189 = vector.load %arg1[%c0_137, %c19_138, %c0_139] : memref<1x326x4xf32, #tpu.memory_space<vmem>>, vector<1x288x4xf32>
    %190 = vector.shape_cast %189 : vector<1x288x4xf32> to vector<288x4xf32>
    %191 = arith.addf %188, %190 : vector<288x4xf32>
    %c0_140 = arith.constant 0 : index
    %c0_141 = arith.constant 0 : index
    %c0_142 = arith.constant 0 : index
    %192 = vector.load %arg4[%c0_140, %c0_141, %c0_142] : memref<1x288x4xf32, #tpu.memory_space<vmem>>, vector<1x288x4xf32>
    %193 = vector.shape_cast %192 : vector<1x288x4xf32> to vector<288x4xf32>
    %194 = vector.shape_cast %191 : vector<288x4xf32> to vector<1x288x4xf32>
    tpu.vector_store %arg4[%c0_140, %c0_141, %c0_142], %194 {strides = array<i32>} : memref<1x288x4xf32, #tpu.memory_space<vmem>>, vector<1x288x4xf32>,
    return
  }
  func.func @transform_0(%arg0: i32) -> (i32, i32, i32) {
    %c0_i32 = arith.constant 0 : i32
    %c0_i32_0 = arith.constant 0 : i32
    %c0_i32_1 = arith.constant 0 : i32
    return %arg0, %c0_i32, %c0_i32_0 : i32, i32, i32
  }
  func.func @transform_1(%arg0: i32) -> (i32, i32, i32) {
    %c0_i32 = arith.constant 0 : i32
    %c0_i32_0 = arith.constant 0 : i32
    %c0_i32_1 = arith.constant 0 : i32
    %c0_i32_2 = arith.constant 0 : i32
    return %c0_i32, %c0_i32_0, %c0_i32_1 : i32, i32, i32
  }
  func.func @transform_2(%arg0: i32) -> (i32, i32, i32) {
    %c0_i32 = arith.constant 0 : i32
    %c0_i32_0 = arith.constant 0 : i32
    %c0_i32_1 = arith.constant 0 : i32
    %c0_i32_2 = arith.constant 0 : i32
    return %c0_i32, %c0_i32_0, %c0_i32_1 : i32, i32, i32
  }
  func.func @transform_3(%arg0: i32) -> (i32, i32, i32) {
    %c0_i32 = arith.constant 0 : i32
    %c0_i32_0 = arith.constant 0 : i32
    %c0_i32_1 = arith.constant 0 : i32
    return %arg0, %c0_i32, %c0_i32_0 : i32, i32, i32
  }
}

</mosaic_0001>

<llo_original>
// kernel: residual_block.1
$region0: #{residual_block.1}
  #allocation0 [shape = 'u32[]', space=smem, size = 0x4, offset = 0x4, fixed_abs, tag = 'smem constant byte address 0x4 - core index']
  #allocation1 [shape = 'u32[144,128]{1,0:T(1,128)}', space=vmem, size = 0x12000, scoped, tag = 'internal scratch']
  #allocation2 [shape = 'f32[326,4]{1,0:T(8,128)}', space=vmem, size = 0x29000, scoped, tag = 'scratch operand']
  %s0 = inlined_call_operand.vmem [shape: f32[2,326,4], index: 0, kind: input, shape index: {}]
  %s1 = inlined_call_operand.vmem [shape: f32[9,4,4], index: 1, kind: input, shape index: {}]
  %s2 = inlined_call_operand.vmem [shape: f32[9,4,4], index: 2, kind: input, shape index: {}]
  %s3 = inlined_call_operand.vmem [shape: f32[2,288,4], index: 3, kind: output, shape index: {}]
  %s4 = sld [smem:[#allocation0]]
  $region45: #{residual_block.1} parent=0
    _
  %s6 = ssub.s32 1, %s4
  %s7 = scalar_select 0, %s6, %s4
  loop: start=0, step=1, limit=4
  $region2: #{residual_block.1} parent=0 // loop_pre_header
    _
  $region3: #{residual_block.1} parent=0 // loop_header
    %s9 = sphi 0, %s13
    %p10 = scmp.ge.s32.totalorder %s9, 4
    %s19 = sphi 0, %s21
    %s22 = sphi 0, %s19
    %s23 = sphi 0, %s22
    %s39 = sphi 0, %s23
    %s43 = sphi 0, %s43
    %s45 = sphi 0, %s43
    %s46 = sphi 0, %s45
    %s60 = sphi 0, %s46
    %s64 = sphi 0, %s64
    %s66 = sphi 0, %s64
    %s67 = sphi 0, %s66
    %s81 = sphi 0, %s67
    %s87 = sphi 0, %s89
    %s90 = sphi 0, %s87
    %s91 = sphi 0, %s90
    %s107 = sphi 0, %s91
  $region4: #{residual_block.1} parent=0 // loop_header_branch
    %12 = sbr.rel (%p10) target = $region8
  $region5: #{residual_block.1} parent=0 // loop_body
    %s14 = ssub.s32 %s9, 1
    %s15 = ssub.s32 %s9, 2
    %s16 = sadd.s32 %s9, 1
    %s17 = ssub.s32 %s9, %s16
    %p18 = scmp.eq.s32.totalorder %s17, 0
    %s20 = sadd.s32 %s19, 1
    %s21 = scalar_select %p18, %s19, %s20
    %p24 = pneg %p18
    %p25 = scmp.eq.s32.totalorder %s9, 1
    %p26 = por %p24, %p25
    %p27 = scmp.ne.s32.totalorder %s19, %s22
    %p28 = scmp.eq.s32.totalorder %s9, 0
    %p29 = por %p27, %p28
    %p30 = scmp.ne.s32.totalorder %s19, %s22
    %p31 = scmp.eq.s32.totalorder %s14, 1
    %p32 = por %p30, %p31
    %p33 = scmp.ne.s32.totalorder %s22, %s23
    %p34 = scmp.eq.s32.totalorder %s14, 0
    %p35 = por %p33, %p34
    %p36 = scmp.ne.s32.totalorder %s22, %s23
    %p37 = scmp.eq.s32.totalorder %s15, 1
    %p38 = por %p36, %p37
    %p40 = scmp.ne.s32.totalorder %s23, %s39
    %p41 = scmp.eq.s32.totalorder %s15, 0
    %p42 = por %p40, %p41
    %s44 = sadd.s32 %s43, 1
    %p47 = scmp.eq.s32.totalorder %s9, 1
    %p48 = scmp.ne.s32.totalorder %s43, %s45
    %p49 = scmp.eq.s32.totalorder %s9, 0
    %p50 = por %p48, %p49
    %p51 = scmp.ne.s32.totalorder %s43, %s45
    %p52 = scmp.eq.s32.totalorder %s14, 1
    %p53 = por %p51, %p52
    %p54 = scmp.ne.s32.totalorder %s45, %s46
    %p55 = scmp.eq.s32.totalorder %s14, 0
    %p56 = por %p54, %p55
    %p57 = scmp.ne.s32.totalorder %s45, %s46
    %p58 = scmp.eq.s32.totalorder %s15, 1
    %p59 = por %p57, %p58
    %p61 = scmp.ne.s32.totalorder %s46, %s60
    %p62 = scmp.eq.s32.totalorder %s15, 0
    %p63 = por %p61, %p62
    %s65 = sadd.s32 %s64, 1
    %p68 = scmp.eq.s32.totalorder %s9, 1
    %p69 = scmp.ne.s32.totalorder %s64, %s66
    %p70 = scmp.eq.s32.totalorder %s9, 0
    %p71 = por %p69, %p70
    %p72 = scmp.ne.s32.totalorder %s64, %s66
    %p73 = scmp.eq.s32.totalorder %s14, 1
    %p74 = por %p72, %p73
    %p75 = scmp.ne.s32.totalorder %s66, %s67
    %p76 = scmp.eq.s32.totalorder %s14, 0
    %p77 = por %p75, %p76
    %p78 = scmp.ne.s32.totalorder %s66, %s67
    %p79 = scmp.eq.s32.totalorder %s15, 1
    %p80 = por %p78, %p79
    %p82 = scmp.ne.s32.totalorder %s67, %s81
    %p83 = scmp.eq.s32.totalorder %s15, 0
    %p84 = por %p82, %p83
    %s85 = ssub.s32 %s9, %s16
    %p86 = scmp.eq.s32.totalorder %s85, 0
    %s88 = sadd.s32 %s87, 1
    %s89 = scalar_select %p86, %s87, %s88
    %p92 = pneg %p86
    %p93 = scmp.eq.s32.totalorder %s9, 1
    %p94 = por %p92, %p93
    %p95 = scmp.ne.s32.totalorder %s87, %s90
    %p96 = scmp.eq.s32.totalorder %s9, 0
    %p97 = por %p95, %p96
    %p98 = scmp.ne.s32.totalorder %s87, %s90
    %p99 = scmp.eq.s32.totalorder %s14, 1
    %p100 = por %p98, %p99
    %p101 = scmp.ne.s32.totalorder %s90, %s91
    %p102 = scmp.eq.s32.totalorder %s14, 0
    %p103 = por %p101, %p102
    %p104 = scmp.ne.s32.totalorder %s90, %s91
    %p105 = scmp.eq.s32.totalorder %s15, 1
    %p106 = por %p104, %p105
    %p108 = scmp.ne.s32.totalorder %s91, %s107
    %p109 = scmp.eq.s32.totalorder %s15, 0
    %p110 = por %p108, %p109
    %p111 = scmp.le.s32.totalorder 1, %s9
    %p112 = scmp.lt.s32.totalorder %s9, 3
    %p113 = pnand %p111, %p112
    %p114 = pneg %p113
    // Predicated region
    $region9: #{residual_block.1} parent=5 // pred_check
      _
    $region10: #{residual_block.1} parent=5 // pred_check_branch
      %116 = sbr.rel (%p113) target = $region12
    $region11: #{residual_block.1} parent=5 // pred_region
      %s117 = ssub.s32 %s9, 1
      // Predicated region
      $region13: #{residual_block.1} parent=11 // pred_check
        %p118 = pneg %p56
      $region14: #{residual_block.1} parent=11 // pred_check_branch
        %120 = sbr.rel (%p118) target = $region16
      $region15: #{residual_block.1} parent=11 // pred_region
        _
      $region16: #{residual_block.1} parent=11 // pred_fallthru
        _
      // Predicated region
      $region17: #{residual_block.1} parent=11 // pred_check
        %p121 = pneg %p77
      $region18: #{residual_block.1} parent=11 // pred_check_branch
        %123 = sbr.rel (%p121) target = $region20
      $region19: #{residual_block.1} parent=11 // pred_region
        _
      $region20: #{residual_block.1} parent=11 // pred_fallthru
        _
    $region12: #{residual_block.1} parent=5 // pred_fallthru
      _
    %p124 = scmp.lt.s32.totalorder %s9, 2
    // Predicated region
    $region21: #{residual_block.1} parent=5 // pred_check
      %p125 = pneg %p124
    $region22: #{residual_block.1} parent=5 // pred_check_branch
      %127 = sbr.rel (%p125) target = $region24
    $region23: #{residual_block.1} parent=5 // pred_region
      // Predicated region
      $region25: #{residual_block.1} parent=23 // pred_check
        %p128 = pneg %p29
      $region26: #{residual_block.1} parent=23 // pred_check_branch
        %130 = sbr.rel (%p128) target = $region28
      $region27: #{residual_block.1} parent=23 // pred_region
        %p131 = scmp.lt.s32.totalorder %s9, 1
        %s132 = scalar_select %p131, %s9, 1
        %s133 = smul.addr %s132, 41
        %s134 = smul.addr %s133, 8
        %s135 = scalar_lea.vmem %s0, %s134
      $region28: #{residual_block.1} parent=23 // pred_fallthru
        _
    $region24: #{residual_block.1} parent=5 // pred_fallthru
      _
    %p136 = scmp.le.s32.totalorder 1, %s9
    %p137 = scmp.lt.s32.totalorder %s9, 3
    %p138 = pnand %p136, %p137
    %p139 = pneg %p138
    // Predicated region
    $region29: #{residual_block.1} parent=5 // pred_check
      _
    $region30: #{residual_block.1} parent=5 // pred_check_branch
      %141 = sbr.rel (%p138) target = $region32
    $region31: #{residual_block.1} parent=5 // pred_region
      %s142 = ssub.s32 %s9, 1
      %p143 = scmp.lt.s32.totalorder %s14, 1
      %s144 = scalar_select %p143, %s14, 1
      %s145 = smul.addr %s144, 41
      %s146 = smul.addr %s145, 8
      %s147 = scalar_lea.vmem %s0, %s146
      %p148 = pneg %p35
      %p149 = pneg %p32
      %p150 = pneg %p56
      %p151 = pneg %p53
      %p152 = pneg %p77
      %p153 = pneg %p74
      %p154 = pneg %p103
      %p155 = pneg %p100
      %p156 = scmp.lt.s32.totalorder %s14, 1
      %s157 = scalar_select %p156, %s14, 1
      %s158 = smul.addr %s157, 36
      %s159 = smul.addr %s158, 8
      %s160 = scalar_lea.vmem %s3, %s159
      %p161 = scmp.lt.s32.totalorder %s14, 1
      %s162 = scalar_select %p161, %s14, 1
      %s163 = smul.addr %s162, 41
      %s164 = smul.addr %s163, 8
      %s165 = scalar_lea.vmem %s0, %s164
      %p166 = scmp.lt.s32.totalorder %s14, 1
      %s167 = scalar_select %p166, %s14, 1
      %s168 = smul.addr %s167, 36
      %s169 = smul.addr %s168, 8
      %s170 = scalar_lea.vmem %s3, %s169
      %v171 = vlaneseq
      %v172 = vshrl.u32 %v171, 7
      %v173 = vadd.s32 %v172, 8
      %v174 = vadd.s32 %v172, 16
      %v175 = vadd.s32 %v172, 24
      %v176 = vadd.s32 %v172, 32
      %v177 = vadd.s32 %v172, 40
      %v178 = vadd.s32 %v172, 48
      %v179 = vadd.s32 %v172, 56
      %v180 = vadd.s32 %v172, 64
      %v181 = vadd.s32 %v172, 72
      %v182 = vadd.s32 %v172, 80
      %v183 = vadd.s32 %v172, 88
      %v184 = vadd.s32 %v172, 96
      %v185 = vadd.s32 %v172, 104
      %v186 = vadd.s32 %v172, 112
      %v187 = vadd.s32 %v172, 120
      %v188 = vadd.s32 %v172, 128
      %v189 = vadd.s32 %v172, 136
      %v190 = vadd.s32 %v172, 144
      %v191 = vadd.s32 %v172, 152
      %v192 = vadd.s32 %v172, 160
      %v193 = vadd.s32 %v172, 168
      %v194 = vadd.s32 %v172, 176
      %v195 = vadd.s32 %v172, 184
      %v196 = vadd.s32 %v172, 192
      %v197 = vadd.s32 %v172, 200
      %v198 = vadd.s32 %v172, 208
      %v199 = vadd.s32 %v172, 216
      %v200 = vadd.s32 %v172, 224
      %v201 = vadd.s32 %v172, 232
      %v202 = vadd.s32 %v172, 240
      %v203 = vadd.s32 %v172, 248
      %v204 = vadd.s32 %v172, 256
      %v205 = vadd.s32 %v172, 264
      %v206 = vadd.s32 %v172, 272
      %v207 = vadd.s32 %v172, 280
      %vm208 = vcmp.lt.s32.totalorder %v172, 0
      %v209 = vsub.s32 0, %v172
      %v210 = vsel %vm208, %v209, %v172
      %v211 = vmul.u32.u64.compose %v210, 3817748708
      %v212 = vextract.low.u32 %v211
      %v213 = vextract.high.u32 %v211
      %v214 = vshrl.u32 %v213, 4
      %v215 = vmul.u32 %v214, 18
      %v216 = vsub.s32 %v210, %v215
      %v217 = vsub.s32 0, %v216
      %v218 = vsel %vm208, %v217, %v216
      %vm219 = vcmp.lt.s32.totalorder %v173, 0
      %v220 = vsub.s32 0, %v173
      %v221 = vsel %vm219, %v220, %v173
      %v222 = vmul.u32.u64.compose %v221, 3817748708
      %v223 = vextract.low.u32 %v222
      %v224 = vextract.high.u32 %v222
      %v225 = vshrl.u32 %v224, 4
      %v226 = vmul.u32 %v225, 18
      %v227 = vsub.s32 %v221, %v226
      %v228 = vsub.s32 0, %v227
      %v229 = vsel %vm219, %v228, %v227
      %vm230 = vcmp.lt.s32.totalorder %v174, 0
      %v231 = vsub.s32 0, %v174
      %v232 = vsel %vm230, %v231, %v174
      %v233 = vmul.u32.u64.compose %v232, 3817748708
      %v234 = vextract.low.u32 %v233
      %v235 = vextract.high.u32 %v233
      %v236 = vshrl.u32 %v235, 4
      %v237 = vmul.u32 %v236, 18
      %v238 = vsub.s32 %v232, %v237
      %v239 = vsub.s32 0, %v238
      %v240 = vsel %vm230, %v239, %v238
      %vm241 = vcmp.lt.s32.totalorder %v175, 0
      %v242 = vsub.s32 0, %v175
      %v243 = vsel %vm241, %v242, %v175
      %v244 = vmul.u32.u64.compose %v243, 3817748708
      %v245 = vextract.low.u32 %v244
      %v246 = vextract.high.u32 %v244
      %v247 = vshrl.u32 %v246, 4
      %v248 = vmul.u32 %v247, 18
      %v249 = vsub.s32 %v243, %v248
      %v250 = vsub.s32 0, %v249
      %v251 = vsel %vm241, %v250, %v249
      %vm252 = vcmp.lt.s32.totalorder %v176, 0
      %v253 = vsub.s32 0, %v176
      %v254 = vsel %vm252, %v253, %v176
      %v255 = vmul.u32.u64.compose %v254, 3817748708
      %v256 = vextract.low.u32 %v255
      %v257 = vextract.high.u32 %v255
      %v258 = vshrl.u32 %v257, 4
      %v259 = vmul.u32 %v258, 18
      %v260 = vsub.s32 %v254, %v259
      %v261 = vsub.s32 0, %v260
      %v262 = vsel %vm252, %v261, %v260
      %vm263 = vcmp.lt.s32.totalorder %v177, 0
      %v264 = vsub.s32 0, %v177
      %v265 = vsel %vm263, %v264, %v177
      %v266 = vmul.u32.u64.compose %v265, 3817748708
      %v267 = vextract.low.u32 %v266
      %v268 = vextract.high.u32 %v266
      %v269 = vshrl.u32 %v268, 4
      %v270 = vmul.u32 %v269, 18
      %v271 = vsub.s32 %v265, %v270
      %v272 = vsub.s32 0, %v271
      %v273 = vsel %vm263, %v272, %v271
      %vm274 = vcmp.lt.s32.totalorder %v178, 0
      %v275 = vsub.s32 0, %v178
      %v276 = vsel %vm274, %v275, %v178
      %v277 = vmul.u32.u64.compose %v276, 3817748708
      %v278 = vextract.low.u32 %v277
      %v279 = vextract.high.u32 %v277
      %v280 = vshrl.u32 %v279, 4
      %v281 = vmul.u32 %v280, 18
      %v282 = vsub.s32 %v276, %v281
      %v283 = vsub.s32 0, %v282
      %v284 = vsel %vm274, %v283, %v282
      %vm285 = vcmp.lt.s32.totalorder %v179, 0
      %v286 = vsub.s32 0, %v179
      %v287 = vsel %vm285, %v286, %v179
      %v288 = vmul.u32.u64.compose %v287, 3817748708
      %v289 = vextract.low.u32 %v288
      %v290 = vextract.high.u32 %v288
      %v291 = vshrl.u32 %v290, 4
      %v292 = vmul.u32 %v291, 18
      %v293 = vsub.s32 %v287, %v292
      %v294 = vsub.s32 0, %v293
      %v295 = vsel %vm285, %v294, %v293
      %vm296 = vcmp.lt.s32.totalorder %v180, 0
      %v297 = vsub.s32 0, %v180
      %v298 = vsel %vm296, %v297, %v180
      %v299 = vmul.u32.u64.compose %v298, 3817748708
      %v300 = vextract.low.u32 %v299
      %v301 = vextract.high.u32 %v299
      %v302 = vshrl.u32 %v301, 4
      %v303 = vmul.u32 %v302, 18
      %v304 = vsub.s32 %v298, %v303
      %v305 = vsub.s32 0, %v304
      %v306 = vsel %vm296, %v305, %v304
      %vm307 = vcmp.lt.s32.totalorder %v181, 0
      %v308 = vsub.s32 0, %v181
      %v309 = vsel %vm307, %v308, %v181
      %v310 = vmul.u32.u64.compose %v309, 3817748708
      %v311 = vextract.low.u32 %v310
      %v312 = vextract.high.u32 %v310
      %v313 = vshrl.u32 %v312, 4
      %v314 = vmul.u32 %v313, 18
      %v315 = vsub.s32 %v309, %v314
      %v316 = vsub.s32 0, %v315
      %v317 = vsel %vm307, %v316, %v315
      %vm318 = vcmp.lt.s32.totalorder %v182, 0
      %v319 = vsub.s32 0, %v182
      %v320 = vsel %vm318, %v319, %v182
      %v321 = vmul.u32.u64.compose %v320, 3817748708
      %v322 = vextract.low.u32 %v321
      %v323 = vextract.high.u32 %v321
      %v324 = vshrl.u32 %v323, 4
      %v325 = vmul.u32 %v324, 18
      %v326 = vsub.s32 %v320, %v325
      %v327 = vsub.s32 0, %v326
      %v328 = vsel %vm318, %v327, %v326
      %vm329 = vcmp.lt.s32.totalorder %v183, 0
      %v330 = vsub.s32 0, %v183
      %v331 = vsel %vm329, %v330, %v183
      %v332 = vmul.u32.u64.compose %v331, 3817748708
      %v333 = vextract.low.u32 %v332
      %v334 = vextract.high.u32 %v332
      %v335 = vshrl.u32 %v334, 4
      %v336 = vmul.u32 %v335, 18
      %v337 = vsub.s32 %v331, %v336
      %v338 = vsub.s32 0, %v337
      %v339 = vsel %vm329, %v338, %v337
      %vm340 = vcmp.lt.s32.totalorder %v184, 0
      %v341 = vsub.s32 0, %v184
      %v342 = vsel %vm340, %v341, %v184
      %v343 = vmul.u32.u64.compose %v342, 3817748708
      %v344 = vextract.low.u32 %v343
      %v345 = vextract.high.u32 %v343
      %v346 = vshrl.u32 %v345, 4
      %v347 = vmul.u32 %v346, 18
      %v348 = vsub.s32 %v342, %v347
      %v349 = vsub.s32 0, %v348
      %v350 = vsel %vm340, %v349, %v348
      %vm351 = vcmp.lt.s32.totalorder %v185, 0
      %v352 = vsub.s32 0, %v185
      %v353 = vsel %vm351, %v352, %v185
      %v354 = vmul.u32.u64.compose %v353, 3817748708
      %v355 = vextract.low.u32 %v354
      %v356 = vextract.high.u32 %v354
      %v357 = vshrl.u32 %v356, 4
      %v358 = vmul.u32 %v357, 18
      %v359 = vsub.s32 %v353, %v358
      %v360 = vsub.s32 0, %v359
      %v361 = vsel %vm351, %v360, %v359
      %vm362 = vcmp.lt.s32.totalorder %v186, 0
      %v363 = vsub.s32 0, %v186
      %v364 = vsel %vm362, %v363, %v186
      %v365 = vmul.u32.u64.compose %v364, 3817748708
      %v366 = vextract.low.u32 %v365
      %v367 = vextract.high.u32 %v365
      %v368 = vshrl.u32 %v367, 4
      %v369 = vmul.u32 %v368, 18
      %v370 = vsub.s32 %v364, %v369
      %v371 = vsub.s32 0, %v370
      %v372 = vsel %vm362, %v371, %v370
      %vm373 = vcmp.lt.s32.totalorder %v187, 0
      %v374 = vsub.s32 0, %v187
      %v375 = vsel %vm373, %v374, %v187
      %v376 = vmul.u32.u64.compose %v375, 3817748708
      %v377 = vextract.low.u32 %v376
      %v378 = vextract.high.u32 %v376
      %v379 = vshrl.u32 %v378, 4
      %v380 = vmul.u32 %v379, 18
      %v381 = vsub.s32 %v375, %v380
      %v382 = vsub.s32 0, %v381
      %v383 = vsel %vm373, %v382, %v381
      %vm384 = vcmp.lt.s32.totalorder %v188, 0
      %v385 = vsub.s32 0, %v188
      %v386 = vsel %vm384, %v385, %v188
      %v387 = vmul.u32.u64.compose %v386, 3817748708
      %v388 = vextract.low.u32 %v387
      %v389 = vextract.high.u32 %v387
      %v390 = vshrl.u32 %v389, 4
      %v391 = vmul.u32 %v390, 18
      %v392 = vsub.s32 %v386, %v391
      %v393 = vsub.s32 0, %v392
      %v394 = vsel %vm384, %v393, %v392
      %vm395 = vcmp.lt.s32.totalorder %v189, 0
      %v396 = vsub.s32 0, %v189
      %v397 = vsel %vm395, %v396, %v189
      %v398 = vmul.u32.u64.compose %v397, 3817748708
      %v399 = vextract.low.u32 %v398
      %v400 = vextract.high.u32 %v398
      %v401 = vshrl.u32 %v400, 4
      %v402 = vmul.u32 %v401, 18
      %v403 = vsub.s32 %v397, %v402
      %v404 = vsub.s32 0, %v403
      %v405 = vsel %vm395, %v404, %v403
      %vm406 = vcmp.lt.s32.totalorder %v190, 0
      %v407 = vsub.s32 0, %v190
      %v408 = vsel %vm406, %v407, %v190
      %v409 = vmul.u32.u64.compose %v408, 3817748708
      %v410 = vextract.low.u32 %v409
      %v411 = vextract.high.u32 %v409
      %v412 = vshrl.u32 %v411, 4
      %v413 = vmul.u32 %v412, 18
      %v414 = vsub.s32 %v408, %v413
      %v415 = vsub.s32 0, %v414
      %v416 = vsel %vm406, %v415, %v414
      %vm417 = vcmp.lt.s32.totalorder %v191, 0
      %v418 = vsub.s32 0, %v191
      %v419 = vsel %vm417, %v418, %v191
      %v420 = vmul.u32.u64.compose %v419, 3817748708
      %v421 = vextract.low.u32 %v420
      %v422 = vextract.high.u32 %v420
      %v423 = vshrl.u32 %v422, 4
      %v424 = vmul.u32 %v423, 18
      %v425 = vsub.s32 %v419, %v424
      %v426 = vsub.s32 0, %v425
      %v427 = vsel %vm417, %v426, %v425
      %vm428 = vcmp.lt.s32.totalorder %v192, 0
      %v429 = vsub.s32 0, %v192
      %v430 = vsel %vm428, %v429, %v192
      %v431 = vmul.u32.u64.compose %v430, 3817748708
      %v432 = vextract.low.u32 %v431
      %v433 = vextract.high.u32 %v431
      %v434 = vshrl.u32 %v433, 4
      %v435 = vmul.u32 %v434, 18
      %v436 = vsub.s32 %v430, %v435
      %v437 = vsub.s32 0, %v436
      %v438 = vsel %vm428, %v437, %v436
      %vm439 = vcmp.lt.s32.totalorder %v193, 0
      %v440 = vsub.s32 0, %v193
      %v441 = vsel %vm439, %v440, %v193
      %v442 = vmul.u32.u64.compose %v441, 3817748708
      %v443 = vextract.low.u32 %v442
      %v444 = vextract.high.u32 %v442
      %v445 = vshrl.u32 %v444, 4
      %v446 = vmul.u32 %v445, 18
      %v447 = vsub.s32 %v441, %v446
      %v448 = vsub.s32 0, %v447
      %v449 = vsel %vm439, %v448, %v447
      %vm450 = vcmp.lt.s32.totalorder %v194, 0
      %v451 = vsub.s32 0, %v194
      %v452 = vsel %vm450, %v451, %v194
      %v453 = vmul.u32.u64.compose %v452, 3817748708
      %v454 = vextract.low.u32 %v453
      %v455 = vextract.high.u32 %v453
      %v456 = vshrl.u32 %v455, 4
      %v457 = vmul.u32 %v456, 18
      %v458 = vsub.s32 %v452, %v457
      %v459 = vsub.s32 0, %v458
      %v460 = vsel %vm450, %v459, %v458
      %vm461 = vcmp.lt.s32.totalorder %v195, 0
      %v462 = vsub.s32 0, %v195
      %v463 = vsel %vm461, %v462, %v195
      %v464 = vmul.u32.u64.compose %v463, 3817748708
      %v465 = vextract.low.u32 %v464
      %v466 = vextract.high.u32 %v464
      %v467 = vshrl.u32 %v466, 4
      %v468 = vmul.u32 %v467, 18
      %v469 = vsub.s32 %v463, %v468
      %v470 = vsub.s32 0, %v469
      %v471 = vsel %vm461, %v470, %v469
      %vm472 = vcmp.lt.s32.totalorder %v196, 0
      %v473 = vsub.s32 0, %v196
      %v474 = vsel %vm472, %v473, %v196
      %v475 = vmul.u32.u64.compose %v474, 3817748708
      %v476 = vextract.low.u32 %v475
      %v477 = vextract.high.u32 %v475
      %v478 = vshrl.u32 %v477, 4
      %v479 = vmul.u32 %v478, 18
      %v480 = vsub.s32 %v474, %v479
      %v481 = vsub.s32 0, %v480
      %v482 = vsel %vm472, %v481, %v480
      %vm483 = vcmp.lt.s32.totalorder %v197, 0
      %v484 = vsub.s32 0, %v197
      %v485 = vsel %vm483, %v484, %v197
      %v486 = vmul.u32.u64.compose %v485, 3817748708
      %v487 = vextract.low.u32 %v486
      %v488 = vextract.high.u32 %v486
      %v489 = vshrl.u32 %v488, 4
      %v490 = vmul.u32 %v489, 18
      %v491 = vsub.s32 %v485, %v490
      %v492 = vsub.s32 0, %v491
      %v493 = vsel %vm483, %v492, %v491
      %vm494 = vcmp.lt.s32.totalorder %v198, 0
      %v495 = vsub.s32 0, %v198
      %v496 = vsel %vm494, %v495, %v198
      %v497 = vmul.u32.u64.compose %v496, 3817748708
      %v498 = vextract.low.u32 %v497
      %v499 = vextract.high.u32 %v497
      %v500 = vshrl.u32 %v499, 4
      %v501 = vmul.u32 %v500, 18
      %v502 = vsub.s32 %v496, %v501
      %v503 = vsub.s32 0, %v502
      %v504 = vsel %vm494, %v503, %v502
      %vm505 = vcmp.lt.s32.totalorder %v199, 0
      %v506 = vsub.s32 0, %v199
      %v507 = vsel %vm505, %v506, %v199
      %v508 = vmul.u32.u64.compose %v507, 3817748708
      %v509 = vextract.low.u32 %v508
      %v510 = vextract.high.u32 %v508
      %v511 = vshrl.u32 %v510, 4
      %v512 = vmul.u32 %v511, 18
      %v513 = vsub.s32 %v507, %v512
      %v514 = vsub.s32 0, %v513
      %v515 = vsel %vm505, %v514, %v513
      %vm516 = vcmp.lt.s32.totalorder %v200, 0
      %v517 = vsub.s32 0, %v200
      %v518 = vsel %vm516, %v517, %v200
      %v519 = vmul.u32.u64.compose %v518, 3817748708
      %v520 = vextract.low.u32 %v519
      %v521 = vextract.high.u32 %v519
      %v522 = vshrl.u32 %v521, 4
      %v523 = vmul.u32 %v522, 18
      %v524 = vsub.s32 %v518, %v523
      %v525 = vsub.s32 0, %v524
      %v526 = vsel %vm516, %v525, %v524
      %vm527 = vcmp.lt.s32.totalorder %v201, 0
      %v528 = vsub.s32 0, %v201
      %v529 = vsel %vm527, %v528, %v201
      %v530 = vmul.u32.u64.compose %v529, 3817748708
      %v531 = vextract.low.u32 %v530
      %v532 = vextract.high.u32 %v530
      %v533 = vshrl.u32 %v532, 4
      %v534 = vmul.u32 %v533, 18
      %v535 = vsub.s32 %v529, %v534
      %v536 = vsub.s32 0, %v535
      %v537 = vsel %vm527, %v536, %v535
      %vm538 = vcmp.lt.s32.totalorder %v202, 0
      %v539 = vsub.s32 0, %v202
      %v540 = vsel %vm538, %v539, %v202
      %v541 = vmul.u32.u64.compose %v540, 3817748708
      %v542 = vextract.low.u32 %v541
      %v543 = vextract.high.u32 %v541
      %v544 = vshrl.u32 %v543, 4
      %v545 = vmul.u32 %v544, 18
      %v546 = vsub.s32 %v540, %v545
      %v547 = vsub.s32 0, %v546
      %v548 = vsel %vm538, %v547, %v546
      %vm549 = vcmp.lt.s32.totalorder %v203, 0
      %v550 = vsub.s32 0, %v203
      %v551 = vsel %vm549, %v550, %v203
      %v552 = vmul.u32.u64.compose %v551, 3817748708
      %v553 = vextract.low.u32 %v552
      %v554 = vextract.high.u32 %v552
      %v555 = vshrl.u32 %v554, 4
      %v556 = vmul.u32 %v555, 18
      %v557 = vsub.s32 %v551, %v556
      %v558 = vsub.s32 0, %v557
      %v559 = vsel %vm549, %v558, %v557
      %vm560 = vcmp.lt.s32.totalorder %v204, 0
      %v561 = vsub.s32 0, %v204
      %v562 = vsel %vm560, %v561, %v204
      %v563 = vmul.u32.u64.compose %v562, 3817748708
      %v564 = vextract.low.u32 %v563
      %v565 = vextract.high.u32 %v563
      %v566 = vshrl.u32 %v565, 4
      %v567 = vmul.u32 %v566, 18
      %v568 = vsub.s32 %v562, %v567
      %v569 = vsub.s32 0, %v568
      %v570 = vsel %vm560, %v569, %v568
      %vm571 = vcmp.lt.s32.totalorder %v205, 0
      %v572 = vsub.s32 0, %v205
      %v573 = vsel %vm571, %v572, %v205
      %v574 = vmul.u32.u64.compose %v573, 3817748708
      %v575 = vextract.low.u32 %v574
      %v576 = vextract.high.u32 %v574
      %v577 = vshrl.u32 %v576, 4
      %v578 = vmul.u32 %v577, 18
      %v579 = vsub.s32 %v573, %v578
      %v580 = vsub.s32 0, %v579
      %v581 = vsel %vm571, %v580, %v579
      %vm582 = vcmp.lt.s32.totalorder %v206, 0
      %v583 = vsub.s32 0, %v206
      %v584 = vsel %vm582, %v583, %v206
      %v585 = vmul.u32.u64.compose %v584, 3817748708
      %v586 = vextract.low.u32 %v585
      %v587 = vextract.high.u32 %v585
      %v588 = vshrl.u32 %v587, 4
      %v589 = vmul.u32 %v588, 18
      %v590 = vsub.s32 %v584, %v589
      %v591 = vsub.s32 0, %v590
      %v592 = vsel %vm582, %v591, %v590
      %vm593 = vcmp.lt.s32.totalorder %v207, 0
      %v594 = vsub.s32 0, %v207
      %v595 = vsel %vm593, %v594, %v207
      %v596 = vmul.u32.u64.compose %v595, 3817748708
      %v597 = vextract.low.u32 %v596
      %v598 = vextract.high.u32 %v596
      %v599 = vshrl.u32 %v598, 4
      %v600 = vmul.u32 %v599, 18
      %v601 = vsub.s32 %v595, %v600
      %v602 = vsub.s32 0, %v601
      %v603 = vsel %vm593, %v602, %v601
      %vm604 = vcmp.ne.s32.totalorder %v218, 0
      %vm605 = vcmp.ne.s32.totalorder %v229, 0
      %vm606 = vcmp.ne.s32.totalorder %v240, 0
      %vm607 = vcmp.ne.s32.totalorder %v251, 0
      %vm608 = vcmp.ne.s32.totalorder %v262, 0
      %vm609 = vcmp.ne.s32.totalorder %v273, 0
      %vm610 = vcmp.ne.s32.totalorder %v284, 0
      %vm611 = vcmp.ne.s32.totalorder %v295, 0
      %vm612 = vcmp.ne.s32.totalorder %v306, 0
      %vm613 = vcmp.ne.s32.totalorder %v317, 0
      %vm614 = vcmp.ne.s32.totalorder %v328, 0
      %vm615 = vcmp.ne.s32.totalorder %v339, 0
      %vm616 = vcmp.ne.s32.totalorder %v350, 0
      %vm617 = vcmp.ne.s32.totalorder %v361, 0
      %vm618 = vcmp.ne.s32.totalorder %v372, 0
      %vm619 = vcmp.ne.s32.totalorder %v383, 0
      %vm620 = vcmp.ne.s32.totalorder %v394, 0
      %vm621 = vcmp.ne.s32.totalorder %v405, 0
      %vm622 = vcmp.ne.s32.totalorder %v416, 0
      %vm623 = vcmp.ne.s32.totalorder %v427, 0
      %vm624 = vcmp.ne.s32.totalorder %v438, 0
      %vm625 = vcmp.ne.s32.totalorder %v449, 0
      %vm626 = vcmp.ne.s32.totalorder %v460, 0
      %vm627 = vcmp.ne.s32.totalorder %v471, 0
      %vm628 = vcmp.ne.s32.totalorder %v482, 0
      %vm629 = vcmp.ne.s32.totalorder %v493, 0
      %vm630 = vcmp.ne.s32.totalorder %v504, 0
      %vm631 = vcmp.ne.s32.totalorder %v515, 0
      %vm632 = vcmp.ne.s32.totalorder %v526, 0
      %vm633 = vcmp.ne.s32.totalorder %v537, 0
      %vm634 = vcmp.ne.s32.totalorder %v548, 0
      %vm635 = vcmp.ne.s32.totalorder %v559, 0
      %vm636 = vcmp.ne.s32.totalorder %v570, 0
      %vm637 = vcmp.ne.s32.totalorder %v581, 0
      %vm638 = vcmp.ne.s32.totalorder %v592, 0
      %vm639 = vcmp.ne.s32.totalorder %v603, 0
      %vm640 = vcmp.lt.s32.totalorder %v218, 0
      %vm641 = vcmp.lt.s32.totalorder %v229, 0
      %vm642 = vcmp.lt.s32.totalorder %v240, 0
      %vm643 = vcmp.lt.s32.totalorder %v251, 0
      %vm644 = vcmp.lt.s32.totalorder %v262, 0
      %vm645 = vcmp.lt.s32.totalorder %v273, 0
      %vm646 = vcmp.lt.s32.totalorder %v284, 0
      %vm647 = vcmp.lt.s32.totalorder %v295, 0
      %vm648 = vcmp.lt.s32.totalorder %v306, 0
      %vm649 = vcmp.lt.s32.totalorder %v317, 0
      %vm650 = vcmp.lt.s32.totalorder %v328, 0
      %vm651 = vcmp.lt.s32.totalorder %v339, 0
      %vm652 = vcmp.lt.s32.totalorder %v350, 0
      %vm653 = vcmp.lt.s32.totalorder %v361, 0
      %vm654 = vcmp.lt.s32.totalorder %v372, 0
      %vm655 = vcmp.lt.s32.totalorder %v383, 0
      %vm656 = vcmp.lt.s32.totalorder %v394, 0
      %vm657 = vcmp.lt.s32.totalorder %v405, 0
      %vm658 = vcmp.lt.s32.totalorder %v416, 0
      %vm659 = vcmp.lt.s32.totalorder %v427, 0
      %vm660 = vcmp.lt.s32.totalorder %v438, 0
      %vm661 = vcmp.lt.s32.totalorder %v449, 0
      %vm662 = vcmp.lt.s32.totalorder %v460, 0
      %vm663 = vcmp.lt.s32.totalorder %v471, 0
      %vm664 = vcmp.lt.s32.totalorder %v482, 0
      %vm665 = vcmp.lt.s32.totalorder %v493, 0
      %vm666 = vcmp.lt.s32.totalorder %v504, 0
      %vm667 = vcmp.lt.s32.totalorder %v515, 0
      %vm668 = vcmp.lt.s32.totalorder %v526, 0
      %vm669 = vcmp.lt.s32.totalorder %v537, 0
      %vm670 = vcmp.lt.s32.totalorder %v548, 0
      %vm671 = vcmp.lt.s32.totalorder %v559, 0
      %vm672 = vcmp.lt.s32.totalorder %v570, 0
      %vm673 = vcmp.lt.s32.totalorder %v581, 0
      %vm674 = vcmp.lt.s32.totalorder %v592, 0
      %vm675 = vcmp.lt.s32.totalorder %v603, 0
      %vm676 = vmand %vm640, %vm604
      %vm677 = vmand %vm641, %vm605
      %vm678 = vmand %vm642, %vm606
      %vm679 = vmand %vm643, %vm607
      %vm680 = vmand %vm644, %vm608
      %vm681 = vmand %vm645, %vm609
      %vm682 = vmand %vm646, %vm610
      %vm683 = vmand %vm647, %vm611
      %vm684 = vmand %vm648, %vm612
      %vm685 = vmand %vm649, %vm613
      %vm686 = vmand %vm650, %vm614
      %vm687 = vmand %vm651, %vm615
      %vm688 = vmand %vm652, %vm616
      %vm689 = vmand %vm653, %vm617
      %vm690 = vmand %vm654, %vm618
      %vm691 = vmand %vm655, %vm619
      %vm692 = vmand %vm656, %vm620
      %vm693 = vmand %vm657, %vm621
      %vm694 = vmand %vm658, %vm622
      %vm695 = vmand %vm659, %vm623
      %vm696 = vmand %vm660, %vm624
      %vm697 = vmand %vm661, %vm625
      %vm698 = vmand %vm662, %vm626
      %vm699 = vmand %vm663, %vm627
      %vm700 = vmand %vm664, %vm628
      %vm701 = vmand %vm665, %vm629
      %vm702 = vmand %vm666, %vm630
      %vm703 = vmand %vm667, %vm631
      %vm704 = vmand %vm668, %vm632
      %vm705 = vmand %vm669, %vm633
      %vm706 = vmand %vm670, %vm634
      %vm707 = vmand %vm671, %vm635
      %vm708 = vmand %vm672, %vm636
      %vm709 = vmand %vm673, %vm637
      %vm710 = vmand %vm674, %vm638
      %vm711 = vmand %vm675, %vm639
      %v712 = vadd.s32 %v218, 18
      %v713 = vadd.s32 %v229, 18
      %v714 = vadd.s32 %v240, 18
      %v715 = vadd.s32 %v251, 18
      %v716 = vadd.s32 %v262, 18
      %v717 = vadd.s32 %v273, 18
      %v718 = vadd.s32 %v284, 18
      %v719 = vadd.s32 %v295, 18
      %v720 = vadd.s32 %v306, 18
      %v721 = vadd.s32 %v317, 18
      %v722 = vadd.s32 %v328, 18
      %v723 = vadd.s32 %v339, 18
      %v724 = vadd.s32 %v350, 18
      %v725 = vadd.s32 %v361, 18
      %v726 = vadd.s32 %v372, 18
      %v727 = vadd.s32 %v383, 18
      %v728 = vadd.s32 %v394, 18
      %v729 = vadd.s32 %v405, 18
      %v730 = vadd.s32 %v416, 18
      %v731 = vadd.s32 %v427, 18
      %v732 = vadd.s32 %v438, 18
      %v733 = vadd.s32 %v449, 18
      %v734 = vadd.s32 %v460, 18
      %v735 = vadd.s32 %v471, 18
      %v736 = vadd.s32 %v482, 18
      %v737 = vadd.s32 %v493, 18
      %v738 = vadd.s32 %v504, 18
      %v739 = vadd.s32 %v515, 18
      %v740 = vadd.s32 %v526, 18
      %v741 = vadd.s32 %v537, 18
      %v742 = vadd.s32 %v548, 18
      %v743 = vadd.s32 %v559, 18
      %v744 = vadd.s32 %v570, 18
      %v745 = vadd.s32 %v581, 18
      %v746 = vadd.s32 %v592, 18
      %v747 = vadd.s32 %v603, 18
      %v748 = vsel %vm676, %v712, %v218
      %v749 = vsel %vm677, %v713, %v229
      %v750 = vsel %vm678, %v714, %v240
      %v751 = vsel %vm679, %v715, %v251
      %v752 = vsel %vm680, %v716, %v262
      %v753 = vsel %vm681, %v717, %v273
      %v754 = vsel %vm682, %v718, %v284
      %v755 = vsel %vm683, %v719, %v295
      %v756 = vsel %vm684, %v720, %v306
      %v757 = vsel %vm685, %v721, %v317
      %v758 = vsel %vm686, %v722, %v328
      %v759 = vsel %vm687, %v723, %v339
      %v760 = vsel %vm688, %v724, %v350
      %v761 = vsel %vm689, %v725, %v361
      %v762 = vsel %vm690, %v726, %v372
      %v763 = vsel %vm691, %v727, %v383
      %v764 = vsel %vm692, %v728, %v394
      %v765 = vsel %vm693, %v729, %v405
      %v766 = vsel %vm694, %v730, %v416
      %v767 = vsel %vm695, %v731, %v427
      %v768 = vsel %vm696, %v732, %v438
      %v769 = vsel %vm697, %v733, %v449
      %v770 = vsel %vm698, %v734, %v460
      %v771 = vsel %vm699, %v735, %v471
      %v772 = vsel %vm700, %v736, %v482
      %v773 = vsel %vm701, %v737, %v493
      %v774 = vsel %vm702, %v738, %v504
      %v775 = vsel %vm703, %v739, %v515
      %v776 = vsel %vm704, %v740, %v526
      %v777 = vsel %vm705, %v741, %v537
      %v778 = vsel %vm706, %v742, %v548
      %v779 = vsel %vm707, %v743, %v559
      %v780 = vsel %vm708, %v744, %v570
      %v781 = vsel %vm709, %v745, %v581
      %v782 = vsel %vm710, %v746, %v592
      %v783 = vsel %vm711, %v747, %v603
      %vm784 = vcmp.lt.s32.totalorder %v748, 16
      %vm785 = vcmp.lt.s32.totalorder %v749, 16
      %vm786 = vcmp.lt.s32.totalorder %v750, 16
      %vm787 = vcmp.lt.s32.totalorder %v751, 16
      %vm788 = vcmp.lt.s32.totalorder %v752, 16
      %vm789 = vcmp.lt.s32.totalorder %v753, 16
      %vm790 = vcmp.lt.s32.totalorder %v754, 16
      %vm791 = vcmp.lt.s32.totalorder %v755, 16
      %vm792 = vcmp.lt.s32.totalorder %v756, 16
      %vm793 = vcmp.lt.s32.totalorder %v757, 16
      %vm794 = vcmp.lt.s32.totalorder %v758, 16
      %vm795 = vcmp.lt.s32.totalorder %v759, 16
      %vm796 = vcmp.lt.s32.totalorder %v760, 16
      %vm797 = vcmp.lt.s32.totalorder %v761, 16
      %vm798 = vcmp.lt.s32.totalorder %v762, 16
      %vm799 = vcmp.lt.s32.totalorder %v763, 16
      %vm800 = vcmp.lt.s32.totalorder %v764, 16
      %vm801 = vcmp.lt.s32.totalorder %v765, 16
      %vm802 = vcmp.lt.s32.totalorder %v766, 16
      %vm803 = vcmp.lt.s32.totalorder %v767, 16
      %vm804 = vcmp.lt.s32.totalorder %v768, 16
      %vm805 = vcmp.lt.s32.totalorder %v769, 16
      %vm806 = vcmp.lt.s32.totalorder %v770, 16
      %vm807 = vcmp.lt.s32.totalorder %v771, 16
      %vm808 = vcmp.lt.s32.totalorder %v772, 16
      %vm809 = vcmp.lt.s32.totalorder %v773, 16
      %vm810 = vcmp.lt.s32.totalorder %v774, 16
      %vm811 = vcmp.lt.s32.totalorder %v775, 16
      %vm812 = vcmp.lt.s32.totalorder %v776, 16
      %vm813 = vcmp.lt.s32.totalorder %v777, 16
      %vm814 = vcmp.lt.s32.totalorder %v778, 16
      %vm815 = vcmp.lt.s32.totalorder %v779, 16
      %vm816 = vcmp.lt.s32.totalorder %v780, 16
      %vm817 = vcmp.lt.s32.totalorder %v781, 16
      %vm818 = vcmp.lt.s32.totalorder %v782, 16
      %vm819 = vcmp.lt.s32.totalorder %v783, 16
      %v820 = vld [vmem:[%s165] sm:$0xff]
      %v821 = vld [vmem:[%s165 + $0x8] sm:$0xff]
      %v822 = vld [vmem:[%s165 + $0x10] sm:$0xff]
      %v823 = vld [vmem:[%s165 + $0x18] sm:$0xff]
      %v824 = vld [vmem:[%s165 + $0x20] sm:$0xff]
      %v825 = vld [vmem:[%s165 + $0x28] sm:$0xff]
      %v826 = vld [vmem:[%s165 + $0x30] sm:$0xff]
      %v827 = vld [vmem:[%s165 + $0x38] sm:$0xff]
      %v828 = vld [vmem:[%s165 + $0x40] sm:$0xff]
      %v829 = vld [vmem:[%s165 + $0x48] sm:$0xff]
      %v830 = vld [vmem:[%s165 + $0x50] sm:$0xff]
      %v831 = vld [vmem:[%s165 + $0x58] sm:$0xff]
      %v832 = vld [vmem:[%s165 + $0x60] sm:$0xff]
      %v833 = vld [vmem:[%s165 + $0x68] sm:$0xff]
      %v834 = vld [vmem:[%s165 + $0x70] sm:$0xff]
      %v835 = vld [vmem:[%s165 + $0x78] sm:$0xff]
      %v836 = vld [vmem:[%s165 + $0x80] sm:$0xff]
      %v837 = vld [vmem:[%s165 + $0x88] sm:$0xff]
      %v838 = vld [vmem:[%s165 + $0x90] sm:$0xff]
      %v839 = vld [vmem:[%s165 + $0x98] sm:$0xff]
      %v840 = vld [vmem:[%s165 + $0xa0] sm:$0xff]
      %v841 = vld [vmem:[%s165 + $0xa8] sm:$0xff]
      %v842 = vld [vmem:[%s165 + $0xb0] sm:$0xff]
      %v843 = vld [vmem:[%s165 + $0xb8] sm:$0xff]
      %v844 = vld [vmem:[%s165 + $0xc0] sm:$0xff]
      %v845 = vld [vmem:[%s165 + $0xc8] sm:$0xff]
      %v846 = vld [vmem:[%s165 + $0xd0] sm:$0xff]
      %v847 = vld [vmem:[%s165 + $0xd8] sm:$0xff]
      %v848 = vld [vmem:[%s165 + $0xe0] sm:$0xff]
      %v849 = vld [vmem:[%s165 + $0xe8] sm:$0xff]
      %v850 = vld [vmem:[%s165 + $0xf0] sm:$0xff]
      %v851 = vld [vmem:[%s165 + $0xf8] sm:$0xff]
      %v852 = vld [vmem:[%s165 + $0x100] sm:$0xff]
      %v853 = vld [vmem:[%s165 + $0x108] sm:$0xff]
      %v854 = vld [vmem:[%s165 + $0x110] sm:$0xff]
      %v855 = vld [vmem:[%s165 + $0x118] sm:$0xff]
      %v856 = vld [vmem:[%s1] sm:$0xf]
      %v857 = vld [vmem:[%s165 + $0x1] sm:$0xff]
      %v858 = vld [vmem:[%s165 + $0x9] sm:$0xff]
      %v859 = vld [vmem:[%s165 + $0x11] sm:$0xff]
      %v860 = vld [vmem:[%s165 + $0x19] sm:$0xff]
      %v861 = vld [vmem:[%s165 + $0x21] sm:$0xff]
      %v862 = vld [vmem:[%s165 + $0x29] sm:$0xff]
      %v863 = vld [vmem:[%s165 + $0x31] sm:$0xff]
      %v864 = vld [vmem:[%s165 + $0x39] sm:$0xff]
      %v865 = vld [vmem:[%s165 + $0x41] sm:$0xff]
      %v866 = vld [vmem:[%s165 + $0x49] sm:$0xff]
      %v867 = vld [vmem:[%s165 + $0x51] sm:$0xff]
      %v868 = vld [vmem:[%s165 + $0x59] sm:$0xff]
      %v869 = vld [vmem:[%s165 + $0x61] sm:$0xff]
      %v870 = vld [vmem:[%s165 + $0x69] sm:$0xff]
      %v871 = vld [vmem:[%s165 + $0x71] sm:$0xff]
      %v872 = vld [vmem:[%s165 + $0x79] sm:$0xff]
      %v873 = vld [vmem:[%s165 + $0x81] sm:$0xff]
      %v874 = vld [vmem:[%s165 + $0x89] sm:$0xff]
      %v875 = vld [vmem:[%s165 + $0x91] sm:$0xff]
      %v876 = vld [vmem:[%s165 + $0x99] sm:$0xff]
      %v877 = vld [vmem:[%s165 + $0xa1] sm:$0xff]
      %v878 = vld [vmem:[%s165 + $0xa9] sm:$0xff]
      %v879 = vld [vmem:[%s165 + $0xb1] sm:$0xff]
      %v880 = vld [vmem:[%s165 + $0xb9] sm:$0xff]
      %v881 = vld [vmem:[%s165 + $0xc1] sm:$0xff]
      %v882 = vld [vmem:[%s165 + $0xc9] sm:$0xff]
      %v883 = vld [vmem:[%s165 + $0xd1] sm:$0xff]
      %v884 = vld [vmem:[%s165 + $0xd9] sm:$0xff]
      %v885 = vld [vmem:[%s165 + $0xe1] sm:$0xff]
      %v886 = vld [vmem:[%s165 + $0xe9] sm:$0xff]
      %v887 = vld [vmem:[%s165 + $0xf1] sm:$0xff]
      %v888 = vld [vmem:[%s165 + $0xf9] sm:$0xff]
      %v889 = vld [vmem:[%s165 + $0x101] sm:$0xff]
      %v890 = vld [vmem:[%s165 + $0x109] sm:$0xff]
      %v891 = vld [vmem:[%s165 + $0x111] sm:$0xff]
      %v892 = vld [vmem:[%s165 + $0x119] sm:$0xff]
      %s893 = scalar_lea.vmem %s1, 4
      %v894 = vld [vmem:[%s893] sm:$0xf]
      %vm895 = vcmask 31744
      %v897 = vsel %vm895, %v857, 0
      %v900 = vsel %vm895, %v858, 0
      %v903 = vsel %vm895, %v859, 0
      %v906 = vsel %vm895, %v860, 0
      %v909 = vsel %vm895, %v861, 0
      %v912 = vsel %vm895, %v862, 0
      %v915 = vsel %vm895, %v863, 0
      %v918 = vsel %vm895, %v864, 0
      %v921 = vsel %vm895, %v865, 0
      %v924 = vsel %vm895, %v866, 0
      %v927 = vsel %vm895, %v867, 0
      %v930 = vsel %vm895, %v868, 0
      %v933 = vsel %vm895, %v869, 0
      %v936 = vsel %vm895, %v870, 0
      %v939 = vsel %vm895, %v871, 0
      %v942 = vsel %vm895, %v872, 0
      %v945 = vsel %vm895, %v873, 0
      %v948 = vsel %vm895, %v874, 0
      %v951 = vsel %vm895, %v875, 0
      %v954 = vsel %vm895, %v876, 0
      %v957 = vsel %vm895, %v877, 0
      %v960 = vsel %vm895, %v878, 0
      %v963 = vsel %vm895, %v879, 0
      %v966 = vsel %vm895, %v880, 0
      %v969 = vsel %vm895, %v881, 0
      %v972 = vsel %vm895, %v882, 0
      %v975 = vsel %vm895, %v883, 0
      %v978 = vsel %vm895, %v884, 0
      %v981 = vsel %vm895, %v885, 0
      %v984 = vsel %vm895, %v886, 0
      %v987 = vsel %vm895, %v887, 0
      %v990 = vsel %vm895, %v888, 0
      %v993 = vsel %vm895, %v889, 0
      %v996 = vsel %vm895, %v890, 0
      %v999 = vsel %vm895, %v891, 0
      %v1002 = vsel %vm895, %v892, 0
      %vm1004 = vcmask 1043456
      %v1006 = vsel %vm1004, %v894, 0
      %1008 = vmatprep.subr.mxu0 0.0
      %1009 = vmatpush1.msra.mxu0 0.0
      %1010 = vmatprep.subr.mxu0 0.0
      %1011 = vmatpush1.msra.mxu0 0.0
      %1012 = vmatprep.subr.mxu0 0.0
      %1013 = vmatpush1.msra.mxu0 0.0
      %1014 = vmatprep.subr.mxu0 0.0
      %1015 = vmatpush1.msra.mxu0 0.0
      %1016 = vmatprep.subr.mxu0 0.0
      %1017 = vmatpush1.msra.mxu0 0.0
      %1018 = vmatprep.subr.mxu0 0.0
      %1019 = vmatpush1.msra.mxu0 0.0
      %1020 = vmatprep.subr.mxu0 0.0
      %1021 = vmatpush1.msra.mxu0 0.0
      %1022 = vmatprep.subr.mxu0 0.0
      %1023 = vmatpush1.msra.mxu0 0.0
      %1024 = vmatprep.subr.mxu0 0.0
      %1025 = vmatpush1.msra.mxu0 0.0
      %1026 = vmatprep.subr.mxu0 0.0
      %1027 = vmatpush1.msra.mxu0 0.0
      %1028 = vmatprep.subr.mxu0 0.0
      %1029 = vmatpush1.msra.mxu0 0.0
      %1030 = vmatprep.subr.mxu0 0.0
      %1031 = vmatpush1.msra.mxu0 0.0
      %1032 = vmatprep.subr.mxu0 0.0
      %1033 = vmatpush1.msra.mxu0 0.0
      %1034 = vmatprep.subr.mxu0 0.0
      %1035 = vmatpush1.msra.mxu0 0.0
      %1036 = vmatprep.subr.mxu0 0.0
      %1037 = vmatpush1.msra.mxu0 0.0
      %1038 = vmatprep.subr.mxu0 0.0
      %1039 = vmatpush1.msra.mxu0 %v1006
      %1040 = vmatprep.subr.mxu0 0.0
      %1041 = vmatpush2.msra.mxu0 0.0
      %1042 = vmatprep.subr.mxu0 0.0
      %1043 = vmatpush2.msra.mxu0 0.0
      %1044 = vmatprep.subr.mxu0 0.0
      %1045 = vmatpush2.msra.mxu0 0.0
      %1046 = vmatprep.subr.mxu0 0.0
      %1047 = vmatpush2.msra.mxu0 0.0
      %1048 = vmatprep.subr.mxu0 0.0
      %1049 = vmatpush2.msra.mxu0 0.0
      %1050 = vmatprep.subr.mxu0 0.0
      %1051 = vmatpush2.msra.mxu0 0.0
      %1052 = vmatprep.subr.mxu0 0.0
      %1053 = vmatpush2.msra.mxu0 0.0
      %1054 = vmatprep.subr.mxu0 0.0
      %1055 = vmatpush2.msra.mxu0 0.0
      %1056 = vmatprep.subr.mxu0 0.0
      %1057 = vmatpush2.msra.mxu0 0.0
      %1058 = vmatprep.subr.mxu0 0.0
      %1059 = vmatpush2.msra.mxu0 0.0
      %1060 = vmatprep.subr.mxu0 0.0
      %1061 = vmatpush2.msra.mxu0 0.0
      %1062 = vmatprep.subr.mxu0 0.0
      %1063 = vmatpush2.msra.mxu0 0.0
      %1064 = vmatprep.subr.mxu0 0.0
      %1065 = vmatpush2.msra.mxu0 0.0
      %1066 = vmatprep.subr.mxu0 0.0
      %1067 = vmatpush2.msra.mxu0 0.0
      %1068 = vmatprep.subr.mxu0 0.0
      %1069 = vmatpush2.msra.mxu0 0.0
      %1070 = vmatprep.subr.mxu0 0.0
      %1071 = vmatpush2.msra.mxu0 0.0
      %1072 = vmatprep.mubr.f32.mxu0 0.0
      %1073 = vmatmul.mubr.f32.gmra.mxu0 %v897
      %v1074 = vpop.f32.mrf.mxu0
      %v1075 = vadd.f32 0.0, %v1074
      %v1076 = vpop.f32.mrf.mxu0
      %1077 = vmatprep.mubr.f32.mxu0 0.0
      %1078 = vmatmul.mubr.f32.gmra.mxu0 %v900
      %v1079 = vpop.f32.mrf.mxu0
      %v1080 = vadd.f32 0.0, %v1079
      %v1081 = vpop.f32.mrf.mxu0
      %1082 = vmatprep.mubr.f32.mxu0 0.0
      %1083 = vmatmul.mubr.f32.gmra.mxu0 %v903
      %v1084 = vpop.f32.mrf.mxu0
      %v1085 = vadd.f32 0.0, %v1084
      %v1086 = vpop.f32.mrf.mxu0
      %1087 = vmatprep.mubr.f32.mxu0 0.0
      %1088 = vmatmul.mubr.f32.gmra.mxu0 %v906
      %v1089 = vpop.f32.mrf.mxu0
      %v1090 = vadd.f32 0.0, %v1089
      %v1091 = vpop.f32.mrf.mxu0
      %1092 = vmatprep.mubr.f32.mxu0 0.0
      %1093 = vmatmul.mubr.f32.gmra.mxu0 %v909
      %v1094 = vpop.f32.mrf.mxu0
      %v1095 = vadd.f32 0.0, %v1094
      %v1096 = vpop.f32.mrf.mxu0
      %1097 = vmatprep.mubr.f32.mxu0 0.0
      %1098 = vmatmul.mubr.f32.gmra.mxu0 %v912
      %v1099 = vpop.f32.mrf.mxu0
      %v1100 = vadd.f32 0.0, %v1099
      %v1101 = vpop.f32.mrf.mxu0
      %1102 = vmatprep.mubr.f32.mxu0 0.0
      %1103 = vmatmul.mubr.f32.gmra.mxu0 %v915
      %v1104 = vpop.f32.mrf.mxu0
      %v1105 = vadd.f32 0.0, %v1104
      %v1106 = vpop.f32.mrf.mxu0
      %1107 = vmatprep.mubr.f32.mxu0 0.0
      %1108 = vmatmul.mubr.f32.gmra.mxu0 %v918
      %v1109 = vpop.f32.mrf.mxu0
      %v1110 = vadd.f32 0.0, %v1109
      %v1111 = vpop.f32.mrf.mxu0
      %1112 = vmatprep.mubr.f32.mxu0 0.0
      %1113 = vmatmul.mubr.f32.gmra.mxu0 %v921
      %v1114 = vpop.f32.mrf.mxu0
      %v1115 = vadd.f32 0.0, %v1114
      %v1116 = vpop.f32.mrf.mxu0
      %1117 = vmatprep.mubr.f32.mxu0 0.0
      %1118 = vmatmul.mubr.f32.gmra.mxu0 %v924
      %v1119 = vpop.f32.mrf.mxu0
      %v1120 = vadd.f32 0.0, %v1119
      %v1121 = vpop.f32.mrf.mxu0
      %1122 = vmatprep.mubr.f32.mxu0 0.0
      %1123 = vmatmul.mubr.f32.gmra.mxu0 %v927
      %v1124 = vpop.f32.mrf.mxu0
      %v1125 = vadd.f32 0.0, %v1124
      %v1126 = vpop.f32.mrf.mxu0
      %1127 = vmatprep.mubr.f32.mxu0 0.0
      %1128 = vmatmul.mubr.f32.gmra.mxu0 %v930
      %v1129 = vpop.f32.mrf.mxu0
      %v1130 = vadd.f32 0.0, %v1129
      %v1131 = vpop.f32.mrf.mxu0
      %1132 = vmatprep.mubr.f32.mxu0 0.0
      %1133 = vmatmul.mubr.f32.gmra.mxu0 %v933
      %v1134 = vpop.f32.mrf.mxu0
      %v1135 = vadd.f32 0.0, %v1134
      %v1136 = vpop.f32.mrf.mxu0
      %1137 = vmatprep.mubr.f32.mxu0 0.0
      %1138 = vmatmul.mubr.f32.gmra.mxu0 %v936
      %v1139 = vpop.f32.mrf.mxu0
      %v1140 = vadd.f32 0.0, %v1139
      %v1141 = vpop.f32.mrf.mxu0
      %1142 = vmatprep.mubr.f32.mxu0 0.0
      %1143 = vmatmul.mubr.f32.gmra.mxu0 %v939
      %v1144 = vpop.f32.mrf.mxu0
      %v1145 = vadd.f32 0.0, %v1144
      %v1146 = vpop.f32.mrf.mxu0
      %1147 = vmatprep.mubr.f32.mxu0 0.0
      %1148 = vmatmul.mubr.f32.gmra.mxu0 %v942
      %v1149 = vpop.f32.mrf.mxu0
      %v1150 = vadd.f32 0.0, %v1149
      %v1151 = vpop.f32.mrf.mxu0
      %1152 = vmatprep.mubr.f32.mxu0 0.0
      %1153 = vmatmul.mubr.f32.gmra.mxu0 %v945
      %v1154 = vpop.f32.mrf.mxu0
      %v1155 = vadd.f32 0.0, %v1154
      %v1156 = vpop.f32.mrf.mxu0
      %1157 = vmatprep.mubr.f32.mxu0 0.0
      %1158 = vmatmul.mubr.f32.gmra.mxu0 %v948
      %v1159 = vpop.f32.mrf.mxu0
      %v1160 = vadd.f32 0.0, %v1159
      %v1161 = vpop.f32.mrf.mxu0
      %1162 = vmatprep.mubr.f32.mxu0 0.0
      %1163 = vmatmul.mubr.f32.gmra.mxu0 %v951
      %v1164 = vpop.f32.mrf.mxu0
      %v1165 = vadd.f32 0.0, %v1164
      %v1166 = vpop.f32.mrf.mxu0
      %1167 = vmatprep.mubr.f32.mxu0 0.0
      %1168 = vmatmul.mubr.f32.gmra.mxu0 %v954
      %v1169 = vpop.f32.mrf.mxu0
      %v1170 = vadd.f32 0.0, %v1169
      %v1171 = vpop.f32.mrf.mxu0
      %1172 = vmatprep.mubr.f32.mxu0 0.0
      %1173 = vmatmul.mubr.f32.gmra.mxu0 %v957
      %v1174 = vpop.f32.mrf.mxu0
      %v1175 = vadd.f32 0.0, %v1174
      %v1176 = vpop.f32.mrf.mxu0
      %1177 = vmatprep.mubr.f32.mxu0 0.0
      %1178 = vmatmul.mubr.f32.gmra.mxu0 %v960
      %v1179 = vpop.f32.mrf.mxu0
      %v1180 = vadd.f32 0.0, %v1179
      %v1181 = vpop.f32.mrf.mxu0
      %1182 = vmatprep.mubr.f32.mxu0 0.0
      %1183 = vmatmul.mubr.f32.gmra.mxu0 %v963
      %v1184 = vpop.f32.mrf.mxu0
      %v1185 = vadd.f32 0.0, %v1184
      %v1186 = vpop.f32.mrf.mxu0
      %1187 = vmatprep.mubr.f32.mxu0 0.0
      %1188 = vmatmul.mubr.f32.gmra.mxu0 %v966
      %v1189 = vpop.f32.mrf.mxu0
      %v1190 = vadd.f32 0.0, %v1189
      %v1191 = vpop.f32.mrf.mxu0
      %1192 = vmatprep.mubr.f32.mxu0 0.0
      %1193 = vmatmul.mubr.f32.gmra.mxu0 %v969
      %v1194 = vpop.f32.mrf.mxu0
      %v1195 = vadd.f32 0.0, %v1194
      %v1196 = vpop.f32.mrf.mxu0
      %1197 = vmatprep.mubr.f32.mxu0 0.0
      %1198 = vmatmul.mubr.f32.gmra.mxu0 %v972
      %v1199 = vpop.f32.mrf.mxu0
      %v1200 = vadd.f32 0.0, %v1199
      %v1201 = vpop.f32.mrf.mxu0
      %1202 = vmatprep.mubr.f32.mxu0 0.0
      %1203 = vmatmul.mubr.f32.gmra.mxu0 %v975
      %v1204 = vpop.f32.mrf.mxu0
      %v1205 = vadd.f32 0.0, %v1204
      %v1206 = vpop.f32.mrf.mxu0
      %1207 = vmatprep.mubr.f32.mxu0 0.0
      %1208 = vmatmul.mubr.f32.gmra.mxu0 %v978
      %v1209 = vpop.f32.mrf.mxu0
      %v1210 = vadd.f32 0.0, %v1209
      %v1211 = vpop.f32.mrf.mxu0
      %1212 = vmatprep.mubr.f32.mxu0 0.0
      %1213 = vmatmul.mubr.f32.gmra.mxu0 %v981
      %v1214 = vpop.f32.mrf.mxu0
      %v1215 = vadd.f32 0.0, %v1214
      %v1216 = vpop.f32.mrf.mxu0
      %1217 = vmatprep.mubr.f32.mxu0 0.0
      %1218 = vmatmul.mubr.f32.gmra.mxu0 %v984
      %v1219 = vpop.f32.mrf.mxu0
      %v1220 = vadd.f32 0.0, %v1219
      %v1221 = vpop.f32.mrf.mxu0
      %1222 = vmatprep.mubr.f32.mxu0 0.0
      %1223 = vmatmul.mubr.f32.gmra.mxu0 %v987
      %v1224 = vpop.f32.mrf.mxu0
      %v1225 = vadd.f32 0.0, %v1224
      %v1226 = vpop.f32.mrf.mxu0
      %1227 = vmatprep.mubr.f32.mxu0 0.0
      %1228 = vmatmul.mubr.f32.gmra.mxu0 %v990
      %v1229 = vpop.f32.mrf.mxu0
      %v1230 = vadd.f32 0.0, %v1229
      %v1231 = vpop.f32.mrf.mxu0
      %1232 = vmatprep.mubr.f32.mxu0 0.0
      %1233 = vmatmul.mubr.f32.gmra.mxu0 %v993
      %v1234 = vpop.f32.mrf.mxu0
      %v1235 = vadd.f32 0.0, %v1234
      %v1236 = vpop.f32.mrf.mxu0
      %1237 = vmatprep.mubr.f32.mxu0 0.0
      %1238 = vmatmul.mubr.f32.gmra.mxu0 %v996
      %v1239 = vpop.f32.mrf.mxu0
      %v1240 = vadd.f32 0.0, %v1239
      %v1241 = vpop.f32.mrf.mxu0
      %1242 = vmatprep.mubr.f32.mxu0 0.0
      %1243 = vmatmul.mubr.f32.gmra.mxu0 %v999
      %v1244 = vpop.f32.mrf.mxu0
      %v1245 = vadd.f32 0.0, %v1244
      %v1246 = vpop.f32.mrf.mxu0
      %1247 = vmatprep.mubr.f32.mxu0 0.0
      %1248 = vmatmul.mubr.f32.gmra.mxu0 %v1002
      %v1249 = vpop.f32.mrf.mxu0
      %v1250 = vadd.f32 0.0, %v1249
      %v1251 = vpop.f32.mrf.mxu0
      %1252 = vdwg.mxu0
      %v1254 = vsel %vm895, %v820, 0
      %v1257 = vsel %vm895, %v821, 0
      %v1260 = vsel %vm895, %v822, 0
      %v1263 = vsel %vm895, %v823, 0
      %v1266 = vsel %vm895, %v824, 0
      %v1269 = vsel %vm895, %v825, 0
      %v1272 = vsel %vm895, %v826, 0
      %v1275 = vsel %vm895, %v827, 0
      %v1278 = vsel %vm895, %v828, 0
      %v1281 = vsel %vm895, %v829, 0
      %v1284 = vsel %vm895, %v830, 0
      %v1287 = vsel %vm895, %v831, 0
      %v1290 = vsel %vm895, %v832, 0
      %v1293 = vsel %vm895, %v833, 0
      %v1296 = vsel %vm895, %v834, 0
      %v1299 = vsel %vm895, %v835, 0
      %v1302 = vsel %vm895, %v836, 0
      %v1305 = vsel %vm895, %v837, 0
      %v1308 = vsel %vm895, %v838, 0
      %v1311 = vsel %vm895, %v839, 0
      %v1314 = vsel %vm895, %v840, 0
      %v1317 = vsel %vm895, %v841, 0
      %v1320 = vsel %vm895, %v842, 0
      %v1323 = vsel %vm895, %v843, 0
      %v1326 = vsel %vm895, %v844, 0
      %v1329 = vsel %vm895, %v845, 0
      %v1332 = vsel %vm895, %v846, 0
      %v1335 = vsel %vm895, %v847, 0
      %v1338 = vsel %vm895, %v848, 0
      %v1341 = vsel %vm895, %v849, 0
      %v1344 = vsel %vm895, %v850, 0
      %v1347 = vsel %vm895, %v851, 0
      %v1350 = vsel %vm895, %v852, 0
      %v1353 = vsel %vm895, %v853, 0
      %v1356 = vsel %vm895, %v854, 0
      %v1359 = vsel %vm895, %v855, 0
      %v1362 = vsel %vm1004, %v856, 0
      %1364 = vmatprep.subr.mxu0 0.0
      %1365 = vmatpush1.msra.mxu0 0.0
      %1366 = vmatprep.subr.mxu0 0.0
      %1367 = vmatpush1.msra.mxu0 0.0
      %1368 = vmatprep.subr.mxu0 0.0
      %1369 = vmatpush1.msra.mxu0 0.0
      %1370 = vmatprep.subr.mxu0 0.0
      %1371 = vmatpush1.msra.mxu0 0.0
      %1372 = vmatprep.subr.mxu0 0.0
      %1373 = vmatpush1.msra.mxu0 0.0
      %1374 = vmatprep.subr.mxu0 0.0
      %1375 = vmatpush1.msra.mxu0 0.0
      %1376 = vmatprep.subr.mxu0 0.0
      %1377 = vmatpush1.msra.mxu0 0.0
      %1378 = vmatprep.subr.mxu0 0.0
      %1379 = vmatpush1.msra.mxu0 0.0
      %1380 = vmatprep.subr.mxu0 0.0
      %1381 = vmatpush1.msra.mxu0 0.0
      %1382 = vmatprep.subr.mxu0 0.0
      %1383 = vmatpush1.msra.mxu0 0.0
      %1384 = vmatprep.subr.mxu0 0.0
      %1385 = vmatpush1.msra.mxu0 0.0
      %1386 = vmatprep.subr.mxu0 0.0
      %1387 = vmatpush1.msra.mxu0 0.0
      %1388 = vmatprep.subr.mxu0 0.0
      %1389 = vmatpush1.msra.mxu0 0.0
      %1390 = vmatprep.subr.mxu0 0.0
      %1391 = vmatpush1.msra.mxu0 0.0
      %1392 = vmatprep.subr.mxu0 0.0
      %1393 = vmatpush1.msra.mxu0 0.0
      %1394 = vmatprep.subr.mxu0 0.0
      %1395 = vmatpush1.msra.mxu0 %v1362
      %1396 = vmatprep.subr.mxu0 0.0
      %1397 = vmatpush2.msra.mxu0 0.0
      %1398 = vmatprep.subr.mxu0 0.0
      %1399 = vmatpush2.msra.mxu0 0.0
      %1400 = vmatprep.subr.mxu0 0.0
      %1401 = vmatpush2.msra.mxu0 0.0
      %1402 = vmatprep.subr.mxu0 0.0
      %1403 = vmatpush2.msra.mxu0 0.0
      %1404 = vmatprep.subr.mxu0 0.0
      %1405 = vmatpush2.msra.mxu0 0.0
      %1406 = vmatprep.subr.mxu0 0.0
      %1407 = vmatpush2.msra.mxu0 0.0
      %1408 = vmatprep.subr.mxu0 0.0
      %1409 = vmatpush2.msra.mxu0 0.0
      %1410 = vmatprep.subr.mxu0 0.0
      %1411 = vmatpush2.msra.mxu0 0.0
      %1412 = vmatprep.subr.mxu0 0.0
      %1413 = vmatpush2.msra.mxu0 0.0
      %1414 = vmatprep.subr.mxu0 0.0
      %1415 = vmatpush2.msra.mxu0 0.0
      %1416 = vmatprep.subr.mxu0 0.0
      %1417 = vmatpush2.msra.mxu0 0.0
      %1418 = vmatprep.subr.mxu0 0.0
      %1419 = vmatpush2.msra.mxu0 0.0
      %1420 = vmatprep.subr.mxu0 0.0
      %1421 = vmatpush2.msra.mxu0 0.0
      %1422 = vmatprep.subr.mxu0 0.0
      %1423 = vmatpush2.msra.mxu0 0.0
      %1424 = vmatprep.subr.mxu0 0.0
      %1425 = vmatpush2.msra.mxu0 0.0
      %1426 = vmatprep.subr.mxu0 0.0
      %1427 = vmatpush2.msra.mxu0 0.0
      %1428 = vmatprep.mubr.f32.mxu0 0.0
      %1429 = vmatmul.mubr.f32.gmra.mxu0 %v1254
      %v1430 = vpop.f32.mrf.mxu0
      %v1431 = vadd.f32 %v1075, %v1430
      %v1432 = vpop.f32.mrf.mxu0
      %1433 = vmatprep.mubr.f32.mxu0 0.0
      %1434 = vmatmul.mubr.f32.gmra.mxu0 %v1257
      %v1435 = vpop.f32.mrf.mxu0
      %v1436 = vadd.f32 %v1080, %v1435
      %v1437 = vpop.f32.mrf.mxu0
      %1438 = vmatprep.mubr.f32.mxu0 0.0
      %1439 = vmatmul.mubr.f32.gmra.mxu0 %v1260
      %v1440 = vpop.f32.mrf.mxu0
      %v1441 = vadd.f32 %v1085, %v1440
      %v1442 = vpop.f32.mrf.mxu0
      %1443 = vmatprep.mubr.f32.mxu0 0.0
      %1444 = vmatmul.mubr.f32.gmra.mxu0 %v1263
      %v1445 = vpop.f32.mrf.mxu0
      %v1446 = vadd.f32 %v1090, %v1445
      %v1447 = vpop.f32.mrf.mxu0
      %1448 = vmatprep.mubr.f32.mxu0 0.0
      %1449 = vmatmul.mubr.f32.gmra.mxu0 %v1266
      %v1450 = vpop.f32.mrf.mxu0
      %v1451 = vadd.f32 %v1095, %v1450
      %v1452 = vpop.f32.mrf.mxu0
      %1453 = vmatprep.mubr.f32.mxu0 0.0
      %1454 = vmatmul.mubr.f32.gmra.mxu0 %v1269
      %v1455 = vpop.f32.mrf.mxu0
      %v1456 = vadd.f32 %v1100, %v1455
      %v1457 = vpop.f32.mrf.mxu0
      %1458 = vmatprep.mubr.f32.mxu0 0.0
      %1459 = vmatmul.mubr.f32.gmra.mxu0 %v1272
      %v1460 = vpop.f32.mrf.mxu0
      %v1461 = vadd.f32 %v1105, %v1460
      %v1462 = vpop.f32.mrf.mxu0
      %1463 = vmatprep.mubr.f32.mxu0 0.0
      %1464 = vmatmul.mubr.f32.gmra.mxu0 %v1275
      %v1465 = vpop.f32.mrf.mxu0
      %v1466 = vadd.f32 %v1110, %v1465
      %v1467 = vpop.f32.mrf.mxu0
      %1468 = vmatprep.mubr.f32.mxu0 0.0
      %1469 = vmatmul.mubr.f32.gmra.mxu0 %v1278
      %v1470 = vpop.f32.mrf.mxu0
      %v1471 = vadd.f32 %v1115, %v1470
      %v1472 = vpop.f32.mrf.mxu0
      %1473 = vmatprep.mubr.f32.mxu0 0.0
      %1474 = vmatmul.mubr.f32.gmra.mxu0 %v1281
      %v1475 = vpop.f32.mrf.mxu0
      %v1476 = vadd.f32 %v1120, %v1475
      %v1477 = vpop.f32.mrf.mxu0
      %1478 = vmatprep.mubr.f32.mxu0 0.0
      %1479 = vmatmul.mubr.f32.gmra.mxu0 %v1284
      %v1480 = vpop.f32.mrf.mxu0
      %v1481 = vadd.f32 %v1125, %v1480
      %v1482 = vpop.f32.mrf.mxu0
      %1483 = vmatprep.mubr.f32.mxu0 0.0
      %1484 = vmatmul.mubr.f32.gmra.mxu0 %v1287
      %v1485 = vpop.f32.mrf.mxu0
      %v1486 = vadd.f32 %v1130, %v1485
      %v1487 = vpop.f32.mrf.mxu0
      %1488 = vmatprep.mubr.f32.mxu0 0.0
      %1489 = vmatmul.mubr.f32.gmra.mxu0 %v1290
      %v1490 = vpop.f32.mrf.mxu0
      %v1491 = vadd.f32 %v1135, %v1490
      %v1492 = vpop.f32.mrf.mxu0
      %1493 = vmatprep.mubr.f32.mxu0 0.0
      %1494 = vmatmul.mubr.f32.gmra.mxu0 %v1293
      %v1495 = vpop.f32.mrf.mxu0
      %v1496 = vadd.f32 %v1140, %v1495
      %v1497 = vpop.f32.mrf.mxu0
      %1498 = vmatprep.mubr.f32.mxu0 0.0
      %1499 = vmatmul.mubr.f32.gmra.mxu0 %v1296
      %v1500 = vpop.f32.mrf.mxu0
      %v1501 = vadd.f32 %v1145, %v1500
      %v1502 = vpop.f32.mrf.mxu0
      %1503 = vmatprep.mubr.f32.mxu0 0.0
      %1504 = vmatmul.mubr.f32.gmra.mxu0 %v1299
      %v1505 = vpop.f32.mrf.mxu0
      %v1506 = vadd.f32 %v1150, %v1505
      %v1507 = vpop.f32.mrf.mxu0
      %1508 = vmatprep.mubr.f32.mxu0 0.0
      %1509 = vmatmul.mubr.f32.gmra.mxu0 %v1302
      %v1510 = vpop.f32.mrf.mxu0
      %v1511 = vadd.f32 %v1155, %v1510
      %v1512 = vpop.f32.mrf.mxu0
      %1513 = vmatprep.mubr.f32.mxu0 0.0
      %1514 = vmatmul.mubr.f32.gmra.mxu0 %v1305
      %v1515 = vpop.f32.mrf.mxu0
      %v1516 = vadd.f32 %v1160, %v1515
      %v1517 = vpop.f32.mrf.mxu0
      %1518 = vmatprep.mubr.f32.mxu0 0.0
      %1519 = vmatmul.mubr.f32.gmra.mxu0 %v1308
      %v1520 = vpop.f32.mrf.mxu0
      %v1521 = vadd.f32 %v1165, %v1520
      %v1522 = vpop.f32.mrf.mxu0
      %1523 = vmatprep.mubr.f32.mxu0 0.0
      %1524 = vmatmul.mubr.f32.gmra.mxu0 %v1311
      %v1525 = vpop.f32.mrf.mxu0
      %v1526 = vadd.f32 %v1170, %v1525
      %v1527 = vpop.f32.mrf.mxu0
      %1528 = vmatprep.mubr.f32.mxu0 0.0
      %1529 = vmatmul.mubr.f32.gmra.mxu0 %v1314
      %v1530 = vpop.f32.mrf.mxu0
      %v1531 = vadd.f32 %v1175, %v1530
      %v1532 = vpop.f32.mrf.mxu0
      %1533 = vmatprep.mubr.f32.mxu0 0.0
      %1534 = vmatmul.mubr.f32.gmra.mxu0 %v1317
      %v1535 = vpop.f32.mrf.mxu0
      %v1536 = vadd.f32 %v1180, %v1535
      %v1537 = vpop.f32.mrf.mxu0
      %1538 = vmatprep.mubr.f32.mxu0 0.0
      %1539 = vmatmul.mubr.f32.gmra.mxu0 %v1320
      %v1540 = vpop.f32.mrf.mxu0
      %v1541 = vadd.f32 %v1185, %v1540
      %v1542 = vpop.f32.mrf.mxu0
      %1543 = vmatprep.mubr.f32.mxu0 0.0
      %1544 = vmatmul.mubr.f32.gmra.mxu0 %v1323
      %v1545 = vpop.f32.mrf.mxu0
      %v1546 = vadd.f32 %v1190, %v1545
      %v1547 = vpop.f32.mrf.mxu0
      %1548 = vmatprep.mubr.f32.mxu0 0.0
      %1549 = vmatmul.mubr.f32.gmra.mxu0 %v1326
      %v1550 = vpop.f32.mrf.mxu0
      %v1551 = vadd.f32 %v1195, %v1550
      %v1552 = vpop.f32.mrf.mxu0
      %1553 = vmatprep.mubr.f32.mxu0 0.0
      %1554 = vmatmul.mubr.f32.gmra.mxu0 %v1329
      %v1555 = vpop.f32.mrf.mxu0
      %v1556 = vadd.f32 %v1200, %v1555
      %v1557 = vpop.f32.mrf.mxu0
      %1558 = vmatprep.mubr.f32.mxu0 0.0
      %1559 = vmatmul.mubr.f32.gmra.mxu0 %v1332
      %v1560 = vpop.f32.mrf.mxu0
      %v1561 = vadd.f32 %v1205, %v1560
      %v1562 = vpop.f32.mrf.mxu0
      %1563 = vmatprep.mubr.f32.mxu0 0.0
      %1564 = vmatmul.mubr.f32.gmra.mxu0 %v1335
      %v1565 = vpop.f32.mrf.mxu0
      %v1566 = vadd.f32 %v1210, %v1565
      %v1567 = vpop.f32.mrf.mxu0
      %1568 = vmatprep.mubr.f32.mxu0 0.0
      %1569 = vmatmul.mubr.f32.gmra.mxu0 %v1338
      %v1570 = vpop.f32.mrf.mxu0
      %v1571 = vadd.f32 %v1215, %v1570
      %v1572 = vpop.f32.mrf.mxu0
      %1573 = vmatprep.mubr.f32.mxu0 0.0
      %1574 = vmatmul.mubr.f32.gmra.mxu0 %v1341
      %v1575 = vpop.f32.mrf.mxu0
      %v1576 = vadd.f32 %v1220, %v1575
      %v1577 = vpop.f32.mrf.mxu0
      %1578 = vmatprep.mubr.f32.mxu0 0.0
      %1579 = vmatmul.mubr.f32.gmra.mxu0 %v1344
      %v1580 = vpop.f32.mrf.mxu0
      %v1581 = vadd.f32 %v1225, %v1580
      %v1582 = vpop.f32.mrf.mxu0
      %1583 = vmatprep.mubr.f32.mxu0 0.0
      %1584 = vmatmul.mubr.f32.gmra.mxu0 %v1347
      %v1585 = vpop.f32.mrf.mxu0
      %v1586 = vadd.f32 %v1230, %v1585
      %v1587 = vpop.f32.mrf.mxu0
      %1588 = vmatprep.mubr.f32.mxu0 0.0
      %1589 = vmatmul.mubr.f32.gmra.mxu0 %v1350
      %v1590 = vpop.f32.mrf.mxu0
      %v1591 = vadd.f32 %v1235, %v1590
      %v1592 = vpop.f32.mrf.mxu0
      %1593 = vmatprep.mubr.f32.mxu0 0.0
      %1594 = vmatmul.mubr.f32.gmra.mxu0 %v1353
      %v1595 = vpop.f32.mrf.mxu0
      %v1596 = vadd.f32 %v1240, %v1595
      %v1597 = vpop.f32.mrf.mxu0
      %1598 = vmatprep.mubr.f32.mxu0 0.0
      %1599 = vmatmul.mubr.f32.gmra.mxu0 %v1356
      %v1600 = vpop.f32.mrf.mxu0
      %v1601 = vadd.f32 %v1245, %v1600
      %v1602 = vpop.f32.mrf.mxu0
      %1603 = vmatprep.mubr.f32.mxu0 0.0
      %1604 = vmatmul.mubr.f32.gmra.mxu0 %v1359
      %v1605 = vpop.f32.mrf.mxu0
      %v1606 = vadd.f32 %v1250, %v1605
      %v1607 = vpop.f32.mrf.mxu0
      %1608 = vdwg.mxu0
      %v1609 = vld [vmem:[%s165 + $0x2] sm:$0xff]
      %v1610 = vld [vmem:[%s165 + $0xa] sm:$0xff]
      %v1611 = vld [vmem:[%s165 + $0x12] sm:$0xff]
      %v1612 = vld [vmem:[%s165 + $0x1a] sm:$0xff]
      %v1613 = vld [vmem:[%s165 + $0x22] sm:$0xff]
      %v1614 = vld [vmem:[%s165 + $0x2a] sm:$0xff]
      %v1615 = vld [vmem:[%s165 + $0x32] sm:$0xff]
      %v1616 = vld [vmem:[%s165 + $0x3a] sm:$0xff]
      %v1617 = vld [vmem:[%s165 + $0x42] sm:$0xff]
      %v1618 = vld [vmem:[%s165 + $0x4a] sm:$0xff]
      %v1619 = vld [vmem:[%s165 + $0x52] sm:$0xff]
      %v1620 = vld [vmem:[%s165 + $0x5a] sm:$0xff]
      %v1621 = vld [vmem:[%s165 + $0x62] sm:$0xff]
      %v1622 = vld [vmem:[%s165 + $0x6a] sm:$0xff]
      %v1623 = vld [vmem:[%s165 + $0x72] sm:$0xff]
      %v1624 = vld [vmem:[%s165 + $0x7a] sm:$0xff]
      %v1625 = vld [vmem:[%s165 + $0x82] sm:$0xff]
      %v1626 = vld [vmem:[%s165 + $0x8a] sm:$0xff]
      %v1627 = vld [vmem:[%s165 + $0x92] sm:$0xff]
      %v1628 = vld [vmem:[%s165 + $0x9a] sm:$0xff]
      %v1629 = vld [vmem:[%s165 + $0xa2] sm:$0xff]
      %v1630 = vld [vmem:[%s165 + $0xaa] sm:$0xff]
      %v1631 = vld [vmem:[%s165 + $0xb2] sm:$0xff]
      %v1632 = vld [vmem:[%s165 + $0xba] sm:$0xff]
      %v1633 = vld [vmem:[%s165 + $0xc2] sm:$0xff]
      %v1634 = vld [vmem:[%s165 + $0xca] sm:$0xff]
      %v1635 = vld [vmem:[%s165 + $0xd2] sm:$0xff]
      %v1636 = vld [vmem:[%s165 + $0xda] sm:$0xff]
      %v1637 = vld [vmem:[%s165 + $0xe2] sm:$0xff]
      %v1638 = vld [vmem:[%s165 + $0xea] sm:$0xff]
      %v1639 = vld [vmem:[%s165 + $0xf2] sm:$0xff]
      %v1640 = vld [vmem:[%s165 + $0xfa] sm:$0xff]
      %v1641 = vld [vmem:[%s165 + $0x102] sm:$0xff]
      %v1642 = vld [vmem:[%s165 + $0x10a] sm:$0xff]
      %v1643 = vld [vmem:[%s165 + $0x112] sm:$0xff]
      %v1644 = vld [vmem:[%s165 + $0x11a] sm:$0xff]
      %s1645 = scalar_lea.vmem %s1, 8
      %v1646 = vld [vmem:[%s1645] sm:$0xf]
      %v1648 = vsel %vm895, %v1609, 0
      %v1651 = vsel %vm895, %v1610, 0
      %v1654 = vsel %vm895, %v1611, 0
      %v1657 = vsel %vm895, %v1612, 0
      %v1660 = vsel %vm895, %v1613, 0
      %v1663 = vsel %vm895, %v1614, 0
      %v1666 = vsel %vm895, %v1615, 0
      %v1669 = vsel %vm895, %v1616, 0
      %v1672 = vsel %vm895, %v1617, 0
      %v1675 = vsel %vm895, %v1618, 0
      %v1678 = vsel %vm895, %v1619, 0
      %v1681 = vsel %vm895, %v1620, 0
      %v1684 = vsel %vm895, %v1621, 0
      %v1687 = vsel %vm895, %v1622, 0
      %v1690 = vsel %vm895, %v1623, 0
      %v1693 = vsel %vm895, %v1624, 0
      %v1696 = vsel %vm895, %v1625, 0
      %v1699 = vsel %vm895, %v1626, 0
      %v1702 = vsel %vm895, %v1627, 0
      %v1705 = vsel %vm895, %v1628, 0
      %v1708 = vsel %vm895, %v1629, 0
      %v1711 = vsel %vm895, %v1630, 0
      %v1714 = vsel %vm895, %v1631, 0
      %v1717 = vsel %vm895, %v1632, 0
      %v1720 = vsel %vm895, %v1633, 0
      %v1723 = vsel %vm895, %v1634, 0
      %v1726 = vsel %vm895, %v1635, 0
      %v1729 = vsel %vm895, %v1636, 0
      %v1732 = vsel %vm895, %v1637, 0
      %v1735 = vsel %vm895, %v1638, 0
      %v1738 = vsel %vm895, %v1639, 0
      %v1741 = vsel %vm895, %v1640, 0
      %v1744 = vsel %vm895, %v1641, 0
      %v1747 = vsel %vm895, %v1642, 0
      %v1750 = vsel %vm895, %v1643, 0
      %v1753 = vsel %vm895, %v1644, 0
      %v1756 = vsel %vm1004, %v1646, 0
      %1758 = vmatprep.subr.mxu0 0.0
      %1759 = vmatpush1.msra.mxu0 0.0
      %1760 = vmatprep.subr.mxu0 0.0
      %1761 = vmatpush1.msra.mxu0 0.0
      %1762 = vmatprep.subr.mxu0 0.0
      %1763 = vmatpush1.msra.mxu0 0.0
      %1764 = vmatprep.subr.mxu0 0.0
      %1765 = vmatpush1.msra.mxu0 0.0
      %1766 = vmatprep.subr.mxu0 0.0
      %1767 = vmatpush1.msra.mxu0 0.0
      %1768 = vmatprep.subr.mxu0 0.0
      %1769 = vmatpush1.msra.mxu0 0.0
      %1770 = vmatprep.subr.mxu0 0.0
      %1771 = vmatpush1.msra.mxu0 0.0
      %1772 = vmatprep.subr.mxu0 0.0
      %1773 = vmatpush1.msra.mxu0 0.0
      %1774 = vmatprep.subr.mxu0 0.0
      %1775 = vmatpush1.msra.mxu0 0.0
      %1776 = vmatprep.subr.mxu0 0.0
      %1777 = vmatpush1.msra.mxu0 0.0
      %1778 = vmatprep.subr.mxu0 0.0
      %1779 = vmatpush1.msra.mxu0 0.0
      %1780 = vmatprep.subr.mxu0 0.0
      %1781 = vmatpush1.msra.mxu0 0.0
      %1782 = vmatprep.subr.mxu0 0.0
      %1783 = vmatpush1.msra.mxu0 0.0
      %1784 = vmatprep.subr.mxu0 0.0
      %1785 = vmatpush1.msra.mxu0 0.0
      %1786 = vmatprep.subr.mxu0 0.0
      %1787 = vmatpush1.msra.mxu0 0.0
      %1788 = vmatprep.subr.mxu0 0.0
      %1789 = vmatpush1.msra.mxu0 %v1756
      %1790 = vmatprep.subr.mxu0 0.0
      %1791 = vmatpush2.msra.mxu0 0.0
      %1792 = vmatprep.subr.mxu0 0.0
      %1793 = vmatpush2.msra.mxu0 0.0
      %1794 = vmatprep.subr.mxu0 0.0
      %1795 = vmatpush2.msra.mxu0 0.0
      %1796 = vmatprep.subr.mxu0 0.0
      %1797 = vmatpush2.msra.mxu0 0.0
      %1798 = vmatprep.subr.mxu0 0.0
      %1799 = vmatpush2.msra.mxu0 0.0
      %1800 = vmatprep.subr.mxu0 0.0
      %1801 = vmatpush2.msra.mxu0 0.0
      %1802 = vmatprep.subr.mxu0 0.0
      %1803 = vmatpush2.msra.mxu0 0.0
      %1804 = vmatprep.subr.mxu0 0.0
      %1805 = vmatpush2.msra.mxu0 0.0
      %1806 = vmatprep.subr.mxu0 0.0
      %1807 = vmatpush2.msra.mxu0 0.0
      %1808 = vmatprep.subr.mxu0 0.0
      %1809 = vmatpush2.msra.mxu0 0.0
      %1810 = vmatprep.subr.mxu0 0.0
      %1811 = vmatpush2.msra.mxu0 0.0
      %1812 = vmatprep.subr.mxu0 0.0
      %1813 = vmatpush2.msra.mxu0 0.0
      %1814 = vmatprep.subr.mxu0 0.0
      %1815 = vmatpush2.msra.mxu0 0.0
      %1816 = vmatprep.subr.mxu0 0.0
      %1817 = vmatpush2.msra.mxu0 0.0
      %1818 = vmatprep.subr.mxu0 0.0
      %1819 = vmatpush2.msra.mxu0 0.0
      %1820 = vmatprep.subr.mxu0 0.0
      %1821 = vmatpush2.msra.mxu0 0.0
      %1822 = vmatprep.mubr.f32.mxu0 0.0
      %1823 = vmatmul.mubr.f32.gmra.mxu0 %v1648
      %v1824 = vpop.f32.mrf.mxu0
      %v1825 = vadd.f32 0.0, %v1824
      %v1826 = vpop.f32.mrf.mxu0
      %1827 = vmatprep.mubr.f32.mxu0 0.0
      %1828 = vmatmul.mubr.f32.gmra.mxu0 %v1651
      %v1829 = vpop.f32.mrf.mxu0
      %v1830 = vadd.f32 0.0, %v1829
      %v1831 = vpop.f32.mrf.mxu0
      %1832 = vmatprep.mubr.f32.mxu0 0.0
      %1833 = vmatmul.mubr.f32.gmra.mxu0 %v1654
      %v1834 = vpop.f32.mrf.mxu0
      %v1835 = vadd.f32 0.0, %v1834
      %v1836 = vpop.f32.mrf.mxu0
      %1837 = vmatprep.mubr.f32.mxu0 0.0
      %1838 = vmatmul.mubr.f32.gmra.mxu0 %v1657
      %v1839 = vpop.f32.mrf.mxu0
      %v1840 = vadd.f32 0.0, %v1839
      %v1841 = vpop.f32.mrf.mxu0
      %1842 = vmatprep.mubr.f32.mxu0 0.0
      %1843 = vmatmul.mubr.f32.gmra.mxu0 %v1660
      %v1844 = vpop.f32.mrf.mxu0
      %v1845 = vadd.f32 0.0, %v1844
      %v1846 = vpop.f32.mrf.mxu0
      %1847 = vmatprep.mubr.f32.mxu0 0.0
      %1848 = vmatmul.mubr.f32.gmra.mxu0 %v1663
      %v1849 = vpop.f32.mrf.mxu0
      %v1850 = vadd.f32 0.0, %v1849
      %v1851 = vpop.f32.mrf.mxu0
      %1852 = vmatprep.mubr.f32.mxu0 0.0
      %1853 = vmatmul.mubr.f32.gmra.mxu0 %v1666
      %v1854 = vpop.f32.mrf.mxu0
      %v1855 = vadd.f32 0.0, %v1854
      %v1856 = vpop.f32.mrf.mxu0
      %1857 = vmatprep.mubr.f32.mxu0 0.0
      %1858 = vmatmul.mubr.f32.gmra.mxu0 %v1669
      %v1859 = vpop.f32.mrf.mxu0
      %v1860 = vadd.f32 0.0, %v1859
      %v1861 = vpop.f32.mrf.mxu0
      %1862 = vmatprep.mubr.f32.mxu0 0.0
      %1863 = vmatmul.mubr.f32.gmra.mxu0 %v1672
      %v1864 = vpop.f32.mrf.mxu0
      %v1865 = vadd.f32 0.0, %v1864
      %v1866 = vpop.f32.mrf.mxu0
      %1867 = vmatprep.mubr.f32.mxu0 0.0
      %1868 = vmatmul.mubr.f32.gmra.mxu0 %v1675
      %v1869 = vpop.f32.mrf.mxu0
      %v1870 = vadd.f32 0.0, %v1869
      %v1871 = vpop.f32.mrf.mxu0
      %1872 = vmatprep.mubr.f32.mxu0 0.0
      %1873 = vmatmul.mubr.f32.gmra.mxu0 %v1678
      %v1874 = vpop.f32.mrf.mxu0
      %v1875 = vadd.f32 0.0, %v1874
      %v1876 = vpop.f32.mrf.mxu0
      %1877 = vmatprep.mubr.f32.mxu0 0.0
      %1878 = vmatmul.mubr.f32.gmra.mxu0 %v1681
      %v1879 = vpop.f32.mrf.mxu0
      %v1880 = vadd.f32 0.0, %v1879
      %v1881 = vpop.f32.mrf.mxu0
      %1882 = vmatprep.mubr.f32.mxu0 0.0
      %1883 = vmatmul.mubr.f32.gmra.mxu0 %v1684
      %v1884 = vpop.f32.mrf.mxu0
      %v1885 = vadd.f32 0.0, %v1884
      %v1886 = vpop.f32.mrf.mxu0
      %1887 = vmatprep.mubr.f32.mxu0 0.0
      %1888 = vmatmul.mubr.f32.gmra.mxu0 %v1687
      %v1889 = vpop.f32.mrf.mxu0
      %v1890 = vadd.f32 0.0, %v1889
      %v1891 = vpop.f32.mrf.mxu0
      %1892 = vmatprep.mubr.f32.mxu0 0.0
      %1893 = vmatmul.mubr.f32.gmra.mxu0 %v1690
      %v1894 = vpop.f32.mrf.mxu0
      %v1895 = vadd.f32 0.0, %v1894
      %v1896 = vpop.f32.mrf.mxu0
      %1897 = vmatprep.mubr.f32.mxu0 0.0
      %1898 = vmatmul.mubr.f32.gmra.mxu0 %v1693
      %v1899 = vpop.f32.mrf.mxu0
      %v1900 = vadd.f32 0.0, %v1899
      %v1901 = vpop.f32.mrf.mxu0
      %1902 = vmatprep.mubr.f32.mxu0 0.0
      %1903 = vmatmul.mubr.f32.gmra.mxu0 %v1696
      %v1904 = vpop.f32.mrf.mxu0
      %v1905 = vadd.f32 0.0, %v1904
      %v1906 = vpop.f32.mrf.mxu0
      %1907 = vmatprep.mubr.f32.mxu0 0.0
      %1908 = vmatmul.mubr.f32.gmra.mxu0 %v1699
      %v1909 = vpop.f32.mrf.mxu0
      %v1910 = vadd.f32 0.0, %v1909
      %v1911 = vpop.f32.mrf.mxu0
      %1912 = vmatprep.mubr.f32.mxu0 0.0
      %1913 = vmatmul.mubr.f32.gmra.mxu0 %v1702
      %v1914 = vpop.f32.mrf.mxu0
      %v1915 = vadd.f32 0.0, %v1914
      %v1916 = vpop.f32.mrf.mxu0
      %1917 = vmatprep.mubr.f32.mxu0 0.0
      %1918 = vmatmul.mubr.f32.gmra.mxu0 %v1705
      %v1919 = vpop.f32.mrf.mxu0
      %v1920 = vadd.f32 0.0, %v1919
      %v1921 = vpop.f32.mrf.mxu0
      %1922 = vmatprep.mubr.f32.mxu0 0.0
      %1923 = vmatmul.mubr.f32.gmra.mxu0 %v1708
      %v1924 = vpop.f32.mrf.mxu0
      %v1925 = vadd.f32 0.0, %v1924
      %v1926 = vpop.f32.mrf.mxu0
      %1927 = vmatprep.mubr.f32.mxu0 0.0
      %1928 = vmatmul.mubr.f32.gmra.mxu0 %v1711
      %v1929 = vpop.f32.mrf.mxu0
      %v1930 = vadd.f32 0.0, %v1929
      %v1931 = vpop.f32.mrf.mxu0
      %1932 = vmatprep.mubr.f32.mxu0 0.0
      %1933 = vmatmul.mubr.f32.gmra.mxu0 %v1714
      %v1934 = vpop.f32.mrf.mxu0
      %v1935 = vadd.f32 0.0, %v1934
      %v1936 = vpop.f32.mrf.mxu0
      %1937 = vmatprep.mubr.f32.mxu0 0.0
      %1938 = vmatmul.mubr.f32.gmra.mxu0 %v1717
      %v1939 = vpop.f32.mrf.mxu0
      %v1940 = vadd.f32 0.0, %v1939
      %v1941 = vpop.f32.mrf.mxu0
      %1942 = vmatprep.mubr.f32.mxu0 0.0
      %1943 = vmatmul.mubr.f32.gmra.mxu0 %v1720
      %v1944 = vpop.f32.mrf.mxu0
      %v1945 = vadd.f32 0.0, %v1944
      %v1946 = vpop.f32.mrf.mxu0
      %1947 = vmatprep.mubr.f32.mxu0 0.0
      %1948 = vmatmul.mubr.f32.gmra.mxu0 %v1723
      %v1949 = vpop.f32.mrf.mxu0
      %v1950 = vadd.f32 0.0, %v1949
      %v1951 = vpop.f32.mrf.mxu0
      %1952 = vmatprep.mubr.f32.mxu0 0.0
      %1953 = vmatmul.mubr.f32.gmra.mxu0 %v1726
      %v1954 = vpop.f32.mrf.mxu0
      %v1955 = vadd.f32 0.0, %v1954
      %v1956 = vpop.f32.mrf.mxu0
      %1957 = vmatprep.mubr.f32.mxu0 0.0
      %1958 = vmatmul.mubr.f32.gmra.mxu0 %v1729
      %v1959 = vpop.f32.mrf.mxu0
      %v1960 = vadd.f32 0.0, %v1959
      %v1961 = vpop.f32.mrf.mxu0
      %1962 = vmatprep.mubr.f32.mxu0 0.0
      %1963 = vmatmul.mubr.f32.gmra.mxu0 %v1732
      %v1964 = vpop.f32.mrf.mxu0
      %v1965 = vadd.f32 0.0, %v1964
      %v1966 = vpop.f32.mrf.mxu0
      %1967 = vmatprep.mubr.f32.mxu0 0.0
      %1968 = vmatmul.mubr.f32.gmra.mxu0 %v1735
      %v1969 = vpop.f32.mrf.mxu0
      %v1970 = vadd.f32 0.0, %v1969
      %v1971 = vpop.f32.mrf.mxu0
      %1972 = vmatprep.mubr.f32.mxu0 0.0
      %1973 = vmatmul.mubr.f32.gmra.mxu0 %v1738
      %v1974 = vpop.f32.mrf.mxu0
      %v1975 = vadd.f32 0.0, %v1974
      %v1976 = vpop.f32.mrf.mxu0
      %1977 = vmatprep.mubr.f32.mxu0 0.0
      %1978 = vmatmul.mubr.f32.gmra.mxu0 %v1741
      %v1979 = vpop.f32.mrf.mxu0
      %v1980 = vadd.f32 0.0, %v1979
      %v1981 = vpop.f32.mrf.mxu0
      %1982 = vmatprep.mubr.f32.mxu0 0.0
      %1983 = vmatmul.mubr.f32.gmra.mxu0 %v1744
      %v1984 = vpop.f32.mrf.mxu0
      %v1985 = vadd.f32 0.0, %v1984
      %v1986 = vpop.f32.mrf.mxu0
      %1987 = vmatprep.mubr.f32.mxu0 0.0
      %1988 = vmatmul.mubr.f32.gmra.mxu0 %v1747
      %v1989 = vpop.f32.mrf.mxu0
      %v1990 = vadd.f32 0.0, %v1989
      %v1991 = vpop.f32.mrf.mxu0
      %1992 = vmatprep.mubr.f32.mxu0 0.0
      %1993 = vmatmul.mubr.f32.gmra.mxu0 %v1750
      %v1994 = vpop.f32.mrf.mxu0
      %v1995 = vadd.f32 0.0, %v1994
      %v1996 = vpop.f32.mrf.mxu0
      %1997 = vmatprep.mubr.f32.mxu0 0.0
      %1998 = vmatmul.mubr.f32.gmra.mxu0 %v1753
      %v1999 = vpop.f32.mrf.mxu0
      %v2000 = vadd.f32 0.0, %v1999
      %v2001 = vpop.f32.mrf.mxu0
      %2002 = vdwg.mxu0
      %v2003 = vadd.f32 %v1431, %v1825
      %v2004 = vadd.f32 %v1436, %v1830
      %v2005 = vadd.f32 %v1441, %v1835
      %v2006 = vadd.f32 %v1446, %v1840
      %v2007 = vadd.f32 %v1451, %v1845
      %v2008 = vadd.f32 %v1456, %v1850
      %v2009 = vadd.f32 %v1461, %v1855
      %v2010 = vadd.f32 %v1466, %v1860
      %v2011 = vadd.f32 %v1471, %v1865
      %v2012 = vadd.f32 %v1476, %v1870
      %v2013 = vadd.f32 %v1481, %v1875
      %v2014 = vadd.f32 %v1486, %v1880
      %v2015 = vadd.f32 %v1491, %v1885
      %v2016 = vadd.f32 %v1496, %v1890
      %v2017 = vadd.f32 %v1501, %v1895
      %v2018 = vadd.f32 %v1506, %v1900
      %v2019 = vadd.f32 %v1511, %v1905
      %v2020 = vadd.f32 %v1516, %v1910
      %v2021 = vadd.f32 %v1521, %v1915
      %v2022 = vadd.f32 %v1526, %v1920
      %v2023 = vadd.f32 %v1531, %v1925
      %v2024 = vadd.f32 %v1536, %v1930
      %v2025 = vadd.f32 %v1541, %v1935
      %v2026 = vadd.f32 %v1546, %v1940
      %v2027 = vadd.f32 %v1551, %v1945
      %v2028 = vadd.f32 %v1556, %v1950
      %v2029 = vadd.f32 %v1561, %v1955
      %v2030 = vadd.f32 %v1566, %v1960
      %v2031 = vadd.f32 %v1571, %v1965
      %v2032 = vadd.f32 %v1576, %v1970
      %v2033 = vadd.f32 %v1581, %v1975
      %v2034 = vadd.f32 %v1586, %v1980
      %v2035 = vadd.f32 %v1591, %v1985
      %v2036 = vadd.f32 %v1596, %v1990
      %v2037 = vadd.f32 %v1601, %v1995
      %v2038 = vadd.f32 %v1606, %v2000
      %v2039 = vld [vmem:[%s165 + $0x12] sm:$0xff]
      %v2040 = vld [vmem:[%s165 + $0x1a] sm:$0xff]
      %v2041 = vld [vmem:[%s165 + $0x22] sm:$0xff]
      %v2042 = vld [vmem:[%s165 + $0x2a] sm:$0xff]
      %v2043 = vld [vmem:[%s165 + $0x32] sm:$0xff]
      %v2044 = vld [vmem:[%s165 + $0x3a] sm:$0xff]
      %v2045 = vld [vmem:[%s165 + $0x42] sm:$0xff]
      %v2046 = vld [vmem:[%s165 + $0x4a] sm:$0xff]
      %v2047 = vld [vmem:[%s165 + $0x52] sm:$0xff]
      %v2048 = vld [vmem:[%s165 + $0x5a] sm:$0xff]
      %v2049 = vld [vmem:[%s165 + $0x62] sm:$0xff]
      %v2050 = vld [vmem:[%s165 + $0x6a] sm:$0xff]
      %v2051 = vld [vmem:[%s165 + $0x72] sm:$0xff]
      %v2052 = vld [vmem:[%s165 + $0x7a] sm:$0xff]
      %v2053 = vld [vmem:[%s165 + $0x82] sm:$0xff]
      %v2054 = vld [vmem:[%s165 + $0x8a] sm:$0xff]
      %v2055 = vld [vmem:[%s165 + $0x92] sm:$0xff]
      %v2056 = vld [vmem:[%s165 + $0x9a] sm:$0xff]
      %v2057 = vld [vmem:[%s165 + $0xa2] sm:$0xff]
      %v2058 = vld [vmem:[%s165 + $0xaa] sm:$0xff]
      %v2059 = vld [vmem:[%s165 + $0xb2] sm:$0xff]
      %v2060 = vld [vmem:[%s165 + $0xba] sm:$0xff]
      %v2061 = vld [vmem:[%s165 + $0xc2] sm:$0xff]
      %v2062 = vld [vmem:[%s165 + $0xca] sm:$0xff]
      %v2063 = vld [vmem:[%s165 + $0xd2] sm:$0xff]
      %v2064 = vld [vmem:[%s165 + $0xda] sm:$0xff]
      %v2065 = vld [vmem:[%s165 + $0xe2] sm:$0xff]
      %v2066 = vld [vmem:[%s165 + $0xea] sm:$0xff]
      %v2067 = vld [vmem:[%s165 + $0xf2] sm:$0xff]
      %v2068 = vld [vmem:[%s165 + $0xfa] sm:$0xff]
      %v2069 = vld [vmem:[%s165 + $0x102] sm:$0xff]
      %v2070 = vld [vmem:[%s165 + $0x10a] sm:$0xff]
      %v2071 = vld [vmem:[%s165 + $0x112] sm:$0xff]
      %v2072 = vld [vmem:[%s165 + $0x11a] sm:$0xff]
      %v2073 = vld [vmem:[%s165 + $0x122] sm:$0xff]
      %v2074 = vld [vmem:[%s165 + $0x12a] sm:$0xff]
      %s2075 = scalar_lea.vmem %s1, 12
      %v2076 = vld [vmem:[%s2075] sm:$0xf]
      %v2078 = vsel %vm895, %v2039, 0
      %v2081 = vsel %vm895, %v2040, 0
      %v2084 = vsel %vm895, %v2041, 0
      %v2087 = vsel %vm895, %v2042, 0
      %v2090 = vsel %vm895, %v2043, 0
      %v2093 = vsel %vm895, %v2044, 0
      %v2096 = vsel %vm895, %v2045, 0
      %v2099 = vsel %vm895, %v2046, 0
      %v2102 = vsel %vm895, %v2047, 0
      %v2105 = vsel %vm895, %v2048, 0
      %v2108 = vsel %vm895, %v2049, 0
      %v2111 = vsel %vm895, %v2050, 0
      %v2114 = vsel %vm895, %v2051, 0
      %v2117 = vsel %vm895, %v2052, 0
      %v2120 = vsel %vm895, %v2053, 0
      %v2123 = vsel %vm895, %v2054, 0
      %v2126 = vsel %vm895, %v2055, 0
      %v2129 = vsel %vm895, %v2056, 0
      %v2132 = vsel %vm895, %v2057, 0
      %v2135 = vsel %vm895, %v2058, 0
      %v2138 = vsel %vm895, %v2059, 0
      %v2141 = vsel %vm895, %v2060, 0
      %v2144 = vsel %vm895, %v2061, 0
      %v2147 = vsel %vm895, %v2062, 0
      %v2150 = vsel %vm895, %v2063, 0
      %v2153 = vsel %vm895, %v2064, 0
      %v2156 = vsel %vm895, %v2065, 0
      %v2159 = vsel %vm895, %v2066, 0
      %v2162 = vsel %vm895, %v2067, 0
      %v2165 = vsel %vm895, %v2068, 0
      %v2168 = vsel %vm895, %v2069, 0
      %v2171 = vsel %vm895, %v2070, 0
      %v2174 = vsel %vm895, %v2071, 0
      %v2177 = vsel %vm895, %v2072, 0
      %v2180 = vsel %vm895, %v2073, 0
      %v2183 = vsel %vm895, %v2074, 0
      %v2186 = vsel %vm1004, %v2076, 0
      %2188 = vmatprep.subr.mxu0 0.0
      %2189 = vmatpush1.msra.mxu0 0.0
      %2190 = vmatprep.subr.mxu0 0.0
      %2191 = vmatpush1.msra.mxu0 0.0
      %2192 = vmatprep.subr.mxu0 0.0
      %2193 = vmatpush1.msra.mxu0 0.0
      %2194 = vmatprep.subr.mxu0 0.0
      %2195 = vmatpush1.msra.mxu0 0.0
      %2196 = vmatprep.subr.mxu0 0.0
      %2197 = vmatpush1.msra.mxu0 0.0
      %2198 = vmatprep.subr.mxu0 0.0
      %2199 = vmatpush1.msra.mxu0 0.0
      %2200 = vmatprep.subr.mxu0 0.0
      %2201 = vmatpush1.msra.mxu0 0.0
      %2202 = vmatprep.subr.mxu0 0.0
      %2203 = vmatpush1.msra.mxu0 0.0
      %2204 = vmatprep.subr.mxu0 0.0
      %2205 = vmatpush1.msra.mxu0 0.0
      %2206 = vmatprep.subr.mxu0 0.0
      %2207 = vmatpush1.msra.mxu0 0.0
      %2208 = vmatprep.subr.mxu0 0.0
      %2209 = vmatpush1.msra.mxu0 0.0
      %2210 = vmatprep.subr.mxu0 0.0
      %2211 = vmatpush1.msra.mxu0 0.0
      %2212 = vmatprep.subr.mxu0 0.0
      %2213 = vmatpush1.msra.mxu0 0.0
      %2214 = vmatprep.subr.mxu0 0.0
      %2215 = vmatpush1.msra.mxu0 0.0
      %2216 = vmatprep.subr.mxu0 0.0
      %2217 = vmatpush1.msra.mxu0 0.0
      %2218 = vmatprep.subr.mxu0 0.0
      %2219 = vmatpush1.msra.mxu0 %v2186
      %2220 = vmatprep.subr.mxu0 0.0
      %2221 = vmatpush2.msra.mxu0 0.0
      %2222 = vmatprep.subr.mxu0 0.0
      %2223 = vmatpush2.msra.mxu0 0.0
      %2224 = vmatprep.subr.mxu0 0.0
      %2225 = vmatpush2.msra.mxu0 0.0
      %2226 = vmatprep.subr.mxu0 0.0
      %2227 = vmatpush2.msra.mxu0 0.0
      %2228 = vmatprep.subr.mxu0 0.0
      %2229 = vmatpush2.msra.mxu0 0.0
      %2230 = vmatprep.subr.mxu0 0.0
      %2231 = vmatpush2.msra.mxu0 0.0
      %2232 = vmatprep.subr.mxu0 0.0
      %2233 = vmatpush2.msra.mxu0 0.0
      %2234 = vmatprep.subr.mxu0 0.0
      %2235 = vmatpush2.msra.mxu0 0.0
      %2236 = vmatprep.subr.mxu0 0.0
      %2237 = vmatpush2.msra.mxu0 0.0
      %2238 = vmatprep.subr.mxu0 0.0
      %2239 = vmatpush2.msra.mxu0 0.0
      %2240 = vmatprep.subr.mxu0 0.0
      %2241 = vmatpush2.msra.mxu0 0.0
      %2242 = vmatprep.subr.mxu0 0.0
      %2243 = vmatpush2.msra.mxu0 0.0
      %2244 = vmatprep.subr.mxu0 0.0
      %2245 = vmatpush2.msra.mxu0 0.0
      %2246 = vmatprep.subr.mxu0 0.0
      %2247 = vmatpush2.msra.mxu0 0.0
      %2248 = vmatprep.subr.mxu0 0.0
      %2249 = vmatpush2.msra.mxu0 0.0
      %2250 = vmatprep.subr.mxu0 0.0
      %2251 = vmatpush2.msra.mxu0 0.0
      %2252 = vmatprep.mubr.f32.mxu0 0.0
      %2253 = vmatmul.mubr.f32.gmra.mxu0 %v2078
      %v2254 = vpop.f32.mrf.mxu0
      %v2255 = vadd.f32 0.0, %v2254
      %v2256 = vpop.f32.mrf.mxu0
      %2257 = vmatprep.mubr.f32.mxu0 0.0
      %2258 = vmatmul.mubr.f32.gmra.mxu0 %v2081
      %v2259 = vpop.f32.mrf.mxu0
      %v2260 = vadd.f32 0.0, %v2259
      %v2261 = vpop.f32.mrf.mxu0
      %2262 = vmatprep.mubr.f32.mxu0 0.0
      %2263 = vmatmul.mubr.f32.gmra.mxu0 %v2084
      %v2264 = vpop.f32.mrf.mxu0
      %v2265 = vadd.f32 0.0, %v2264
      %v2266 = vpop.f32.mrf.mxu0
      %2267 = vmatprep.mubr.f32.mxu0 0.0
      %2268 = vmatmul.mubr.f32.gmra.mxu0 %v2087
      %v2269 = vpop.f32.mrf.mxu0
      %v2270 = vadd.f32 0.0, %v2269
      %v2271 = vpop.f32.mrf.mxu0
      %2272 = vmatprep.mubr.f32.mxu0 0.0
      %2273 = vmatmul.mubr.f32.gmra.mxu0 %v2090
      %v2274 = vpop.f32.mrf.mxu0
      %v2275 = vadd.f32 0.0, %v2274
      %v2276 = vpop.f32.mrf.mxu0
      %2277 = vmatprep.mubr.f32.mxu0 0.0
      %2278 = vmatmul.mubr.f32.gmra.mxu0 %v2093
      %v2279 = vpop.f32.mrf.mxu0
      %v2280 = vadd.f32 0.0, %v2279
      %v2281 = vpop.f32.mrf.mxu0
      %2282 = vmatprep.mubr.f32.mxu0 0.0
      %2283 = vmatmul.mubr.f32.gmra.mxu0 %v2096
      %v2284 = vpop.f32.mrf.mxu0
      %v2285 = vadd.f32 0.0, %v2284
      %v2286 = vpop.f32.mrf.mxu0
      %2287 = vmatprep.mubr.f32.mxu0 0.0
      %2288 = vmatmul.mubr.f32.gmra.mxu0 %v2099
      %v2289 = vpop.f32.mrf.mxu0
      %v2290 = vadd.f32 0.0, %v2289
      %v2291 = vpop.f32.mrf.mxu0
      %2292 = vmatprep.mubr.f32.mxu0 0.0
      %2293 = vmatmul.mubr.f32.gmra.mxu0 %v2102
      %v2294 = vpop.f32.mrf.mxu0
      %v2295 = vadd.f32 0.0, %v2294
      %v2296 = vpop.f32.mrf.mxu0
      %2297 = vmatprep.mubr.f32.mxu0 0.0
      %2298 = vmatmul.mubr.f32.gmra.mxu0 %v2105
      %v2299 = vpop.f32.mrf.mxu0
      %v2300 = vadd.f32 0.0, %v2299
      %v2301 = vpop.f32.mrf.mxu0
      %2302 = vmatprep.mubr.f32.mxu0 0.0
      %2303 = vmatmul.mubr.f32.gmra.mxu0 %v2108
      %v2304 = vpop.f32.mrf.mxu0
      %v2305 = vadd.f32 0.0, %v2304
      %v2306 = vpop.f32.mrf.mxu0
      %2307 = vmatprep.mubr.f32.mxu0 0.0
      %2308 = vmatmul.mubr.f32.gmra.mxu0 %v2111
      %v2309 = vpop.f32.mrf.mxu0
      %v2310 = vadd.f32 0.0, %v2309
      %v2311 = vpop.f32.mrf.mxu0
      %2312 = vmatprep.mubr.f32.mxu0 0.0
      %2313 = vmatmul.mubr.f32.gmra.mxu0 %v2114
      %v2314 = vpop.f32.mrf.mxu0
      %v2315 = vadd.f32 0.0, %v2314
      %v2316 = vpop.f32.mrf.mxu0
      %2317 = vmatprep.mubr.f32.mxu0 0.0
      %2318 = vmatmul.mubr.f32.gmra.mxu0 %v2117
      %v2319 = vpop.f32.mrf.mxu0
      %v2320 = vadd.f32 0.0, %v2319
      %v2321 = vpop.f32.mrf.mxu0
      %2322 = vmatprep.mubr.f32.mxu0 0.0
      %2323 = vmatmul.mubr.f32.gmra.mxu0 %v2120
      %v2324 = vpop.f32.mrf.mxu0
      %v2325 = vadd.f32 0.0, %v2324
      %v2326 = vpop.f32.mrf.mxu0
      %2327 = vmatprep.mubr.f32.mxu0 0.0
      %2328 = vmatmul.mubr.f32.gmra.mxu0 %v2123
      %v2329 = vpop.f32.mrf.mxu0
      %v2330 = vadd.f32 0.0, %v2329
      %v2331 = vpop.f32.mrf.mxu0
      %2332 = vmatprep.mubr.f32.mxu0 0.0
      %2333 = vmatmul.mubr.f32.gmra.mxu0 %v2126
      %v2334 = vpop.f32.mrf.mxu0
      %v2335 = vadd.f32 0.0, %v2334
      %v2336 = vpop.f32.mrf.mxu0
      %2337 = vmatprep.mubr.f32.mxu0 0.0
      %2338 = vmatmul.mubr.f32.gmra.mxu0 %v2129
      %v2339 = vpop.f32.mrf.mxu0
      %v2340 = vadd.f32 0.0, %v2339
      %v2341 = vpop.f32.mrf.mxu0
      %2342 = vmatprep.mubr.f32.mxu0 0.0
      %2343 = vmatmul.mubr.f32.gmra.mxu0 %v2132
      %v2344 = vpop.f32.mrf.mxu0
      %v2345 = vadd.f32 0.0, %v2344
      %v2346 = vpop.f32.mrf.mxu0
      %2347 = vmatprep.mubr.f32.mxu0 0.0
      %2348 = vmatmul.mubr.f32.gmra.mxu0 %v2135
      %v2349 = vpop.f32.mrf.mxu0
      %v2350 = vadd.f32 0.0, %v2349
      %v2351 = vpop.f32.mrf.mxu0
      %2352 = vmatprep.mubr.f32.mxu0 0.0
      %2353 = vmatmul.mubr.f32.gmra.mxu0 %v2138
      %v2354 = vpop.f32.mrf.mxu0
      %v2355 = vadd.f32 0.0, %v2354
      %v2356 = vpop.f32.mrf.mxu0
      %2357 = vmatprep.mubr.f32.mxu0 0.0
      %2358 = vmatmul.mubr.f32.gmra.mxu0 %v2141
      %v2359 = vpop.f32.mrf.mxu0
      %v2360 = vadd.f32 0.0, %v2359
      %v2361 = vpop.f32.mrf.mxu0
      %2362 = vmatprep.mubr.f32.mxu0 0.0
      %2363 = vmatmul.mubr.f32.gmra.mxu0 %v2144
      %v2364 = vpop.f32.mrf.mxu0
      %v2365 = vadd.f32 0.0, %v2364
      %v2366 = vpop.f32.mrf.mxu0
      %2367 = vmatprep.mubr.f32.mxu0 0.0
      %2368 = vmatmul.mubr.f32.gmra.mxu0 %v2147
      %v2369 = vpop.f32.mrf.mxu0
      %v2370 = vadd.f32 0.0, %v2369
      %v2371 = vpop.f32.mrf.mxu0
      %2372 = vmatprep.mubr.f32.mxu0 0.0
      %2373 = vmatmul.mubr.f32.gmra.mxu0 %v2150
      %v2374 = vpop.f32.mrf.mxu0
      %v2375 = vadd.f32 0.0, %v2374
      %v2376 = vpop.f32.mrf.mxu0
      %2377 = vmatprep.mubr.f32.mxu0 0.0
      %2378 = vmatmul.mubr.f32.gmra.mxu0 %v2153
      %v2379 = vpop.f32.mrf.mxu0
      %v2380 = vadd.f32 0.0, %v2379
      %v2381 = vpop.f32.mrf.mxu0
      %2382 = vmatprep.mubr.f32.mxu0 0.0
      %2383 = vmatmul.mubr.f32.gmra.mxu0 %v2156
      %v2384 = vpop.f32.mrf.mxu0
      %v2385 = vadd.f32 0.0, %v2384
      %v2386 = vpop.f32.mrf.mxu0
      %2387 = vmatprep.mubr.f32.mxu0 0.0
      %2388 = vmatmul.mubr.f32.gmra.mxu0 %v2159
      %v2389 = vpop.f32.mrf.mxu0
      %v2390 = vadd.f32 0.0, %v2389
      %v2391 = vpop.f32.mrf.mxu0
      %2392 = vmatprep.mubr.f32.mxu0 0.0
      %2393 = vmatmul.mubr.f32.gmra.mxu0 %v2162
      %v2394 = vpop.f32.mrf.mxu0
      %v2395 = vadd.f32 0.0, %v2394
      %v2396 = vpop.f32.mrf.mxu0
      %2397 = vmatprep.mubr.f32.mxu0 0.0
      %2398 = vmatmul.mubr.f32.gmra.mxu0 %v2165
      %v2399 = vpop.f32.mrf.mxu0
      %v2400 = vadd.f32 0.0, %v2399
      %v2401 = vpop.f32.mrf.mxu0
      %2402 = vmatprep.mubr.f32.mxu0 0.0
      %2403 = vmatmul.mubr.f32.gmra.mxu0 %v2168
      %v2404 = vpop.f32.mrf.mxu0
      %v2405 = vadd.f32 0.0, %v2404
      %v2406 = vpop.f32.mrf.mxu0
      %2407 = vmatprep.mubr.f32.mxu0 0.0
      %2408 = vmatmul.mubr.f32.gmra.mxu0 %v2171
      %v2409 = vpop.f32.mrf.mxu0
      %v2410 = vadd.f32 0.0, %v2409
      %v2411 = vpop.f32.mrf.mxu0
      %2412 = vmatprep.mubr.f32.mxu0 0.0
      %2413 = vmatmul.mubr.f32.gmra.mxu0 %v2174
      %v2414 = vpop.f32.mrf.mxu0
      %v2415 = vadd.f32 0.0, %v2414
      %v2416 = vpop.f32.mrf.mxu0
      %2417 = vmatprep.mubr.f32.mxu0 0.0
      %2418 = vmatmul.mubr.f32.gmra.mxu0 %v2177
      %v2419 = vpop.f32.mrf.mxu0
      %v2420 = vadd.f32 0.0, %v2419
      %v2421 = vpop.f32.mrf.mxu0
      %2422 = vmatprep.mubr.f32.mxu0 0.0
      %2423 = vmatmul.mubr.f32.gmra.mxu0 %v2180
      %v2424 = vpop.f32.mrf.mxu0
      %v2425 = vadd.f32 0.0, %v2424
      %v2426 = vpop.f32.mrf.mxu0
      %2427 = vmatprep.mubr.f32.mxu0 0.0
      %2428 = vmatmul.mubr.f32.gmra.mxu0 %v2183
      %v2429 = vpop.f32.mrf.mxu0
      %v2430 = vadd.f32 0.0, %v2429
      %v2431 = vpop.f32.mrf.mxu0
      %2432 = vdwg.mxu0
      %v2433 = vadd.f32 %v2003, %v2255
      %v2434 = vadd.f32 %v2004, %v2260
      %v2435 = vadd.f32 %v2005, %v2265
      %v2436 = vadd.f32 %v2006, %v2270
      %v2437 = vadd.f32 %v2007, %v2275
      %v2438 = vadd.f32 %v2008, %v2280
      %v2439 = vadd.f32 %v2009, %v2285
      %v2440 = vadd.f32 %v2010, %v2290
      %v2441 = vadd.f32 %v2011, %v2295
      %v2442 = vadd.f32 %v2012, %v2300
      %v2443 = vadd.f32 %v2013, %v2305
      %v2444 = vadd.f32 %v2014, %v2310
      %v2445 = vadd.f32 %v2015, %v2315
      %v2446 = vadd.f32 %v2016, %v2320
      %v2447 = vadd.f32 %v2017, %v2325
      %v2448 = vadd.f32 %v2018, %v2330
      %v2449 = vadd.f32 %v2019, %v2335
      %v2450 = vadd.f32 %v2020, %v2340
      %v2451 = vadd.f32 %v2021, %v2345
      %v2452 = vadd.f32 %v2022, %v2350
      %v2453 = vadd.f32 %v2023, %v2355
      %v2454 = vadd.f32 %v2024, %v2360
      %v2455 = vadd.f32 %v2025, %v2365
      %v2456 = vadd.f32 %v2026, %v2370
      %v2457 = vadd.f32 %v2027, %v2375
      %v2458 = vadd.f32 %v2028, %v2380
      %v2459 = vadd.f32 %v2029, %v2385
      %v2460 = vadd.f32 %v2030, %v2390
      %v2461 = vadd.f32 %v2031, %v2395
      %v2462 = vadd.f32 %v2032, %v2400
      %v2463 = vadd.f32 %v2033, %v2405
      %v2464 = vadd.f32 %v2034, %v2410
      %v2465 = vadd.f32 %v2035, %v2415
      %v2466 = vadd.f32 %v2036, %v2420
      %v2467 = vadd.f32 %v2037, %v2425
      %v2468 = vadd.f32 %v2038, %v2430
      %v2469 = vld [vmem:[%s165 + $0x13] sm:$0xff]
      %v2470 = vld [vmem:[%s165 + $0x1b] sm:$0xff]
      %v2471 = vld [vmem:[%s165 + $0x23] sm:$0xff]
      %v2472 = vld [vmem:[%s165 + $0x2b] sm:$0xff]
      %v2473 = vld [vmem:[%s165 + $0x33] sm:$0xff]
      %v2474 = vld [vmem:[%s165 + $0x3b] sm:$0xff]
      %v2475 = vld [vmem:[%s165 + $0x43] sm:$0xff]
      %v2476 = vld [vmem:[%s165 + $0x4b] sm:$0xff]
      %v2477 = vld [vmem:[%s165 + $0x53] sm:$0xff]
      %v2478 = vld [vmem:[%s165 + $0x5b] sm:$0xff]
      %v2479 = vld [vmem:[%s165 + $0x63] sm:$0xff]
      %v2480 = vld [vmem:[%s165 + $0x6b] sm:$0xff]
      %v2481 = vld [vmem:[%s165 + $0x73] sm:$0xff]
      %v2482 = vld [vmem:[%s165 + $0x7b] sm:$0xff]
      %v2483 = vld [vmem:[%s165 + $0x83] sm:$0xff]
      %v2484 = vld [vmem:[%s165 + $0x8b] sm:$0xff]
      %v2485 = vld [vmem:[%s165 + $0x93] sm:$0xff]
      %v2486 = vld [vmem:[%s165 + $0x9b] sm:$0xff]
      %v2487 = vld [vmem:[%s165 + $0xa3] sm:$0xff]
      %v2488 = vld [vmem:[%s165 + $0xab] sm:$0xff]
      %v2489 = vld [vmem:[%s165 + $0xb3] sm:$0xff]
      %v2490 = vld [vmem:[%s165 + $0xbb] sm:$0xff]
      %v2491 = vld [vmem:[%s165 + $0xc3] sm:$0xff]
      %v2492 = vld [vmem:[%s165 + $0xcb] sm:$0xff]
      %v2493 = vld [vmem:[%s165 + $0xd3] sm:$0xff]
      %v2494 = vld [vmem:[%s165 + $0xdb] sm:$0xff]
      %v2495 = vld [vmem:[%s165 + $0xe3] sm:$0xff]
      %v2496 = vld [vmem:[%s165 + $0xeb] sm:$0xff]
      %v2497 = vld [vmem:[%s165 + $0xf3] sm:$0xff]
      %v2498 = vld [vmem:[%s165 + $0xfb] sm:$0xff]
      %v2499 = vld [vmem:[%s165 + $0x103] sm:$0xff]
      %v2500 = vld [vmem:[%s165 + $0x10b] sm:$0xff]
      %v2501 = vld [vmem:[%s165 + $0x113] sm:$0xff]
      %v2502 = vld [vmem:[%s165 + $0x11b] sm:$0xff]
      %v2503 = vld [vmem:[%s165 + $0x123] sm:$0xff]
      %v2504 = vld [vmem:[%s165 + $0x12b] sm:$0xff]
      %s2505 = scalar_lea.vmem %s1, 16
      %v2506 = vld [vmem:[%s2505] sm:$0xf]
      %v2508 = vsel %vm895, %v2469, 0
      %v2511 = vsel %vm895, %v2470, 0
      %v2514 = vsel %vm895, %v2471, 0
      %v2517 = vsel %vm895, %v2472, 0
      %v2520 = vsel %vm895, %v2473, 0
      %v2523 = vsel %vm895, %v2474, 0
      %v2526 = vsel %vm895, %v2475, 0
      %v2529 = vsel %vm895, %v2476, 0
      %v2532 = vsel %vm895, %v2477, 0
      %v2535 = vsel %vm895, %v2478, 0
      %v2538 = vsel %vm895, %v2479, 0
      %v2541 = vsel %vm895, %v2480, 0
      %v2544 = vsel %vm895, %v2481, 0
      %v2547 = vsel %vm895, %v2482, 0
      %v2550 = vsel %vm895, %v2483, 0
      %v2553 = vsel %vm895, %v2484, 0
      %v2556 = vsel %vm895, %v2485, 0
      %v2559 = vsel %vm895, %v2486, 0
      %v2562 = vsel %vm895, %v2487, 0
      %v2565 = vsel %vm895, %v2488, 0
      %v2568 = vsel %vm895, %v2489, 0
      %v2571 = vsel %vm895, %v2490, 0
      %v2574 = vsel %vm895, %v2491, 0
      %v2577 = vsel %vm895, %v2492, 0
      %v2580 = vsel %vm895, %v2493, 0
      %v2583 = vsel %vm895, %v2494, 0
      %v2586 = vsel %vm895, %v2495, 0
      %v2589 = vsel %vm895, %v2496, 0
      %v2592 = vsel %vm895, %v2497, 0
      %v2595 = vsel %vm895, %v2498, 0
      %v2598 = vsel %vm895, %v2499, 0
      %v2601 = vsel %vm895, %v2500, 0
      %v2604 = vsel %vm895, %v2501, 0
      %v2607 = vsel %vm895, %v2502, 0
      %v2610 = vsel %vm895, %v2503, 0
      %v2613 = vsel %vm895, %v2504, 0
      %v2616 = vsel %vm1004, %v2506, 0
      %2618 = vmatprep.subr.mxu0 0.0
      %2619 = vmatpush1.msra.mxu0 0.0
      %2620 = vmatprep.subr.mxu0 0.0
      %2621 = vmatpush1.msra.mxu0 0.0
      %2622 = vmatprep.subr.mxu0 0.0
      %2623 = vmatpush1.msra.mxu0 0.0
      %2624 = vmatprep.subr.mxu0 0.0
      %2625 = vmatpush1.msra.mxu0 0.0
      %2626 = vmatprep.subr.mxu0 0.0
      %2627 = vmatpush1.msra.mxu0 0.0
      %2628 = vmatprep.subr.mxu0 0.0
      %2629 = vmatpush1.msra.mxu0 0.0
      %2630 = vmatprep.subr.mxu0 0.0
      %2631 = vmatpush1.msra.mxu0 0.0
      %2632 = vmatprep.subr.mxu0 0.0
      %2633 = vmatpush1.msra.mxu0 0.0
      %2634 = vmatprep.subr.mxu0 0.0
      %2635 = vmatpush1.msra.mxu0 0.0
      %2636 = vmatprep.subr.mxu0 0.0
      %2637 = vmatpush1.msra.mxu0 0.0
      %2638 = vmatprep.subr.mxu0 0.0
      %2639 = vmatpush1.msra.mxu0 0.0
      %2640 = vmatprep.subr.mxu0 0.0
      %2641 = vmatpush1.msra.mxu0 0.0
      %2642 = vmatprep.subr.mxu0 0.0
      %2643 = vmatpush1.msra.mxu0 0.0
      %2644 = vmatprep.subr.mxu0 0.0
      %2645 = vmatpush1.msra.mxu0 0.0
      %2646 = vmatprep.subr.mxu0 0.0
      %2647 = vmatpush1.msra.mxu0 0.0
      %2648 = vmatprep.subr.mxu0 0.0
      %2649 = vmatpush1.msra.mxu0 %v2616
      %2650 = vmatprep.subr.mxu0 0.0
      %2651 = vmatpush2.msra.mxu0 0.0
      %2652 = vmatprep.subr.mxu0 0.0
      %2653 = vmatpush2.msra.mxu0 0.0
      %2654 = vmatprep.subr.mxu0 0.0
      %2655 = vmatpush2.msra.mxu0 0.0
      %2656 = vmatprep.subr.mxu0 0.0
      %2657 = vmatpush2.msra.mxu0 0.0
      %2658 = vmatprep.subr.mxu0 0.0
      %2659 = vmatpush2.msra.mxu0 0.0
      %2660 = vmatprep.subr.mxu0 0.0
      %2661 = vmatpush2.msra.mxu0 0.0
      %2662 = vmatprep.subr.mxu0 0.0
      %2663 = vmatpush2.msra.mxu0 0.0
      %2664 = vmatprep.subr.mxu0 0.0
      %2665 = vmatpush2.msra.mxu0 0.0
      %2666 = vmatprep.subr.mxu0 0.0
      %2667 = vmatpush2.msra.mxu0 0.0
      %2668 = vmatprep.subr.mxu0 0.0
      %2669 = vmatpush2.msra.mxu0 0.0
      %2670 = vmatprep.subr.mxu0 0.0
      %2671 = vmatpush2.msra.mxu0 0.0
      %2672 = vmatprep.subr.mxu0 0.0
      %2673 = vmatpush2.msra.mxu0 0.0
      %2674 = vmatprep.subr.mxu0 0.0
      %2675 = vmatpush2.msra.mxu0 0.0
      %2676 = vmatprep.subr.mxu0 0.0
      %2677 = vmatpush2.msra.mxu0 0.0
      %2678 = vmatprep.subr.mxu0 0.0
      %2679 = vmatpush2.msra.mxu0 0.0
      %2680 = vmatprep.subr.mxu0 0.0
      %2681 = vmatpush2.msra.mxu0 0.0
      %2682 = vmatprep.mubr.f32.mxu0 0.0
      %2683 = vmatmul.mubr.f32.gmra.mxu0 %v2508
      %v2684 = vpop.f32.mrf.mxu0
      %v2685 = vadd.f32 0.0, %v2684
      %v2686 = vpop.f32.mrf.mxu0
      %2687 = vmatprep.mubr.f32.mxu0 0.0
      %2688 = vmatmul.mubr.f32.gmra.mxu0 %v2511
      %v2689 = vpop.f32.mrf.mxu0
      %v2690 = vadd.f32 0.0, %v2689
      %v2691 = vpop.f32.mrf.mxu0
      %2692 = vmatprep.mubr.f32.mxu0 0.0
      %2693 = vmatmul.mubr.f32.gmra.mxu0 %v2514
      %v2694 = vpop.f32.mrf.mxu0
      %v2695 = vadd.f32 0.0, %v2694
      %v2696 = vpop.f32.mrf.mxu0
      %2697 = vmatprep.mubr.f32.mxu0 0.0
      %2698 = vmatmul.mubr.f32.gmra.mxu0 %v2517
      %v2699 = vpop.f32.mrf.mxu0
      %v2700 = vadd.f32 0.0, %v2699
      %v2701 = vpop.f32.mrf.mxu0
      %2702 = vmatprep.mubr.f32.mxu0 0.0
      %2703 = vmatmul.mubr.f32.gmra.mxu0 %v2520
      %v2704 = vpop.f32.mrf.mxu0
      %v2705 = vadd.f32 0.0, %v2704
      %v2706 = vpop.f32.mrf.mxu0
      %2707 = vmatprep.mubr.f32.mxu0 0.0
      %2708 = vmatmul.mubr.f32.gmra.mxu0 %v2523
      %v2709 = vpop.f32.mrf.mxu0
      %v2710 = vadd.f32 0.0, %v2709
      %v2711 = vpop.f32.mrf.mxu0
      %2712 = vmatprep.mubr.f32.mxu0 0.0
      %2713 = vmatmul.mubr.f32.gmra.mxu0 %v2526
      %v2714 = vpop.f32.mrf.mxu0
      %v2715 = vadd.f32 0.0, %v2714
      %v2716 = vpop.f32.mrf.mxu0
      %2717 = vmatprep.mubr.f32.mxu0 0.0
      %2718 = vmatmul.mubr.f32.gmra.mxu0 %v2529
      %v2719 = vpop.f32.mrf.mxu0
      %v2720 = vadd.f32 0.0, %v2719
      %v2721 = vpop.f32.mrf.mxu0
      %2722 = vmatprep.mubr.f32.mxu0 0.0
      %2723 = vmatmul.mubr.f32.gmra.mxu0 %v2532
      %v2724 = vpop.f32.mrf.mxu0
      %v2725 = vadd.f32 0.0, %v2724
      %v2726 = vpop.f32.mrf.mxu0
      %2727 = vmatprep.mubr.f32.mxu0 0.0
      %2728 = vmatmul.mubr.f32.gmra.mxu0 %v2535
      %v2729 = vpop.f32.mrf.mxu0
      %v2730 = vadd.f32 0.0, %v2729
      %v2731 = vpop.f32.mrf.mxu0
      %2732 = vmatprep.mubr.f32.mxu0 0.0
      %2733 = vmatmul.mubr.f32.gmra.mxu0 %v2538
      %v2734 = vpop.f32.mrf.mxu0
      %v2735 = vadd.f32 0.0, %v2734
      %v2736 = vpop.f32.mrf.mxu0
      %2737 = vmatprep.mubr.f32.mxu0 0.0
      %2738 = vmatmul.mubr.f32.gmra.mxu0 %v2541
      %v2739 = vpop.f32.mrf.mxu0
      %v2740 = vadd.f32 0.0, %v2739
      %v2741 = vpop.f32.mrf.mxu0
      %2742 = vmatprep.mubr.f32.mxu0 0.0
      %2743 = vmatmul.mubr.f32.gmra.mxu0 %v2544
      %v2744 = vpop.f32.mrf.mxu0
      %v2745 = vadd.f32 0.0, %v2744
      %v2746 = vpop.f32.mrf.mxu0
      %2747 = vmatprep.mubr.f32.mxu0 0.0
      %2748 = vmatmul.mubr.f32.gmra.mxu0 %v2547
      %v2749 = vpop.f32.mrf.mxu0
      %v2750 = vadd.f32 0.0, %v2749
      %v2751 = vpop.f32.mrf.mxu0
      %2752 = vmatprep.mubr.f32.mxu0 0.0
      %2753 = vmatmul.mubr.f32.gmra.mxu0 %v2550
      %v2754 = vpop.f32.mrf.mxu0
      %v2755 = vadd.f32 0.0, %v2754
      %v2756 = vpop.f32.mrf.mxu0
      %2757 = vmatprep.mubr.f32.mxu0 0.0
      %2758 = vmatmul.mubr.f32.gmra.mxu0 %v2553
      %v2759 = vpop.f32.mrf.mxu0
      %v2760 = vadd.f32 0.0, %v2759
      %v2761 = vpop.f32.mrf.mxu0
      %2762 = vmatprep.mubr.f32.mxu0 0.0
      %2763 = vmatmul.mubr.f32.gmra.mxu0 %v2556
      %v2764 = vpop.f32.mrf.mxu0
      %v2765 = vadd.f32 0.0, %v2764
      %v2766 = vpop.f32.mrf.mxu0
      %2767 = vmatprep.mubr.f32.mxu0 0.0
      %2768 = vmatmul.mubr.f32.gmra.mxu0 %v2559
      %v2769 = vpop.f32.mrf.mxu0
      %v2770 = vadd.f32 0.0, %v2769
      %v2771 = vpop.f32.mrf.mxu0
      %2772 = vmatprep.mubr.f32.mxu0 0.0
      %2773 = vmatmul.mubr.f32.gmra.mxu0 %v2562
      %v2774 = vpop.f32.mrf.mxu0
      %v2775 = vadd.f32 0.0, %v2774
      %v2776 = vpop.f32.mrf.mxu0
      %2777 = vmatprep.mubr.f32.mxu0 0.0
      %2778 = vmatmul.mubr.f32.gmra.mxu0 %v2565
      %v2779 = vpop.f32.mrf.mxu0
      %v2780 = vadd.f32 0.0, %v2779
      %v2781 = vpop.f32.mrf.mxu0
      %2782 = vmatprep.mubr.f32.mxu0 0.0
      %2783 = vmatmul.mubr.f32.gmra.mxu0 %v2568
      %v2784 = vpop.f32.mrf.mxu0
      %v2785 = vadd.f32 0.0, %v2784
      %v2786 = vpop.f32.mrf.mxu0
      %2787 = vmatprep.mubr.f32.mxu0 0.0
      %2788 = vmatmul.mubr.f32.gmra.mxu0 %v2571
      %v2789 = vpop.f32.mrf.mxu0
      %v2790 = vadd.f32 0.0, %v2789
      %v2791 = vpop.f32.mrf.mxu0
      %2792 = vmatprep.mubr.f32.mxu0 0.0
      %2793 = vmatmul.mubr.f32.gmra.mxu0 %v2574
      %v2794 = vpop.f32.mrf.mxu0
      %v2795 = vadd.f32 0.0, %v2794
      %v2796 = vpop.f32.mrf.mxu0
      %2797 = vmatprep.mubr.f32.mxu0 0.0
      %2798 = vmatmul.mubr.f32.gmra.mxu0 %v2577
      %v2799 = vpop.f32.mrf.mxu0
      %v2800 = vadd.f32 0.0, %v2799
      %v2801 = vpop.f32.mrf.mxu0
      %2802 = vmatprep.mubr.f32.mxu0 0.0
      %2803 = vmatmul.mubr.f32.gmra.mxu0 %v2580
      %v2804 = vpop.f32.mrf.mxu0
      %v2805 = vadd.f32 0.0, %v2804
      %v2806 = vpop.f32.mrf.mxu0
      %2807 = vmatprep.mubr.f32.mxu0 0.0
      %2808 = vmatmul.mubr.f32.gmra.mxu0 %v2583
      %v2809 = vpop.f32.mrf.mxu0
      %v2810 = vadd.f32 0.0, %v2809
      %v2811 = vpop.f32.mrf.mxu0
      %2812 = vmatprep.mubr.f32.mxu0 0.0
      %2813 = vmatmul.mubr.f32.gmra.mxu0 %v2586
      %v2814 = vpop.f32.mrf.mxu0
      %v2815 = vadd.f32 0.0, %v2814
      %v2816 = vpop.f32.mrf.mxu0
      %2817 = vmatprep.mubr.f32.mxu0 0.0
      %2818 = vmatmul.mubr.f32.gmra.mxu0 %v2589
      %v2819 = vpop.f32.mrf.mxu0
      %v2820 = vadd.f32 0.0, %v2819
      %v2821 = vpop.f32.mrf.mxu0
      %2822 = vmatprep.mubr.f32.mxu0 0.0
      %2823 = vmatmul.mubr.f32.gmra.mxu0 %v2592
      %v2824 = vpop.f32.mrf.mxu0
      %v2825 = vadd.f32 0.0, %v2824
      %v2826 = vpop.f32.mrf.mxu0
      %2827 = vmatprep.mubr.f32.mxu0 0.0
      %2828 = vmatmul.mubr.f32.gmra.mxu0 %v2595
      %v2829 = vpop.f32.mrf.mxu0
      %v2830 = vadd.f32 0.0, %v2829
      %v2831 = vpop.f32.mrf.mxu0
      %2832 = vmatprep.mubr.f32.mxu0 0.0
      %2833 = vmatmul.mubr.f32.gmra.mxu0 %v2598
      %v2834 = vpop.f32.mrf.mxu0
      %v2835 = vadd.f32 0.0, %v2834
      %v2836 = vpop.f32.mrf.mxu0
      %2837 = vmatprep.mubr.f32.mxu0 0.0
      %2838 = vmatmul.mubr.f32.gmra.mxu0 %v2601
      %v2839 = vpop.f32.mrf.mxu0
      %v2840 = vadd.f32 0.0, %v2839
      %v2841 = vpop.f32.mrf.mxu0
      %2842 = vmatprep.mubr.f32.mxu0 0.0
      %2843 = vmatmul.mubr.f32.gmra.mxu0 %v2604
      %v2844 = vpop.f32.mrf.mxu0
      %v2845 = vadd.f32 0.0, %v2844
      %v2846 = vpop.f32.mrf.mxu0
      %2847 = vmatprep.mubr.f32.mxu0 0.0
      %2848 = vmatmul.mubr.f32.gmra.mxu0 %v2607
      %v2849 = vpop.f32.mrf.mxu0
      %v2850 = vadd.f32 0.0, %v2849
      %v2851 = vpop.f32.mrf.mxu0
      %2852 = vmatprep.mubr.f32.mxu0 0.0
      %2853 = vmatmul.mubr.f32.gmra.mxu0 %v2610
      %v2854 = vpop.f32.mrf.mxu0
      %v2855 = vadd.f32 0.0, %v2854
      %v2856 = vpop.f32.mrf.mxu0
      %2857 = vmatprep.mubr.f32.mxu0 0.0
      %2858 = vmatmul.mubr.f32.gmra.mxu0 %v2613
      %v2859 = vpop.f32.mrf.mxu0
      %v2860 = vadd.f32 0.0, %v2859
      %v2861 = vpop.f32.mrf.mxu0
      %2862 = vdwg.mxu0
      %v2863 = vadd.f32 %v2433, %v2685
      %v2864 = vadd.f32 %v2434, %v2690
      %v2865 = vadd.f32 %v2435, %v2695
      %v2866 = vadd.f32 %v2436, %v2700
      %v2867 = vadd.f32 %v2437, %v2705
      %v2868 = vadd.f32 %v2438, %v2710
      %v2869 = vadd.f32 %v2439, %v2715
      %v2870 = vadd.f32 %v2440, %v2720
      %v2871 = vadd.f32 %v2441, %v2725
      %v2872 = vadd.f32 %v2442, %v2730
      %v2873 = vadd.f32 %v2443, %v2735
      %v2874 = vadd.f32 %v2444, %v2740
      %v2875 = vadd.f32 %v2445, %v2745
      %v2876 = vadd.f32 %v2446, %v2750
      %v2877 = vadd.f32 %v2447, %v2755
      %v2878 = vadd.f32 %v2448, %v2760
      %v2879 = vadd.f32 %v2449, %v2765
      %v2880 = vadd.f32 %v2450, %v2770
      %v2881 = vadd.f32 %v2451, %v2775
      %v2882 = vadd.f32 %v2452, %v2780
      %v2883 = vadd.f32 %v2453, %v2785
      %v2884 = vadd.f32 %v2454, %v2790
      %v2885 = vadd.f32 %v2455, %v2795
      %v2886 = vadd.f32 %v2456, %v2800
      %v2887 = vadd.f32 %v2457, %v2805
      %v2888 = vadd.f32 %v2458, %v2810
      %v2889 = vadd.f32 %v2459, %v2815
      %v2890 = vadd.f32 %v2460, %v2820
      %v2891 = vadd.f32 %v2461, %v2825
      %v2892 = vadd.f32 %v2462, %v2830
      %v2893 = vadd.f32 %v2463, %v2835
      %v2894 = vadd.f32 %v2464, %v2840
      %v2895 = vadd.f32 %v2465, %v2845
      %v2896 = vadd.f32 %v2466, %v2850
      %v2897 = vadd.f32 %v2467, %v2855
      %v2898 = vadd.f32 %v2468, %v2860
      %v2899 = vld [vmem:[%s165 + $0x14] sm:$0xff]
      %v2900 = vld [vmem:[%s165 + $0x1c] sm:$0xff]
      %v2901 = vld [vmem:[%s165 + $0x24] sm:$0xff]
      %v2902 = vld [vmem:[%s165 + $0x2c] sm:$0xff]
      %v2903 = vld [vmem:[%s165 + $0x34] sm:$0xff]
      %v2904 = vld [vmem:[%s165 + $0x3c] sm:$0xff]
      %v2905 = vld [vmem:[%s165 + $0x44] sm:$0xff]
      %v2906 = vld [vmem:[%s165 + $0x4c] sm:$0xff]
      %v2907 = vld [vmem:[%s165 + $0x54] sm:$0xff]
      %v2908 = vld [vmem:[%s165 + $0x5c] sm:$0xff]
      %v2909 = vld [vmem:[%s165 + $0x64] sm:$0xff]
      %v2910 = vld [vmem:[%s165 + $0x6c] sm:$0xff]
      %v2911 = vld [vmem:[%s165 + $0x74] sm:$0xff]
      %v2912 = vld [vmem:[%s165 + $0x7c] sm:$0xff]
      %v2913 = vld [vmem:[%s165 + $0x84] sm:$0xff]
      %v2914 = vld [vmem:[%s165 + $0x8c] sm:$0xff]
      %v2915 = vld [vmem:[%s165 + $0x94] sm:$0xff]
      %v2916 = vld [vmem:[%s165 + $0x9c] sm:$0xff]
      %v2917 = vld [vmem:[%s165 + $0xa4] sm:$0xff]
      %v2918 = vld [vmem:[%s165 + $0xac] sm:$0xff]
      %v2919 = vld [vmem:[%s165 + $0xb4] sm:$0xff]
      %v2920 = vld [vmem:[%s165 + $0xbc] sm:$0xff]
      %v2921 = vld [vmem:[%s165 + $0xc4] sm:$0xff]
      %v2922 = vld [vmem:[%s165 + $0xcc] sm:$0xff]
      %v2923 = vld [vmem:[%s165 + $0xd4] sm:$0xff]
      %v2924 = vld [vmem:[%s165 + $0xdc] sm:$0xff]
      %v2925 = vld [vmem:[%s165 + $0xe4] sm:$0xff]
      %v2926 = vld [vmem:[%s165 + $0xec] sm:$0xff]
      %v2927 = vld [vmem:[%s165 + $0xf4] sm:$0xff]
      %v2928 = vld [vmem:[%s165 + $0xfc] sm:$0xff]
      %v2929 = vld [vmem:[%s165 + $0x104] sm:$0xff]
      %v2930 = vld [vmem:[%s165 + $0x10c] sm:$0xff]
      %v2931 = vld [vmem:[%s165 + $0x114] sm:$0xff]
      %v2932 = vld [vmem:[%s165 + $0x11c] sm:$0xff]
      %v2933 = vld [vmem:[%s165 + $0x124] sm:$0xff]
      %v2934 = vld [vmem:[%s165 + $0x12c] sm:$0xff]
      %s2935 = scalar_lea.vmem %s1, 20
      %v2936 = vld [vmem:[%s2935] sm:$0xf]
      %v2938 = vsel %vm895, %v2899, 0
      %v2941 = vsel %vm895, %v2900, 0
      %v2944 = vsel %vm895, %v2901, 0
      %v2947 = vsel %vm895, %v2902, 0
      %v2950 = vsel %vm895, %v2903, 0
      %v2953 = vsel %vm895, %v2904, 0
      %v2956 = vsel %vm895, %v2905, 0
      %v2959 = vsel %vm895, %v2906, 0
      %v2962 = vsel %vm895, %v2907, 0
      %v2965 = vsel %vm895, %v2908, 0
      %v2968 = vsel %vm895, %v2909, 0
      %v2971 = vsel %vm895, %v2910, 0
      %v2974 = vsel %vm895, %v2911, 0
      %v2977 = vsel %vm895, %v2912, 0
      %v2980 = vsel %vm895, %v2913, 0
      %v2983 = vsel %vm895, %v2914, 0
      %v2986 = vsel %vm895, %v2915, 0
      %v2989 = vsel %vm895, %v2916, 0
      %v2992 = vsel %vm895, %v2917, 0
      %v2995 = vsel %vm895, %v2918, 0
      %v2998 = vsel %vm895, %v2919, 0
      %v3001 = vsel %vm895, %v2920, 0
      %v3004 = vsel %vm895, %v2921, 0
      %v3007 = vsel %vm895, %v2922, 0
      %v3010 = vsel %vm895, %v2923, 0
      %v3013 = vsel %vm895, %v2924, 0
      %v3016 = vsel %vm895, %v2925, 0
      %v3019 = vsel %vm895, %v2926, 0
      %v3022 = vsel %vm895, %v2927, 0
      %v3025 = vsel %vm895, %v2928, 0
      %v3028 = vsel %vm895, %v2929, 0
      %v3031 = vsel %vm895, %v2930, 0
      %v3034 = vsel %vm895, %v2931, 0
      %v3037 = vsel %vm895, %v2932, 0
      %v3040 = vsel %vm895, %v2933, 0
      %v3043 = vsel %vm895, %v2934, 0
      %v3046 = vsel %vm1004, %v2936, 0
      %3048 = vmatprep.subr.mxu0 0.0
      %3049 = vmatpush1.msra.mxu0 0.0
      %3050 = vmatprep.subr.mxu0 0.0
      %3051 = vmatpush1.msra.mxu0 0.0
      %3052 = vmatprep.subr.mxu0 0.0
      %3053 = vmatpush1.msra.mxu0 0.0
      %3054 = vmatprep.subr.mxu0 0.0
      %3055 = vmatpush1.msra.mxu0 0.0
      %3056 = vmatprep.subr.mxu0 0.0
      %3057 = vmatpush1.msra.mxu0 0.0
      %3058 = vmatprep.subr.mxu0 0.0
      %3059 = vmatpush1.msra.mxu0 0.0
      %3060 = vmatprep.subr.mxu0 0.0
      %3061 = vmatpush1.msra.mxu0 0.0
      %3062 = vmatprep.subr.mxu0 0.0
      %3063 = vmatpush1.msra.mxu0 0.0
      %3064 = vmatprep.subr.mxu0 0.0
      %3065 = vmatpush1.msra.mxu0 0.0
      %3066 = vmatprep.subr.mxu0 0.0
      %3067 = vmatpush1.msra.mxu0 0.0
      %3068 = vmatprep.subr.mxu0 0.0
      %3069 = vmatpush1.msra.mxu0 0.0
      %3070 = vmatprep.subr.mxu0 0.0
      %3071 = vmatpush1.msra.mxu0 0.0
      %3072 = vmatprep.subr.mxu0 0.0
      %3073 = vmatpush1.msra.mxu0 0.0
      %3074 = vmatprep.subr.mxu0 0.0
      %3075 = vmatpush1.msra.mxu0 0.0
      %3076 = vmatprep.subr.mxu0 0.0
      %3077 = vmatpush1.msra.mxu0 0.0
      %3078 = vmatprep.subr.mxu0 0.0
      %3079 = vmatpush1.msra.mxu0 %v3046
      %3080 = vmatprep.subr.mxu0 0.0
      %3081 = vmatpush2.msra.mxu0 0.0
      %3082 = vmatprep.subr.mxu0 0.0
      %3083 = vmatpush2.msra.mxu0 0.0
      %3084 = vmatprep.subr.mxu0 0.0
      %3085 = vmatpush2.msra.mxu0 0.0
      %3086 = vmatprep.subr.mxu0 0.0
      %3087 = vmatpush2.msra.mxu0 0.0
      %3088 = vmatprep.subr.mxu0 0.0
      %3089 = vmatpush2.msra.mxu0 0.0
      %3090 = vmatprep.subr.mxu0 0.0
      %3091 = vmatpush2.msra.mxu0 0.0
      %3092 = vmatprep.subr.mxu0 0.0
      %3093 = vmatpush2.msra.mxu0 0.0
      %3094 = vmatprep.subr.mxu0 0.0
      %3095 = vmatpush2.msra.mxu0 0.0
      %3096 = vmatprep.subr.mxu0 0.0
      %3097 = vmatpush2.msra.mxu0 0.0
      %3098 = vmatprep.subr.mxu0 0.0
      %3099 = vmatpush2.msra.mxu0 0.0
      %3100 = vmatprep.subr.mxu0 0.0
      %3101 = vmatpush2.msra.mxu0 0.0
      %3102 = vmatprep.subr.mxu0 0.0
      %3103 = vmatpush2.msra.mxu0 0.0
      %3104 = vmatprep.subr.mxu0 0.0
      %3105 = vmatpush2.msra.mxu0 0.0
      %3106 = vmatprep.subr.mxu0 0.0
      %3107 = vmatpush2.msra.mxu0 0.0
      %3108 = vmatprep.subr.mxu0 0.0
      %3109 = vmatpush2.msra.mxu0 0.0
      %3110 = vmatprep.subr.mxu0 0.0
      %3111 = vmatpush2.msra.mxu0 0.0
      %3112 = vmatprep.mubr.f32.mxu0 0.0
      %3113 = vmatmul.mubr.f32.gmra.mxu0 %v2938
      %v3114 = vpop.f32.mrf.mxu0
      %v3115 = vadd.f32 0.0, %v3114
      %v3116 = vpop.f32.mrf.mxu0
      %3117 = vmatprep.mubr.f32.mxu0 0.0
      %3118 = vmatmul.mubr.f32.gmra.mxu0 %v2941
      %v3119 = vpop.f32.mrf.mxu0
      %v3120 = vadd.f32 0.0, %v3119
      %v3121 = vpop.f32.mrf.mxu0
      %3122 = vmatprep.mubr.f32.mxu0 0.0
      %3123 = vmatmul.mubr.f32.gmra.mxu0 %v2944
      %v3124 = vpop.f32.mrf.mxu0
      %v3125 = vadd.f32 0.0, %v3124
      %v3126 = vpop.f32.mrf.mxu0
      %3127 = vmatprep.mubr.f32.mxu0 0.0
      %3128 = vmatmul.mubr.f32.gmra.mxu0 %v2947
      %v3129 = vpop.f32.mrf.mxu0
      %v3130 = vadd.f32 0.0, %v3129
      %v3131 = vpop.f32.mrf.mxu0
      %3132 = vmatprep.mubr.f32.mxu0 0.0
      %3133 = vmatmul.mubr.f32.gmra.mxu0 %v2950
      %v3134 = vpop.f32.mrf.mxu0
      %v3135 = vadd.f32 0.0, %v3134
      %v3136 = vpop.f32.mrf.mxu0
      %3137 = vmatprep.mubr.f32.mxu0 0.0
      %3138 = vmatmul.mubr.f32.gmra.mxu0 %v2953
      %v3139 = vpop.f32.mrf.mxu0
      %v3140 = vadd.f32 0.0, %v3139
      %v3141 = vpop.f32.mrf.mxu0
      %3142 = vmatprep.mubr.f32.mxu0 0.0
      %3143 = vmatmul.mubr.f32.gmra.mxu0 %v2956
      %v3144 = vpop.f32.mrf.mxu0
      %v3145 = vadd.f32 0.0, %v3144
      %v3146 = vpop.f32.mrf.mxu0
      %3147 = vmatprep.mubr.f32.mxu0 0.0
      %3148 = vmatmul.mubr.f32.gmra.mxu0 %v2959
      %v3149 = vpop.f32.mrf.mxu0
      %v3150 = vadd.f32 0.0, %v3149
      %v3151 = vpop.f32.mrf.mxu0
      %3152 = vmatprep.mubr.f32.mxu0 0.0
      %3153 = vmatmul.mubr.f32.gmra.mxu0 %v2962
      %v3154 = vpop.f32.mrf.mxu0
      %v3155 = vadd.f32 0.0, %v3154
      %v3156 = vpop.f32.mrf.mxu0
      %3157 = vmatprep.mubr.f32.mxu0 0.0
      %3158 = vmatmul.mubr.f32.gmra.mxu0 %v2965
      %v3159 = vpop.f32.mrf.mxu0
      %v3160 = vadd.f32 0.0, %v3159
      %v3161 = vpop.f32.mrf.mxu0
      %3162 = vmatprep.mubr.f32.mxu0 0.0
      %3163 = vmatmul.mubr.f32.gmra.mxu0 %v2968
      %v3164 = vpop.f32.mrf.mxu0
      %v3165 = vadd.f32 0.0, %v3164
      %v3166 = vpop.f32.mrf.mxu0
      %3167 = vmatprep.mubr.f32.mxu0 0.0
      %3168 = vmatmul.mubr.f32.gmra.mxu0 %v2971
      %v3169 = vpop.f32.mrf.mxu0
      %v3170 = vadd.f32 0.0, %v3169
      %v3171 = vpop.f32.mrf.mxu0
      %3172 = vmatprep.mubr.f32.mxu0 0.0
      %3173 = vmatmul.mubr.f32.gmra.mxu0 %v2974
      %v3174 = vpop.f32.mrf.mxu0
      %v3175 = vadd.f32 0.0, %v3174
      %v3176 = vpop.f32.mrf.mxu0
      %3177 = vmatprep.mubr.f32.mxu0 0.0
      %3178 = vmatmul.mubr.f32.gmra.mxu0 %v2977
      %v3179 = vpop.f32.mrf.mxu0
      %v3180 = vadd.f32 0.0, %v3179
      %v3181 = vpop.f32.mrf.mxu0
      %3182 = vmatprep.mubr.f32.mxu0 0.0
      %3183 = vmatmul.mubr.f32.gmra.mxu0 %v2980
      %v3184 = vpop.f32.mrf.mxu0
      %v3185 = vadd.f32 0.0, %v3184
      %v3186 = vpop.f32.mrf.mxu0
      %3187 = vmatprep.mubr.f32.mxu0 0.0
      %3188 = vmatmul.mubr.f32.gmra.mxu0 %v2983
      %v3189 = vpop.f32.mrf.mxu0
      %v3190 = vadd.f32 0.0, %v3189
      %v3191 = vpop.f32.mrf.mxu0
      %3192 = vmatprep.mubr.f32.mxu0 0.0
      %3193 = vmatmul.mubr.f32.gmra.mxu0 %v2986
      %v3194 = vpop.f32.mrf.mxu0
      %v3195 = vadd.f32 0.0, %v3194
      %v3196 = vpop.f32.mrf.mxu0
      %3197 = vmatprep.mubr.f32.mxu0 0.0
      %3198 = vmatmul.mubr.f32.gmra.mxu0 %v2989
      %v3199 = vpop.f32.mrf.mxu0
      %v3200 = vadd.f32 0.0, %v3199
      %v3201 = vpop.f32.mrf.mxu0
      %3202 = vmatprep.mubr.f32.mxu0 0.0
      %3203 = vmatmul.mubr.f32.gmra.mxu0 %v2992
      %v3204 = vpop.f32.mrf.mxu0
      %v3205 = vadd.f32 0.0, %v3204
      %v3206 = vpop.f32.mrf.mxu0
      %3207 = vmatprep.mubr.f32.mxu0 0.0
      %3208 = vmatmul.mubr.f32.gmra.mxu0 %v2995
      %v3209 = vpop.f32.mrf.mxu0
      %v3210 = vadd.f32 0.0, %v3209
      %v3211 = vpop.f32.mrf.mxu0
      %3212 = vmatprep.mubr.f32.mxu0 0.0
      %3213 = vmatmul.mubr.f32.gmra.mxu0 %v2998
      %v3214 = vpop.f32.mrf.mxu0
      %v3215 = vadd.f32 0.0, %v3214
      %v3216 = vpop.f32.mrf.mxu0
      %3217 = vmatprep.mubr.f32.mxu0 0.0
      %3218 = vmatmul.mubr.f32.gmra.mxu0 %v3001
      %v3219 = vpop.f32.mrf.mxu0
      %v3220 = vadd.f32 0.0, %v3219
      %v3221 = vpop.f32.mrf.mxu0
      %3222 = vmatprep.mubr.f32.mxu0 0.0
      %3223 = vmatmul.mubr.f32.gmra.mxu0 %v3004
      %v3224 = vpop.f32.mrf.mxu0
      %v3225 = vadd.f32 0.0, %v3224
      %v3226 = vpop.f32.mrf.mxu0
      %3227 = vmatprep.mubr.f32.mxu0 0.0
      %3228 = vmatmul.mubr.f32.gmra.mxu0 %v3007
      %v3229 = vpop.f32.mrf.mxu0
      %v3230 = vadd.f32 0.0, %v3229
      %v3231 = vpop.f32.mrf.mxu0
      %3232 = vmatprep.mubr.f32.mxu0 0.0
      %3233 = vmatmul.mubr.f32.gmra.mxu0 %v3010
      %v3234 = vpop.f32.mrf.mxu0
      %v3235 = vadd.f32 0.0, %v3234
      %v3236 = vpop.f32.mrf.mxu0
      %3237 = vmatprep.mubr.f32.mxu0 0.0
      %3238 = vmatmul.mubr.f32.gmra.mxu0 %v3013
      %v3239 = vpop.f32.mrf.mxu0
      %v3240 = vadd.f32 0.0, %v3239
      %v3241 = vpop.f32.mrf.mxu0
      %3242 = vmatprep.mubr.f32.mxu0 0.0
      %3243 = vmatmul.mubr.f32.gmra.mxu0 %v3016
      %v3244 = vpop.f32.mrf.mxu0
      %v3245 = vadd.f32 0.0, %v3244
      %v3246 = vpop.f32.mrf.mxu0
      %3247 = vmatprep.mubr.f32.mxu0 0.0
      %3248 = vmatmul.mubr.f32.gmra.mxu0 %v3019
      %v3249 = vpop.f32.mrf.mxu0
      %v3250 = vadd.f32 0.0, %v3249
      %v3251 = vpop.f32.mrf.mxu0
      %3252 = vmatprep.mubr.f32.mxu0 0.0
      %3253 = vmatmul.mubr.f32.gmra.mxu0 %v3022
      %v3254 = vpop.f32.mrf.mxu0
      %v3255 = vadd.f32 0.0, %v3254
      %v3256 = vpop.f32.mrf.mxu0
      %3257 = vmatprep.mubr.f32.mxu0 0.0
      %3258 = vmatmul.mubr.f32.gmra.mxu0 %v3025
      %v3259 = vpop.f32.mrf.mxu0
      %v3260 = vadd.f32 0.0, %v3259
      %v3261 = vpop.f32.mrf.mxu0
      %3262 = vmatprep.mubr.f32.mxu0 0.0
      %3263 = vmatmul.mubr.f32.gmra.mxu0 %v3028
      %v3264 = vpop.f32.mrf.mxu0
      %v3265 = vadd.f32 0.0, %v3264
      %v3266 = vpop.f32.mrf.mxu0
      %3267 = vmatprep.mubr.f32.mxu0 0.0
      %3268 = vmatmul.mubr.f32.gmra.mxu0 %v3031
      %v3269 = vpop.f32.mrf.mxu0
      %v3270 = vadd.f32 0.0, %v3269
      %v3271 = vpop.f32.mrf.mxu0
      %3272 = vmatprep.mubr.f32.mxu0 0.0
      %3273 = vmatmul.mubr.f32.gmra.mxu0 %v3034
      %v3274 = vpop.f32.mrf.mxu0
      %v3275 = vadd.f32 0.0, %v3274
      %v3276 = vpop.f32.mrf.mxu0
      %3277 = vmatprep.mubr.f32.mxu0 0.0
      %3278 = vmatmul.mubr.f32.gmra.mxu0 %v3037
      %v3279 = vpop.f32.mrf.mxu0
      %v3280 = vadd.f32 0.0, %v3279
      %v3281 = vpop.f32.mrf.mxu0
      %3282 = vmatprep.mubr.f32.mxu0 0.0
      %3283 = vmatmul.mubr.f32.gmra.mxu0 %v3040
      %v3284 = vpop.f32.mrf.mxu0
      %v3285 = vadd.f32 0.0, %v3284
      %v3286 = vpop.f32.mrf.mxu0
      %3287 = vmatprep.mubr.f32.mxu0 0.0
      %3288 = vmatmul.mubr.f32.gmra.mxu0 %v3043
      %v3289 = vpop.f32.mrf.mxu0
      %v3290 = vadd.f32 0.0, %v3289
      %v3291 = vpop.f32.mrf.mxu0
      %3292 = vdwg.mxu0
      %v3293 = vadd.f32 %v2863, %v3115
      %v3294 = vadd.f32 %v2864, %v3120
      %v3295 = vadd.f32 %v2865, %v3125
      %v3296 = vadd.f32 %v2866, %v3130
      %v3297 = vadd.f32 %v2867, %v3135
      %v3298 = vadd.f32 %v2868, %v3140
      %v3299 = vadd.f32 %v2869, %v3145
      %v3300 = vadd.f32 %v2870, %v3150
      %v3301 = vadd.f32 %v2871, %v3155
      %v3302 = vadd.f32 %v2872, %v3160
      %v3303 = vadd.f32 %v2873, %v3165
      %v3304 = vadd.f32 %v2874, %v3170
      %v3305 = vadd.f32 %v2875, %v3175
      %v3306 = vadd.f32 %v2876, %v3180
      %v3307 = vadd.f32 %v2877, %v3185
      %v3308 = vadd.f32 %v2878, %v3190
      %v3309 = vadd.f32 %v2879, %v3195
      %v3310 = vadd.f32 %v2880, %v3200
      %v3311 = vadd.f32 %v2881, %v3205
      %v3312 = vadd.f32 %v2882, %v3210
      %v3313 = vadd.f32 %v2883, %v3215
      %v3314 = vadd.f32 %v2884, %v3220
      %v3315 = vadd.f32 %v2885, %v3225
      %v3316 = vadd.f32 %v2886, %v3230
      %v3317 = vadd.f32 %v2887, %v3235
      %v3318 = vadd.f32 %v2888, %v3240
      %v3319 = vadd.f32 %v2889, %v3245
      %v3320 = vadd.f32 %v2890, %v3250
      %v3321 = vadd.f32 %v2891, %v3255
      %v3322 = vadd.f32 %v2892, %v3260
      %v3323 = vadd.f32 %v2893, %v3265
      %v3324 = vadd.f32 %v2894, %v3270
      %v3325 = vadd.f32 %v2895, %v3275
      %v3326 = vadd.f32 %v2896, %v3280
      %v3327 = vadd.f32 %v2897, %v3285
      %v3328 = vadd.f32 %v2898, %v3290
      %v3329 = vld [vmem:[%s165 + $0x24] sm:$0xff]
      %v3330 = vld [vmem:[%s165 + $0x2c] sm:$0xff]
      %v3331 = vld [vmem:[%s165 + $0x34] sm:$0xff]
      %v3332 = vld [vmem:[%s165 + $0x3c] sm:$0xff]
      %v3333 = vld [vmem:[%s165 + $0x44] sm:$0xff]
      %v3334 = vld [vmem:[%s165 + $0x4c] sm:$0xff]
      %v3335 = vld [vmem:[%s165 + $0x54] sm:$0xff]
      %v3336 = vld [vmem:[%s165 + $0x5c] sm:$0xff]
      %v3337 = vld [vmem:[%s165 + $0x64] sm:$0xff]
      %v3338 = vld [vmem:[%s165 + $0x6c] sm:$0xff]
      %v3339 = vld [vmem:[%s165 + $0x74] sm:$0xff]
      %v3340 = vld [vmem:[%s165 + $0x7c] sm:$0xff]
      %v3341 = vld [vmem:[%s165 + $0x84] sm:$0xff]
      %v3342 = vld [vmem:[%s165 + $0x8c] sm:$0xff]
      %v3343 = vld [vmem:[%s165 + $0x94] sm:$0xff]
      %v3344 = vld [vmem:[%s165 + $0x9c] sm:$0xff]
      %v3345 = vld [vmem:[%s165 + $0xa4] sm:$0xff]
      %v3346 = vld [vmem:[%s165 + $0xac] sm:$0xff]
      %v3347 = vld [vmem:[%s165 + $0xb4] sm:$0xff]
      %v3348 = vld [vmem:[%s165 + $0xbc] sm:$0xff]
      %v3349 = vld [vmem:[%s165 + $0xc4] sm:$0xff]
      %v3350 = vld [vmem:[%s165 + $0xcc] sm:$0xff]
      %v3351 = vld [vmem:[%s165 + $0xd4] sm:$0xff]
      %v3352 = vld [vmem:[%s165 + $0xdc] sm:$0xff]
      %v3353 = vld [vmem:[%s165 + $0xe4] sm:$0xff]
      %v3354 = vld [vmem:[%s165 + $0xec] sm:$0xff]
      %v3355 = vld [vmem:[%s165 + $0xf4] sm:$0xff]
      %v3356 = vld [vmem:[%s165 + $0xfc] sm:$0xff]
      %v3357 = vld [vmem:[%s165 + $0x104] sm:$0xff]
      %v3358 = vld [vmem:[%s165 + $0x10c] sm:$0xff]
      %v3359 = vld [vmem:[%s165 + $0x114] sm:$0xff]
      %v3360 = vld [vmem:[%s165 + $0x11c] sm:$0xff]
      %v3361 = vld [vmem:[%s165 + $0x124] sm:$0xff]
      %v3362 = vld [vmem:[%s165 + $0x12c] sm:$0xff]
      %v3363 = vld [vmem:[%s165 + $0x134] sm:$0xff]
      %v3364 = vld [vmem:[%s165 + $0x13c] sm:$0xff]
      %s3365 = scalar_lea.vmem %s1, 24
      %v3366 = vld [vmem:[%s3365] sm:$0xf]
      %v3368 = vsel %vm895, %v3329, 0
      %v3371 = vsel %vm895, %v3330, 0
      %v3374 = vsel %vm895, %v3331, 0
      %v3377 = vsel %vm895, %v3332, 0
      %v3380 = vsel %vm895, %v3333, 0
      %v3383 = vsel %vm895, %v3334, 0
      %v3386 = vsel %vm895, %v3335, 0
      %v3389 = vsel %vm895, %v3336, 0
      %v3392 = vsel %vm895, %v3337, 0
      %v3395 = vsel %vm895, %v3338, 0
      %v3398 = vsel %vm895, %v3339, 0
      %v3401 = vsel %vm895, %v3340, 0
      %v3404 = vsel %vm895, %v3341, 0
      %v3407 = vsel %vm895, %v3342, 0
      %v3410 = vsel %vm895, %v3343, 0
      %v3413 = vsel %vm895, %v3344, 0
      %v3416 = vsel %vm895, %v3345, 0
      %v3419 = vsel %vm895, %v3346, 0
      %v3422 = vsel %vm895, %v3347, 0
      %v3425 = vsel %vm895, %v3348, 0
      %v3428 = vsel %vm895, %v3349, 0
      %v3431 = vsel %vm895, %v3350, 0
      %v3434 = vsel %vm895, %v3351, 0
      %v3437 = vsel %vm895, %v3352, 0
      %v3440 = vsel %vm895, %v3353, 0
      %v3443 = vsel %vm895, %v3354, 0
      %v3446 = vsel %vm895, %v3355, 0
      %v3449 = vsel %vm895, %v3356, 0
      %v3452 = vsel %vm895, %v3357, 0
      %v3455 = vsel %vm895, %v3358, 0
      %v3458 = vsel %vm895, %v3359, 0
      %v3461 = vsel %vm895, %v3360, 0
      %v3464 = vsel %vm895, %v3361, 0
      %v3467 = vsel %vm895, %v3362, 0
      %v3470 = vsel %vm895, %v3363, 0
      %v3473 = vsel %vm895, %v3364, 0
      %v3476 = vsel %vm1004, %v3366, 0
      %3478 = vmatprep.subr.mxu0 0.0
      %3479 = vmatpush1.msra.mxu0 0.0
      %3480 = vmatprep.subr.mxu0 0.0
      %3481 = vmatpush1.msra.mxu0 0.0
      %3482 = vmatprep.subr.mxu0 0.0
      %3483 = vmatpush1.msra.mxu0 0.0
      %3484 = vmatprep.subr.mxu0 0.0
      %3485 = vmatpush1.msra.mxu0 0.0
      %3486 = vmatprep.subr.mxu0 0.0
      %3487 = vmatpush1.msra.mxu0 0.0
      %3488 = vmatprep.subr.mxu0 0.0
      %3489 = vmatpush1.msra.mxu0 0.0
      %3490 = vmatprep.subr.mxu0 0.0
      %3491 = vmatpush1.msra.mxu0 0.0
      %3492 = vmatprep.subr.mxu0 0.0
      %3493 = vmatpush1.msra.mxu0 0.0
      %3494 = vmatprep.subr.mxu0 0.0
      %3495 = vmatpush1.msra.mxu0 0.0
      %3496 = vmatprep.subr.mxu0 0.0
      %3497 = vmatpush1.msra.mxu0 0.0
      %3498 = vmatprep.subr.mxu0 0.0
      %3499 = vmatpush1.msra.mxu0 0.0
      %3500 = vmatprep.subr.mxu0 0.0
      %3501 = vmatpush1.msra.mxu0 0.0
      %3502 = vmatprep.subr.mxu0 0.0
      %3503 = vmatpush1.msra.mxu0 0.0
      %3504 = vmatprep.subr.mxu0 0.0
      %3505 = vmatpush1.msra.mxu0 0.0
      %3506 = vmatprep.subr.mxu0 0.0
      %3507 = vmatpush1.msra.mxu0 0.0
      %3508 = vmatprep.subr.mxu0 0.0
      %3509 = vmatpush1.msra.mxu0 %v3476
      %3510 = vmatprep.subr.mxu0 0.0
      %3511 = vmatpush2.msra.mxu0 0.0
      %3512 = vmatprep.subr.mxu0 0.0
      %3513 = vmatpush2.msra.mxu0 0.0
      %3514 = vmatprep.subr.mxu0 0.0
      %3515 = vmatpush2.msra.mxu0 0.0
      %3516 = vmatprep.subr.mxu0 0.0
      %3517 = vmatpush2.msra.mxu0 0.0
      %3518 = vmatprep.subr.mxu0 0.0
      %3519 = vmatpush2.msra.mxu0 0.0
      %3520 = vmatprep.subr.mxu0 0.0
      %3521 = vmatpush2.msra.mxu0 0.0
      %3522 = vmatprep.subr.mxu0 0.0
      %3523 = vmatpush2.msra.mxu0 0.0
      %3524 = vmatprep.subr.mxu0 0.0
      %3525 = vmatpush2.msra.mxu0 0.0
      %3526 = vmatprep.subr.mxu0 0.0
      %3527 = vmatpush2.msra.mxu0 0.0
      %3528 = vmatprep.subr.mxu0 0.0
      %3529 = vmatpush2.msra.mxu0 0.0
      %3530 = vmatprep.subr.mxu0 0.0
      %3531 = vmatpush2.msra.mxu0 0.0
      %3532 = vmatprep.subr.mxu0 0.0
      %3533 = vmatpush2.msra.mxu0 0.0
      %3534 = vmatprep.subr.mxu0 0.0
      %3535 = vmatpush2.msra.mxu0 0.0
      %3536 = vmatprep.subr.mxu0 0.0
      %3537 = vmatpush2.msra.mxu0 0.0
      %3538 = vmatprep.subr.mxu0 0.0
      %3539 = vmatpush2.msra.mxu0 0.0
      %3540 = vmatprep.subr.mxu0 0.0
      %3541 = vmatpush2.msra.mxu0 0.0
      %3542 = vmatprep.mubr.f32.mxu0 0.0
      %3543 = vmatmul.mubr.f32.gmra.mxu0 %v3368
      %v3544 = vpop.f32.mrf.mxu0
      %v3545 = vadd.f32 0.0, %v3544
      %v3546 = vpop.f32.mrf.mxu0
      %3547 = vmatprep.mubr.f32.mxu0 0.0
      %3548 = vmatmul.mubr.f32.gmra.mxu0 %v3371
      %v3549 = vpop.f32.mrf.mxu0
      %v3550 = vadd.f32 0.0, %v3549
      %v3551 = vpop.f32.mrf.mxu0
      %3552 = vmatprep.mubr.f32.mxu0 0.0
      %3553 = vmatmul.mubr.f32.gmra.mxu0 %v3374
      %v3554 = vpop.f32.mrf.mxu0
      %v3555 = vadd.f32 0.0, %v3554
      %v3556 = vpop.f32.mrf.mxu0
      %3557 = vmatprep.mubr.f32.mxu0 0.0
      %3558 = vmatmul.mubr.f32.gmra.mxu0 %v3377
      %v3559 = vpop.f32.mrf.mxu0
      %v3560 = vadd.f32 0.0, %v3559
      %v3561 = vpop.f32.mrf.mxu0
      %3562 = vmatprep.mubr.f32.mxu0 0.0
      %3563 = vmatmul.mubr.f32.gmra.mxu0 %v3380
      %v3564 = vpop.f32.mrf.mxu0
      %v3565 = vadd.f32 0.0, %v3564
      %v3566 = vpop.f32.mrf.mxu0
      %3567 = vmatprep.mubr.f32.mxu0 0.0
      %3568 = vmatmul.mubr.f32.gmra.mxu0 %v3383
      %v3569 = vpop.f32.mrf.mxu0
      %v3570 = vadd.f32 0.0, %v3569
      %v3571 = vpop.f32.mrf.mxu0
      %3572 = vmatprep.mubr.f32.mxu0 0.0
      %3573 = vmatmul.mubr.f32.gmra.mxu0 %v3386
      %v3574 = vpop.f32.mrf.mxu0
      %v3575 = vadd.f32 0.0, %v3574
      %v3576 = vpop.f32.mrf.mxu0
      %3577 = vmatprep.mubr.f32.mxu0 0.0
      %3578 = vmatmul.mubr.f32.gmra.mxu0 %v3389
      %v3579 = vpop.f32.mrf.mxu0
      %v3580 = vadd.f32 0.0, %v3579
      %v3581 = vpop.f32.mrf.mxu0
      %3582 = vmatprep.mubr.f32.mxu0 0.0
      %3583 = vmatmul.mubr.f32.gmra.mxu0 %v3392
      %v3584 = vpop.f32.mrf.mxu0
      %v3585 = vadd.f32 0.0, %v3584
      %v3586 = vpop.f32.mrf.mxu0
      %3587 = vmatprep.mubr.f32.mxu0 0.0
      %3588 = vmatmul.mubr.f32.gmra.mxu0 %v3395
      %v3589 = vpop.f32.mrf.mxu0
      %v3590 = vadd.f32 0.0, %v3589
      %v3591 = vpop.f32.mrf.mxu0
      %3592 = vmatprep.mubr.f32.mxu0 0.0
      %3593 = vmatmul.mubr.f32.gmra.mxu0 %v3398
      %v3594 = vpop.f32.mrf.mxu0
      %v3595 = vadd.f32 0.0, %v3594
      %v3596 = vpop.f32.mrf.mxu0
      %3597 = vmatprep.mubr.f32.mxu0 0.0
      %3598 = vmatmul.mubr.f32.gmra.mxu0 %v3401
      %v3599 = vpop.f32.mrf.mxu0
      %v3600 = vadd.f32 0.0, %v3599
      %v3601 = vpop.f32.mrf.mxu0
      %3602 = vmatprep.mubr.f32.mxu0 0.0
      %3603 = vmatmul.mubr.f32.gmra.mxu0 %v3404
      %v3604 = vpop.f32.mrf.mxu0
      %v3605 = vadd.f32 0.0, %v3604
      %v3606 = vpop.f32.mrf.mxu0
      %3607 = vmatprep.mubr.f32.mxu0 0.0
      %3608 = vmatmul.mubr.f32.gmra.mxu0 %v3407
      %v3609 = vpop.f32.mrf.mxu0
      %v3610 = vadd.f32 0.0, %v3609
      %v3611 = vpop.f32.mrf.mxu0
      %3612 = vmatprep.mubr.f32.mxu0 0.0
      %3613 = vmatmul.mubr.f32.gmra.mxu0 %v3410
      %v3614 = vpop.f32.mrf.mxu0
      %v3615 = vadd.f32 0.0, %v3614
      %v3616 = vpop.f32.mrf.mxu0
      %3617 = vmatprep.mubr.f32.mxu0 0.0
      %3618 = vmatmul.mubr.f32.gmra.mxu0 %v3413
      %v3619 = vpop.f32.mrf.mxu0
      %v3620 = vadd.f32 0.0, %v3619
      %v3621 = vpop.f32.mrf.mxu0
      %3622 = vmatprep.mubr.f32.mxu0 0.0
      %3623 = vmatmul.mubr.f32.gmra.mxu0 %v3416
      %v3624 = vpop.f32.mrf.mxu0
      %v3625 = vadd.f32 0.0, %v3624
      %v3626 = vpop.f32.mrf.mxu0
      %3627 = vmatprep.mubr.f32.mxu0 0.0
      %3628 = vmatmul.mubr.f32.gmra.mxu0 %v3419
      %v3629 = vpop.f32.mrf.mxu0
      %v3630 = vadd.f32 0.0, %v3629
      %v3631 = vpop.f32.mrf.mxu0
      %3632 = vmatprep.mubr.f32.mxu0 0.0
      %3633 = vmatmul.mubr.f32.gmra.mxu0 %v3422
      %v3634 = vpop.f32.mrf.mxu0
      %v3635 = vadd.f32 0.0, %v3634
      %v3636 = vpop.f32.mrf.mxu0
      %3637 = vmatprep.mubr.f32.mxu0 0.0
      %3638 = vmatmul.mubr.f32.gmra.mxu0 %v3425
      %v3639 = vpop.f32.mrf.mxu0
      %v3640 = vadd.f32 0.0, %v3639
      %v3641 = vpop.f32.mrf.mxu0
      %3642 = vmatprep.mubr.f32.mxu0 0.0
      %3643 = vmatmul.mubr.f32.gmra.mxu0 %v3428
      %v3644 = vpop.f32.mrf.mxu0
      %v3645 = vadd.f32 0.0, %v3644
      %v3646 = vpop.f32.mrf.mxu0
      %3647 = vmatprep.mubr.f32.mxu0 0.0
      %3648 = vmatmul.mubr.f32.gmra.mxu0 %v3431
      %v3649 = vpop.f32.mrf.mxu0
      %v3650 = vadd.f32 0.0, %v3649
      %v3651 = vpop.f32.mrf.mxu0
      %3652 = vmatprep.mubr.f32.mxu0 0.0
      %3653 = vmatmul.mubr.f32.gmra.mxu0 %v3434
      %v3654 = vpop.f32.mrf.mxu0
      %v3655 = vadd.f32 0.0, %v3654
      %v3656 = vpop.f32.mrf.mxu0
      %3657 = vmatprep.mubr.f32.mxu0 0.0
      %3658 = vmatmul.mubr.f32.gmra.mxu0 %v3437
      %v3659 = vpop.f32.mrf.mxu0
      %v3660 = vadd.f32 0.0, %v3659
      %v3661 = vpop.f32.mrf.mxu0
      %3662 = vmatprep.mubr.f32.mxu0 0.0
      %3663 = vmatmul.mubr.f32.gmra.mxu0 %v3440
      %v3664 = vpop.f32.mrf.mxu0
      %v3665 = vadd.f32 0.0, %v3664
      %v3666 = vpop.f32.mrf.mxu0
      %3667 = vmatprep.mubr.f32.mxu0 0.0
      %3668 = vmatmul.mubr.f32.gmra.mxu0 %v3443
      %v3669 = vpop.f32.mrf.mxu0
      %v3670 = vadd.f32 0.0, %v3669
      %v3671 = vpop.f32.mrf.mxu0
      %3672 = vmatprep.mubr.f32.mxu0 0.0
      %3673 = vmatmul.mubr.f32.gmra.mxu0 %v3446
      %v3674 = vpop.f32.mrf.mxu0
      %v3675 = vadd.f32 0.0, %v3674
      %v3676 = vpop.f32.mrf.mxu0
      %3677 = vmatprep.mubr.f32.mxu0 0.0
      %3678 = vmatmul.mubr.f32.gmra.mxu0 %v3449
      %v3679 = vpop.f32.mrf.mxu0
      %v3680 = vadd.f32 0.0, %v3679
      %v3681 = vpop.f32.mrf.mxu0
      %3682 = vmatprep.mubr.f32.mxu0 0.0
      %3683 = vmatmul.mubr.f32.gmra.mxu0 %v3452
      %v3684 = vpop.f32.mrf.mxu0
      %v3685 = vadd.f32 0.0, %v3684
      %v3686 = vpop.f32.mrf.mxu0
      %3687 = vmatprep.mubr.f32.mxu0 0.0
      %3688 = vmatmul.mubr.f32.gmra.mxu0 %v3455
      %v3689 = vpop.f32.mrf.mxu0
      %v3690 = vadd.f32 0.0, %v3689
      %v3691 = vpop.f32.mrf.mxu0
      %3692 = vmatprep.mubr.f32.mxu0 0.0
      %3693 = vmatmul.mubr.f32.gmra.mxu0 %v3458
      %v3694 = vpop.f32.mrf.mxu0
      %v3695 = vadd.f32 0.0, %v3694
      %v3696 = vpop.f32.mrf.mxu0
      %3697 = vmatprep.mubr.f32.mxu0 0.0
      %3698 = vmatmul.mubr.f32.gmra.mxu0 %v3461
      %v3699 = vpop.f32.mrf.mxu0
      %v3700 = vadd.f32 0.0, %v3699
      %v3701 = vpop.f32.mrf.mxu0
      %3702 = vmatprep.mubr.f32.mxu0 0.0
      %3703 = vmatmul.mubr.f32.gmra.mxu0 %v3464
      %v3704 = vpop.f32.mrf.mxu0
      %v3705 = vadd.f32 0.0, %v3704
      %v3706 = vpop.f32.mrf.mxu0
      %3707 = vmatprep.mubr.f32.mxu0 0.0
      %3708 = vmatmul.mubr.f32.gmra.mxu0 %v3467
      %v3709 = vpop.f32.mrf.mxu0
      %v3710 = vadd.f32 0.0, %v3709
      %v3711 = vpop.f32.mrf.mxu0
      %3712 = vmatprep.mubr.f32.mxu0 0.0
      %3713 = vmatmul.mubr.f32.gmra.mxu0 %v3470
      %v3714 = vpop.f32.mrf.mxu0
      %v3715 = vadd.f32 0.0, %v3714
      %v3716 = vpop.f32.mrf.mxu0
      %3717 = vmatprep.mubr.f32.mxu0 0.0
      %3718 = vmatmul.mubr.f32.gmra.mxu0 %v3473
      %v3719 = vpop.f32.mrf.mxu0
      %v3720 = vadd.f32 0.0, %v3719
      %v3721 = vpop.f32.mrf.mxu0
      %3722 = vdwg.mxu0
      %v3723 = vadd.f32 %v3293, %v3545
      %v3724 = vadd.f32 %v3294, %v3550
      %v3725 = vadd.f32 %v3295, %v3555
      %v3726 = vadd.f32 %v3296, %v3560
      %v3727 = vadd.f32 %v3297, %v3565
      %v3728 = vadd.f32 %v3298, %v3570
      %v3729 = vadd.f32 %v3299, %v3575
      %v3730 = vadd.f32 %v3300, %v3580
      %v3731 = vadd.f32 %v3301, %v3585
      %v3732 = vadd.f32 %v3302, %v3590
      %v3733 = vadd.f32 %v3303, %v3595
      %v3734 = vadd.f32 %v3304, %v3600
      %v3735 = vadd.f32 %v3305, %v3605
      %v3736 = vadd.f32 %v3306, %v3610
      %v3737 = vadd.f32 %v3307, %v3615
      %v3738 = vadd.f32 %v3308, %v3620
      %v3739 = vadd.f32 %v3309, %v3625
      %v3740 = vadd.f32 %v3310, %v3630
      %v3741 = vadd.f32 %v3311, %v3635
      %v3742 = vadd.f32 %v3312, %v3640
      %v3743 = vadd.f32 %v3313, %v3645
      %v3744 = vadd.f32 %v3314, %v3650
      %v3745 = vadd.f32 %v3315, %v3655
      %v3746 = vadd.f32 %v3316, %v3660
      %v3747 = vadd.f32 %v3317, %v3665
      %v3748 = vadd.f32 %v3318, %v3670
      %v3749 = vadd.f32 %v3319, %v3675
      %v3750 = vadd.f32 %v3320, %v3680
      %v3751 = vadd.f32 %v3321, %v3685
      %v3752 = vadd.f32 %v3322, %v3690
      %v3753 = vadd.f32 %v3323, %v3695
      %v3754 = vadd.f32 %v3324, %v3700
      %v3755 = vadd.f32 %v3325, %v3705
      %v3756 = vadd.f32 %v3326, %v3710
      %v3757 = vadd.f32 %v3327, %v3715
      %v3758 = vadd.f32 %v3328, %v3720
      %v3759 = vld [vmem:[%s165 + $0x25] sm:$0xff]
      %v3760 = vld [vmem:[%s165 + $0x2d] sm:$0xff]
      %v3761 = vld [vmem:[%s165 + $0x35] sm:$0xff]
      %v3762 = vld [vmem:[%s165 + $0x3d] sm:$0xff]
      %v3763 = vld [vmem:[%s165 + $0x45] sm:$0xff]
      %v3764 = vld [vmem:[%s165 + $0x4d] sm:$0xff]
      %v3765 = vld [vmem:[%s165 + $0x55] sm:$0xff]
      %v3766 = vld [vmem:[%s165 + $0x5d] sm:$0xff]
      %v3767 = vld [vmem:[%s165 + $0x65] sm:$0xff]
      %v3768 = vld [vmem:[%s165 + $0x6d] sm:$0xff]
      %v3769 = vld [vmem:[%s165 + $0x75] sm:$0xff]
      %v3770 = vld [vmem:[%s165 + $0x7d] sm:$0xff]
      %v3771 = vld [vmem:[%s165 + $0x85] sm:$0xff]
      %v3772 = vld [vmem:[%s165 + $0x8d] sm:$0xff]
      %v3773 = vld [vmem:[%s165 + $0x95] sm:$0xff]
      %v3774 = vld [vmem:[%s165 + $0x9d] sm:$0xff]
      %v3775 = vld [vmem:[%s165 + $0xa5] sm:$0xff]
      %v3776 = vld [vmem:[%s165 + $0xad] sm:$0xff]
      %v3777 = vld [vmem:[%s165 + $0xb5] sm:$0xff]
      %v3778 = vld [vmem:[%s165 + $0xbd] sm:$0xff]
      %v3779 = vld [vmem:[%s165 + $0xc5] sm:$0xff]
      %v3780 = vld [vmem:[%s165 + $0xcd] sm:$0xff]
      %v3781 = vld [vmem:[%s165 + $0xd5] sm:$0xff]
      %v3782 = vld [vmem:[%s165 + $0xdd] sm:$0xff]
      %v3783 = vld [vmem:[%s165 + $0xe5] sm:$0xff]
      %v3784 = vld [vmem:[%s165 + $0xed] sm:$0xff]
      %v3785 = vld [vmem:[%s165 + $0xf5] sm:$0xff]
      %v3786 = vld [vmem:[%s165 + $0xfd] sm:$0xff]
      %v3787 = vld [vmem:[%s165 + $0x105] sm:$0xff]
      %v3788 = vld [vmem:[%s165 + $0x10d] sm:$0xff]
      %v3789 = vld [vmem:[%s165 + $0x115] sm:$0xff]
      %v3790 = vld [vmem:[%s165 + $0x11d] sm:$0xff]
      %v3791 = vld [vmem:[%s165 + $0x125] sm:$0xff]
      %v3792 = vld [vmem:[%s165 + $0x12d] sm:$0xff]
      %v3793 = vld [vmem:[%s165 + $0x135] sm:$0xff]
      %v3794 = vld [vmem:[%s165 + $0x13d] sm:$0xff]
      %s3795 = scalar_lea.vmem %s1, 28
      %v3796 = vld [vmem:[%s3795] sm:$0xf]
      %v3798 = vsel %vm895, %v3759, 0
      %v3801 = vsel %vm895, %v3760, 0
      %v3804 = vsel %vm895, %v3761, 0
      %v3807 = vsel %vm895, %v3762, 0
      %v3810 = vsel %vm895, %v3763, 0
      %v3813 = vsel %vm895, %v3764, 0
      %v3816 = vsel %vm895, %v3765, 0
      %v3819 = vsel %vm895, %v3766, 0
      %v3822 = vsel %vm895, %v3767, 0
      %v3825 = vsel %vm895, %v3768, 0
      %v3828 = vsel %vm895, %v3769, 0
      %v3831 = vsel %vm895, %v3770, 0
      %v3834 = vsel %vm895, %v3771, 0
      %v3837 = vsel %vm895, %v3772, 0
      %v3840 = vsel %vm895, %v3773, 0
      %v3843 = vsel %vm895, %v3774, 0
      %v3846 = vsel %vm895, %v3775, 0
      %v3849 = vsel %vm895, %v3776, 0
      %v3852 = vsel %vm895, %v3777, 0
      %v3855 = vsel %vm895, %v3778, 0
      %v3858 = vsel %vm895, %v3779, 0
      %v3861 = vsel %vm895, %v3780, 0
      %v3864 = vsel %vm895, %v3781, 0
      %v3867 = vsel %vm895, %v3782, 0
      %v3870 = vsel %vm895, %v3783, 0
      %v3873 = vsel %vm895, %v3784, 0
      %v3876 = vsel %vm895, %v3785, 0
      %v3879 = vsel %vm895, %v3786, 0
      %v3882 = vsel %vm895, %v3787, 0
      %v3885 = vsel %vm895, %v3788, 0
      %v3888 = vsel %vm895, %v3789, 0
      %v3891 = vsel %vm895, %v3790, 0
      %v3894 = vsel %vm895, %v3791, 0
      %v3897 = vsel %vm895, %v3792, 0
      %v3900 = vsel %vm895, %v3793, 0
      %v3903 = vsel %vm895, %v3794, 0
      %v3906 = vsel %vm1004, %v3796, 0
      %3908 = vmatprep.subr.mxu0 0.0
      %3909 = vmatpush1.msra.mxu0 0.0
      %3910 = vmatprep.subr.mxu0 0.0
      %3911 = vmatpush1.msra.mxu0 0.0
      %3912 = vmatprep.subr.mxu0 0.0
      %3913 = vmatpush1.msra.mxu0 0.0
      %3914 = vmatprep.subr.mxu0 0.0
      %3915 = vmatpush1.msra.mxu0 0.0
      %3916 = vmatprep.subr.mxu0 0.0
      %3917 = vmatpush1.msra.mxu0 0.0
      %3918 = vmatprep.subr.mxu0 0.0
      %3919 = vmatpush1.msra.mxu0 0.0
      %3920 = vmatprep.subr.mxu0 0.0
      %3921 = vmatpush1.msra.mxu0 0.0
      %3922 = vmatprep.subr.mxu0 0.0
      %3923 = vmatpush1.msra.mxu0 0.0
      %3924 = vmatprep.subr.mxu0 0.0
      %3925 = vmatpush1.msra.mxu0 0.0
      %3926 = vmatprep.subr.mxu0 0.0
      %3927 = vmatpush1.msra.mxu0 0.0
      %3928 = vmatprep.subr.mxu0 0.0
      %3929 = vmatpush1.msra.mxu0 0.0
      %3930 = vmatprep.subr.mxu0 0.0
      %3931 = vmatpush1.msra.mxu0 0.0
      %3932 = vmatprep.subr.mxu0 0.0
      %3933 = vmatpush1.msra.mxu0 0.0
      %3934 = vmatprep.subr.mxu0 0.0
      %3935 = vmatpush1.msra.mxu0 0.0
      %3936 = vmatprep.subr.mxu0 0.0
      %3937 = vmatpush1.msra.mxu0 0.0
      %3938 = vmatprep.subr.mxu0 0.0
      %3939 = vmatpush1.msra.mxu0 %v3906
      %3940 = vmatprep.subr.mxu0 0.0
      %3941 = vmatpush2.msra.mxu0 0.0
      %3942 = vmatprep.subr.mxu0 0.0
      %3943 = vmatpush2.msra.mxu0 0.0
      %3944 = vmatprep.subr.mxu0 0.0
      %3945 = vmatpush2.msra.mxu0 0.0
      %3946 = vmatprep.subr.mxu0 0.0
      %3947 = vmatpush2.msra.mxu0 0.0
      %3948 = vmatprep.subr.mxu0 0.0
      %3949 = vmatpush2.msra.mxu0 0.0
      %3950 = vmatprep.subr.mxu0 0.0
      %3951 = vmatpush2.msra.mxu0 0.0
      %3952 = vmatprep.subr.mxu0 0.0
      %3953 = vmatpush2.msra.mxu0 0.0
      %3954 = vmatprep.subr.mxu0 0.0
      %3955 = vmatpush2.msra.mxu0 0.0
      %3956 = vmatprep.subr.mxu0 0.0
      %3957 = vmatpush2.msra.mxu0 0.0
      %3958 = vmatprep.subr.mxu0 0.0
      %3959 = vmatpush2.msra.mxu0 0.0
      %3960 = vmatprep.subr.mxu0 0.0
      %3961 = vmatpush2.msra.mxu0 0.0
      %3962 = vmatprep.subr.mxu0 0.0
      %3963 = vmatpush2.msra.mxu0 0.0
      %3964 = vmatprep.subr.mxu0 0.0
      %3965 = vmatpush2.msra.mxu0 0.0
      %3966 = vmatprep.subr.mxu0 0.0
      %3967 = vmatpush2.msra.mxu0 0.0
      %3968 = vmatprep.subr.mxu0 0.0
      %3969 = vmatpush2.msra.mxu0 0.0
      %3970 = vmatprep.subr.mxu0 0.0
      %3971 = vmatpush2.msra.mxu0 0.0
      %3972 = vmatprep.mubr.f32.mxu0 0.0
      %3973 = vmatmul.mubr.f32.gmra.mxu0 %v3798
      %v3974 = vpop.f32.mrf.mxu0
      %v3975 = vadd.f32 0.0, %v3974
      %v3976 = vpop.f32.mrf.mxu0
      %3977 = vmatprep.mubr.f32.mxu0 0.0
      %3978 = vmatmul.mubr.f32.gmra.mxu0 %v3801
      %v3979 = vpop.f32.mrf.mxu0
      %v3980 = vadd.f32 0.0, %v3979
      %v3981 = vpop.f32.mrf.mxu0
      %3982 = vmatprep.mubr.f32.mxu0 0.0
      %3983 = vmatmul.mubr.f32.gmra.mxu0 %v3804
      %v3984 = vpop.f32.mrf.mxu0
      %v3985 = vadd.f32 0.0, %v3984
      %v3986 = vpop.f32.mrf.mxu0
      %3987 = vmatprep.mubr.f32.mxu0 0.0
      %3988 = vmatmul.mubr.f32.gmra.mxu0 %v3807
      %v3989 = vpop.f32.mrf.mxu0
      %v3990 = vadd.f32 0.0, %v3989
      %v3991 = vpop.f32.mrf.mxu0
      %3992 = vmatprep.mubr.f32.mxu0 0.0
      %3993 = vmatmul.mubr.f32.gmra.mxu0 %v3810
      %v3994 = vpop.f32.mrf.mxu0
      %v3995 = vadd.f32 0.0, %v3994
      %v3996 = vpop.f32.mrf.mxu0
      %3997 = vmatprep.mubr.f32.mxu0 0.0
      %3998 = vmatmul.mubr.f32.gmra.mxu0 %v3813
      %v3999 = vpop.f32.mrf.mxu0
      %v4000 = vadd.f32 0.0, %v3999
      %v4001 = vpop.f32.mrf.mxu0
      %4002 = vmatprep.mubr.f32.mxu0 0.0
      %4003 = vmatmul.mubr.f32.gmra.mxu0 %v3816
      %v4004 = vpop.f32.mrf.mxu0
      %v4005 = vadd.f32 0.0, %v4004
      %v4006 = vpop.f32.mrf.mxu0
      %4007 = vmatprep.mubr.f32.mxu0 0.0
      %4008 = vmatmul.mubr.f32.gmra.mxu0 %v3819
      %v4009 = vpop.f32.mrf.mxu0
      %v4010 = vadd.f32 0.0, %v4009
      %v4011 = vpop.f32.mrf.mxu0
      %4012 = vmatprep.mubr.f32.mxu0 0.0
      %4013 = vmatmul.mubr.f32.gmra.mxu0 %v3822
      %v4014 = vpop.f32.mrf.mxu0
      %v4015 = vadd.f32 0.0, %v4014
      %v4016 = vpop.f32.mrf.mxu0
      %4017 = vmatprep.mubr.f32.mxu0 0.0
      %4018 = vmatmul.mubr.f32.gmra.mxu0 %v3825
      %v4019 = vpop.f32.mrf.mxu0
      %v4020 = vadd.f32 0.0, %v4019
      %v4021 = vpop.f32.mrf.mxu0
      %4022 = vmatprep.mubr.f32.mxu0 0.0
      %4023 = vmatmul.mubr.f32.gmra.mxu0 %v3828
      %v4024 = vpop.f32.mrf.mxu0
      %v4025 = vadd.f32 0.0, %v4024
      %v4026 = vpop.f32.mrf.mxu0
      %4027 = vmatprep.mubr.f32.mxu0 0.0
      %4028 = vmatmul.mubr.f32.gmra.mxu0 %v3831
      %v4029 = vpop.f32.mrf.mxu0
      %v4030 = vadd.f32 0.0, %v4029
      %v4031 = vpop.f32.mrf.mxu0
      %4032 = vmatprep.mubr.f32.mxu0 0.0
      %4033 = vmatmul.mubr.f32.gmra.mxu0 %v3834
      %v4034 = vpop.f32.mrf.mxu0
      %v4035 = vadd.f32 0.0, %v4034
      %v4036 = vpop.f32.mrf.mxu0
      %4037 = vmatprep.mubr.f32.mxu0 0.0
      %4038 = vmatmul.mubr.f32.gmra.mxu0 %v3837
      %v4039 = vpop.f32.mrf.mxu0
      %v4040 = vadd.f32 0.0, %v4039
      %v4041 = vpop.f32.mrf.mxu0
      %4042 = vmatprep.mubr.f32.mxu0 0.0
      %4043 = vmatmul.mubr.f32.gmra.mxu0 %v3840
      %v4044 = vpop.f32.mrf.mxu0
      %v4045 = vadd.f32 0.0, %v4044
      %v4046 = vpop.f32.mrf.mxu0
      %4047 = vmatprep.mubr.f32.mxu0 0.0
      %4048 = vmatmul.mubr.f32.gmra.mxu0 %v3843
      %v4049 = vpop.f32.mrf.mxu0
      %v4050 = vadd.f32 0.0, %v4049
      %v4051 = vpop.f32.mrf.mxu0
      %4052 = vmatprep.mubr.f32.mxu0 0.0
      %4053 = vmatmul.mubr.f32.gmra.mxu0 %v3846
      %v4054 = vpop.f32.mrf.mxu0
      %v4055 = vadd.f32 0.0, %v4054
      %v4056 = vpop.f32.mrf.mxu0
      %4057 = vmatprep.mubr.f32.mxu0 0.0
      %4058 = vmatmul.mubr.f32.gmra.mxu0 %v3849
      %v4059 = vpop.f32.mrf.mxu0
      %v4060 = vadd.f32 0.0, %v4059
      %v4061 = vpop.f32.mrf.mxu0
      %4062 = vmatprep.mubr.f32.mxu0 0.0
      %4063 = vmatmul.mubr.f32.gmra.mxu0 %v3852
      %v4064 = vpop.f32.mrf.mxu0
      %v4065 = vadd.f32 0.0, %v4064
      %v4066 = vpop.f32.mrf.mxu0
      %4067 = vmatprep.mubr.f32.mxu0 0.0
      %4068 = vmatmul.mubr.f32.gmra.mxu0 %v3855
      %v4069 = vpop.f32.mrf.mxu0
      %v4070 = vadd.f32 0.0, %v4069
      %v4071 = vpop.f32.mrf.mxu0
      %4072 = vmatprep.mubr.f32.mxu0 0.0
      %4073 = vmatmul.mubr.f32.gmra.mxu0 %v3858
      %v4074 = vpop.f32.mrf.mxu0
      %v4075 = vadd.f32 0.0, %v4074
      %v4076 = vpop.f32.mrf.mxu0
      %4077 = vmatprep.mubr.f32.mxu0 0.0
      %4078 = vmatmul.mubr.f32.gmra.mxu0 %v3861
      %v4079 = vpop.f32.mrf.mxu0
      %v4080 = vadd.f32 0.0, %v4079
      %v4081 = vpop.f32.mrf.mxu0
      %4082 = vmatprep.mubr.f32.mxu0 0.0
      %4083 = vmatmul.mubr.f32.gmra.mxu0 %v3864
      %v4084 = vpop.f32.mrf.mxu0
      %v4085 = vadd.f32 0.0, %v4084
      %v4086 = vpop.f32.mrf.mxu0
      %4087 = vmatprep.mubr.f32.mxu0 0.0
      %4088 = vmatmul.mubr.f32.gmra.mxu0 %v3867
      %v4089 = vpop.f32.mrf.mxu0
      %v4090 = vadd.f32 0.0, %v4089
      %v4091 = vpop.f32.mrf.mxu0
      %4092 = vmatprep.mubr.f32.mxu0 0.0
      %4093 = vmatmul.mubr.f32.gmra.mxu0 %v3870
      %v4094 = vpop.f32.mrf.mxu0
      %v4095 = vadd.f32 0.0, %v4094
      %v4096 = vpop.f32.mrf.mxu0
      %4097 = vmatprep.mubr.f32.mxu0 0.0
      %4098 = vmatmul.mubr.f32.gmra.mxu0 %v3873
      %v4099 = vpop.f32.mrf.mxu0
      %v4100 = vadd.f32 0.0, %v4099
      %v4101 = vpop.f32.mrf.mxu0
      %4102 = vmatprep.mubr.f32.mxu0 0.0
      %4103 = vmatmul.mubr.f32.gmra.mxu0 %v3876
      %v4104 = vpop.f32.mrf.mxu0
      %v4105 = vadd.f32 0.0, %v4104
      %v4106 = vpop.f32.mrf.mxu0
      %4107 = vmatprep.mubr.f32.mxu0 0.0
      %4108 = vmatmul.mubr.f32.gmra.mxu0 %v3879
      %v4109 = vpop.f32.mrf.mxu0
      %v4110 = vadd.f32 0.0, %v4109
      %v4111 = vpop.f32.mrf.mxu0
      %4112 = vmatprep.mubr.f32.mxu0 0.0
      %4113 = vmatmul.mubr.f32.gmra.mxu0 %v3882
      %v4114 = vpop.f32.mrf.mxu0
      %v4115 = vadd.f32 0.0, %v4114
      %v4116 = vpop.f32.mrf.mxu0
      %4117 = vmatprep.mubr.f32.mxu0 0.0
      %4118 = vmatmul.mubr.f32.gmra.mxu0 %v3885
      %v4119 = vpop.f32.mrf.mxu0
      %v4120 = vadd.f32 0.0, %v4119
      %v4121 = vpop.f32.mrf.mxu0
      %4122 = vmatprep.mubr.f32.mxu0 0.0
      %4123 = vmatmul.mubr.f32.gmra.mxu0 %v3888
      %v4124 = vpop.f32.mrf.mxu0
      %v4125 = vadd.f32 0.0, %v4124
      %v4126 = vpop.f32.mrf.mxu0
      %4127 = vmatprep.mubr.f32.mxu0 0.0
      %4128 = vmatmul.mubr.f32.gmra.mxu0 %v3891
      %v4129 = vpop.f32.mrf.mxu0
      %v4130 = vadd.f32 0.0, %v4129
      %v4131 = vpop.f32.mrf.mxu0
      %4132 = vmatprep.mubr.f32.mxu0 0.0
      %4133 = vmatmul.mubr.f32.gmra.mxu0 %v3894
      %v4134 = vpop.f32.mrf.mxu0
      %v4135 = vadd.f32 0.0, %v4134
      %v4136 = vpop.f32.mrf.mxu0
      %4137 = vmatprep.mubr.f32.mxu0 0.0
      %4138 = vmatmul.mubr.f32.gmra.mxu0 %v3897
      %v4139 = vpop.f32.mrf.mxu0
      %v4140 = vadd.f32 0.0, %v4139
      %v4141 = vpop.f32.mrf.mxu0
      %4142 = vmatprep.mubr.f32.mxu0 0.0
      %4143 = vmatmul.mubr.f32.gmra.mxu0 %v3900
      %v4144 = vpop.f32.mrf.mxu0
      %v4145 = vadd.f32 0.0, %v4144
      %v4146 = vpop.f32.mrf.mxu0
      %4147 = vmatprep.mubr.f32.mxu0 0.0
      %4148 = vmatmul.mubr.f32.gmra.mxu0 %v3903
      %v4149 = vpop.f32.mrf.mxu0
      %v4150 = vadd.f32 0.0, %v4149
      %v4151 = vpop.f32.mrf.mxu0
      %4152 = vdwg.mxu0
      %v4153 = vadd.f32 %v3723, %v3975
      %v4154 = vadd.f32 %v3724, %v3980
      %v4155 = vadd.f32 %v3725, %v3985
      %v4156 = vadd.f32 %v3726, %v3990
      %v4157 = vadd.f32 %v3727, %v3995
      %v4158 = vadd.f32 %v3728, %v4000
      %v4159 = vadd.f32 %v3729, %v4005
      %v4160 = vadd.f32 %v3730, %v4010
      %v4161 = vadd.f32 %v3731, %v4015
      %v4162 = vadd.f32 %v3732, %v4020
      %v4163 = vadd.f32 %v3733, %v4025
      %v4164 = vadd.f32 %v3734, %v4030
      %v4165 = vadd.f32 %v3735, %v4035
      %v4166 = vadd.f32 %v3736, %v4040
      %v4167 = vadd.f32 %v3737, %v4045
      %v4168 = vadd.f32 %v3738, %v4050
      %v4169 = vadd.f32 %v3739, %v4055
      %v4170 = vadd.f32 %v3740, %v4060
      %v4171 = vadd.f32 %v3741, %v4065
      %v4172 = vadd.f32 %v3742, %v4070
      %v4173 = vadd.f32 %v3743, %v4075
      %v4174 = vadd.f32 %v3744, %v4080
      %v4175 = vadd.f32 %v3745, %v4085
      %v4176 = vadd.f32 %v3746, %v4090
      %v4177 = vadd.f32 %v3747, %v4095
      %v4178 = vadd.f32 %v3748, %v4100
      %v4179 = vadd.f32 %v3749, %v4105
      %v4180 = vadd.f32 %v3750, %v4110
      %v4181 = vadd.f32 %v3751, %v4115
      %v4182 = vadd.f32 %v3752, %v4120
      %v4183 = vadd.f32 %v3753, %v4125
      %v4184 = vadd.f32 %v3754, %v4130
      %v4185 = vadd.f32 %v3755, %v4135
      %v4186 = vadd.f32 %v3756, %v4140
      %v4187 = vadd.f32 %v3757, %v4145
      %v4188 = vadd.f32 %v3758, %v4150
      %v4189 = vld [vmem:[%s165 + $0x26] sm:$0xff]
      %v4190 = vld [vmem:[%s165 + $0x2e] sm:$0xff]
      %v4191 = vld [vmem:[%s165 + $0x36] sm:$0xff]
      %v4192 = vld [vmem:[%s165 + $0x3e] sm:$0xff]
      %v4193 = vld [vmem:[%s165 + $0x46] sm:$0xff]
      %v4194 = vld [vmem:[%s165 + $0x4e] sm:$0xff]
      %v4195 = vld [vmem:[%s165 + $0x56] sm:$0xff]
      %v4196 = vld [vmem:[%s165 + $0x5e] sm:$0xff]
      %v4197 = vld [vmem:[%s165 + $0x66] sm:$0xff]
      %v4198 = vld [vmem:[%s165 + $0x6e] sm:$0xff]
      %v4199 = vld [vmem:[%s165 + $0x76] sm:$0xff]
      %v4200 = vld [vmem:[%s165 + $0x7e] sm:$0xff]
      %v4201 = vld [vmem:[%s165 + $0x86] sm:$0xff]
      %v4202 = vld [vmem:[%s165 + $0x8e] sm:$0xff]
      %v4203 = vld [vmem:[%s165 + $0x96] sm:$0xff]
      %v4204 = vld [vmem:[%s165 + $0x9e] sm:$0xff]
      %v4205 = vld [vmem:[%s165 + $0xa6] sm:$0xff]
      %v4206 = vld [vmem:[%s165 + $0xae] sm:$0xff]
      %v4207 = vld [vmem:[%s165 + $0xb6] sm:$0xff]
      %v4208 = vld [vmem:[%s165 + $0xbe] sm:$0xff]
      %v4209 = vld [vmem:[%s165 + $0xc6] sm:$0xff]
      %v4210 = vld [vmem:[%s165 + $0xce] sm:$0xff]
      %v4211 = vld [vmem:[%s165 + $0xd6] sm:$0xff]
      %v4212 = vld [vmem:[%s165 + $0xde] sm:$0xff]
      %v4213 = vld [vmem:[%s165 + $0xe6] sm:$0xff]
      %v4214 = vld [vmem:[%s165 + $0xee] sm:$0xff]
      %v4215 = vld [vmem:[%s165 + $0xf6] sm:$0xff]
      %v4216 = vld [vmem:[%s165 + $0xfe] sm:$0xff]
      %v4217 = vld [vmem:[%s165 + $0x106] sm:$0xff]
      %v4218 = vld [vmem:[%s165 + $0x10e] sm:$0xff]
      %v4219 = vld [vmem:[%s165 + $0x116] sm:$0xff]
      %v4220 = vld [vmem:[%s165 + $0x11e] sm:$0xff]
      %v4221 = vld [vmem:[%s165 + $0x126] sm:$0xff]
      %v4222 = vld [vmem:[%s165 + $0x12e] sm:$0xff]
      %v4223 = vld [vmem:[%s165 + $0x136] sm:$0xff]
      %v4224 = vld [vmem:[%s165 + $0x13e] sm:$0xff]
      %s4225 = scalar_lea.vmem %s1, 32
      %v4226 = vld [vmem:[%s4225] sm:$0xf]
      %v4228 = vsel %vm895, %v4189, 0
      %v4231 = vsel %vm895, %v4190, 0
      %v4234 = vsel %vm895, %v4191, 0
      %v4237 = vsel %vm895, %v4192, 0
      %v4240 = vsel %vm895, %v4193, 0
      %v4243 = vsel %vm895, %v4194, 0
      %v4246 = vsel %vm895, %v4195, 0
      %v4249 = vsel %vm895, %v4196, 0
      %v4252 = vsel %vm895, %v4197, 0
      %v4255 = vsel %vm895, %v4198, 0
      %v4258 = vsel %vm895, %v4199, 0
      %v4261 = vsel %vm895, %v4200, 0
      %v4264 = vsel %vm895, %v4201, 0
      %v4267 = vsel %vm895, %v4202, 0
      %v4270 = vsel %vm895, %v4203, 0
      %v4273 = vsel %vm895, %v4204, 0
      %v4276 = vsel %vm895, %v4205, 0
      %v4279 = vsel %vm895, %v4206, 0
      %v4282 = vsel %vm895, %v4207, 0
      %v4285 = vsel %vm895, %v4208, 0
      %v4288 = vsel %vm895, %v4209, 0
      %v4291 = vsel %vm895, %v4210, 0
      %v4294 = vsel %vm895, %v4211, 0
      %v4297 = vsel %vm895, %v4212, 0
      %v4300 = vsel %vm895, %v4213, 0
      %v4303 = vsel %vm895, %v4214, 0
      %v4306 = vsel %vm895, %v4215, 0
      %v4309 = vsel %vm895, %v4216, 0
      %v4312 = vsel %vm895, %v4217, 0
      %v4315 = vsel %vm895, %v4218, 0
      %v4318 = vsel %vm895, %v4219, 0
      %v4321 = vsel %vm895, %v4220, 0
      %v4324 = vsel %vm895, %v4221, 0
      %v4327 = vsel %vm895, %v4222, 0
      %v4330 = vsel %vm895, %v4223, 0
      %v4333 = vsel %vm895, %v4224, 0
      %v4336 = vsel %vm1004, %v4226, 0
      %4338 = vmatprep.subr.mxu0 0.0
      %4339 = vmatpush1.msra.mxu0 0.0
      %4340 = vmatprep.subr.mxu0 0.0
      %4341 = vmatpush1.msra.mxu0 0.0
      %4342 = vmatprep.subr.mxu0 0.0
      %4343 = vmatpush1.msra.mxu0 0.0
      %4344 = vmatprep.subr.mxu0 0.0
      %4345 = vmatpush1.msra.mxu0 0.0
      %4346 = vmatprep.subr.mxu0 0.0
      %4347 = vmatpush1.msra.mxu0 0.0
      %4348 = vmatprep.subr.mxu0 0.0
      %4349 = vmatpush1.msra.mxu0 0.0
      %4350 = vmatprep.subr.mxu0 0.0
      %4351 = vmatpush1.msra.mxu0 0.0
      %4352 = vmatprep.subr.mxu0 0.0
      %4353 = vmatpush1.msra.mxu0 0.0
      %4354 = vmatprep.subr.mxu0 0.0
      %4355 = vmatpush1.msra.mxu0 0.0
      %4356 = vmatprep.subr.mxu0 0.0
      %4357 = vmatpush1.msra.mxu0 0.0
      %4358 = vmatprep.subr.mxu0 0.0
      %4359 = vmatpush1.msra.mxu0 0.0
      %4360 = vmatprep.subr.mxu0 0.0
      %4361 = vmatpush1.msra.mxu0 0.0
      %4362 = vmatprep.subr.mxu0 0.0
      %4363 = vmatpush1.msra.mxu0 0.0
      %4364 = vmatprep.subr.mxu0 0.0
      %4365 = vmatpush1.msra.mxu0 0.0
      %4366 = vmatprep.subr.mxu0 0.0
      %4367 = vmatpush1.msra.mxu0 0.0
      %4368 = vmatprep.subr.mxu0 0.0
      %4369 = vmatpush1.msra.mxu0 %v4336
      %4370 = vmatprep.subr.mxu0 0.0
      %4371 = vmatpush2.msra.mxu0 0.0
      %4372 = vmatprep.subr.mxu0 0.0
      %4373 = vmatpush2.msra.mxu0 0.0
      %4374 = vmatprep.subr.mxu0 0.0
      %4375 = vmatpush2.msra.mxu0 0.0
      %4376 = vmatprep.subr.mxu0 0.0
      %4377 = vmatpush2.msra.mxu0 0.0
      %4378 = vmatprep.subr.mxu0 0.0
      %4379 = vmatpush2.msra.mxu0 0.0
      %4380 = vmatprep.subr.mxu0 0.0
      %4381 = vmatpush2.msra.mxu0 0.0
      %4382 = vmatprep.subr.mxu0 0.0
      %4383 = vmatpush2.msra.mxu0 0.0
      %4384 = vmatprep.subr.mxu0 0.0
      %4385 = vmatpush2.msra.mxu0 0.0
      %4386 = vmatprep.subr.mxu0 0.0
      %4387 = vmatpush2.msra.mxu0 0.0
      %4388 = vmatprep.subr.mxu0 0.0
      %4389 = vmatpush2.msra.mxu0 0.0
      %4390 = vmatprep.subr.mxu0 0.0
      %4391 = vmatpush2.msra.mxu0 0.0
      %4392 = vmatprep.subr.mxu0 0.0
      %4393 = vmatpush2.msra.mxu0 0.0
      %4394 = vmatprep.subr.mxu0 0.0
      %4395 = vmatpush2.msra.mxu0 0.0
      %4396 = vmatprep.subr.mxu0 0.0
      %4397 = vmatpush2.msra.mxu0 0.0
      %4398 = vmatprep.subr.mxu0 0.0
      %4399 = vmatpush2.msra.mxu0 0.0
      %4400 = vmatprep.subr.mxu0 0.0
      %4401 = vmatpush2.msra.mxu0 0.0
      %4402 = vmatprep.mubr.f32.mxu0 0.0
      %4403 = vmatmul.mubr.f32.gmra.mxu0 %v4228
      %v4404 = vpop.f32.mrf.mxu0
      %v4405 = vadd.f32 0.0, %v4404
      %v4406 = vpop.f32.mrf.mxu0
      %4407 = vmatprep.mubr.f32.mxu0 0.0
      %4408 = vmatmul.mubr.f32.gmra.mxu0 %v4231
      %v4409 = vpop.f32.mrf.mxu0
      %v4410 = vadd.f32 0.0, %v4409
      %v4411 = vpop.f32.mrf.mxu0
      %4412 = vmatprep.mubr.f32.mxu0 0.0
      %4413 = vmatmul.mubr.f32.gmra.mxu0 %v4234
      %v4414 = vpop.f32.mrf.mxu0
      %v4415 = vadd.f32 0.0, %v4414
      %v4416 = vpop.f32.mrf.mxu0
      %4417 = vmatprep.mubr.f32.mxu0 0.0
      %4418 = vmatmul.mubr.f32.gmra.mxu0 %v4237
      %v4419 = vpop.f32.mrf.mxu0
      %v4420 = vadd.f32 0.0, %v4419
      %v4421 = vpop.f32.mrf.mxu0
      %4422 = vmatprep.mubr.f32.mxu0 0.0
      %4423 = vmatmul.mubr.f32.gmra.mxu0 %v4240
      %v4424 = vpop.f32.mrf.mxu0
      %v4425 = vadd.f32 0.0, %v4424
      %v4426 = vpop.f32.mrf.mxu0
      %4427 = vmatprep.mubr.f32.mxu0 0.0
      %4428 = vmatmul.mubr.f32.gmra.mxu0 %v4243
      %v4429 = vpop.f32.mrf.mxu0
      %v4430 = vadd.f32 0.0, %v4429
      %v4431 = vpop.f32.mrf.mxu0
      %4432 = vmatprep.mubr.f32.mxu0 0.0
      %4433 = vmatmul.mubr.f32.gmra.mxu0 %v4246
      %v4434 = vpop.f32.mrf.mxu0
      %v4435 = vadd.f32 0.0, %v4434
      %v4436 = vpop.f32.mrf.mxu0
      %4437 = vmatprep.mubr.f32.mxu0 0.0
      %4438 = vmatmul.mubr.f32.gmra.mxu0 %v4249
      %v4439 = vpop.f32.mrf.mxu0
      %v4440 = vadd.f32 0.0, %v4439
      %v4441 = vpop.f32.mrf.mxu0
      %4442 = vmatprep.mubr.f32.mxu0 0.0
      %4443 = vmatmul.mubr.f32.gmra.mxu0 %v4252
      %v4444 = vpop.f32.mrf.mxu0
      %v4445 = vadd.f32 0.0, %v4444
      %v4446 = vpop.f32.mrf.mxu0
      %4447 = vmatprep.mubr.f32.mxu0 0.0
      %4448 = vmatmul.mubr.f32.gmra.mxu0 %v4255
      %v4449 = vpop.f32.mrf.mxu0
      %v4450 = vadd.f32 0.0, %v4449
      %v4451 = vpop.f32.mrf.mxu0
      %4452 = vmatprep.mubr.f32.mxu0 0.0
      %4453 = vmatmul.mubr.f32.gmra.mxu0 %v4258
      %v4454 = vpop.f32.mrf.mxu0
      %v4455 = vadd.f32 0.0, %v4454
      %v4456 = vpop.f32.mrf.mxu0
      %4457 = vmatprep.mubr.f32.mxu0 0.0
      %4458 = vmatmul.mubr.f32.gmra.mxu0 %v4261
      %v4459 = vpop.f32.mrf.mxu0
      %v4460 = vadd.f32 0.0, %v4459
      %v4461 = vpop.f32.mrf.mxu0
      %4462 = vmatprep.mubr.f32.mxu0 0.0
      %4463 = vmatmul.mubr.f32.gmra.mxu0 %v4264
      %v4464 = vpop.f32.mrf.mxu0
      %v4465 = vadd.f32 0.0, %v4464
      %v4466 = vpop.f32.mrf.mxu0
      %4467 = vmatprep.mubr.f32.mxu0 0.0
      %4468 = vmatmul.mubr.f32.gmra.mxu0 %v4267
      %v4469 = vpop.f32.mrf.mxu0
      %v4470 = vadd.f32 0.0, %v4469
      %v4471 = vpop.f32.mrf.mxu0
      %4472 = vmatprep.mubr.f32.mxu0 0.0
      %4473 = vmatmul.mubr.f32.gmra.mxu0 %v4270
      %v4474 = vpop.f32.mrf.mxu0
      %v4475 = vadd.f32 0.0, %v4474
      %v4476 = vpop.f32.mrf.mxu0
      %4477 = vmatprep.mubr.f32.mxu0 0.0
      %4478 = vmatmul.mubr.f32.gmra.mxu0 %v4273
      %v4479 = vpop.f32.mrf.mxu0
      %v4480 = vadd.f32 0.0, %v4479
      %v4481 = vpop.f32.mrf.mxu0
      %4482 = vmatprep.mubr.f32.mxu0 0.0
      %4483 = vmatmul.mubr.f32.gmra.mxu0 %v4276
      %v4484 = vpop.f32.mrf.mxu0
      %v4485 = vadd.f32 0.0, %v4484
      %v4486 = vpop.f32.mrf.mxu0
      %4487 = vmatprep.mubr.f32.mxu0 0.0
      %4488 = vmatmul.mubr.f32.gmra.mxu0 %v4279
      %v4489 = vpop.f32.mrf.mxu0
      %v4490 = vadd.f32 0.0, %v4489
      %v4491 = vpop.f32.mrf.mxu0
      %4492 = vmatprep.mubr.f32.mxu0 0.0
      %4493 = vmatmul.mubr.f32.gmra.mxu0 %v4282
      %v4494 = vpop.f32.mrf.mxu0
      %v4495 = vadd.f32 0.0, %v4494
      %v4496 = vpop.f32.mrf.mxu0
      %4497 = vmatprep.mubr.f32.mxu0 0.0
      %4498 = vmatmul.mubr.f32.gmra.mxu0 %v4285
      %v4499 = vpop.f32.mrf.mxu0
      %v4500 = vadd.f32 0.0, %v4499
      %v4501 = vpop.f32.mrf.mxu0
      %4502 = vmatprep.mubr.f32.mxu0 0.0
      %4503 = vmatmul.mubr.f32.gmra.mxu0 %v4288
      %v4504 = vpop.f32.mrf.mxu0
      %v4505 = vadd.f32 0.0, %v4504
      %v4506 = vpop.f32.mrf.mxu0
      %4507 = vmatprep.mubr.f32.mxu0 0.0
      %4508 = vmatmul.mubr.f32.gmra.mxu0 %v4291
      %v4509 = vpop.f32.mrf.mxu0
      %v4510 = vadd.f32 0.0, %v4509
      %v4511 = vpop.f32.mrf.mxu0
      %4512 = vmatprep.mubr.f32.mxu0 0.0
      %4513 = vmatmul.mubr.f32.gmra.mxu0 %v4294
      %v4514 = vpop.f32.mrf.mxu0
      %v4515 = vadd.f32 0.0, %v4514
      %v4516 = vpop.f32.mrf.mxu0
      %4517 = vmatprep.mubr.f32.mxu0 0.0
      %4518 = vmatmul.mubr.f32.gmra.mxu0 %v4297
      %v4519 = vpop.f32.mrf.mxu0
      %v4520 = vadd.f32 0.0, %v4519
      %v4521 = vpop.f32.mrf.mxu0
      %4522 = vmatprep.mubr.f32.mxu0 0.0
      %4523 = vmatmul.mubr.f32.gmra.mxu0 %v4300
      %v4524 = vpop.f32.mrf.mxu0
      %v4525 = vadd.f32 0.0, %v4524
      %v4526 = vpop.f32.mrf.mxu0
      %4527 = vmatprep.mubr.f32.mxu0 0.0
      %4528 = vmatmul.mubr.f32.gmra.mxu0 %v4303
      %v4529 = vpop.f32.mrf.mxu0
      %v4530 = vadd.f32 0.0, %v4529
      %v4531 = vpop.f32.mrf.mxu0
      %4532 = vmatprep.mubr.f32.mxu0 0.0
      %4533 = vmatmul.mubr.f32.gmra.mxu0 %v4306
      %v4534 = vpop.f32.mrf.mxu0
      %v4535 = vadd.f32 0.0, %v4534
      %v4536 = vpop.f32.mrf.mxu0
      %4537 = vmatprep.mubr.f32.mxu0 0.0
      %4538 = vmatmul.mubr.f32.gmra.mxu0 %v4309
      %v4539 = vpop.f32.mrf.mxu0
      %v4540 = vadd.f32 0.0, %v4539
      %v4541 = vpop.f32.mrf.mxu0
      %4542 = vmatprep.mubr.f32.mxu0 0.0
      %4543 = vmatmul.mubr.f32.gmra.mxu0 %v4312
      %v4544 = vpop.f32.mrf.mxu0
      %v4545 = vadd.f32 0.0, %v4544
      %v4546 = vpop.f32.mrf.mxu0
      %4547 = vmatprep.mubr.f32.mxu0 0.0
      %4548 = vmatmul.mubr.f32.gmra.mxu0 %v4315
      %v4549 = vpop.f32.mrf.mxu0
      %v4550 = vadd.f32 0.0, %v4549
      %v4551 = vpop.f32.mrf.mxu0
      %4552 = vmatprep.mubr.f32.mxu0 0.0
      %4553 = vmatmul.mubr.f32.gmra.mxu0 %v4318
      %v4554 = vpop.f32.mrf.mxu0
      %v4555 = vadd.f32 0.0, %v4554
      %v4556 = vpop.f32.mrf.mxu0
      %4557 = vmatprep.mubr.f32.mxu0 0.0
      %4558 = vmatmul.mubr.f32.gmra.mxu0 %v4321
      %v4559 = vpop.f32.mrf.mxu0
      %v4560 = vadd.f32 0.0, %v4559
      %v4561 = vpop.f32.mrf.mxu0
      %4562 = vmatprep.mubr.f32.mxu0 0.0
      %4563 = vmatmul.mubr.f32.gmra.mxu0 %v4324
      %v4564 = vpop.f32.mrf.mxu0
      %v4565 = vadd.f32 0.0, %v4564
      %v4566 = vpop.f32.mrf.mxu0
      %4567 = vmatprep.mubr.f32.mxu0 0.0
      %4568 = vmatmul.mubr.f32.gmra.mxu0 %v4327
      %v4569 = vpop.f32.mrf.mxu0
      %v4570 = vadd.f32 0.0, %v4569
      %v4571 = vpop.f32.mrf.mxu0
      %4572 = vmatprep.mubr.f32.mxu0 0.0
      %4573 = vmatmul.mubr.f32.gmra.mxu0 %v4330
      %v4574 = vpop.f32.mrf.mxu0
      %v4575 = vadd.f32 0.0, %v4574
      %v4576 = vpop.f32.mrf.mxu0
      %4577 = vmatprep.mubr.f32.mxu0 0.0
      %4578 = vmatmul.mubr.f32.gmra.mxu0 %v4333
      %v4579 = vpop.f32.mrf.mxu0
      %v4580 = vadd.f32 0.0, %v4579
      %v4581 = vpop.f32.mrf.mxu0
      %4582 = vdwg.mxu0
      %v4583 = vadd.f32 %v4153, %v4405
      %v4584 = vadd.f32 %v4154, %v4410
      %v4585 = vadd.f32 %v4155, %v4415
      %v4586 = vadd.f32 %v4156, %v4420
      %v4587 = vadd.f32 %v4157, %v4425
      %v4588 = vadd.f32 %v4158, %v4430
      %v4589 = vadd.f32 %v4159, %v4435
      %v4590 = vadd.f32 %v4160, %v4440
      %v4591 = vadd.f32 %v4161, %v4445
      %v4592 = vadd.f32 %v4162, %v4450
      %v4593 = vadd.f32 %v4163, %v4455
      %v4594 = vadd.f32 %v4164, %v4460
      %v4595 = vadd.f32 %v4165, %v4465
      %v4596 = vadd.f32 %v4166, %v4470
      %v4597 = vadd.f32 %v4167, %v4475
      %v4598 = vadd.f32 %v4168, %v4480
      %v4599 = vadd.f32 %v4169, %v4485
      %v4600 = vadd.f32 %v4170, %v4490
      %v4601 = vadd.f32 %v4171, %v4495
      %v4602 = vadd.f32 %v4172, %v4500
      %v4603 = vadd.f32 %v4173, %v4505
      %v4604 = vadd.f32 %v4174, %v4510
      %v4605 = vadd.f32 %v4175, %v4515
      %v4606 = vadd.f32 %v4176, %v4520
      %v4607 = vadd.f32 %v4177, %v4525
      %v4608 = vadd.f32 %v4178, %v4530
      %v4609 = vadd.f32 %v4179, %v4535
      %v4610 = vadd.f32 %v4180, %v4540
      %v4611 = vadd.f32 %v4181, %v4545
      %v4612 = vadd.f32 %v4182, %v4550
      %v4613 = vadd.f32 %v4183, %v4555
      %v4614 = vadd.f32 %v4184, %v4560
      %v4615 = vadd.f32 %v4185, %v4565
      %v4616 = vadd.f32 %v4186, %v4570
      %v4617 = vadd.f32 %v4187, %v4575
      %v4618 = vadd.f32 %v4188, %v4580
      %v4619 = vsel %vm784, 1, 0
      %v4620 = vsel %vm785, 1, 0
      %v4621 = vsel %vm786, 1, 0
      %v4622 = vsel %vm787, 1, 0
      %v4623 = vsel %vm788, 1, 0
      %v4624 = vsel %vm789, 1, 0
      %v4625 = vsel %vm790, 1, 0
      %v4626 = vsel %vm791, 1, 0
      %v4627 = vsel %vm792, 1, 0
      %v4628 = vsel %vm793, 1, 0
      %v4629 = vsel %vm794, 1, 0
      %v4630 = vsel %vm795, 1, 0
      %v4631 = vsel %vm796, 1, 0
      %v4632 = vsel %vm797, 1, 0
      %v4633 = vsel %vm798, 1, 0
      %v4634 = vsel %vm799, 1, 0
      %v4635 = vsel %vm800, 1, 0
      %v4636 = vsel %vm801, 1, 0
      %v4637 = vsel %vm802, 1, 0
      %v4638 = vsel %vm803, 1, 0
      %v4639 = vsel %vm804, 1, 0
      %v4640 = vsel %vm805, 1, 0
      %v4641 = vsel %vm806, 1, 0
      %v4642 = vsel %vm807, 1, 0
      %v4643 = vsel %vm808, 1, 0
      %v4644 = vsel %vm809, 1, 0
      %v4645 = vsel %vm810, 1, 0
      %v4646 = vsel %vm811, 1, 0
      %v4647 = vsel %vm812, 1, 0
      %v4648 = vsel %vm813, 1, 0
      %v4649 = vsel %vm814, 1, 0
      %v4650 = vsel %vm815, 1, 0
      %v4651 = vsel %vm816, 1, 0
      %v4652 = vsel %vm817, 1, 0
      %v4653 = vsel %vm818, 1, 0
      %v4654 = vsel %vm819, 1, 0
      %vm4655 = vcmp.eq.s32.totalorder %v4619, 1
      %vm4656 = vcmp.eq.s32.totalorder %v4620, 1
      %vm4657 = vcmp.eq.s32.totalorder %v4621, 1
      %vm4658 = vcmp.eq.s32.totalorder %v4622, 1
      %vm4659 = vcmp.eq.s32.totalorder %v4623, 1
      %vm4660 = vcmp.eq.s32.totalorder %v4624, 1
      %vm4661 = vcmp.eq.s32.totalorder %v4625, 1
      %vm4662 = vcmp.eq.s32.totalorder %v4626, 1
      %vm4663 = vcmp.eq.s32.totalorder %v4627, 1
      %vm4664 = vcmp.eq.s32.totalorder %v4628, 1
      %vm4665 = vcmp.eq.s32.totalorder %v4629, 1
      %vm4666 = vcmp.eq.s32.totalorder %v4630, 1
      %vm4667 = vcmp.eq.s32.totalorder %v4631, 1
      %vm4668 = vcmp.eq.s32.totalorder %v4632, 1
      %vm4669 = vcmp.eq.s32.totalorder %v4633, 1
      %vm4670 = vcmp.eq.s32.totalorder %v4634, 1
      %vm4671 = vcmp.eq.s32.totalorder %v4635, 1
      %vm4672 = vcmp.eq.s32.totalorder %v4636, 1
      %vm4673 = vcmp.eq.s32.totalorder %v4637, 1
      %vm4674 = vcmp.eq.s32.totalorder %v4638, 1
      %vm4675 = vcmp.eq.s32.totalorder %v4639, 1
      %vm4676 = vcmp.eq.s32.totalorder %v4640, 1
      %vm4677 = vcmp.eq.s32.totalorder %v4641, 1
      %vm4678 = vcmp.eq.s32.totalorder %v4642, 1
      %vm4679 = vcmp.eq.s32.totalorder %v4643, 1
      %vm4680 = vcmp.eq.s32.totalorder %v4644, 1
      %vm4681 = vcmp.eq.s32.totalorder %v4645, 1
      %vm4682 = vcmp.eq.s32.totalorder %v4646, 1
      %vm4683 = vcmp.eq.s32.totalorder %v4647, 1
      %vm4684 = vcmp.eq.s32.totalorder %v4648, 1
      %vm4685 = vcmp.eq.s32.totalorder %v4649, 1
      %vm4686 = vcmp.eq.s32.totalorder %v4650, 1
      %vm4687 = vcmp.eq.s32.totalorder %v4651, 1
      %vm4688 = vcmp.eq.s32.totalorder %v4652, 1
      %vm4689 = vcmp.eq.s32.totalorder %v4653, 1
      %vm4690 = vcmp.eq.s32.totalorder %v4654, 1
      %v4691 = vsel %vm4655, %v4583, 0.0
      %v4692 = vsel %vm4656, %v4584, 0.0
      %v4693 = vsel %vm4657, %v4585, 0.0
      %v4694 = vsel %vm4658, %v4586, 0.0
      %v4695 = vsel %vm4659, %v4587, 0.0
      %v4696 = vsel %vm4660, %v4588, 0.0
      %v4697 = vsel %vm4661, %v4589, 0.0
      %v4698 = vsel %vm4662, %v4590, 0.0
      %v4699 = vsel %vm4663, %v4591, 0.0
      %v4700 = vsel %vm4664, %v4592, 0.0
      %v4701 = vsel %vm4665, %v4593, 0.0
      %v4702 = vsel %vm4666, %v4594, 0.0
      %v4703 = vsel %vm4667, %v4595, 0.0
      %v4704 = vsel %vm4668, %v4596, 0.0
      %v4705 = vsel %vm4669, %v4597, 0.0
      %v4706 = vsel %vm4670, %v4598, 0.0
      %v4707 = vsel %vm4671, %v4599, 0.0
      %v4708 = vsel %vm4672, %v4600, 0.0
      %v4709 = vsel %vm4673, %v4601, 0.0
      %v4710 = vsel %vm4674, %v4602, 0.0
      %v4711 = vsel %vm4675, %v4603, 0.0
      %v4712 = vsel %vm4676, %v4604, 0.0
      %v4713 = vsel %vm4677, %v4605, 0.0
      %v4714 = vsel %vm4678, %v4606, 0.0
      %v4715 = vsel %vm4679, %v4607, 0.0
      %v4716 = vsel %vm4680, %v4608, 0.0
      %v4717 = vsel %vm4681, %v4609, 0.0
      %v4718 = vsel %vm4682, %v4610, 0.0
      %v4719 = vsel %vm4683, %v4611, 0.0
      %v4720 = vsel %vm4684, %v4612, 0.0
      %v4721 = vsel %vm4685, %v4613, 0.0
      %v4722 = vsel %vm4686, %v4614, 0.0
      %v4723 = vsel %vm4687, %v4615, 0.0
      %v4724 = vsel %vm4688, %v4616, 0.0
      %v4725 = vsel %vm4689, %v4617, 0.0
      %v4726 = vsel %vm4690, %v4618, 0.0
      %v4727 = vsel %vm895, %v4691, 0.0
      %v4728 = vsel %vm895, %v4692, 0.0
      %v4729 = vadd.f32 %v4727, %v4728
      %v4730 = vsel %vm895, %v4693, 0.0
      %v4731 = vadd.f32 %v4729, %v4730
      %v4732 = vsel %vm895, %v4694, 0.0
      %v4733 = vadd.f32 %v4731, %v4732
      %v4734 = vsel %vm895, %v4695, 0.0
      %v4735 = vadd.f32 %v4733, %v4734
      %v4736 = vsel %vm895, %v4696, 0.0
      %v4737 = vadd.f32 %v4735, %v4736
      %v4738 = vsel %vm895, %v4697, 0.0
      %v4739 = vadd.f32 %v4737, %v4738
      %v4740 = vsel %vm895, %v4698, 0.0
      %v4741 = vadd.f32 %v4739, %v4740
      %v4742 = vsel %vm895, %v4699, 0.0
      %v4743 = vadd.f32 %v4741, %v4742
      %v4744 = vsel %vm895, %v4700, 0.0
      %v4745 = vadd.f32 %v4743, %v4744
      %v4746 = vsel %vm895, %v4701, 0.0
      %v4747 = vadd.f32 %v4745, %v4746
      %v4748 = vsel %vm895, %v4702, 0.0
      %v4749 = vadd.f32 %v4747, %v4748
      %v4750 = vsel %vm895, %v4703, 0.0
      %v4751 = vadd.f32 %v4749, %v4750
      %v4752 = vsel %vm895, %v4704, 0.0
      %v4753 = vadd.f32 %v4751, %v4752
      %v4754 = vsel %vm895, %v4705, 0.0
      %v4755 = vadd.f32 %v4753, %v4754
      %v4756 = vsel %vm895, %v4706, 0.0
      %v4757 = vadd.f32 %v4755, %v4756
      %v4758 = vsel %vm895, %v4707, 0.0
      %v4759 = vadd.f32 %v4757, %v4758
      %v4760 = vsel %vm895, %v4708, 0.0
      %v4761 = vadd.f32 %v4759, %v4760
      %v4762 = vsel %vm895, %v4709, 0.0
      %v4763 = vadd.f32 %v4761, %v4762
      %v4764 = vsel %vm895, %v4710, 0.0
      %v4765 = vadd.f32 %v4763, %v4764
      %v4766 = vsel %vm895, %v4711, 0.0
      %v4767 = vadd.f32 %v4765, %v4766
      %v4768 = vsel %vm895, %v4712, 0.0
      %v4769 = vadd.f32 %v4767, %v4768
      %v4770 = vsel %vm895, %v4713, 0.0
      %v4771 = vadd.f32 %v4769, %v4770
      %v4772 = vsel %vm895, %v4714, 0.0
      %v4773 = vadd.f32 %v4771, %v4772
      %v4774 = vsel %vm895, %v4715, 0.0
      %v4775 = vadd.f32 %v4773, %v4774
      %v4776 = vsel %vm895, %v4716, 0.0
      %v4777 = vadd.f32 %v4775, %v4776
      %v4778 = vsel %vm895, %v4717, 0.0
      %v4779 = vadd.f32 %v4777, %v4778
      %v4780 = vsel %vm895, %v4718, 0.0
      %v4781 = vadd.f32 %v4779, %v4780
      %v4782 = vsel %vm895, %v4719, 0.0
      %v4783 = vadd.f32 %v4781, %v4782
      %v4784 = vsel %vm895, %v4720, 0.0
      %v4785 = vadd.f32 %v4783, %v4784
      %v4786 = vsel %vm895, %v4721, 0.0
      %v4787 = vadd.f32 %v4785, %v4786
      %v4788 = vsel %vm895, %v4722, 0.0
      %v4789 = vadd.f32 %v4787, %v4788
      %v4790 = vsel %vm895, %v4723, 0.0
      %v4791 = vadd.f32 %v4789, %v4790
      %v4792 = vsel %vm895, %v4724, 0.0
      %v4793 = vadd.f32 %v4791, %v4792
      %v4794 = vsel %vm895, %v4725, 0.0
      %v4795 = vadd.f32 %v4793, %v4794
      %v4796 = vsel %vm895, %v4726, 0.0
      %v4797 = vadd.f32 %v4795, %v4796
      %v4798 = vrot.slane %v4797, 4
      %v4799 = vadd.f32 %v4797, %v4798
      %v4800 = vrot.slane %v4799, 2
      %v4801 = vadd.f32 %v4799, %v4800
      %v4802 = vrot.slane %v4801, 1
      %v4803 = vadd.f32 %v4801, %v4802
      %v4804 = vmul.f32 %v4803, 0.00390625
      %v4805 = vmul.f32 %v4691, %v4691
      %v4806 = vmul.f32 %v4692, %v4692
      %v4807 = vmul.f32 %v4693, %v4693
      %v4808 = vmul.f32 %v4694, %v4694
      %v4809 = vmul.f32 %v4695, %v4695
      %v4810 = vmul.f32 %v4696, %v4696
      %v4811 = vmul.f32 %v4697, %v4697
      %v4812 = vmul.f32 %v4698, %v4698
      %v4813 = vmul.f32 %v4699, %v4699
      %v4814 = vmul.f32 %v4700, %v4700
      %v4815 = vmul.f32 %v4701, %v4701
      %v4816 = vmul.f32 %v4702, %v4702
      %v4817 = vmul.f32 %v4703, %v4703
      %v4818 = vmul.f32 %v4704, %v4704
      %v4819 = vmul.f32 %v4705, %v4705
      %v4820 = vmul.f32 %v4706, %v4706
      %v4821 = vmul.f32 %v4707, %v4707
      %v4822 = vmul.f32 %v4708, %v4708
      %v4823 = vmul.f32 %v4709, %v4709
      %v4824 = vmul.f32 %v4710, %v4710
      %v4825 = vmul.f32 %v4711, %v4711
      %v4826 = vmul.f32 %v4712, %v4712
      %v4827 = vmul.f32 %v4713, %v4713
      %v4828 = vmul.f32 %v4714, %v4714
      %v4829 = vmul.f32 %v4715, %v4715
      %v4830 = vmul.f32 %v4716, %v4716
      %v4831 = vmul.f32 %v4717, %v4717
      %v4832 = vmul.f32 %v4718, %v4718
      %v4833 = vmul.f32 %v4719, %v4719
      %v4834 = vmul.f32 %v4720, %v4720
      %v4835 = vmul.f32 %v4721, %v4721
      %v4836 = vmul.f32 %v4722, %v4722
      %v4837 = vmul.f32 %v4723, %v4723
      %v4838 = vmul.f32 %v4724, %v4724
      %v4839 = vmul.f32 %v4725, %v4725
      %v4840 = vmul.f32 %v4726, %v4726
      %v4841 = vsel %vm895, %v4805, 0.0
      %v4842 = vsel %vm895, %v4806, 0.0
      %v4843 = vadd.f32 %v4841, %v4842
      %v4844 = vsel %vm895, %v4807, 0.0
      %v4845 = vadd.f32 %v4843, %v4844
      %v4846 = vsel %vm895, %v4808, 0.0
      %v4847 = vadd.f32 %v4845, %v4846
      %v4848 = vsel %vm895, %v4809, 0.0
      %v4849 = vadd.f32 %v4847, %v4848
      %v4850 = vsel %vm895, %v4810, 0.0
      %v4851 = vadd.f32 %v4849, %v4850
      %v4852 = vsel %vm895, %v4811, 0.0
      %v4853 = vadd.f32 %v4851, %v4852
      %v4854 = vsel %vm895, %v4812, 0.0
      %v4855 = vadd.f32 %v4853, %v4854
      %v4856 = vsel %vm895, %v4813, 0.0
      %v4857 = vadd.f32 %v4855, %v4856
      %v4858 = vsel %vm895, %v4814, 0.0
      %v4859 = vadd.f32 %v4857, %v4858
      %v4860 = vsel %vm895, %v4815, 0.0
      %v4861 = vadd.f32 %v4859, %v4860
      %v4862 = vsel %vm895, %v4816, 0.0
      %v4863 = vadd.f32 %v4861, %v4862
      %v4864 = vsel %vm895, %v4817, 0.0
      %v4865 = vadd.f32 %v4863, %v4864
      %v4866 = vsel %vm895, %v4818, 0.0
      %v4867 = vadd.f32 %v4865, %v4866
      %v4868 = vsel %vm895, %v4819, 0.0
      %v4869 = vadd.f32 %v4867, %v4868
      %v4870 = vsel %vm895, %v4820, 0.0
      %v4871 = vadd.f32 %v4869, %v4870
      %v4872 = vsel %vm895, %v4821, 0.0
      %v4873 = vadd.f32 %v4871, %v4872
      %v4874 = vsel %vm895, %v4822, 0.0
      %v4875 = vadd.f32 %v4873, %v4874
      %v4876 = vsel %vm895, %v4823, 0.0
      %v4877 = vadd.f32 %v4875, %v4876
      %v4878 = vsel %vm895, %v4824, 0.0
      %v4879 = vadd.f32 %v4877, %v4878
      %v4880 = vsel %vm895, %v4825, 0.0
      %v4881 = vadd.f32 %v4879, %v4880
      %v4882 = vsel %vm895, %v4826, 0.0
      %v4883 = vadd.f32 %v4881, %v4882
      %v4884 = vsel %vm895, %v4827, 0.0
      %v4885 = vadd.f32 %v4883, %v4884
      %v4886 = vsel %vm895, %v4828, 0.0
      %v4887 = vadd.f32 %v4885, %v4886
      %v4888 = vsel %vm895, %v4829, 0.0
      %v4889 = vadd.f32 %v4887, %v4888
      %v4890 = vsel %vm895, %v4830, 0.0
      %v4891 = vadd.f32 %v4889, %v4890
      %v4892 = vsel %vm895, %v4831, 0.0
      %v4893 = vadd.f32 %v4891, %v4892
      %v4894 = vsel %vm895, %v4832, 0.0
      %v4895 = vadd.f32 %v4893, %v4894
      %v4896 = vsel %vm895, %v4833, 0.0
      %v4897 = vadd.f32 %v4895, %v4896
      %v4898 = vsel %vm895, %v4834, 0.0
      %v4899 = vadd.f32 %v4897, %v4898
      %v4900 = vsel %vm895, %v4835, 0.0
      %v4901 = vadd.f32 %v4899, %v4900
      %v4902 = vsel %vm895, %v4836, 0.0
      %v4903 = vadd.f32 %v4901, %v4902
      %v4904 = vsel %vm895, %v4837, 0.0
      %v4905 = vadd.f32 %v4903, %v4904
      %v4906 = vsel %vm895, %v4838, 0.0
      %v4907 = vadd.f32 %v4905, %v4906
      %v4908 = vsel %vm895, %v4839, 0.0
      %v4909 = vadd.f32 %v4907, %v4908
      %v4910 = vsel %vm895, %v4840, 0.0
      %v4911 = vadd.f32 %v4909, %v4910
      %v4912 = vrot.slane %v4911, 4
      %v4913 = vadd.f32 %v4911, %v4912
      %v4914 = vrot.slane %v4913, 2
      %v4915 = vadd.f32 %v4913, %v4914
      %v4916 = vrot.slane %v4915, 1
      %v4917 = vadd.f32 %v4915, %v4916
      %v4918 = vmul.f32 %v4917, 0.00390625
      %v4919 = vmul.f32 %v4804, %v4804
      %v4920 = vsub.f32 %v4918, %v4919
      %v4921 = vmax.f32 %v4920, 0.0
      %v4922 = vadd.f32 %v4921, 1e-05
      %v4923 = vrsqrt.pop %v4922
      %v4924 = vmul.f32 %v4583, %v4923
      %v4925 = vmul.f32 %v4584, %v4923
      %v4926 = vmul.f32 %v4585, %v4923
      %v4927 = vmul.f32 %v4586, %v4923
      %v4928 = vmul.f32 %v4587, %v4923
      %v4929 = vmul.f32 %v4588, %v4923
      %v4930 = vmul.f32 %v4589, %v4923
      %v4931 = vmul.f32 %v4590, %v4923
      %v4932 = vmul.f32 %v4591, %v4923
      %v4933 = vmul.f32 %v4592, %v4923
      %v4934 = vmul.f32 %v4593, %v4923
      %v4935 = vmul.f32 %v4594, %v4923
      %v4936 = vmul.f32 %v4595, %v4923
      %v4937 = vmul.f32 %v4596, %v4923
      %v4938 = vmul.f32 %v4597, %v4923
      %v4939 = vmul.f32 %v4598, %v4923
      %v4940 = vmul.f32 %v4599, %v4923
      %v4941 = vmul.f32 %v4600, %v4923
      %v4942 = vmul.f32 %v4601, %v4923
      %v4943 = vmul.f32 %v4602, %v4923
      %v4944 = vmul.f32 %v4603, %v4923
      %v4945 = vmul.f32 %v4604, %v4923
      %v4946 = vmul.f32 %v4605, %v4923
      %v4947 = vmul.f32 %v4606, %v4923
      %v4948 = vmul.f32 %v4607, %v4923
      %v4949 = vmul.f32 %v4608, %v4923
      %v4950 = vmul.f32 %v4609, %v4923
      %v4951 = vmul.f32 %v4610, %v4923
      %v4952 = vmul.f32 %v4611, %v4923
      %v4953 = vmul.f32 %v4612, %v4923
      %v4954 = vmul.f32 %v4613, %v4923
      %v4955 = vmul.f32 %v4614, %v4923
      %v4956 = vmul.f32 %v4615, %v4923
      %v4957 = vmul.f32 %v4616, %v4923
      %v4958 = vmul.f32 %v4617, %v4923
      %v4959 = vmul.f32 %v4618, %v4923
      %v4960 = vmul.f32 %v4804, %v4923
      %v4961 = vsub.f32 %v4924, %v4960
      %v4962 = vsub.f32 %v4925, %v4960
      %v4963 = vsub.f32 %v4926, %v4960
      %v4964 = vsub.f32 %v4927, %v4960
      %v4965 = vsub.f32 %v4928, %v4960
      %v4966 = vsub.f32 %v4929, %v4960
      %v4967 = vsub.f32 %v4930, %v4960
      %v4968 = vsub.f32 %v4931, %v4960
      %v4969 = vsub.f32 %v4932, %v4960
      %v4970 = vsub.f32 %v4933, %v4960
      %v4971 = vsub.f32 %v4934, %v4960
      %v4972 = vsub.f32 %v4935, %v4960
      %v4973 = vsub.f32 %v4936, %v4960
      %v4974 = vsub.f32 %v4937, %v4960
      %v4975 = vsub.f32 %v4938, %v4960
      %v4976 = vsub.f32 %v4939, %v4960
      %v4977 = vsub.f32 %v4940, %v4960
      %v4978 = vsub.f32 %v4941, %v4960
      %v4979 = vsub.f32 %v4942, %v4960
      %v4980 = vsub.f32 %v4943, %v4960
      %v4981 = vsub.f32 %v4944, %v4960
      %v4982 = vsub.f32 %v4945, %v4960
      %v4983 = vsub.f32 %v4946, %v4960
      %v4984 = vsub.f32 %v4947, %v4960
      %v4985 = vsub.f32 %v4948, %v4960
      %v4986 = vsub.f32 %v4949, %v4960
      %v4987 = vsub.f32 %v4950, %v4960
      %v4988 = vsub.f32 %v4951, %v4960
      %v4989 = vsub.f32 %v4952, %v4960
      %v4990 = vsub.f32 %v4953, %v4960
      %v4991 = vsub.f32 %v4954, %v4960
      %v4992 = vsub.f32 %v4955, %v4960
      %v4993 = vsub.f32 %v4956, %v4960
      %v4994 = vsub.f32 %v4957, %v4960
      %v4995 = vsub.f32 %v4958, %v4960
      %v4996 = vsub.f32 %v4959, %v4960
      %v4997 = vmax.f32 %v4961, 0.0
      %v4998 = vmax.f32 %v4962, 0.0
      %v4999 = vmax.f32 %v4963, 0.0
      %v5000 = vmax.f32 %v4964, 0.0
      %v5001 = vmax.f32 %v4965, 0.0
      %v5002 = vmax.f32 %v4966, 0.0
      %v5003 = vmax.f32 %v4967, 0.0
      %v5004 = vmax.f32 %v4968, 0.0
      %v5005 = vmax.f32 %v4969, 0.0
      %v5006 = vmax.f32 %v4970, 0.0
      %v5007 = vmax.f32 %v4971, 0.0
      %v5008 = vmax.f32 %v4972, 0.0
      %v5009 = vmax.f32 %v4973, 0.0
      %v5010 = vmax.f32 %v4974, 0.0
      %v5011 = vmax.f32 %v4975, 0.0
      %v5012 = vmax.f32 %v4976, 0.0
      %v5013 = vmax.f32 %v4977, 0.0
      %v5014 = vmax.f32 %v4978, 0.0
      %v5015 = vmax.f32 %v4979, 0.0
      %v5016 = vmax.f32 %v4980, 0.0
      %v5017 = vmax.f32 %v4981, 0.0
      %v5018 = vmax.f32 %v4982, 0.0
      %v5019 = vmax.f32 %v4983, 0.0
      %v5020 = vmax.f32 %v4984, 0.0
      %v5021 = vmax.f32 %v4985, 0.0
      %v5022 = vmax.f32 %v4986, 0.0
      %v5023 = vmax.f32 %v4987, 0.0
      %v5024 = vmax.f32 %v4988, 0.0
      %v5025 = vmax.f32 %v4989, 0.0
      %v5026 = vmax.f32 %v4990, 0.0
      %v5027 = vmax.f32 %v4991, 0.0
      %v5028 = vmax.f32 %v4992, 0.0
      %v5029 = vmax.f32 %v4993, 0.0
      %v5030 = vmax.f32 %v4994, 0.0
      %v5031 = vmax.f32 %v4995, 0.0
      %v5032 = vmax.f32 %v4996, 0.0
      %5033 = vst.msk [vmem:[#allocation2 + $0x13] sm:$0xff] %vm895, %v4997
      %5034 = vst.msk [vmem:[#allocation2 + $0x1b] sm:$0xff] %vm895, %v4998
      %5035 = vst.msk [vmem:[#allocation2 + $0x23] sm:$0xff] %vm895, %v4999
      %5036 = vst.msk [vmem:[#allocation2 + $0x2b] sm:$0xff] %vm895, %v5000
      %5037 = vst.msk [vmem:[#allocation2 + $0x33] sm:$0xff] %vm895, %v5001
      %5038 = vst.msk [vmem:[#allocation2 + $0x3b] sm:$0xff] %vm895, %v5002
      %5039 = vst.msk [vmem:[#allocation2 + $0x43] sm:$0xff] %vm895, %v5003
      %5040 = vst.msk [vmem:[#allocation2 + $0x4b] sm:$0xff] %vm895, %v5004
      %5041 = vst.msk [vmem:[#allocation2 + $0x53] sm:$0xff] %vm895, %v5005
      %5042 = vst.msk [vmem:[#allocation2 + $0x5b] sm:$0xff] %vm895, %v5006
      %5043 = vst.msk [vmem:[#allocation2 + $0x63] sm:$0xff] %vm895, %v5007
      %5044 = vst.msk [vmem:[#allocation2 + $0x6b] sm:$0xff] %vm895, %v5008
      %5045 = vst.msk [vmem:[#allocation2 + $0x73] sm:$0xff] %vm895, %v5009
      %5046 = vst.msk [vmem:[#allocation2 + $0x7b] sm:$0xff] %vm895, %v5010
      %5047 = vst.msk [vmem:[#allocation2 + $0x83] sm:$0xff] %vm895, %v5011
      %5048 = vst.msk [vmem:[#allocation2 + $0x8b] sm:$0xff] %vm895, %v5012
      %5049 = vst.msk [vmem:[#allocation2 + $0x93] sm:$0xff] %vm895, %v5013
      %5050 = vst.msk [vmem:[#allocation2 + $0x9b] sm:$0xff] %vm895, %v5014
      %5051 = vst.msk [vmem:[#allocation2 + $0xa3] sm:$0xff] %vm895, %v5015
      %5052 = vst.msk [vmem:[#allocation2 + $0xab] sm:$0xff] %vm895, %v5016
      %5053 = vst.msk [vmem:[#allocation2 + $0xb3] sm:$0xff] %vm895, %v5017
      %5054 = vst.msk [vmem:[#allocation2 + $0xbb] sm:$0xff] %vm895, %v5018
      %5055 = vst.msk [vmem:[#allocation2 + $0xc3] sm:$0xff] %vm895, %v5019
      %5056 = vst.msk [vmem:[#allocation2 + $0xcb] sm:$0xff] %vm895, %v5020
      %5057 = vst.msk [vmem:[#allocation2 + $0xd3] sm:$0xff] %vm895, %v5021
      %5058 = vst.msk [vmem:[#allocation2 + $0xdb] sm:$0xff] %vm895, %v5022
      %5059 = vst.msk [vmem:[#allocation2 + $0xe3] sm:$0xff] %vm895, %v5023
      %5060 = vst.msk [vmem:[#allocation2 + $0xeb] sm:$0xff] %vm895, %v5024
      %5061 = vst.msk [vmem:[#allocation2 + $0xf3] sm:$0xff] %vm895, %v5025
      %5062 = vst.msk [vmem:[#allocation2 + $0xfb] sm:$0xff] %vm895, %v5026
      %5063 = vst.msk [vmem:[#allocation2 + $0x103] sm:$0xff] %vm895, %v5027
      %5064 = vst.msk [vmem:[#allocation2 + $0x10b] sm:$0xff] %vm895, %v5028
      %5065 = vst.msk [vmem:[#allocation2 + $0x113] sm:$0xff] %vm895, %v5029
      %5066 = vst.msk [vmem:[#allocation2 + $0x11b] sm:$0xff] %vm895, %v5030
      %5067 = vst.msk [vmem:[#allocation2 + $0x123] sm:$0xff] %vm895, %v5031
      %5068 = vst.msk [vmem:[#allocation2 + $0x12b] sm:$0xff] %vm895, %v5032
      %v5069 = vld [vmem:[#allocation2 + $0x12] sm:$0xff]
      %v5070 = vld [vmem:[#allocation2 + $0x1a] sm:$0xff]
      %v5071 = vld [vmem:[#allocation2 + $0x22] sm:$0xff]
      %v5072 = vld [vmem:[#allocation2 + $0x2a] sm:$0xff]
      %v5073 = vld [vmem:[#allocation2 + $0x32] sm:$0xff]
      %v5074 = vld [vmem:[#allocation2 + $0x3a] sm:$0xff]
      %v5075 = vld [vmem:[#allocation2 + $0x42] sm:$0xff]
      %v5076 = vld [vmem:[#allocation2 + $0x4a] sm:$0xff]
      %v5077 = vld [vmem:[#allocation2 + $0x52] sm:$0xff]
      %v5078 = vld [vmem:[#allocation2 + $0x5a] sm:$0xff]
      %v5079 = vld [vmem:[#allocation2 + $0x62] sm:$0xff]
      %v5080 = vld [vmem:[#allocation2 + $0x6a] sm:$0xff]
      %v5081 = vld [vmem:[#allocation2 + $0x72] sm:$0xff]
      %v5082 = vld [vmem:[#allocation2 + $0x7a] sm:$0xff]
      %v5083 = vld [vmem:[#allocation2 + $0x82] sm:$0xff]
      %v5084 = vld [vmem:[#allocation2 + $0x8a] sm:$0xff]
      %v5085 = vld [vmem:[#allocation2 + $0x92] sm:$0xff]
      %v5086 = vld [vmem:[#allocation2 + $0x9a] sm:$0xff]
      %v5087 = vld [vmem:[#allocation2 + $0xa2] sm:$0xff]
      %v5088 = vld [vmem:[#allocation2 + $0xaa] sm:$0xff]
      %v5089 = vld [vmem:[#allocation2 + $0xb2] sm:$0xff]
      %v5090 = vld [vmem:[#allocation2 + $0xba] sm:$0xff]
      %v5091 = vld [vmem:[#allocation2 + $0xc2] sm:$0xff]
      %v5092 = vld [vmem:[#allocation2 + $0xca] sm:$0xff]
      %v5093 = vld [vmem:[#allocation2 + $0xd2] sm:$0xff]
      %v5094 = vld [vmem:[#allocation2 + $0xda] sm:$0xff]
      %v5095 = vld [vmem:[#allocation2 + $0xe2] sm:$0xff]
      %v5096 = vld [vmem:[#allocation2 + $0xea] sm:$0xff]
      %v5097 = vld [vmem:[#allocation2 + $0xf2] sm:$0xff]
      %v5098 = vld [vmem:[#allocation2 + $0xfa] sm:$0xff]
      %v5099 = vld [vmem:[#allocation2 + $0x102] sm:$0xff]
      %v5100 = vld [vmem:[#allocation2 + $0x10a] sm:$0xff]
      %v5101 = vld [vmem:[#allocation2 + $0x112] sm:$0xff]
      %v5102 = vld [vmem:[#allocation2 + $0x11a] sm:$0xff]
      %v5103 = vld [vmem:[#allocation2 + $0x122] sm:$0xff]
      %v5104 = vld [vmem:[#allocation2 + $0x12a] sm:$0xff]
      %v5105 = vld [vmem:[#allocation2 + $0x14] sm:$0xff]
      %v5106 = vld [vmem:[#allocation2 + $0x1c] sm:$0xff]
      %v5107 = vld [vmem:[#allocation2 + $0x24] sm:$0xff]
      %v5108 = vld [vmem:[#allocation2 + $0x2c] sm:$0xff]
      %v5109 = vld [vmem:[#allocation2 + $0x34] sm:$0xff]
      %v5110 = vld [vmem:[#allocation2 + $0x3c] sm:$0xff]
      %v5111 = vld [vmem:[#allocation2 + $0x44] sm:$0xff]
      %v5112 = vld [vmem:[#allocation2 + $0x4c] sm:$0xff]
      %v5113 = vld [vmem:[#allocation2 + $0x54] sm:$0xff]
      %v5114 = vld [vmem:[#allocation2 + $0x5c] sm:$0xff]
      %v5115 = vld [vmem:[#allocation2 + $0x64] sm:$0xff]
      %v5116 = vld [vmem:[#allocation2 + $0x6c] sm:$0xff]
      %v5117 = vld [vmem:[#allocation2 + $0x74] sm:$0xff]
      %v5118 = vld [vmem:[#allocation2 + $0x7c] sm:$0xff]
      %v5119 = vld [vmem:[#allocation2 + $0x84] sm:$0xff]
      %v5120 = vld [vmem:[#allocation2 + $0x8c] sm:$0xff]
      %v5121 = vld [vmem:[#allocation2 + $0x94] sm:$0xff]
      %v5122 = vld [vmem:[#allocation2 + $0x9c] sm:$0xff]
      %v5123 = vld [vmem:[#allocation2 + $0xa4] sm:$0xff]
      %v5124 = vld [vmem:[#allocation2 + $0xac] sm:$0xff]
      %v5125 = vld [vmem:[#allocation2 + $0xb4] sm:$0xff]
      %v5126 = vld [vmem:[#allocation2 + $0xbc] sm:$0xff]
      %v5127 = vld [vmem:[#allocation2 + $0xc4] sm:$0xff]
      %v5128 = vld [vmem:[#allocation2 + $0xcc] sm:$0xff]
      %v5129 = vld [vmem:[#allocation2 + $0xd4] sm:$0xff]
      %v5130 = vld [vmem:[#allocation2 + $0xdc] sm:$0xff]
      %v5131 = vld [vmem:[#allocation2 + $0xe4] sm:$0xff]
      %v5132 = vld [vmem:[#allocation2 + $0xec] sm:$0xff]
      %v5133 = vld [vmem:[#allocation2 + $0xf4] sm:$0xff]
      %v5134 = vld [vmem:[#allocation2 + $0xfc] sm:$0xff]
      %v5135 = vld [vmem:[#allocation2 + $0x104] sm:$0xff]
      %v5136 = vld [vmem:[#allocation2 + $0x10c] sm:$0xff]
      %v5137 = vld [vmem:[#allocation2 + $0x114] sm:$0xff]
      %v5138 = vld [vmem:[#allocation2 + $0x11c] sm:$0xff]
      %v5139 = vld [vmem:[#allocation2 + $0x124] sm:$0xff]
      %v5140 = vld [vmem:[#allocation2 + $0x12c] sm:$0xff]
      %v5141 = vld [vmem:[#allocation2 + $0x10] sm:$0xff]
      %v5142 = vld [vmem:[#allocation2 + $0x18] sm:$0xff]
      %v5143 = vld [vmem:[#allocation2 + $0x20] sm:$0xff]
      %v5144 = vld [vmem:[#allocation2 + $0x28] sm:$0xff]
      %v5145 = vld [vmem:[#allocation2 + $0x30] sm:$0xff]
      %v5146 = vld [vmem:[#allocation2 + $0x38] sm:$0xff]
      %v5147 = vld [vmem:[#allocation2 + $0x40] sm:$0xff]
      %v5148 = vld [vmem:[#allocation2 + $0x48] sm:$0xff]
      %v5149 = vld [vmem:[#allocation2 + $0x50] sm:$0xff]
      %v5150 = vld [vmem:[#allocation2 + $0x58] sm:$0xff]
      %v5151 = vld [vmem:[#allocation2 + $0x60] sm:$0xff]
      %v5152 = vld [vmem:[#allocation2 + $0x68] sm:$0xff]
      %v5153 = vld [vmem:[#allocation2 + $0x70] sm:$0xff]
      %v5154 = vld [vmem:[#allocation2 + $0x78] sm:$0xff]
      %v5155 = vld [vmem:[#allocation2 + $0x80] sm:$0xff]
      %v5156 = vld [vmem:[#allocation2 + $0x88] sm:$0xff]
      %v5157 = vld [vmem:[#allocation2 + $0x90] sm:$0xff]
      %v5158 = vld [vmem:[#allocation2 + $0x98] sm:$0xff]
      %v5159 = vld [vmem:[#allocation2 + $0xa0] sm:$0xff]
      %v5160 = vld [vmem:[#allocation2 + $0xa8] sm:$0xff]
      %v5161 = vld [vmem:[#allocation2 + $0xb0] sm:$0xff]
      %v5162 = vld [vmem:[#allocation2 + $0xb8] sm:$0xff]
      %v5163 = vld [vmem:[#allocation2 + $0xc0] sm:$0xff]
      %v5164 = vld [vmem:[#allocation2 + $0xc8] sm:$0xff]
      %v5165 = vld [vmem:[#allocation2 + $0xd0] sm:$0xff]
      %v5166 = vld [vmem:[#allocation2 + $0xd8] sm:$0xff]
      %v5167 = vld [vmem:[#allocation2 + $0xe0] sm:$0xff]
      %v5168 = vld [vmem:[#allocation2 + $0xe8] sm:$0xff]
      %v5169 = vld [vmem:[#allocation2 + $0xf0] sm:$0xff]
      %v5170 = vld [vmem:[#allocation2 + $0xf8] sm:$0xff]
      %v5171 = vld [vmem:[#allocation2 + $0x100] sm:$0xff]
      %v5172 = vld [vmem:[#allocation2 + $0x108] sm:$0xff]
      %v5173 = vld [vmem:[#allocation2 + $0x110] sm:$0xff]
      %v5174 = vld [vmem:[#allocation2 + $0x118] sm:$0xff]
      %v5175 = vld [vmem:[#allocation2 + $0x120] sm:$0xff]
      %v5176 = vld [vmem:[#allocation2 + $0x128] sm:$0xff]
      %vm5177 = vcmp.eq.s32.totalorder %v748, 0
      %vm5178 = vcmp.eq.s32.totalorder %v749, 0
      %vm5179 = vcmp.eq.s32.totalorder %v750, 0
      %vm5180 = vcmp.eq.s32.totalorder %v751, 0
      %vm5181 = vcmp.eq.s32.totalorder %v752, 0
      %vm5182 = vcmp.eq.s32.totalorder %v753, 0
      %vm5183 = vcmp.eq.s32.totalorder %v754, 0
      %vm5184 = vcmp.eq.s32.totalorder %v755, 0
      %vm5185 = vcmp.eq.s32.totalorder %v756, 0
      %vm5186 = vcmp.eq.s32.totalorder %v757, 0
      %vm5187 = vcmp.eq.s32.totalorder %v758, 0
      %vm5188 = vcmp.eq.s32.totalorder %v759, 0
      %vm5189 = vcmp.eq.s32.totalorder %v760, 0
      %vm5190 = vcmp.eq.s32.totalorder %v761, 0
      %vm5191 = vcmp.eq.s32.totalorder %v762, 0
      %vm5192 = vcmp.eq.s32.totalorder %v763, 0
      %vm5193 = vcmp.eq.s32.totalorder %v764, 0
      %vm5194 = vcmp.eq.s32.totalorder %v765, 0
      %vm5195 = vcmp.eq.s32.totalorder %v766, 0
      %vm5196 = vcmp.eq.s32.totalorder %v767, 0
      %vm5197 = vcmp.eq.s32.totalorder %v768, 0
      %vm5198 = vcmp.eq.s32.totalorder %v769, 0
      %vm5199 = vcmp.eq.s32.totalorder %v770, 0
      %vm5200 = vcmp.eq.s32.totalorder %v771, 0
      %vm5201 = vcmp.eq.s32.totalorder %v772, 0
      %vm5202 = vcmp.eq.s32.totalorder %v773, 0
      %vm5203 = vcmp.eq.s32.totalorder %v774, 0
      %vm5204 = vcmp.eq.s32.totalorder %v775, 0
      %vm5205 = vcmp.eq.s32.totalorder %v776, 0
      %vm5206 = vcmp.eq.s32.totalorder %v777, 0
      %vm5207 = vcmp.eq.s32.totalorder %v778, 0
      %vm5208 = vcmp.eq.s32.totalorder %v779, 0
      %vm5209 = vcmp.eq.s32.totalorder %v780, 0
      %vm5210 = vcmp.eq.s32.totalorder %v781, 0
      %vm5211 = vcmp.eq.s32.totalorder %v782, 0
      %vm5212 = vcmp.eq.s32.totalorder %v783, 0
      %vm5213 = vcmp.eq.s32.totalorder %v748, 17
      %vm5214 = vcmp.eq.s32.totalorder %v749, 17
      %vm5215 = vcmp.eq.s32.totalorder %v750, 17
      %vm5216 = vcmp.eq.s32.totalorder %v751, 17
      %vm5217 = vcmp.eq.s32.totalorder %v752, 17
      %vm5218 = vcmp.eq.s32.totalorder %v753, 17
      %vm5219 = vcmp.eq.s32.totalorder %v754, 17
      %vm5220 = vcmp.eq.s32.totalorder %v755, 17
      %vm5221 = vcmp.eq.s32.totalorder %v756, 17
      %vm5222 = vcmp.eq.s32.totalorder %v757, 17
      %vm5223 = vcmp.eq.s32.totalorder %v758, 17
      %vm5224 = vcmp.eq.s32.totalorder %v759, 17
      %vm5225 = vcmp.eq.s32.totalorder %v760, 17
      %vm5226 = vcmp.eq.s32.totalorder %v761, 17
      %vm5227 = vcmp.eq.s32.totalorder %v762, 17
      %vm5228 = vcmp.eq.s32.totalorder %v763, 17
      %vm5229 = vcmp.eq.s32.totalorder %v764, 17
      %vm5230 = vcmp.eq.s32.totalorder %v765, 17
      %vm5231 = vcmp.eq.s32.totalorder %v766, 17
      %vm5232 = vcmp.eq.s32.totalorder %v767, 17
      %vm5233 = vcmp.eq.s32.totalorder %v768, 17
      %vm5234 = vcmp.eq.s32.totalorder %v769, 17
      %vm5235 = vcmp.eq.s32.totalorder %v770, 17
      %vm5236 = vcmp.eq.s32.totalorder %v771, 17
      %vm5237 = vcmp.eq.s32.totalorder %v772, 17
      %vm5238 = vcmp.eq.s32.totalorder %v773, 17
      %vm5239 = vcmp.eq.s32.totalorder %v774, 17
      %vm5240 = vcmp.eq.s32.totalorder %v775, 17
      %vm5241 = vcmp.eq.s32.totalorder %v776, 17
      %vm5242 = vcmp.eq.s32.totalorder %v777, 17
      %vm5243 = vcmp.eq.s32.totalorder %v778, 17
      %vm5244 = vcmp.eq.s32.totalorder %v779, 17
      %vm5245 = vcmp.eq.s32.totalorder %v780, 17
      %vm5246 = vcmp.eq.s32.totalorder %v781, 17
      %vm5247 = vcmp.eq.s32.totalorder %v782, 17
      %vm5248 = vcmp.eq.s32.totalorder %v783, 17
      %v5249 = vsel %vm5213, 1, 0
      %v5250 = vsel %vm5214, 1, 0
      %v5251 = vsel %vm5215, 1, 0
      %v5252 = vsel %vm5216, 1, 0
      %v5253 = vsel %vm5217, 1, 0
      %v5254 = vsel %vm5218, 1, 0
      %v5255 = vsel %vm5219, 1, 0
      %v5256 = vsel %vm5220, 1, 0
      %v5257 = vsel %vm5221, 1, 0
      %v5258 = vsel %vm5222, 1, 0
      %v5259 = vsel %vm5223, 1, 0
      %v5260 = vsel %vm5224, 1, 0
      %v5261 = vsel %vm5225, 1, 0
      %v5262 = vsel %vm5226, 1, 0
      %v5263 = vsel %vm5227, 1, 0
      %v5264 = vsel %vm5228, 1, 0
      %v5265 = vsel %vm5229, 1, 0
      %v5266 = vsel %vm5230, 1, 0
      %v5267 = vsel %vm5231, 1, 0
      %v5268 = vsel %vm5232, 1, 0
      %v5269 = vsel %vm5233, 1, 0
      %v5270 = vsel %vm5234, 1, 0
      %v5271 = vsel %vm5235, 1, 0
      %v5272 = vsel %vm5236, 1, 0
      %v5273 = vsel %vm5237, 1, 0
      %v5274 = vsel %vm5238, 1, 0
      %v5275 = vsel %vm5239, 1, 0
      %v5276 = vsel %vm5240, 1, 0
      %v5277 = vsel %vm5241, 1, 0
      %v5278 = vsel %vm5242, 1, 0
      %v5279 = vsel %vm5243, 1, 0
      %v5280 = vsel %vm5244, 1, 0
      %v5281 = vsel %vm5245, 1, 0
      %v5282 = vsel %vm5246, 1, 0
      %v5283 = vsel %vm5247, 1, 0
      %v5284 = vsel %vm5248, 1, 0
      %vm5285 = vcmp.eq.s32.totalorder %v5249, 1
      %vm5286 = vcmp.eq.s32.totalorder %v5250, 1
      %vm5287 = vcmp.eq.s32.totalorder %v5251, 1
      %vm5288 = vcmp.eq.s32.totalorder %v5252, 1
      %vm5289 = vcmp.eq.s32.totalorder %v5253, 1
      %vm5290 = vcmp.eq.s32.totalorder %v5254, 1
      %vm5291 = vcmp.eq.s32.totalorder %v5255, 1
      %vm5292 = vcmp.eq.s32.totalorder %v5256, 1
      %vm5293 = vcmp.eq.s32.totalorder %v5257, 1
      %vm5294 = vcmp.eq.s32.totalorder %v5258, 1
      %vm5295 = vcmp.eq.s32.totalorder %v5259, 1
      %vm5296 = vcmp.eq.s32.totalorder %v5260, 1
      %vm5297 = vcmp.eq.s32.totalorder %v5261, 1
      %vm5298 = vcmp.eq.s32.totalorder %v5262, 1
      %vm5299 = vcmp.eq.s32.totalorder %v5263, 1
      %vm5300 = vcmp.eq.s32.totalorder %v5264, 1
      %vm5301 = vcmp.eq.s32.totalorder %v5265, 1
      %vm5302 = vcmp.eq.s32.totalorder %v5266, 1
      %vm5303 = vcmp.eq.s32.totalorder %v5267, 1
      %vm5304 = vcmp.eq.s32.totalorder %v5268, 1
      %vm5305 = vcmp.eq.s32.totalorder %v5269, 1
      %vm5306 = vcmp.eq.s32.totalorder %v5270, 1
      %vm5307 = vcmp.eq.s32.totalorder %v5271, 1
      %vm5308 = vcmp.eq.s32.totalorder %v5272, 1
      %vm5309 = vcmp.eq.s32.totalorder %v5273, 1
      %vm5310 = vcmp.eq.s32.totalorder %v5274, 1
      %vm5311 = vcmp.eq.s32.totalorder %v5275, 1
      %vm5312 = vcmp.eq.s32.totalorder %v5276, 1
      %vm5313 = vcmp.eq.s32.totalorder %v5277, 1
      %vm5314 = vcmp.eq.s32.totalorder %v5278, 1
      %vm5315 = vcmp.eq.s32.totalorder %v5279, 1
      %vm5316 = vcmp.eq.s32.totalorder %v5280, 1
      %vm5317 = vcmp.eq.s32.totalorder %v5281, 1
      %vm5318 = vcmp.eq.s32.totalorder %v5282, 1
      %vm5319 = vcmp.eq.s32.totalorder %v5283, 1
      %vm5320 = vcmp.eq.s32.totalorder %v5284, 1
      %v5321 = vsel %vm5285, %v5141, %v5069
      %v5322 = vsel %vm5286, %v5142, %v5070
      %v5323 = vsel %vm5287, %v5143, %v5071
      %v5324 = vsel %vm5288, %v5144, %v5072
      %v5325 = vsel %vm5289, %v5145, %v5073
      %v5326 = vsel %vm5290, %v5146, %v5074
      %v5327 = vsel %vm5291, %v5147, %v5075
      %v5328 = vsel %vm5292, %v5148, %v5076
      %v5329 = vsel %vm5293, %v5149, %v5077
      %v5330 = vsel %vm5294, %v5150, %v5078
      %v5331 = vsel %vm5295, %v5151, %v5079
      %v5332 = vsel %vm5296, %v5152, %v5080
      %v5333 = vsel %vm5297, %v5153, %v5081
      %v5334 = vsel %vm5298, %v5154, %v5082
      %v5335 = vsel %vm5299, %v5155, %v5083
      %v5336 = vsel %vm5300, %v5156, %v5084
      %v5337 = vsel %vm5301, %v5157, %v5085
      %v5338 = vsel %vm5302, %v5158, %v5086
      %v5339 = vsel %vm5303, %v5159, %v5087
      %v5340 = vsel %vm5304, %v5160, %v5088
      %v5341 = vsel %vm5305, %v5161, %v5089
      %v5342 = vsel %vm5306, %v5162, %v5090
      %v5343 = vsel %vm5307, %v5163, %v5091
      %v5344 = vsel %vm5308, %v5164, %v5092
      %v5345 = vsel %vm5309, %v5165, %v5093
      %v5346 = vsel %vm5310, %v5166, %v5094
      %v5347 = vsel %vm5311, %v5167, %v5095
      %v5348 = vsel %vm5312, %v5168, %v5096
      %v5349 = vsel %vm5313, %v5169, %v5097
      %v5350 = vsel %vm5314, %v5170, %v5098
      %v5351 = vsel %vm5315, %v5171, %v5099
      %v5352 = vsel %vm5316, %v5172, %v5100
      %v5353 = vsel %vm5317, %v5173, %v5101
      %v5354 = vsel %vm5318, %v5174, %v5102
      %v5355 = vsel %vm5319, %v5175, %v5103
      %v5356 = vsel %vm5320, %v5176, %v5104
      %v5357 = vsel %vm5177, 1, 0
      %v5358 = vsel %vm5178, 1, 0
      %v5359 = vsel %vm5179, 1, 0
      %v5360 = vsel %vm5180, 1, 0
      %v5361 = vsel %vm5181, 1, 0
      %v5362 = vsel %vm5182, 1, 0
      %v5363 = vsel %vm5183, 1, 0
      %v5364 = vsel %vm5184, 1, 0
      %v5365 = vsel %vm5185, 1, 0
      %v5366 = vsel %vm5186, 1, 0
      %v5367 = vsel %vm5187, 1, 0
      %v5368 = vsel %vm5188, 1, 0
      %v5369 = vsel %vm5189, 1, 0
      %v5370 = vsel %vm5190, 1, 0
      %v5371 = vsel %vm5191, 1, 0
      %v5372 = vsel %vm5192, 1, 0
      %v5373 = vsel %vm5193, 1, 0
      %v5374 = vsel %vm5194, 1, 0
      %v5375 = vsel %vm5195, 1, 0
      %v5376 = vsel %vm5196, 1, 0
      %v5377 = vsel %vm5197, 1, 0
      %v5378 = vsel %vm5198, 1, 0
      %v5379 = vsel %vm5199, 1, 0
      %v5380 = vsel %vm5200, 1, 0
      %v5381 = vsel %vm5201, 1, 0
      %v5382 = vsel %vm5202, 1, 0
      %v5383 = vsel %vm5203, 1, 0
      %v5384 = vsel %vm5204, 1, 0
      %v5385 = vsel %vm5205, 1, 0
      %v5386 = vsel %vm5206, 1, 0
      %v5387 = vsel %vm5207, 1, 0
      %v5388 = vsel %vm5208, 1, 0
      %v5389 = vsel %vm5209, 1, 0
      %v5390 = vsel %vm5210, 1, 0
      %v5391 = vsel %vm5211, 1, 0
      %v5392 = vsel %vm5212, 1, 0
      %vm5393 = vcmp.eq.s32.totalorder %v5357, 1
      %vm5394 = vcmp.eq.s32.totalorder %v5358, 1
      %vm5395 = vcmp.eq.s32.totalorder %v5359, 1
      %vm5396 = vcmp.eq.s32.totalorder %v5360, 1
      %vm5397 = vcmp.eq.s32.totalorder %v5361, 1
      %vm5398 = vcmp.eq.s32.totalorder %v5362, 1
      %vm5399 = vcmp.eq.s32.totalorder %v5363, 1
      %vm5400 = vcmp.eq.s32.totalorder %v5364, 1
      %vm5401 = vcmp.eq.s32.totalorder %v5365, 1
      %vm5402 = vcmp.eq.s32.totalorder %v5366, 1
      %vm5403 = vcmp.eq.s32.totalorder %v5367, 1
      %vm5404 = vcmp.eq.s32.totalorder %v5368, 1
      %vm5405 = vcmp.eq.s32.totalorder %v5369, 1
      %vm5406 = vcmp.eq.s32.totalorder %v5370, 1
      %vm5407 = vcmp.eq.s32.totalorder %v5371, 1
      %vm5408 = vcmp.eq.s32.totalorder %v5372, 1
      %vm5409 = vcmp.eq.s32.totalorder %v5373, 1
      %vm5410 = vcmp.eq.s32.totalorder %v5374, 1
      %vm5411 = vcmp.eq.s32.totalorder %v5375, 1
      %vm5412 = vcmp.eq.s32.totalorder %v5376, 1
      %vm5413 = vcmp.eq.s32.totalorder %v5377, 1
      %vm5414 = vcmp.eq.s32.totalorder %v5378, 1
      %vm5415 = vcmp.eq.s32.totalorder %v5379, 1
      %vm5416 = vcmp.eq.s32.totalorder %v5380, 1
      %vm5417 = vcmp.eq.s32.totalorder %v5381, 1
      %vm5418 = vcmp.eq.s32.totalorder %v5382, 1
      %vm5419 = vcmp.eq.s32.totalorder %v5383, 1
      %vm5420 = vcmp.eq.s32.totalorder %v5384, 1
      %vm5421 = vcmp.eq.s32.totalorder %v5385, 1
      %vm5422 = vcmp.eq.s32.totalorder %v5386, 1
      %vm5423 = vcmp.eq.s32.totalorder %v5387, 1
      %vm5424 = vcmp.eq.s32.totalorder %v5388, 1
      %vm5425 = vcmp.eq.s32.totalorder %v5389, 1
      %vm5426 = vcmp.eq.s32.totalorder %v5390, 1
      %vm5427 = vcmp.eq.s32.totalorder %v5391, 1
      %vm5428 = vcmp.eq.s32.totalorder %v5392, 1
      %v5429 = vsel %vm5393, %v5105, %v5321
      %v5430 = vsel %vm5394, %v5106, %v5322
      %v5431 = vsel %vm5395, %v5107, %v5323
      %v5432 = vsel %vm5396, %v5108, %v5324
      %v5433 = vsel %vm5397, %v5109, %v5325
      %v5434 = vsel %vm5398, %v5110, %v5326
      %v5435 = vsel %vm5399, %v5111, %v5327
      %v5436 = vsel %vm5400, %v5112, %v5328
      %v5437 = vsel %vm5401, %v5113, %v5329
      %v5438 = vsel %vm5402, %v5114, %v5330
      %v5439 = vsel %vm5403, %v5115, %v5331
      %v5440 = vsel %vm5404, %v5116, %v5332
      %v5441 = vsel %vm5405, %v5117, %v5333
      %v5442 = vsel %vm5406, %v5118, %v5334
      %v5443 = vsel %vm5407, %v5119, %v5335
      %v5444 = vsel %vm5408, %v5120, %v5336
      %v5445 = vsel %vm5409, %v5121, %v5337
      %v5446 = vsel %vm5410, %v5122, %v5338
      %v5447 = vsel %vm5411, %v5123, %v5339
      %v5448 = vsel %vm5412, %v5124, %v5340
      %v5449 = vsel %vm5413, %v5125, %v5341
      %v5450 = vsel %vm5414, %v5126, %v5342
      %v5451 = vsel %vm5415, %v5127, %v5343
      %v5452 = vsel %vm5416, %v5128, %v5344
      %v5453 = vsel %vm5417, %v5129, %v5345
      %v5454 = vsel %vm5418, %v5130, %v5346
      %v5455 = vsel %vm5419, %v5131, %v5347
      %v5456 = vsel %vm5420, %v5132, %v5348
      %v5457 = vsel %vm5421, %v5133, %v5349
      %v5458 = vsel %vm5422, %v5134, %v5350
      %v5459 = vsel %vm5423, %v5135, %v5351
      %v5460 = vsel %vm5424, %v5136, %v5352
      %v5461 = vsel %vm5425, %v5137, %v5353
      %v5462 = vsel %vm5426, %v5138, %v5354
      %v5463 = vsel %vm5427, %v5139, %v5355
      %v5464 = vsel %vm5428, %v5140, %v5356
      %5465 = vst.msk [vmem:[#allocation2 + $0x12] sm:$0xff] %vm895, %v5429
      %5466 = vst.msk [vmem:[#allocation2 + $0x1a] sm:$0xff] %vm895, %v5430
      %5467 = vst.msk [vmem:[#allocation2 + $0x22] sm:$0xff] %vm895, %v5431
      %5468 = vst.msk [vmem:[#allocation2 + $0x2a] sm:$0xff] %vm895, %v5432
      %5469 = vst.msk [vmem:[#allocation2 + $0x32] sm:$0xff] %vm895, %v5433
      %5470 = vst.msk [vmem:[#allocation2 + $0x3a] sm:$0xff] %vm895, %v5434
      %5471 = vst.msk [vmem:[#allocation2 + $0x42] sm:$0xff] %vm895, %v5435
      %5472 = vst.msk [vmem:[#allocation2 + $0x4a] sm:$0xff] %vm895, %v5436
      %5473 = vst.msk [vmem:[#allocation2 + $0x52] sm:$0xff] %vm895, %v5437
      %5474 = vst.msk [vmem:[#allocation2 + $0x5a] sm:$0xff] %vm895, %v5438
      %5475 = vst.msk [vmem:[#allocation2 + $0x62] sm:$0xff] %vm895, %v5439
      %5476 = vst.msk [vmem:[#allocation2 + $0x6a] sm:$0xff] %vm895, %v5440
      %5477 = vst.msk [vmem:[#allocation2 + $0x72] sm:$0xff] %vm895, %v5441
      %5478 = vst.msk [vmem:[#allocation2 + $0x7a] sm:$0xff] %vm895, %v5442
      %5479 = vst.msk [vmem:[#allocation2 + $0x82] sm:$0xff] %vm895, %v5443
      %5480 = vst.msk [vmem:[#allocation2 + $0x8a] sm:$0xff] %vm895, %v5444
      %5481 = vst.msk [vmem:[#allocation2 + $0x92] sm:$0xff] %vm895, %v5445
      %5482 = vst.msk [vmem:[#allocation2 + $0x9a] sm:$0xff] %vm895, %v5446
      %5483 = vst.msk [vmem:[#allocation2 + $0xa2] sm:$0xff] %vm895, %v5447
      %5484 = vst.msk [vmem:[#allocation2 + $0xaa] sm:$0xff] %vm895, %v5448
      %5485 = vst.msk [vmem:[#allocation2 + $0xb2] sm:$0xff] %vm895, %v5449
      %5486 = vst.msk [vmem:[#allocation2 + $0xba] sm:$0xff] %vm895, %v5450
      %5487 = vst.msk [vmem:[#allocation2 + $0xc2] sm:$0xff] %vm895, %v5451
      %5488 = vst.msk [vmem:[#allocation2 + $0xca] sm:$0xff] %vm895, %v5452
      %5489 = vst.msk [vmem:[#allocation2 + $0xd2] sm:$0xff] %vm895, %v5453
      %5490 = vst.msk [vmem:[#allocation2 + $0xda] sm:$0xff] %vm895, %v5454
      %5491 = vst.msk [vmem:[#allocation2 + $0xe2] sm:$0xff] %vm895, %v5455
      %5492 = vst.msk [vmem:[#allocation2 + $0xea] sm:$0xff] %vm895, %v5456
      %5493 = vst.msk [vmem:[#allocation2 + $0xf2] sm:$0xff] %vm895, %v5457
      %5494 = vst.msk [vmem:[#allocation2 + $0xfa] sm:$0xff] %vm895, %v5458
      %5495 = vst.msk [vmem:[#allocation2 + $0x102] sm:$0xff] %vm895, %v5459
      %5496 = vst.msk [vmem:[#allocation2 + $0x10a] sm:$0xff] %vm895, %v5460
      %5497 = vst.msk [vmem:[#allocation2 + $0x112] sm:$0xff] %vm895, %v5461
      %5498 = vst.msk [vmem:[#allocation2 + $0x11a] sm:$0xff] %vm895, %v5462
      %5499 = vst.msk [vmem:[#allocation2 + $0x122] sm:$0xff] %vm895, %v5463
      %5500 = vst.msk [vmem:[#allocation2 + $0x12a] sm:$0xff] %vm895, %v5464
      %v5501 = vld [vmem:[#allocation2 + $0x24] sm:$0xff]
      %v5502 = vld [vmem:[#allocation2 + $0x2c] sm:$0xff]
      %v5503 = vld [vmem:[#allocation2 + $0x34] sm:$0x3]
      %5504 = vst.msk [vmem:[#allocation2] sm:$0xff] %vm895, %v5501
      %5505 = vst.msk [vmem:[#allocation2 + $0x8] sm:$0xff] %vm895, %v5502
      %vm5506 = vcmask 25600
      %5507 = vst.msk [vmem:[#allocation2 + $0x10] sm:$0x3] %vm5506, %v5503
      %v5508 = vld [vmem:[#allocation2 + $0x10e] sm:$0xff]
      %v5509 = vld [vmem:[#allocation2 + $0x116] sm:$0xff]
      %v5510 = vld [vmem:[#allocation2 + $0x11e] sm:$0x3]
      %5511 = vst.msk [vmem:[#allocation2 + $0x132] sm:$0xff] %vm895, %v5508
      %5512 = vst.msk [vmem:[#allocation2 + $0x13a] sm:$0xff] %vm895, %v5509
      %5513 = vst.msk [vmem:[#allocation2 + $0x142] sm:$0x3] %vm5506, %v5510
      %5514 = vst.msk [vmem:[#allocation2 + $0x144] sm:$0x3] %vm5506, 0.0
      %v5515 = vld [vmem:[#allocation2] sm:$0xff]
      %v5516 = vld [vmem:[#allocation2 + $0x8] sm:$0xff]
      %v5517 = vld [vmem:[#allocation2 + $0x10] sm:$0xff]
      %v5518 = vld [vmem:[#allocation2 + $0x18] sm:$0xff]
      %v5519 = vld [vmem:[#allocation2 + $0x20] sm:$0xff]
      %v5520 = vld [vmem:[#allocation2 + $0x28] sm:$0xff]
      %v5521 = vld [vmem:[#allocation2 + $0x30] sm:$0xff]
      %v5522 = vld [vmem:[#allocation2 + $0x38] sm:$0xff]
      %v5523 = vld [vmem:[#allocation2 + $0x40] sm:$0xff]
      %v5524 = vld [vmem:[#allocation2 + $0x48] sm:$0xff]
      %v5525 = vld [vmem:[#allocation2 + $0x50] sm:$0xff]
      %v5526 = vld [vmem:[#allocation2 + $0x58] sm:$0xff]
      %v5527 = vld [vmem:[#allocation2 + $0x60] sm:$0xff]
      %v5528 = vld [vmem:[#allocation2 + $0x68] sm:$0xff]
      %v5529 = vld [vmem:[#allocation2 + $0x70] sm:$0xff]
      %v5530 = vld [vmem:[#allocation2 + $0x78] sm:$0xff]
      %v5531 = vld [vmem:[#allocation2 + $0x80] sm:$0xff]
      %v5532 = vld [vmem:[#allocation2 + $0x88] sm:$0xff]
      %v5533 = vld [vmem:[#allocation2 + $0x90] sm:$0xff]
      %v5534 = vld [vmem:[#allocation2 + $0x98] sm:$0xff]
      %v5535 = vld [vmem:[#allocation2 + $0xa0] sm:$0xff]
      %v5536 = vld [vmem:[#allocation2 + $0xa8] sm:$0xff]
      %v5537 = vld [vmem:[#allocation2 + $0xb0] sm:$0xff]
      %v5538 = vld [vmem:[#allocation2 + $0xb8] sm:$0xff]
      %v5539 = vld [vmem:[#allocation2 + $0xc0] sm:$0xff]
      %v5540 = vld [vmem:[#allocation2 + $0xc8] sm:$0xff]
      %v5541 = vld [vmem:[#allocation2 + $0xd0] sm:$0xff]
      %v5542 = vld [vmem:[#allocation2 + $0xd8] sm:$0xff]
      %v5543 = vld [vmem:[#allocation2 + $0xe0] sm:$0xff]
      %v5544 = vld [vmem:[#allocation2 + $0xe8] sm:$0xff]
      %v5545 = vld [vmem:[#allocation2 + $0xf0] sm:$0xff]
      %v5546 = vld [vmem:[#allocation2 + $0xf8] sm:$0xff]
      %v5547 = vld [vmem:[#allocation2 + $0x100] sm:$0xff]
      %v5548 = vld [vmem:[#allocation2 + $0x108] sm:$0xff]
      %v5549 = vld [vmem:[#allocation2 + $0x110] sm:$0xff]
      %v5550 = vld [vmem:[#allocation2 + $0x118] sm:$0xff]
      %v5551 = vld [vmem:[%s2] sm:$0xf]
      %v5552 = vld [vmem:[#allocation2 + $0x1] sm:$0xff]
      %v5553 = vld [vmem:[#allocation2 + $0x9] sm:$0xff]
      %v5554 = vld [vmem:[#allocation2 + $0x11] sm:$0xff]
      %v5555 = vld [vmem:[#allocation2 + $0x19] sm:$0xff]
      %v5556 = vld [vmem:[#allocation2 + $0x21] sm:$0xff]
      %v5557 = vld [vmem:[#allocation2 + $0x29] sm:$0xff]
      %v5558 = vld [vmem:[#allocation2 + $0x31] sm:$0xff]
      %v5559 = vld [vmem:[#allocation2 + $0x39] sm:$0xff]
      %v5560 = vld [vmem:[#allocation2 + $0x41] sm:$0xff]
      %v5561 = vld [vmem:[#allocation2 + $0x49] sm:$0xff]
      %v5562 = vld [vmem:[#allocation2 + $0x51] sm:$0xff]
      %v5563 = vld [vmem:[#allocation2 + $0x59] sm:$0xff]
      %v5564 = vld [vmem:[#allocation2 + $0x61] sm:$0xff]
      %v5565 = vld [vmem:[#allocation2 + $0x69] sm:$0xff]
      %v5566 = vld [vmem:[#allocation2 + $0x71] sm:$0xff]
      %v5567 = vld [vmem:[#allocation2 + $0x79] sm:$0xff]
      %v5568 = vld [vmem:[#allocation2 + $0x81] sm:$0xff]
      %v5569 = vld [vmem:[#allocation2 + $0x89] sm:$0xff]
      %v5570 = vld [vmem:[#allocation2 + $0x91] sm:$0xff]
      %v5571 = vld [vmem:[#allocation2 + $0x99] sm:$0xff]
      %v5572 = vld [vmem:[#allocation2 + $0xa1] sm:$0xff]
      %v5573 = vld [vmem:[#allocation2 + $0xa9] sm:$0xff]
      %v5574 = vld [vmem:[#allocation2 + $0xb1] sm:$0xff]
      %v5575 = vld [vmem:[#allocation2 + $0xb9] sm:$0xff]
      %v5576 = vld [vmem:[#allocation2 + $0xc1] sm:$0xff]
      %v5577 = vld [vmem:[#allocation2 + $0xc9] sm:$0xff]
      %v5578 = vld [vmem:[#allocation2 + $0xd1] sm:$0xff]
      %v5579 = vld [vmem:[#allocation2 + $0xd9] sm:$0xff]
      %v5580 = vld [vmem:[#allocation2 + $0xe1] sm:$0xff]
      %v5581 = vld [vmem:[#allocation2 + $0xe9] sm:$0xff]
      %v5582 = vld [vmem:[#allocation2 + $0xf1] sm:$0xff]
      %v5583 = vld [vmem:[#allocation2 + $0xf9] sm:$0xff]
      %v5584 = vld [vmem:[#allocation2 + $0x101] sm:$0xff]
      %v5585 = vld [vmem:[#allocation2 + $0x109] sm:$0xff]
      %v5586 = vld [vmem:[#allocation2 + $0x111] sm:$0xff]
      %v5587 = vld [vmem:[#allocation2 + $0x119] sm:$0xff]
      %s5588 = scalar_lea.vmem %s2, 4
      %v5589 = vld [vmem:[%s5588] sm:$0xf]
      %v5591 = vsel %vm895, %v5552, 0
      %v5594 = vsel %vm895, %v5553, 0
      %v5597 = vsel %vm895, %v5554, 0
      %v5600 = vsel %vm895, %v5555, 0
      %v5603 = vsel %vm895, %v5556, 0
      %v5606 = vsel %vm895, %v5557, 0
      %v5609 = vsel %vm895, %v5558, 0
      %v5612 = vsel %vm895, %v5559, 0
      %v5615 = vsel %vm895, %v5560, 0
      %v5618 = vsel %vm895, %v5561, 0
      %v5621 = vsel %vm895, %v5562, 0
      %v5624 = vsel %vm895, %v5563, 0
      %v5627 = vsel %vm895, %v5564, 0
      %v5630 = vsel %vm895, %v5565, 0
      %v5633 = vsel %vm895, %v5566, 0
      %v5636 = vsel %vm895, %v5567, 0
      %v5639 = vsel %vm895, %v5568, 0
      %v5642 = vsel %vm895, %v5569, 0
      %v5645 = vsel %vm895, %v5570, 0
      %v5648 = vsel %vm895, %v5571, 0
      %v5651 = vsel %vm895, %v5572, 0
      %v5654 = vsel %vm895, %v5573, 0
      %v5657 = vsel %vm895, %v5574, 0
      %v5660 = vsel %vm895, %v5575, 0
      %v5663 = vsel %vm895, %v5576, 0
      %v5666 = vsel %vm895, %v5577, 0
      %v5669 = vsel %vm895, %v5578, 0
      %v5672 = vsel %vm895, %v5579, 0
      %v5675 = vsel %vm895, %v5580, 0
      %v5678 = vsel %vm895, %v5581, 0
      %v5681 = vsel %vm895, %v5582, 0
      %v5684 = vsel %vm895, %v5583, 0
      %v5687 = vsel %vm895, %v5584, 0
      %v5690 = vsel %vm895, %v5585, 0
      %v5693 = vsel %vm895, %v5586, 0
      %v5696 = vsel %vm895, %v5587, 0
      %v5699 = vsel %vm1004, %v5589, 0
      %5701 = vmatprep.subr.mxu0 0.0
      %5702 = vmatpush1.msra.mxu0 0.0
      %5703 = vmatprep.subr.mxu0 0.0
      %5704 = vmatpush1.msra.mxu0 0.0
      %5705 = vmatprep.subr.mxu0 0.0
      %5706 = vmatpush1.msra.mxu0 0.0
      %5707 = vmatprep.subr.mxu0 0.0
      %5708 = vmatpush1.msra.mxu0 0.0
      %5709 = vmatprep.subr.mxu0 0.0
      %5710 = vmatpush1.msra.mxu0 0.0
      %5711 = vmatprep.subr.mxu0 0.0
      %5712 = vmatpush1.msra.mxu0 0.0
      %5713 = vmatprep.subr.mxu0 0.0
      %5714 = vmatpush1.msra.mxu0 0.0
      %5715 = vmatprep.subr.mxu0 0.0
      %5716 = vmatpush1.msra.mxu0 0.0
      %5717 = vmatprep.subr.mxu0 0.0
      %5718 = vmatpush1.msra.mxu0 0.0
      %5719 = vmatprep.subr.mxu0 0.0
      %5720 = vmatpush1.msra.mxu0 0.0
      %5721 = vmatprep.subr.mxu0 0.0
      %5722 = vmatpush1.msra.mxu0 0.0
      %5723 = vmatprep.subr.mxu0 0.0
      %5724 = vmatpush1.msra.mxu0 0.0
      %5725 = vmatprep.subr.mxu0 0.0
      %5726 = vmatpush1.msra.mxu0 0.0
      %5727 = vmatprep.subr.mxu0 0.0
      %5728 = vmatpush1.msra.mxu0 0.0
      %5729 = vmatprep.subr.mxu0 0.0
      %5730 = vmatpush1.msra.mxu0 0.0
      %5731 = vmatprep.subr.mxu0 0.0
      %5732 = vmatpush1.msra.mxu0 %v5699
      %5733 = vmatprep.subr.mxu0 0.0
      %5734 = vmatpush2.msra.mxu0 0.0
      %5735 = vmatprep.subr.mxu0 0.0
      %5736 = vmatpush2.msra.mxu0 0.0
      %5737 = vmatprep.subr.mxu0 0.0
      %5738 = vmatpush2.msra.mxu0 0.0
      %5739 = vmatprep.subr.mxu0 0.0
      %5740 = vmatpush2.msra.mxu0 0.0
      %5741 = vmatprep.subr.mxu0 0.0
      %5742 = vmatpush2.msra.mxu0 0.0
      %5743 = vmatprep.subr.mxu0 0.0
      %5744 = vmatpush2.msra.mxu0 0.0
      %5745 = vmatprep.subr.mxu0 0.0
      %5746 = vmatpush2.msra.mxu0 0.0
      %5747 = vmatprep.subr.mxu0 0.0
      %5748 = vmatpush2.msra.mxu0 0.0
      %5749 = vmatprep.subr.mxu0 0.0
      %5750 = vmatpush2.msra.mxu0 0.0
      %5751 = vmatprep.subr.mxu0 0.0
      %5752 = vmatpush2.msra.mxu0 0.0
      %5753 = vmatprep.subr.mxu0 0.0
      %5754 = vmatpush2.msra.mxu0 0.0
      %5755 = vmatprep.subr.mxu0 0.0
      %5756 = vmatpush2.msra.mxu0 0.0
      %5757 = vmatprep.subr.mxu0 0.0
      %5758 = vmatpush2.msra.mxu0 0.0
      %5759 = vmatprep.subr.mxu0 0.0
      %5760 = vmatpush2.msra.mxu0 0.0
      %5761 = vmatprep.subr.mxu0 0.0
      %5762 = vmatpush2.msra.mxu0 0.0
      %5763 = vmatprep.subr.mxu0 0.0
      %5764 = vmatpush2.msra.mxu0 0.0
      %5765 = vmatprep.mubr.f32.mxu0 0.0
      %5766 = vmatmul.mubr.f32.gmra.mxu0 %v5591
      %v5767 = vpop.f32.mrf.mxu0
      %v5768 = vadd.f32 0.0, %v5767
      %v5769 = vpop.f32.mrf.mxu0
      %5770 = vmatprep.mubr.f32.mxu0 0.0
      %5771 = vmatmul.mubr.f32.gmra.mxu0 %v5594
      %v5772 = vpop.f32.mrf.mxu0
      %v5773 = vadd.f32 0.0, %v5772
      %v5774 = vpop.f32.mrf.mxu0
      %5775 = vmatprep.mubr.f32.mxu0 0.0
      %5776 = vmatmul.mubr.f32.gmra.mxu0 %v5597
      %v5777 = vpop.f32.mrf.mxu0
      %v5778 = vadd.f32 0.0, %v5777
      %v5779 = vpop.f32.mrf.mxu0
      %5780 = vmatprep.mubr.f32.mxu0 0.0
      %5781 = vmatmul.mubr.f32.gmra.mxu0 %v5600
      %v5782 = vpop.f32.mrf.mxu0
      %v5783 = vadd.f32 0.0, %v5782
      %v5784 = vpop.f32.mrf.mxu0
      %5785 = vmatprep.mubr.f32.mxu0 0.0
      %5786 = vmatmul.mubr.f32.gmra.mxu0 %v5603
      %v5787 = vpop.f32.mrf.mxu0
      %v5788 = vadd.f32 0.0, %v5787
      %v5789 = vpop.f32.mrf.mxu0
      %5790 = vmatprep.mubr.f32.mxu0 0.0
      %5791 = vmatmul.mubr.f32.gmra.mxu0 %v5606
      %v5792 = vpop.f32.mrf.mxu0
      %v5793 = vadd.f32 0.0, %v5792
      %v5794 = vpop.f32.mrf.mxu0
      %5795 = vmatprep.mubr.f32.mxu0 0.0
      %5796 = vmatmul.mubr.f32.gmra.mxu0 %v5609
      %v5797 = vpop.f32.mrf.mxu0
      %v5798 = vadd.f32 0.0, %v5797
      %v5799 = vpop.f32.mrf.mxu0
      %5800 = vmatprep.mubr.f32.mxu0 0.0
      %5801 = vmatmul.mubr.f32.gmra.mxu0 %v5612
      %v5802 = vpop.f32.mrf.mxu0
      %v5803 = vadd.f32 0.0, %v5802
      %v5804 = vpop.f32.mrf.mxu0
      %5805 = vmatprep.mubr.f32.mxu0 0.0
      %5806 = vmatmul.mubr.f32.gmra.mxu0 %v5615
      %v5807 = vpop.f32.mrf.mxu0
      %v5808 = vadd.f32 0.0, %v5807
      %v5809 = vpop.f32.mrf.mxu0
      %5810 = vmatprep.mubr.f32.mxu0 0.0
      %5811 = vmatmul.mubr.f32.gmra.mxu0 %v5618
      %v5812 = vpop.f32.mrf.mxu0
      %v5813 = vadd.f32 0.0, %v5812
      %v5814 = vpop.f32.mrf.mxu0
      %5815 = vmatprep.mubr.f32.mxu0 0.0
      %5816 = vmatmul.mubr.f32.gmra.mxu0 %v5621
      %v5817 = vpop.f32.mrf.mxu0
      %v5818 = vadd.f32 0.0, %v5817
      %v5819 = vpop.f32.mrf.mxu0
      %5820 = vmatprep.mubr.f32.mxu0 0.0
      %5821 = vmatmul.mubr.f32.gmra.mxu0 %v5624
      %v5822 = vpop.f32.mrf.mxu0
      %v5823 = vadd.f32 0.0, %v5822
      %v5824 = vpop.f32.mrf.mxu0
      %5825 = vmatprep.mubr.f32.mxu0 0.0
      %5826 = vmatmul.mubr.f32.gmra.mxu0 %v5627
      %v5827 = vpop.f32.mrf.mxu0
      %v5828 = vadd.f32 0.0, %v5827
      %v5829 = vpop.f32.mrf.mxu0
      %5830 = vmatprep.mubr.f32.mxu0 0.0
      %5831 = vmatmul.mubr.f32.gmra.mxu0 %v5630
      %v5832 = vpop.f32.mrf.mxu0
      %v5833 = vadd.f32 0.0, %v5832
      %v5834 = vpop.f32.mrf.mxu0
      %5835 = vmatprep.mubr.f32.mxu0 0.0
      %5836 = vmatmul.mubr.f32.gmra.mxu0 %v5633
      %v5837 = vpop.f32.mrf.mxu0
      %v5838 = vadd.f32 0.0, %v5837
      %v5839 = vpop.f32.mrf.mxu0
      %5840 = vmatprep.mubr.f32.mxu0 0.0
      %5841 = vmatmul.mubr.f32.gmra.mxu0 %v5636
      %v5842 = vpop.f32.mrf.mxu0
      %v5843 = vadd.f32 0.0, %v5842
      %v5844 = vpop.f32.mrf.mxu0
      %5845 = vmatprep.mubr.f32.mxu0 0.0
      %5846 = vmatmul.mubr.f32.gmra.mxu0 %v5639
      %v5847 = vpop.f32.mrf.mxu0
      %v5848 = vadd.f32 0.0, %v5847
      %v5849 = vpop.f32.mrf.mxu0
      %5850 = vmatprep.mubr.f32.mxu0 0.0
      %5851 = vmatmul.mubr.f32.gmra.mxu0 %v5642
      %v5852 = vpop.f32.mrf.mxu0
      %v5853 = vadd.f32 0.0, %v5852
      %v5854 = vpop.f32.mrf.mxu0
      %5855 = vmatprep.mubr.f32.mxu0 0.0
      %5856 = vmatmul.mubr.f32.gmra.mxu0 %v5645
      %v5857 = vpop.f32.mrf.mxu0
      %v5858 = vadd.f32 0.0, %v5857
      %v5859 = vpop.f32.mrf.mxu0
      %5860 = vmatprep.mubr.f32.mxu0 0.0
      %5861 = vmatmul.mubr.f32.gmra.mxu0 %v5648
      %v5862 = vpop.f32.mrf.mxu0
      %v5863 = vadd.f32 0.0, %v5862
      %v5864 = vpop.f32.mrf.mxu0
      %5865 = vmatprep.mubr.f32.mxu0 0.0
      %5866 = vmatmul.mubr.f32.gmra.mxu0 %v5651
      %v5867 = vpop.f32.mrf.mxu0
      %v5868 = vadd.f32 0.0, %v5867
      %v5869 = vpop.f32.mrf.mxu0
      %5870 = vmatprep.mubr.f32.mxu0 0.0
      %5871 = vmatmul.mubr.f32.gmra.mxu0 %v5654
      %v5872 = vpop.f32.mrf.mxu0
      %v5873 = vadd.f32 0.0, %v5872
      %v5874 = vpop.f32.mrf.mxu0
      %5875 = vmatprep.mubr.f32.mxu0 0.0
      %5876 = vmatmul.mubr.f32.gmra.mxu0 %v5657
      %v5877 = vpop.f32.mrf.mxu0
      %v5878 = vadd.f32 0.0, %v5877
      %v5879 = vpop.f32.mrf.mxu0
      %5880 = vmatprep.mubr.f32.mxu0 0.0
      %5881 = vmatmul.mubr.f32.gmra.mxu0 %v5660
      %v5882 = vpop.f32.mrf.mxu0
      %v5883 = vadd.f32 0.0, %v5882
      %v5884 = vpop.f32.mrf.mxu0
      %5885 = vmatprep.mubr.f32.mxu0 0.0
      %5886 = vmatmul.mubr.f32.gmra.mxu0 %v5663
      %v5887 = vpop.f32.mrf.mxu0
      %v5888 = vadd.f32 0.0, %v5887
      %v5889 = vpop.f32.mrf.mxu0
      %5890 = vmatprep.mubr.f32.mxu0 0.0
      %5891 = vmatmul.mubr.f32.gmra.mxu0 %v5666
      %v5892 = vpop.f32.mrf.mxu0
      %v5893 = vadd.f32 0.0, %v5892
      %v5894 = vpop.f32.mrf.mxu0
      %5895 = vmatprep.mubr.f32.mxu0 0.0
      %5896 = vmatmul.mubr.f32.gmra.mxu0 %v5669
      %v5897 = vpop.f32.mrf.mxu0
      %v5898 = vadd.f32 0.0, %v5897
      %v5899 = vpop.f32.mrf.mxu0
      %5900 = vmatprep.mubr.f32.mxu0 0.0
      %5901 = vmatmul.mubr.f32.gmra.mxu0 %v5672
      %v5902 = vpop.f32.mrf.mxu0
      %v5903 = vadd.f32 0.0, %v5902
      %v5904 = vpop.f32.mrf.mxu0
      %5905 = vmatprep.mubr.f32.mxu0 0.0
      %5906 = vmatmul.mubr.f32.gmra.mxu0 %v5675
      %v5907 = vpop.f32.mrf.mxu0
      %v5908 = vadd.f32 0.0, %v5907
      %v5909 = vpop.f32.mrf.mxu0
      %5910 = vmatprep.mubr.f32.mxu0 0.0
      %5911 = vmatmul.mubr.f32.gmra.mxu0 %v5678
      %v5912 = vpop.f32.mrf.mxu0
      %v5913 = vadd.f32 0.0, %v5912
      %v5914 = vpop.f32.mrf.mxu0
      %5915 = vmatprep.mubr.f32.mxu0 0.0
      %5916 = vmatmul.mubr.f32.gmra.mxu0 %v5681
      %v5917 = vpop.f32.mrf.mxu0
      %v5918 = vadd.f32 0.0, %v5917
      %v5919 = vpop.f32.mrf.mxu0
      %5920 = vmatprep.mubr.f32.mxu0 0.0
      %5921 = vmatmul.mubr.f32.gmra.mxu0 %v5684
      %v5922 = vpop.f32.mrf.mxu0
      %v5923 = vadd.f32 0.0, %v5922
      %v5924 = vpop.f32.mrf.mxu0
      %5925 = vmatprep.mubr.f32.mxu0 0.0
      %5926 = vmatmul.mubr.f32.gmra.mxu0 %v5687
      %v5927 = vpop.f32.mrf.mxu0
      %v5928 = vadd.f32 0.0, %v5927
      %v5929 = vpop.f32.mrf.mxu0
      %5930 = vmatprep.mubr.f32.mxu0 0.0
      %5931 = vmatmul.mubr.f32.gmra.mxu0 %v5690
      %v5932 = vpop.f32.mrf.mxu0
      %v5933 = vadd.f32 0.0, %v5932
      %v5934 = vpop.f32.mrf.mxu0
      %5935 = vmatprep.mubr.f32.mxu0 0.0
      %5936 = vmatmul.mubr.f32.gmra.mxu0 %v5693
      %v5937 = vpop.f32.mrf.mxu0
      %v5938 = vadd.f32 0.0, %v5937
      %v5939 = vpop.f32.mrf.mxu0
      %5940 = vmatprep.mubr.f32.mxu0 0.0
      %5941 = vmatmul.mubr.f32.gmra.mxu0 %v5696
      %v5942 = vpop.f32.mrf.mxu0
      %v5943 = vadd.f32 0.0, %v5942
      %v5944 = vpop.f32.mrf.mxu0
      %5945 = vdwg.mxu0
      %v5947 = vsel %vm895, %v5515, 0
      %v5950 = vsel %vm895, %v5516, 0
      %v5953 = vsel %vm895, %v5517, 0
      %v5956 = vsel %vm895, %v5518, 0
      %v5959 = vsel %vm895, %v5519, 0
      %v5962 = vsel %vm895, %v5520, 0
      %v5965 = vsel %vm895, %v5521, 0
      %v5968 = vsel %vm895, %v5522, 0
      %v5971 = vsel %vm895, %v5523, 0
      %v5974 = vsel %vm895, %v5524, 0
      %v5977 = vsel %vm895, %v5525, 0
      %v5980 = vsel %vm895, %v5526, 0
      %v5983 = vsel %vm895, %v5527, 0
      %v5986 = vsel %vm895, %v5528, 0
      %v5989 = vsel %vm895, %v5529, 0
      %v5992 = vsel %vm895, %v5530, 0
      %v5995 = vsel %vm895, %v5531, 0
      %v5998 = vsel %vm895, %v5532, 0
      %v6001 = vsel %vm895, %v5533, 0
      %v6004 = vsel %vm895, %v5534, 0
      %v6007 = vsel %vm895, %v5535, 0
      %v6010 = vsel %vm895, %v5536, 0
      %v6013 = vsel %vm895, %v5537, 0
      %v6016 = vsel %vm895, %v5538, 0
      %v6019 = vsel %vm895, %v5539, 0
      %v6022 = vsel %vm895, %v5540, 0
      %v6025 = vsel %vm895, %v5541, 0
      %v6028 = vsel %vm895, %v5542, 0
      %v6031 = vsel %vm895, %v5543, 0
      %v6034 = vsel %vm895, %v5544, 0
      %v6037 = vsel %vm895, %v5545, 0
      %v6040 = vsel %vm895, %v5546, 0
      %v6043 = vsel %vm895, %v5547, 0
      %v6046 = vsel %vm895, %v5548, 0
      %v6049 = vsel %vm895, %v5549, 0
      %v6052 = vsel %vm895, %v5550, 0
      %v6055 = vsel %vm1004, %v5551, 0
      %6057 = vmatprep.subr.mxu0 0.0
      %6058 = vmatpush1.msra.mxu0 0.0
      %6059 = vmatprep.subr.mxu0 0.0
      %6060 = vmatpush1.msra.mxu0 0.0
      %6061 = vmatprep.subr.mxu0 0.0
      %6062 = vmatpush1.msra.mxu0 0.0
      %6063 = vmatprep.subr.mxu0 0.0
      %6064 = vmatpush1.msra.mxu0 0.0
      %6065 = vmatprep.subr.mxu0 0.0
      %6066 = vmatpush1.msra.mxu0 0.0
      %6067 = vmatprep.subr.mxu0 0.0
      %6068 = vmatpush1.msra.mxu0 0.0
      %6069 = vmatprep.subr.mxu0 0.0
      %6070 = vmatpush1.msra.mxu0 0.0
      %6071 = vmatprep.subr.mxu0 0.0
      %6072 = vmatpush1.msra.mxu0 0.0
      %6073 = vmatprep.subr.mxu0 0.0
      %6074 = vmatpush1.msra.mxu0 0.0
      %6075 = vmatprep.subr.mxu0 0.0
      %6076 = vmatpush1.msra.mxu0 0.0
      %6077 = vmatprep.subr.mxu0 0.0
      %6078 = vmatpush1.msra.mxu0 0.0
      %6079 = vmatprep.subr.mxu0 0.0
      %6080 = vmatpush1.msra.mxu0 0.0
      %6081 = vmatprep.subr.mxu0 0.0
      %6082 = vmatpush1.msra.mxu0 0.0
      %6083 = vmatprep.subr.mxu0 0.0
      %6084 = vmatpush1.msra.mxu0 0.0
      %6085 = vmatprep.subr.mxu0 0.0
      %6086 = vmatpush1.msra.mxu0 0.0
      %6087 = vmatprep.subr.mxu0 0.0
      %6088 = vmatpush1.msra.mxu0 %v6055
      %6089 = vmatprep.subr.mxu0 0.0
      %6090 = vmatpush2.msra.mxu0 0.0
      %6091 = vmatprep.subr.mxu0 0.0
      %6092 = vmatpush2.msra.mxu0 0.0
      %6093 = vmatprep.subr.mxu0 0.0
      %6094 = vmatpush2.msra.mxu0 0.0
      %6095 = vmatprep.subr.mxu0 0.0
      %6096 = vmatpush2.msra.mxu0 0.0
      %6097 = vmatprep.subr.mxu0 0.0
      %6098 = vmatpush2.msra.mxu0 0.0
      %6099 = vmatprep.subr.mxu0 0.0
      %6100 = vmatpush2.msra.mxu0 0.0
      %6101 = vmatprep.subr.mxu0 0.0
      %6102 = vmatpush2.msra.mxu0 0.0
      %6103 = vmatprep.subr.mxu0 0.0
      %6104 = vmatpush2.msra.mxu0 0.0
      %6105 = vmatprep.subr.mxu0 0.0
      %6106 = vmatpush2.msra.mxu0 0.0
      %6107 = vmatprep.subr.mxu0 0.0
      %6108 = vmatpush2.msra.mxu0 0.0
      %6109 = vmatprep.subr.mxu0 0.0
      %6110 = vmatpush2.msra.mxu0 0.0
      %6111 = vmatprep.subr.mxu0 0.0
      %6112 = vmatpush2.msra.mxu0 0.0
      %6113 = vmatprep.subr.mxu0 0.0
      %6114 = vmatpush2.msra.mxu0 0.0
      %6115 = vmatprep.subr.mxu0 0.0
      %6116 = vmatpush2.msra.mxu0 0.0
      %6117 = vmatprep.subr.mxu0 0.0
      %6118 = vmatpush2.msra.mxu0 0.0
      %6119 = vmatprep.subr.mxu0 0.0
      %6120 = vmatpush2.msra.mxu0 0.0
      %6121 = vmatprep.mubr.f32.mxu0 0.0
      %6122 = vmatmul.mubr.f32.gmra.mxu0 %v5947
      %v6123 = vpop.f32.mrf.mxu0
      %v6124 = vadd.f32 %v5768, %v6123
      %v6125 = vpop.f32.mrf.mxu0
      %6126 = vmatprep.mubr.f32.mxu0 0.0
      %6127 = vmatmul.mubr.f32.gmra.mxu0 %v5950
      %v6128 = vpop.f32.mrf.mxu0
      %v6129 = vadd.f32 %v5773, %v6128
      %v6130 = vpop.f32.mrf.mxu0
      %6131 = vmatprep.mubr.f32.mxu0 0.0
      %6132 = vmatmul.mubr.f32.gmra.mxu0 %v5953
      %v6133 = vpop.f32.mrf.mxu0
      %v6134 = vadd.f32 %v5778, %v6133
      %v6135 = vpop.f32.mrf.mxu0
      %6136 = vmatprep.mubr.f32.mxu0 0.0
      %6137 = vmatmul.mubr.f32.gmra.mxu0 %v5956
      %v6138 = vpop.f32.mrf.mxu0
      %v6139 = vadd.f32 %v5783, %v6138
      %v6140 = vpop.f32.mrf.mxu0
      %6141 = vmatprep.mubr.f32.mxu0 0.0
      %6142 = vmatmul.mubr.f32.gmra.mxu0 %v5959
      %v6143 = vpop.f32.mrf.mxu0
      %v6144 = vadd.f32 %v5788, %v6143
      %v6145 = vpop.f32.mrf.mxu0
      %6146 = vmatprep.mubr.f32.mxu0 0.0
      %6147 = vmatmul.mubr.f32.gmra.mxu0 %v5962
      %v6148 = vpop.f32.mrf.mxu0
      %v6149 = vadd.f32 %v5793, %v6148
      %v6150 = vpop.f32.mrf.mxu0
      %6151 = vmatprep.mubr.f32.mxu0 0.0
      %6152 = vmatmul.mubr.f32.gmra.mxu0 %v5965
      %v6153 = vpop.f32.mrf.mxu0
      %v6154 = vadd.f32 %v5798, %v6153
      %v6155 = vpop.f32.mrf.mxu0
      %6156 = vmatprep.mubr.f32.mxu0 0.0
      %6157 = vmatmul.mubr.f32.gmra.mxu0 %v5968
      %v6158 = vpop.f32.mrf.mxu0
      %v6159 = vadd.f32 %v5803, %v6158
      %v6160 = vpop.f32.mrf.mxu0
      %6161 = vmatprep.mubr.f32.mxu0 0.0
      %6162 = vmatmul.mubr.f32.gmra.mxu0 %v5971
      %v6163 = vpop.f32.mrf.mxu0
      %v6164 = vadd.f32 %v5808, %v6163
      %v6165 = vpop.f32.mrf.mxu0
      %6166 = vmatprep.mubr.f32.mxu0 0.0
      %6167 = vmatmul.mubr.f32.gmra.mxu0 %v5974
      %v6168 = vpop.f32.mrf.mxu0
      %v6169 = vadd.f32 %v5813, %v6168
      %v6170 = vpop.f32.mrf.mxu0
      %6171 = vmatprep.mubr.f32.mxu0 0.0
      %6172 = vmatmul.mubr.f32.gmra.mxu0 %v5977
      %v6173 = vpop.f32.mrf.mxu0
      %v6174 = vadd.f32 %v5818, %v6173
      %v6175 = vpop.f32.mrf.mxu0
      %6176 = vmatprep.mubr.f32.mxu0 0.0
      %6177 = vmatmul.mubr.f32.gmra.mxu0 %v5980
      %v6178 = vpop.f32.mrf.mxu0
      %v6179 = vadd.f32 %v5823, %v6178
      %v6180 = vpop.f32.mrf.mxu0
      %6181 = vmatprep.mubr.f32.mxu0 0.0
      %6182 = vmatmul.mubr.f32.gmra.mxu0 %v5983
      %v6183 = vpop.f32.mrf.mxu0
      %v6184 = vadd.f32 %v5828, %v6183
      %v6185 = vpop.f32.mrf.mxu0
      %6186 = vmatprep.mubr.f32.mxu0 0.0
      %6187 = vmatmul.mubr.f32.gmra.mxu0 %v5986
      %v6188 = vpop.f32.mrf.mxu0
      %v6189 = vadd.f32 %v5833, %v6188
      %v6190 = vpop.f32.mrf.mxu0
      %6191 = vmatprep.mubr.f32.mxu0 0.0
      %6192 = vmatmul.mubr.f32.gmra.mxu0 %v5989
      %v6193 = vpop.f32.mrf.mxu0
      %v6194 = vadd.f32 %v5838, %v6193
      %v6195 = vpop.f32.mrf.mxu0
      %6196 = vmatprep.mubr.f32.mxu0 0.0
      %6197 = vmatmul.mubr.f32.gmra.mxu0 %v5992
      %v6198 = vpop.f32.mrf.mxu0
      %v6199 = vadd.f32 %v5843, %v6198
      %v6200 = vpop.f32.mrf.mxu0
      %6201 = vmatprep.mubr.f32.mxu0 0.0
      %6202 = vmatmul.mubr.f32.gmra.mxu0 %v5995
      %v6203 = vpop.f32.mrf.mxu0
      %v6204 = vadd.f32 %v5848, %v6203
      %v6205 = vpop.f32.mrf.mxu0
      %6206 = vmatprep.mubr.f32.mxu0 0.0
      %6207 = vmatmul.mubr.f32.gmra.mxu0 %v5998
      %v6208 = vpop.f32.mrf.mxu0
      %v6209 = vadd.f32 %v5853, %v6208
      %v6210 = vpop.f32.mrf.mxu0
      %6211 = vmatprep.mubr.f32.mxu0 0.0
      %6212 = vmatmul.mubr.f32.gmra.mxu0 %v6001
      %v6213 = vpop.f32.mrf.mxu0
      %v6214 = vadd.f32 %v5858, %v6213
      %v6215 = vpop.f32.mrf.mxu0
      %6216 = vmatprep.mubr.f32.mxu0 0.0
      %6217 = vmatmul.mubr.f32.gmra.mxu0 %v6004
      %v6218 = vpop.f32.mrf.mxu0
      %v6219 = vadd.f32 %v5863, %v6218
      %v6220 = vpop.f32.mrf.mxu0
      %6221 = vmatprep.mubr.f32.mxu0 0.0
      %6222 = vmatmul.mubr.f32.gmra.mxu0 %v6007
      %v6223 = vpop.f32.mrf.mxu0
      %v6224 = vadd.f32 %v5868, %v6223
      %v6225 = vpop.f32.mrf.mxu0
      %6226 = vmatprep.mubr.f32.mxu0 0.0
      %6227 = vmatmul.mubr.f32.gmra.mxu0 %v6010
      %v6228 = vpop.f32.mrf.mxu0
      %v6229 = vadd.f32 %v5873, %v6228
      %v6230 = vpop.f32.mrf.mxu0
      %6231 = vmatprep.mubr.f32.mxu0 0.0
      %6232 = vmatmul.mubr.f32.gmra.mxu0 %v6013
      %v6233 = vpop.f32.mrf.mxu0
      %v6234 = vadd.f32 %v5878, %v6233
      %v6235 = vpop.f32.mrf.mxu0
      %6236 = vmatprep.mubr.f32.mxu0 0.0
      %6237 = vmatmul.mubr.f32.gmra.mxu0 %v6016
      %v6238 = vpop.f32.mrf.mxu0
      %v6239 = vadd.f32 %v5883, %v6238
      %v6240 = vpop.f32.mrf.mxu0
      %6241 = vmatprep.mubr.f32.mxu0 0.0
      %6242 = vmatmul.mubr.f32.gmra.mxu0 %v6019
      %v6243 = vpop.f32.mrf.mxu0
      %v6244 = vadd.f32 %v5888, %v6243
      %v6245 = vpop.f32.mrf.mxu0
      %6246 = vmatprep.mubr.f32.mxu0 0.0
      %6247 = vmatmul.mubr.f32.gmra.mxu0 %v6022
      %v6248 = vpop.f32.mrf.mxu0
      %v6249 = vadd.f32 %v5893, %v6248
      %v6250 = vpop.f32.mrf.mxu0
      %6251 = vmatprep.mubr.f32.mxu0 0.0
      %6252 = vmatmul.mubr.f32.gmra.mxu0 %v6025
      %v6253 = vpop.f32.mrf.mxu0
      %v6254 = vadd.f32 %v5898, %v6253
      %v6255 = vpop.f32.mrf.mxu0
      %6256 = vmatprep.mubr.f32.mxu0 0.0
      %6257 = vmatmul.mubr.f32.gmra.mxu0 %v6028
      %v6258 = vpop.f32.mrf.mxu0
      %v6259 = vadd.f32 %v5903, %v6258
      %v6260 = vpop.f32.mrf.mxu0
      %6261 = vmatprep.mubr.f32.mxu0 0.0
      %6262 = vmatmul.mubr.f32.gmra.mxu0 %v6031
      %v6263 = vpop.f32.mrf.mxu0
      %v6264 = vadd.f32 %v5908, %v6263
      %v6265 = vpop.f32.mrf.mxu0
      %6266 = vmatprep.mubr.f32.mxu0 0.0
      %6267 = vmatmul.mubr.f32.gmra.mxu0 %v6034
      %v6268 = vpop.f32.mrf.mxu0
      %v6269 = vadd.f32 %v5913, %v6268
      %v6270 = vpop.f32.mrf.mxu0
      %6271 = vmatprep.mubr.f32.mxu0 0.0
      %6272 = vmatmul.mubr.f32.gmra.mxu0 %v6037
      %v6273 = vpop.f32.mrf.mxu0
      %v6274 = vadd.f32 %v5918, %v6273
      %v6275 = vpop.f32.mrf.mxu0
      %6276 = vmatprep.mubr.f32.mxu0 0.0
      %6277 = vmatmul.mubr.f32.gmra.mxu0 %v6040
      %v6278 = vpop.f32.mrf.mxu0
      %v6279 = vadd.f32 %v5923, %v6278
      %v6280 = vpop.f32.mrf.mxu0
      %6281 = vmatprep.mubr.f32.mxu0 0.0
      %6282 = vmatmul.mubr.f32.gmra.mxu0 %v6043
      %v6283 = vpop.f32.mrf.mxu0
      %v6284 = vadd.f32 %v5928, %v6283
      %v6285 = vpop.f32.mrf.mxu0
      %6286 = vmatprep.mubr.f32.mxu0 0.0
      %6287 = vmatmul.mubr.f32.gmra.mxu0 %v6046
      %v6288 = vpop.f32.mrf.mxu0
      %v6289 = vadd.f32 %v5933, %v6288
      %v6290 = vpop.f32.mrf.mxu0
      %6291 = vmatprep.mubr.f32.mxu0 0.0
      %6292 = vmatmul.mubr.f32.gmra.mxu0 %v6049
      %v6293 = vpop.f32.mrf.mxu0
      %v6294 = vadd.f32 %v5938, %v6293
      %v6295 = vpop.f32.mrf.mxu0
      %6296 = vmatprep.mubr.f32.mxu0 0.0
      %6297 = vmatmul.mubr.f32.gmra.mxu0 %v6052
      %v6298 = vpop.f32.mrf.mxu0
      %v6299 = vadd.f32 %v5943, %v6298
      %v6300 = vpop.f32.mrf.mxu0
      %6301 = vdwg.mxu0
      %v6302 = vld [vmem:[#allocation2 + $0x2] sm:$0xff]
      %v6303 = vld [vmem:[#allocation2 + $0xa] sm:$0xff]
      %v6304 = vld [vmem:[#allocation2 + $0x12] sm:$0xff]
      %v6305 = vld [vmem:[#allocation2 + $0x1a] sm:$0xff]
      %v6306 = vld [vmem:[#allocation2 + $0x22] sm:$0xff]
      %v6307 = vld [vmem:[#allocation2 + $0x2a] sm:$0xff]
      %v6308 = vld [vmem:[#allocation2 + $0x32] sm:$0xff]
      %v6309 = vld [vmem:[#allocation2 + $0x3a] sm:$0xff]
      %v6310 = vld [vmem:[#allocation2 + $0x42] sm:$0xff]
      %v6311 = vld [vmem:[#allocation2 + $0x4a] sm:$0xff]
      %v6312 = vld [vmem:[#allocation2 + $0x52] sm:$0xff]
      %v6313 = vld [vmem:[#allocation2 + $0x5a] sm:$0xff]
      %v6314 = vld [vmem:[#allocation2 + $0x62] sm:$0xff]
      %v6315 = vld [vmem:[#allocation2 + $0x6a] sm:$0xff]
      %v6316 = vld [vmem:[#allocation2 + $0x72] sm:$0xff]
      %v6317 = vld [vmem:[#allocation2 + $0x7a] sm:$0xff]
      %v6318 = vld [vmem:[#allocation2 + $0x82] sm:$0xff]
      %v6319 = vld [vmem:[#allocation2 + $0x8a] sm:$0xff]
      %v6320 = vld [vmem:[#allocation2 + $0x92] sm:$0xff]
      %v6321 = vld [vmem:[#allocation2 + $0x9a] sm:$0xff]
      %v6322 = vld [vmem:[#allocation2 + $0xa2] sm:$0xff]
      %v6323 = vld [vmem:[#allocation2 + $0xaa] sm:$0xff]
      %v6324 = vld [vmem:[#allocation2 + $0xb2] sm:$0xff]
      %v6325 = vld [vmem:[#allocation2 + $0xba] sm:$0xff]
      %v6326 = vld [vmem:[#allocation2 + $0xc2] sm:$0xff]
      %v6327 = vld [vmem:[#allocation2 + $0xca] sm:$0xff]
      %v6328 = vld [vmem:[#allocation2 + $0xd2] sm:$0xff]
      %v6329 = vld [vmem:[#allocation2 + $0xda] sm:$0xff]
      %v6330 = vld [vmem:[#allocation2 + $0xe2] sm:$0xff]
      %v6331 = vld [vmem:[#allocation2 + $0xea] sm:$0xff]
      %v6332 = vld [vmem:[#allocation2 + $0xf2] sm:$0xff]
      %v6333 = vld [vmem:[#allocation2 + $0xfa] sm:$0xff]
      %v6334 = vld [vmem:[#allocation2 + $0x102] sm:$0xff]
      %v6335 = vld [vmem:[#allocation2 + $0x10a] sm:$0xff]
      %v6336 = vld [vmem:[#allocation2 + $0x112] sm:$0xff]
      %v6337 = vld [vmem:[#allocation2 + $0x11a] sm:$0xff]
      %s6338 = scalar_lea.vmem %s2, 8
      %v6339 = vld [vmem:[%s6338] sm:$0xf]
      %v6341 = vsel %vm895, %v6302, 0
      %v6344 = vsel %vm895, %v6303, 0
      %v6347 = vsel %vm895, %v6304, 0
      %v6350 = vsel %vm895, %v6305, 0
      %v6353 = vsel %vm895, %v6306, 0
      %v6356 = vsel %vm895, %v6307, 0
      %v6359 = vsel %vm895, %v6308, 0
      %v6362 = vsel %vm895, %v6309, 0
      %v6365 = vsel %vm895, %v6310, 0
      %v6368 = vsel %vm895, %v6311, 0
      %v6371 = vsel %vm895, %v6312, 0
      %v6374 = vsel %vm895, %v6313, 0
      %v6377 = vsel %vm895, %v6314, 0
      %v6380 = vsel %vm895, %v6315, 0
      %v6383 = vsel %vm895, %v6316, 0
      %v6386 = vsel %vm895, %v6317, 0
      %v6389 = vsel %vm895, %v6318, 0
      %v6392 = vsel %vm895, %v6319, 0
      %v6395 = vsel %vm895, %v6320, 0
      %v6398 = vsel %vm895, %v6321, 0
      %v6401 = vsel %vm895, %v6322, 0
      %v6404 = vsel %vm895, %v6323, 0
      %v6407 = vsel %vm895, %v6324, 0
      %v6410 = vsel %vm895, %v6325, 0
      %v6413 = vsel %vm895, %v6326, 0
      %v6416 = vsel %vm895, %v6327, 0
      %v6419 = vsel %vm895, %v6328, 0
      %v6422 = vsel %vm895, %v6329, 0
      %v6425 = vsel %vm895, %v6330, 0
      %v6428 = vsel %vm895, %v6331, 0
      %v6431 = vsel %vm895, %v6332, 0
      %v6434 = vsel %vm895, %v6333, 0
      %v6437 = vsel %vm895, %v6334, 0
      %v6440 = vsel %vm895, %v6335, 0
      %v6443 = vsel %vm895, %v6336, 0
      %v6446 = vsel %vm895, %v6337, 0
      %v6449 = vsel %vm1004, %v6339, 0
      %6451 = vmatprep.subr.mxu0 0.0
      %6452 = vmatpush1.msra.mxu0 0.0
      %6453 = vmatprep.subr.mxu0 0.0
      %6454 = vmatpush1.msra.mxu0 0.0
      %6455 = vmatprep.subr.mxu0 0.0
      %6456 = vmatpush1.msra.mxu0 0.0
      %6457 = vmatprep.subr.mxu0 0.0
      %6458 = vmatpush1.msra.mxu0 0.0
      %6459 = vmatprep.subr.mxu0 0.0
      %6460 = vmatpush1.msra.mxu0 0.0
      %6461 = vmatprep.subr.mxu0 0.0
      %6462 = vmatpush1.msra.mxu0 0.0
      %6463 = vmatprep.subr.mxu0 0.0
      %6464 = vmatpush1.msra.mxu0 0.0
      %6465 = vmatprep.subr.mxu0 0.0
      %6466 = vmatpush1.msra.mxu0 0.0
      %6467 = vmatprep.subr.mxu0 0.0
      %6468 = vmatpush1.msra.mxu0 0.0
      %6469 = vmatprep.subr.mxu0 0.0
      %6470 = vmatpush1.msra.mxu0 0.0
      %6471 = vmatprep.subr.mxu0 0.0
      %6472 = vmatpush1.msra.mxu0 0.0
      %6473 = vmatprep.subr.mxu0 0.0
      %6474 = vmatpush1.msra.mxu0 0.0
      %6475 = vmatprep.subr.mxu0 0.0
      %6476 = vmatpush1.msra.mxu0 0.0
      %6477 = vmatprep.subr.mxu0 0.0
      %6478 = vmatpush1.msra.mxu0 0.0
      %6479 = vmatprep.subr.mxu0 0.0
      %6480 = vmatpush1.msra.mxu0 0.0
      %6481 = vmatprep.subr.mxu0 0.0
      %6482 = vmatpush1.msra.mxu0 %v6449
      %6483 = vmatprep.subr.mxu0 0.0
      %6484 = vmatpush2.msra.mxu0 0.0
      %6485 = vmatprep.subr.mxu0 0.0
      %6486 = vmatpush2.msra.mxu0 0.0
      %6487 = vmatprep.subr.mxu0 0.0
      %6488 = vmatpush2.msra.mxu0 0.0
      %6489 = vmatprep.subr.mxu0 0.0
      %6490 = vmatpush2.msra.mxu0 0.0
      %6491 = vmatprep.subr.mxu0 0.0
      %6492 = vmatpush2.msra.mxu0 0.0
      %6493 = vmatprep.subr.mxu0 0.0
      %6494 = vmatpush2.msra.mxu0 0.0
      %6495 = vmatprep.subr.mxu0 0.0
      %6496 = vmatpush2.msra.mxu0 0.0
      %6497 = vmatprep.subr.mxu0 0.0
      %6498 = vmatpush2.msra.mxu0 0.0
      %6499 = vmatprep.subr.mxu0 0.0
      %6500 = vmatpush2.msra.mxu0 0.0
      %6501 = vmatprep.subr.mxu0 0.0
      %6502 = vmatpush2.msra.mxu0 0.0
      %6503 = vmatprep.subr.mxu0 0.0
      %6504 = vmatpush2.msra.mxu0 0.0
      %6505 = vmatprep.subr.mxu0 0.0
      %6506 = vmatpush2.msra.mxu0 0.0
      %6507 = vmatprep.subr.mxu0 0.0
      %6508 = vmatpush2.msra.mxu0 0.0
      %6509 = vmatprep.subr.mxu0 0.0
      %6510 = vmatpush2.msra.mxu0 0.0
      %6511 = vmatprep.subr.mxu0 0.0
      %6512 = vmatpush2.msra.mxu0 0.0
      %6513 = vmatprep.subr.mxu0 0.0
      %6514 = vmatpush2.msra.mxu0 0.0
      %6515 = vmatprep.mubr.f32.mxu0 0.0
      %6516 = vmatmul.mubr.f32.gmra.mxu0 %v6341
      %v6517 = vpop.f32.mrf.mxu0
      %v6518 = vadd.f32 0.0, %v6517
      %v6519 = vpop.f32.mrf.mxu0
      %6520 = vmatprep.mubr.f32.mxu0 0.0
      %6521 = vmatmul.mubr.f32.gmra.mxu0 %v6344
      %v6522 = vpop.f32.mrf.mxu0
      %v6523 = vadd.f32 0.0, %v6522
      %v6524 = vpop.f32.mrf.mxu0
      %6525 = vmatprep.mubr.f32.mxu0 0.0
      %6526 = vmatmul.mubr.f32.gmra.mxu0 %v6347
      %v6527 = vpop.f32.mrf.mxu0
      %v6528 = vadd.f32 0.0, %v6527
      %v6529 = vpop.f32.mrf.mxu0
      %6530 = vmatprep.mubr.f32.mxu0 0.0
      %6531 = vmatmul.mubr.f32.gmra.mxu0 %v6350
      %v6532 = vpop.f32.mrf.mxu0
      %v6533 = vadd.f32 0.0, %v6532
      %v6534 = vpop.f32.mrf.mxu0
      %6535 = vmatprep.mubr.f32.mxu0 0.0
      %6536 = vmatmul.mubr.f32.gmra.mxu0 %v6353
      %v6537 = vpop.f32.mrf.mxu0
      %v6538 = vadd.f32 0.0, %v6537
      %v6539 = vpop.f32.mrf.mxu0
      %6540 = vmatprep.mubr.f32.mxu0 0.0
      %6541 = vmatmul.mubr.f32.gmra.mxu0 %v6356
      %v6542 = vpop.f32.mrf.mxu0
      %v6543 = vadd.f32 0.0, %v6542
      %v6544 = vpop.f32.mrf.mxu0
      %6545 = vmatprep.mubr.f32.mxu0 0.0
      %6546 = vmatmul.mubr.f32.gmra.mxu0 %v6359
      %v6547 = vpop.f32.mrf.mxu0
      %v6548 = vadd.f32 0.0, %v6547
      %v6549 = vpop.f32.mrf.mxu0
      %6550 = vmatprep.mubr.f32.mxu0 0.0
      %6551 = vmatmul.mubr.f32.gmra.mxu0 %v6362
      %v6552 = vpop.f32.mrf.mxu0
      %v6553 = vadd.f32 0.0, %v6552
      %v6554 = vpop.f32.mrf.mxu0
      %6555 = vmatprep.mubr.f32.mxu0 0.0
      %6556 = vmatmul.mubr.f32.gmra.mxu0 %v6365
      %v6557 = vpop.f32.mrf.mxu0
      %v6558 = vadd.f32 0.0, %v6557
      %v6559 = vpop.f32.mrf.mxu0
      %6560 = vmatprep.mubr.f32.mxu0 0.0
      %6561 = vmatmul.mubr.f32.gmra.mxu0 %v6368
      %v6562 = vpop.f32.mrf.mxu0
      %v6563 = vadd.f32 0.0, %v6562
      %v6564 = vpop.f32.mrf.mxu0
      %6565 = vmatprep.mubr.f32.mxu0 0.0
      %6566 = vmatmul.mubr.f32.gmra.mxu0 %v6371
      %v6567 = vpop.f32.mrf.mxu0
      %v6568 = vadd.f32 0.0, %v6567
      %v6569 = vpop.f32.mrf.mxu0
      %6570 = vmatprep.mubr.f32.mxu0 0.0
      %6571 = vmatmul.mubr.f32.gmra.mxu0 %v6374
      %v6572 = vpop.f32.mrf.mxu0
      %v6573 = vadd.f32 0.0, %v6572
      %v6574 = vpop.f32.mrf.mxu0
      %6575 = vmatprep.mubr.f32.mxu0 0.0
      %6576 = vmatmul.mubr.f32.gmra.mxu0 %v6377
      %v6577 = vpop.f32.mrf.mxu0
      %v6578 = vadd.f32 0.0, %v6577
      %v6579 = vpop.f32.mrf.mxu0
      %6580 = vmatprep.mubr.f32.mxu0 0.0
      %6581 = vmatmul.mubr.f32.gmra.mxu0 %v6380
      %v6582 = vpop.f32.mrf.mxu0
      %v6583 = vadd.f32 0.0, %v6582
      %v6584 = vpop.f32.mrf.mxu0
      %6585 = vmatprep.mubr.f32.mxu0 0.0
      %6586 = vmatmul.mubr.f32.gmra.mxu0 %v6383
      %v6587 = vpop.f32.mrf.mxu0
      %v6588 = vadd.f32 0.0, %v6587
      %v6589 = vpop.f32.mrf.mxu0
      %6590 = vmatprep.mubr.f32.mxu0 0.0
      %6591 = vmatmul.mubr.f32.gmra.mxu0 %v6386
      %v6592 = vpop.f32.mrf.mxu0
      %v6593 = vadd.f32 0.0, %v6592
      %v6594 = vpop.f32.mrf.mxu0
      %6595 = vmatprep.mubr.f32.mxu0 0.0
      %6596 = vmatmul.mubr.f32.gmra.mxu0 %v6389
      %v6597 = vpop.f32.mrf.mxu0
      %v6598 = vadd.f32 0.0, %v6597
      %v6599 = vpop.f32.mrf.mxu0
      %6600 = vmatprep.mubr.f32.mxu0 0.0
      %6601 = vmatmul.mubr.f32.gmra.mxu0 %v6392
      %v6602 = vpop.f32.mrf.mxu0
      %v6603 = vadd.f32 0.0, %v6602
      %v6604 = vpop.f32.mrf.mxu0
      %6605 = vmatprep.mubr.f32.mxu0 0.0
      %6606 = vmatmul.mubr.f32.gmra.mxu0 %v6395
      %v6607 = vpop.f32.mrf.mxu0
      %v6608 = vadd.f32 0.0, %v6607
      %v6609 = vpop.f32.mrf.mxu0
      %6610 = vmatprep.mubr.f32.mxu0 0.0
      %6611 = vmatmul.mubr.f32.gmra.mxu0 %v6398
      %v6612 = vpop.f32.mrf.mxu0
      %v6613 = vadd.f32 0.0, %v6612
      %v6614 = vpop.f32.mrf.mxu0
      %6615 = vmatprep.mubr.f32.mxu0 0.0
      %6616 = vmatmul.mubr.f32.gmra.mxu0 %v6401
      %v6617 = vpop.f32.mrf.mxu0
      %v6618 = vadd.f32 0.0, %v6617
      %v6619 = vpop.f32.mrf.mxu0
      %6620 = vmatprep.mubr.f32.mxu0 0.0
      %6621 = vmatmul.mubr.f32.gmra.mxu0 %v6404
      %v6622 = vpop.f32.mrf.mxu0
      %v6623 = vadd.f32 0.0, %v6622
      %v6624 = vpop.f32.mrf.mxu0
      %6625 = vmatprep.mubr.f32.mxu0 0.0
      %6626 = vmatmul.mubr.f32.gmra.mxu0 %v6407
      %v6627 = vpop.f32.mrf.mxu0
      %v6628 = vadd.f32 0.0, %v6627
      %v6629 = vpop.f32.mrf.mxu0
      %6630 = vmatprep.mubr.f32.mxu0 0.0
      %6631 = vmatmul.mubr.f32.gmra.mxu0 %v6410
      %v6632 = vpop.f32.mrf.mxu0
      %v6633 = vadd.f32 0.0, %v6632
      %v6634 = vpop.f32.mrf.mxu0
      %6635 = vmatprep.mubr.f32.mxu0 0.0
      %6636 = vmatmul.mubr.f32.gmra.mxu0 %v6413
      %v6637 = vpop.f32.mrf.mxu0
      %v6638 = vadd.f32 0.0, %v6637
      %v6639 = vpop.f32.mrf.mxu0
      %6640 = vmatprep.mubr.f32.mxu0 0.0
      %6641 = vmatmul.mubr.f32.gmra.mxu0 %v6416
      %v6642 = vpop.f32.mrf.mxu0
      %v6643 = vadd.f32 0.0, %v6642
      %v6644 = vpop.f32.mrf.mxu0
      %6645 = vmatprep.mubr.f32.mxu0 0.0
      %6646 = vmatmul.mubr.f32.gmra.mxu0 %v6419
      %v6647 = vpop.f32.mrf.mxu0
      %v6648 = vadd.f32 0.0, %v6647
      %v6649 = vpop.f32.mrf.mxu0
      %6650 = vmatprep.mubr.f32.mxu0 0.0
      %6651 = vmatmul.mubr.f32.gmra.mxu0 %v6422
      %v6652 = vpop.f32.mrf.mxu0
      %v6653 = vadd.f32 0.0, %v6652
      %v6654 = vpop.f32.mrf.mxu0
      %6655 = vmatprep.mubr.f32.mxu0 0.0
      %6656 = vmatmul.mubr.f32.gmra.mxu0 %v6425
      %v6657 = vpop.f32.mrf.mxu0
      %v6658 = vadd.f32 0.0, %v6657
      %v6659 = vpop.f32.mrf.mxu0
      %6660 = vmatprep.mubr.f32.mxu0 0.0
      %6661 = vmatmul.mubr.f32.gmra.mxu0 %v6428
      %v6662 = vpop.f32.mrf.mxu0
      %v6663 = vadd.f32 0.0, %v6662
      %v6664 = vpop.f32.mrf.mxu0
      %6665 = vmatprep.mubr.f32.mxu0 0.0
      %6666 = vmatmul.mubr.f32.gmra.mxu0 %v6431
      %v6667 = vpop.f32.mrf.mxu0
      %v6668 = vadd.f32 0.0, %v6667
      %v6669 = vpop.f32.mrf.mxu0
      %6670 = vmatprep.mubr.f32.mxu0 0.0
      %6671 = vmatmul.mubr.f32.gmra.mxu0 %v6434
      %v6672 = vpop.f32.mrf.mxu0
      %v6673 = vadd.f32 0.0, %v6672
      %v6674 = vpop.f32.mrf.mxu0
      %6675 = vmatprep.mubr.f32.mxu0 0.0
      %6676 = vmatmul.mubr.f32.gmra.mxu0 %v6437
      %v6677 = vpop.f32.mrf.mxu0
      %v6678 = vadd.f32 0.0, %v6677
      %v6679 = vpop.f32.mrf.mxu0
      %6680 = vmatprep.mubr.f32.mxu0 0.0
      %6681 = vmatmul.mubr.f32.gmra.mxu0 %v6440
      %v6682 = vpop.f32.mrf.mxu0
      %v6683 = vadd.f32 0.0, %v6682
      %v6684 = vpop.f32.mrf.mxu0
      %6685 = vmatprep.mubr.f32.mxu0 0.0
      %6686 = vmatmul.mubr.f32.gmra.mxu0 %v6443
      %v6687 = vpop.f32.mrf.mxu0
      %v6688 = vadd.f32 0.0, %v6687
      %v6689 = vpop.f32.mrf.mxu0
      %6690 = vmatprep.mubr.f32.mxu0 0.0
      %6691 = vmatmul.mubr.f32.gmra.mxu0 %v6446
      %v6692 = vpop.f32.mrf.mxu0
      %v6693 = vadd.f32 0.0, %v6692
      %v6694 = vpop.f32.mrf.mxu0
      %6695 = vdwg.mxu0
      %v6696 = vadd.f32 %v6124, %v6518
      %v6697 = vadd.f32 %v6129, %v6523
      %v6698 = vadd.f32 %v6134, %v6528
      %v6699 = vadd.f32 %v6139, %v6533
      %v6700 = vadd.f32 %v6144, %v6538
      %v6701 = vadd.f32 %v6149, %v6543
      %v6702 = vadd.f32 %v6154, %v6548
      %v6703 = vadd.f32 %v6159, %v6553
      %v6704 = vadd.f32 %v6164, %v6558
      %v6705 = vadd.f32 %v6169, %v6563
      %v6706 = vadd.f32 %v6174, %v6568
      %v6707 = vadd.f32 %v6179, %v6573
      %v6708 = vadd.f32 %v6184, %v6578
      %v6709 = vadd.f32 %v6189, %v6583
      %v6710 = vadd.f32 %v6194, %v6588
      %v6711 = vadd.f32 %v6199, %v6593
      %v6712 = vadd.f32 %v6204, %v6598
      %v6713 = vadd.f32 %v6209, %v6603
      %v6714 = vadd.f32 %v6214, %v6608
      %v6715 = vadd.f32 %v6219, %v6613
      %v6716 = vadd.f32 %v6224, %v6618
      %v6717 = vadd.f32 %v6229, %v6623
      %v6718 = vadd.f32 %v6234, %v6628
      %v6719 = vadd.f32 %v6239, %v6633
      %v6720 = vadd.f32 %v6244, %v6638
      %v6721 = vadd.f32 %v6249, %v6643
      %v6722 = vadd.f32 %v6254, %v6648
      %v6723 = vadd.f32 %v6259, %v6653
      %v6724 = vadd.f32 %v6264, %v6658
      %v6725 = vadd.f32 %v6269, %v6663
      %v6726 = vadd.f32 %v6274, %v6668
      %v6727 = vadd.f32 %v6279, %v6673
      %v6728 = vadd.f32 %v6284, %v6678
      %v6729 = vadd.f32 %v6289, %v6683
      %v6730 = vadd.f32 %v6294, %v6688
      %v6731 = vadd.f32 %v6299, %v6693
      %v6732 = vld [vmem:[#allocation2 + $0x12] sm:$0xff]
      %v6733 = vld [vmem:[#allocation2 + $0x1a] sm:$0xff]
      %v6734 = vld [vmem:[#allocation2 + $0x22] sm:$0xff]
      %v6735 = vld [vmem:[#allocation2 + $0x2a] sm:$0xff]
      %v6736 = vld [vmem:[#allocation2 + $0x32] sm:$0xff]
      %v6737 = vld [vmem:[#allocation2 + $0x3a] sm:$0xff]
      %v6738 = vld [vmem:[#allocation2 + $0x42] sm:$0xff]
      %v6739 = vld [vmem:[#allocation2 + $0x4a] sm:$0xff]
      %v6740 = vld [vmem:[#allocation2 + $0x52] sm:$0xff]
      %v6741 = vld [vmem:[#allocation2 + $0x5a] sm:$0xff]
      %v6742 = vld [vmem:[#allocation2 + $0x62] sm:$0xff]
      %v6743 = vld [vmem:[#allocation2 + $0x6a] sm:$0xff]
      %v6744 = vld [vmem:[#allocation2 + $0x72] sm:$0xff]
      %v6745 = vld [vmem:[#allocation2 + $0x7a] sm:$0xff]
      %v6746 = vld [vmem:[#allocation2 + $0x82] sm:$0xff]
      %v6747 = vld [vmem:[#allocation2 + $0x8a] sm:$0xff]
      %v6748 = vld [vmem:[#allocation2 + $0x92] sm:$0xff]
      %v6749 = vld [vmem:[#allocation2 + $0x9a] sm:$0xff]
      %v6750 = vld [vmem:[#allocation2 + $0xa2] sm:$0xff]
      %v6751 = vld [vmem:[#allocation2 + $0xaa] sm:$0xff]
      %v6752 = vld [vmem:[#allocation2 + $0xb2] sm:$0xff]
      %v6753 = vld [vmem:[#allocation2 + $0xba] sm:$0xff]
      %v6754 = vld [vmem:[#allocation2 + $0xc2] sm:$0xff]
      %v6755 = vld [vmem:[#allocation2 + $0xca] sm:$0xff]
      %v6756 = vld [vmem:[#allocation2 + $0xd2] sm:$0xff]
      %v6757 = vld [vmem:[#allocation2 + $0xda] sm:$0xff]
      %v6758 = vld [vmem:[#allocation2 + $0xe2] sm:$0xff]
      %v6759 = vld [vmem:[#allocation2 + $0xea] sm:$0xff]
      %v6760 = vld [vmem:[#allocation2 + $0xf2] sm:$0xff]
      %v6761 = vld [vmem:[#allocation2 + $0xfa] sm:$0xff]
      %v6762 = vld [vmem:[#allocation2 + $0x102] sm:$0xff]
      %v6763 = vld [vmem:[#allocation2 + $0x10a] sm:$0xff]
      %v6764 = vld [vmem:[#allocation2 + $0x112] sm:$0xff]
      %v6765 = vld [vmem:[#allocation2 + $0x11a] sm:$0xff]
      %v6766 = vld [vmem:[#allocation2 + $0x122] sm:$0xff]
      %v6767 = vld [vmem:[#allocation2 + $0x12a] sm:$0xff]
      %s6768 = scalar_lea.vmem %s2, 12
      %v6769 = vld [vmem:[%s6768] sm:$0xf]
      %v6771 = vsel %vm895, %v6732, 0
      %v6774 = vsel %vm895, %v6733, 0
      %v6777 = vsel %vm895, %v6734, 0
      %v6780 = vsel %vm895, %v6735, 0
      %v6783 = vsel %vm895, %v6736, 0
      %v6786 = vsel %vm895, %v6737, 0
      %v6789 = vsel %vm895, %v6738, 0
      %v6792 = vsel %vm895, %v6739, 0
      %v6795 = vsel %vm895, %v6740, 0
      %v6798 = vsel %vm895, %v6741, 0
      %v6801 = vsel %vm895, %v6742, 0
      %v6804 = vsel %vm895, %v6743, 0
      %v6807 = vsel %vm895, %v6744, 0
      %v6810 = vsel %vm895, %v6745, 0
      %v6813 = vsel %vm895, %v6746, 0
      %v6816 = vsel %vm895, %v6747, 0
      %v6819 = vsel %vm895, %v6748, 0
      %v6822 = vsel %vm895, %v6749, 0
      %v6825 = vsel %vm895, %v6750, 0
      %v6828 = vsel %vm895, %v6751, 0
      %v6831 = vsel %vm895, %v6752, 0
      %v6834 = vsel %vm895, %v6753, 0
      %v6837 = vsel %vm895, %v6754, 0
      %v6840 = vsel %vm895, %v6755, 0
      %v6843 = vsel %vm895, %v6756, 0
      %v6846 = vsel %vm895, %v6757, 0
      %v6849 = vsel %vm895, %v6758, 0
      %v6852 = vsel %vm895, %v6759, 0
      %v6855 = vsel %vm895, %v6760, 0
      %v6858 = vsel %vm895, %v6761, 0
      %v6861 = vsel %vm895, %v6762, 0
      %v6864 = vsel %vm895, %v6763, 0
      %v6867 = vsel %vm895, %v6764, 0
      %v6870 = vsel %vm895, %v6765, 0
      %v6873 = vsel %vm895, %v6766, 0
      %v6876 = vsel %vm895, %v6767, 0
      %v6879 = vsel %vm1004, %v6769, 0
      %6881 = vmatprep.subr.mxu0 0.0
      %6882 = vmatpush1.msra.mxu0 0.0
      %6883 = vmatprep.subr.mxu0 0.0
      %6884 = vmatpush1.msra.mxu0 0.0
      %6885 = vmatprep.subr.mxu0 0.0
      %6886 = vmatpush1.msra.mxu0 0.0
      %6887 = vmatprep.subr.mxu0 0.0
      %6888 = vmatpush1.msra.mxu0 0.0
      %6889 = vmatprep.subr.mxu0 0.0
      %6890 = vmatpush1.msra.mxu0 0.0
      %6891 = vmatprep.subr.mxu0 0.0
      %6892 = vmatpush1.msra.mxu0 0.0
      %6893 = vmatprep.subr.mxu0 0.0
      %6894 = vmatpush1.msra.mxu0 0.0
      %6895 = vmatprep.subr.mxu0 0.0
      %6896 = vmatpush1.msra.mxu0 0.0
      %6897 = vmatprep.subr.mxu0 0.0
      %6898 = vmatpush1.msra.mxu0 0.0
      %6899 = vmatprep.subr.mxu0 0.0
      %6900 = vmatpush1.msra.mxu0 0.0
      %6901 = vmatprep.subr.mxu0 0.0
      %6902 = vmatpush1.msra.mxu0 0.0
      %6903 = vmatprep.subr.mxu0 0.0
      %6904 = vmatpush1.msra.mxu0 0.0
      %6905 = vmatprep.subr.mxu0 0.0
      %6906 = vmatpush1.msra.mxu0 0.0
      %6907 = vmatprep.subr.mxu0 0.0
      %6908 = vmatpush1.msra.mxu0 0.0
      %6909 = vmatprep.subr.mxu0 0.0
      %6910 = vmatpush1.msra.mxu0 0.0
      %6911 = vmatprep.subr.mxu0 0.0
      %6912 = vmatpush1.msra.mxu0 %v6879
      %6913 = vmatprep.subr.mxu0 0.0
      %6914 = vmatpush2.msra.mxu0 0.0
      %6915 = vmatprep.subr.mxu0 0.0
      %6916 = vmatpush2.msra.mxu0 0.0
      %6917 = vmatprep.subr.mxu0 0.0
      %6918 = vmatpush2.msra.mxu0 0.0
      %6919 = vmatprep.subr.mxu0 0.0
      %6920 = vmatpush2.msra.mxu0 0.0
      %6921 = vmatprep.subr.mxu0 0.0
      %6922 = vmatpush2.msra.mxu0 0.0
      %6923 = vmatprep.subr.mxu0 0.0
      %6924 = vmatpush2.msra.mxu0 0.0
      %6925 = vmatprep.subr.mxu0 0.0
      %6926 = vmatpush2.msra.mxu0 0.0
      %6927 = vmatprep.subr.mxu0 0.0
      %6928 = vmatpush2.msra.mxu0 0.0
      %6929 = vmatprep.subr.mxu0 0.0
      %6930 = vmatpush2.msra.mxu0 0.0
      %6931 = vmatprep.subr.mxu0 0.0
      %6932 = vmatpush2.msra.mxu0 0.0
      %6933 = vmatprep.subr.mxu0 0.0
      %6934 = vmatpush2.msra.mxu0 0.0
      %6935 = vmatprep.subr.mxu0 0.0
      %6936 = vmatpush2.msra.mxu0 0.0
      %6937 = vmatprep.subr.mxu0 0.0
      %6938 = vmatpush2.msra.mxu0 0.0
      %6939 = vmatprep.subr.mxu0 0.0
      %6940 = vmatpush2.msra.mxu0 0.0
      %6941 = vmatprep.subr.mxu0 0.0
      %6942 = vmatpush2.msra.mxu0 0.0
      %6943 = vmatprep.subr.mxu0 0.0
      %6944 = vmatpush2.msra.mxu0 0.0
      %6945 = vmatprep.mubr.f32.mxu0 0.0
      %6946 = vmatmul.mubr.f32.gmra.mxu0 %v6771
      %v6947 = vpop.f32.mrf.mxu0
      %v6948 = vadd.f32 0.0, %v6947
      %v6949 = vpop.f32.mrf.mxu0
      %6950 = vmatprep.mubr.f32.mxu0 0.0
      %6951 = vmatmul.mubr.f32.gmra.mxu0 %v6774
      %v6952 = vpop.f32.mrf.mxu0
      %v6953 = vadd.f32 0.0, %v6952
      %v6954 = vpop.f32.mrf.mxu0
      %6955 = vmatprep.mubr.f32.mxu0 0.0
      %6956 = vmatmul.mubr.f32.gmra.mxu0 %v6777
      %v6957 = vpop.f32.mrf.mxu0
      %v6958 = vadd.f32 0.0, %v6957
      %v6959 = vpop.f32.mrf.mxu0
      %6960 = vmatprep.mubr.f32.mxu0 0.0
      %6961 = vmatmul.mubr.f32.gmra.mxu0 %v6780
      %v6962 = vpop.f32.mrf.mxu0
      %v6963 = vadd.f32 0.0, %v6962
      %v6964 = vpop.f32.mrf.mxu0
      %6965 = vmatprep.mubr.f32.mxu0 0.0
      %6966 = vmatmul.mubr.f32.gmra.mxu0 %v6783
      %v6967 = vpop.f32.mrf.mxu0
      %v6968 = vadd.f32 0.0, %v6967
      %v6969 = vpop.f32.mrf.mxu0
      %6970 = vmatprep.mubr.f32.mxu0 0.0
      %6971 = vmatmul.mubr.f32.gmra.mxu0 %v6786
      %v6972 = vpop.f32.mrf.mxu0
      %v6973 = vadd.f32 0.0, %v6972
      %v6974 = vpop.f32.mrf.mxu0
      %6975 = vmatprep.mubr.f32.mxu0 0.0
      %6976 = vmatmul.mubr.f32.gmra.mxu0 %v6789
      %v6977 = vpop.f32.mrf.mxu0
      %v6978 = vadd.f32 0.0, %v6977
      %v6979 = vpop.f32.mrf.mxu0
      %6980 = vmatprep.mubr.f32.mxu0 0.0
      %6981 = vmatmul.mubr.f32.gmra.mxu0 %v6792
      %v6982 = vpop.f32.mrf.mxu0
      %v6983 = vadd.f32 0.0, %v6982
      %v6984 = vpop.f32.mrf.mxu0
      %6985 = vmatprep.mubr.f32.mxu0 0.0
      %6986 = vmatmul.mubr.f32.gmra.mxu0 %v6795
      %v6987 = vpop.f32.mrf.mxu0
      %v6988 = vadd.f32 0.0, %v6987
      %v6989 = vpop.f32.mrf.mxu0
      %6990 = vmatprep.mubr.f32.mxu0 0.0
      %6991 = vmatmul.mubr.f32.gmra.mxu0 %v6798
      %v6992 = vpop.f32.mrf.mxu0
      %v6993 = vadd.f32 0.0, %v6992
      %v6994 = vpop.f32.mrf.mxu0
      %6995 = vmatprep.mubr.f32.mxu0 0.0
      %6996 = vmatmul.mubr.f32.gmra.mxu0 %v6801
      %v6997 = vpop.f32.mrf.mxu0
      %v6998 = vadd.f32 0.0, %v6997
      %v6999 = vpop.f32.mrf.mxu0
      %7000 = vmatprep.mubr.f32.mxu0 0.0
      %7001 = vmatmul.mubr.f32.gmra.mxu0 %v6804
      %v7002 = vpop.f32.mrf.mxu0
      %v7003 = vadd.f32 0.0, %v7002
      %v7004 = vpop.f32.mrf.mxu0
      %7005 = vmatprep.mubr.f32.mxu0 0.0
      %7006 = vmatmul.mubr.f32.gmra.mxu0 %v6807
      %v7007 = vpop.f32.mrf.mxu0
      %v7008 = vadd.f32 0.0, %v7007
      %v7009 = vpop.f32.mrf.mxu0
      %7010 = vmatprep.mubr.f32.mxu0 0.0
      %7011 = vmatmul.mubr.f32.gmra.mxu0 %v6810
      %v7012 = vpop.f32.mrf.mxu0
      %v7013 = vadd.f32 0.0, %v7012
      %v7014 = vpop.f32.mrf.mxu0
      %7015 = vmatprep.mubr.f32.mxu0 0.0
      %7016 = vmatmul.mubr.f32.gmra.mxu0 %v6813
      %v7017 = vpop.f32.mrf.mxu0
      %v7018 = vadd.f32 0.0, %v7017
      %v7019 = vpop.f32.mrf.mxu0
      %7020 = vmatprep.mubr.f32.mxu0 0.0
      %7021 = vmatmul.mubr.f32.gmra.mxu0 %v6816
      %v7022 = vpop.f32.mrf.mxu0
      %v7023 = vadd.f32 0.0, %v7022
      %v7024 = vpop.f32.mrf.mxu0
      %7025 = vmatprep.mubr.f32.mxu0 0.0
      %7026 = vmatmul.mubr.f32.gmra.mxu0 %v6819
      %v7027 = vpop.f32.mrf.mxu0
      %v7028 = vadd.f32 0.0, %v7027
      %v7029 = vpop.f32.mrf.mxu0
      %7030 = vmatprep.mubr.f32.mxu0 0.0
      %7031 = vmatmul.mubr.f32.gmra.mxu0 %v6822
      %v7032 = vpop.f32.mrf.mxu0
      %v7033 = vadd.f32 0.0, %v7032
      %v7034 = vpop.f32.mrf.mxu0
      %7035 = vmatprep.mubr.f32.mxu0 0.0
      %7036 = vmatmul.mubr.f32.gmra.mxu0 %v6825
      %v7037 = vpop.f32.mrf.mxu0
      %v7038 = vadd.f32 0.0, %v7037
      %v7039 = vpop.f32.mrf.mxu0
      %7040 = vmatprep.mubr.f32.mxu0 0.0
      %7041 = vmatmul.mubr.f32.gmra.mxu0 %v6828
      %v7042 = vpop.f32.mrf.mxu0
      %v7043 = vadd.f32 0.0, %v7042
      %v7044 = vpop.f32.mrf.mxu0
      %7045 = vmatprep.mubr.f32.mxu0 0.0
      %7046 = vmatmul.mubr.f32.gmra.mxu0 %v6831
      %v7047 = vpop.f32.mrf.mxu0
      %v7048 = vadd.f32 0.0, %v7047
      %v7049 = vpop.f32.mrf.mxu0
      %7050 = vmatprep.mubr.f32.mxu0 0.0
      %7051 = vmatmul.mubr.f32.gmra.mxu0 %v6834
      %v7052 = vpop.f32.mrf.mxu0
      %v7053 = vadd.f32 0.0, %v7052
      %v7054 = vpop.f32.mrf.mxu0
      %7055 = vmatprep.mubr.f32.mxu0 0.0
      %7056 = vmatmul.mubr.f32.gmra.mxu0 %v6837
      %v7057 = vpop.f32.mrf.mxu0
      %v7058 = vadd.f32 0.0, %v7057
      %v7059 = vpop.f32.mrf.mxu0
      %7060 = vmatprep.mubr.f32.mxu0 0.0
      %7061 = vmatmul.mubr.f32.gmra.mxu0 %v6840
      %v7062 = vpop.f32.mrf.mxu0
      %v7063 = vadd.f32 0.0, %v7062
      %v7064 = vpop.f32.mrf.mxu0
      %7065 = vmatprep.mubr.f32.mxu0 0.0
      %7066 = vmatmul.mubr.f32.gmra.mxu0 %v6843
      %v7067 = vpop.f32.mrf.mxu0
      %v7068 = vadd.f32 0.0, %v7067
      %v7069 = vpop.f32.mrf.mxu0
      %7070 = vmatprep.mubr.f32.mxu0 0.0
      %7071 = vmatmul.mubr.f32.gmra.mxu0 %v6846
      %v7072 = vpop.f32.mrf.mxu0
      %v7073 = vadd.f32 0.0, %v7072
      %v7074 = vpop.f32.mrf.mxu0
      %7075 = vmatprep.mubr.f32.mxu0 0.0
      %7076 = vmatmul.mubr.f32.gmra.mxu0 %v6849
      %v7077 = vpop.f32.mrf.mxu0
      %v7078 = vadd.f32 0.0, %v7077
      %v7079 = vpop.f32.mrf.mxu0
      %7080 = vmatprep.mubr.f32.mxu0 0.0
      %7081 = vmatmul.mubr.f32.gmra.mxu0 %v6852
      %v7082 = vpop.f32.mrf.mxu0
      %v7083 = vadd.f32 0.0, %v7082
      %v7084 = vpop.f32.mrf.mxu0
      %7085 = vmatprep.mubr.f32.mxu0 0.0
      %7086 = vmatmul.mubr.f32.gmra.mxu0 %v6855
      %v7087 = vpop.f32.mrf.mxu0
      %v7088 = vadd.f32 0.0, %v7087
      %v7089 = vpop.f32.mrf.mxu0
      %7090 = vmatprep.mubr.f32.mxu0 0.0
      %7091 = vmatmul.mubr.f32.gmra.mxu0 %v6858
      %v7092 = vpop.f32.mrf.mxu0
      %v7093 = vadd.f32 0.0, %v7092
      %v7094 = vpop.f32.mrf.mxu0
      %7095 = vmatprep.mubr.f32.mxu0 0.0
      %7096 = vmatmul.mubr.f32.gmra.mxu0 %v6861
      %v7097 = vpop.f32.mrf.mxu0
      %v7098 = vadd.f32 0.0, %v7097
      %v7099 = vpop.f32.mrf.mxu0
      %7100 = vmatprep.mubr.f32.mxu0 0.0
      %7101 = vmatmul.mubr.f32.gmra.mxu0 %v6864
      %v7102 = vpop.f32.mrf.mxu0
      %v7103 = vadd.f32 0.0, %v7102
      %v7104 = vpop.f32.mrf.mxu0
      %7105 = vmatprep.mubr.f32.mxu0 0.0
      %7106 = vmatmul.mubr.f32.gmra.mxu0 %v6867
      %v7107 = vpop.f32.mrf.mxu0
      %v7108 = vadd.f32 0.0, %v7107
      %v7109 = vpop.f32.mrf.mxu0
      %7110 = vmatprep.mubr.f32.mxu0 0.0
      %7111 = vmatmul.mubr.f32.gmra.mxu0 %v6870
      %v7112 = vpop.f32.mrf.mxu0
      %v7113 = vadd.f32 0.0, %v7112
      %v7114 = vpop.f32.mrf.mxu0
      %7115 = vmatprep.mubr.f32.mxu0 0.0
      %7116 = vmatmul.mubr.f32.gmra.mxu0 %v6873
      %v7117 = vpop.f32.mrf.mxu0
      %v7118 = vadd.f32 0.0, %v7117
      %v7119 = vpop.f32.mrf.mxu0
      %7120 = vmatprep.mubr.f32.mxu0 0.0
      %7121 = vmatmul.mubr.f32.gmra.mxu0 %v6876
      %v7122 = vpop.f32.mrf.mxu0
      %v7123 = vadd.f32 0.0, %v7122
      %v7124 = vpop.f32.mrf.mxu0
      %7125 = vdwg.mxu0
      %v7126 = vadd.f32 %v6696, %v6948
      %v7127 = vadd.f32 %v6697, %v6953
      %v7128 = vadd.f32 %v6698, %v6958
      %v7129 = vadd.f32 %v6699, %v6963
      %v7130 = vadd.f32 %v6700, %v6968
      %v7131 = vadd.f32 %v6701, %v6973
      %v7132 = vadd.f32 %v6702, %v6978
      %v7133 = vadd.f32 %v6703, %v6983
      %v7134 = vadd.f32 %v6704, %v6988
      %v7135 = vadd.f32 %v6705, %v6993
      %v7136 = vadd.f32 %v6706, %v6998
      %v7137 = vadd.f32 %v6707, %v7003
      %v7138 = vadd.f32 %v6708, %v7008
      %v7139 = vadd.f32 %v6709, %v7013
      %v7140 = vadd.f32 %v6710, %v7018
      %v7141 = vadd.f32 %v6711, %v7023
      %v7142 = vadd.f32 %v6712, %v7028
      %v7143 = vadd.f32 %v6713, %v7033
      %v7144 = vadd.f32 %v6714, %v7038
      %v7145 = vadd.f32 %v6715, %v7043
      %v7146 = vadd.f32 %v6716, %v7048
      %v7147 = vadd.f32 %v6717, %v7053
      %v7148 = vadd.f32 %v6718, %v7058
      %v7149 = vadd.f32 %v6719, %v7063
      %v7150 = vadd.f32 %v6720, %v7068
      %v7151 = vadd.f32 %v6721, %v7073
      %v7152 = vadd.f32 %v6722, %v7078
      %v7153 = vadd.f32 %v6723, %v7083
      %v7154 = vadd.f32 %v6724, %v7088
      %v7155 = vadd.f32 %v6725, %v7093
      %v7156 = vadd.f32 %v6726, %v7098
      %v7157 = vadd.f32 %v6727, %v7103
      %v7158 = vadd.f32 %v6728, %v7108
      %v7159 = vadd.f32 %v6729, %v7113
      %v7160 = vadd.f32 %v6730, %v7118
      %v7161 = vadd.f32 %v6731, %v7123
      %v7162 = vld [vmem:[#allocation2 + $0x13] sm:$0xff]
      %v7163 = vld [vmem:[#allocation2 + $0x1b] sm:$0xff]
      %v7164 = vld [vmem:[#allocation2 + $0x23] sm:$0xff]
      %v7165 = vld [vmem:[#allocation2 + $0x2b] sm:$0xff]
      %v7166 = vld [vmem:[#allocation2 + $0x33] sm:$0xff]
      %v7167 = vld [vmem:[#allocation2 + $0x3b] sm:$0xff]
      %v7168 = vld [vmem:[#allocation2 + $0x43] sm:$0xff]
      %v7169 = vld [vmem:[#allocation2 + $0x4b] sm:$0xff]
      %v7170 = vld [vmem:[#allocation2 + $0x53] sm:$0xff]
      %v7171 = vld [vmem:[#allocation2 + $0x5b] sm:$0xff]
      %v7172 = vld [vmem:[#allocation2 + $0x63] sm:$0xff]
      %v7173 = vld [vmem:[#allocation2 + $0x6b] sm:$0xff]
      %v7174 = vld [vmem:[#allocation2 + $0x73] sm:$0xff]
      %v7175 = vld [vmem:[#allocation2 + $0x7b] sm:$0xff]
      %v7176 = vld [vmem:[#allocation2 + $0x83] sm:$0xff]
      %v7177 = vld [vmem:[#allocation2 + $0x8b] sm:$0xff]
      %v7178 = vld [vmem:[#allocation2 + $0x93] sm:$0xff]
      %v7179 = vld [vmem:[#allocation2 + $0x9b] sm:$0xff]
      %v7180 = vld [vmem:[#allocation2 + $0xa3] sm:$0xff]
      %v7181 = vld [vmem:[#allocation2 + $0xab] sm:$0xff]
      %v7182 = vld [vmem:[#allocation2 + $0xb3] sm:$0xff]
      %v7183 = vld [vmem:[#allocation2 + $0xbb] sm:$0xff]
      %v7184 = vld [vmem:[#allocation2 + $0xc3] sm:$0xff]
      %v7185 = vld [vmem:[#allocation2 + $0xcb] sm:$0xff]
      %v7186 = vld [vmem:[#allocation2 + $0xd3] sm:$0xff]
      %v7187 = vld [vmem:[#allocation2 + $0xdb] sm:$0xff]
      %v7188 = vld [vmem:[#allocation2 + $0xe3] sm:$0xff]
      %v7189 = vld [vmem:[#allocation2 + $0xeb] sm:$0xff]
      %v7190 = vld [vmem:[#allocation2 + $0xf3] sm:$0xff]
      %v7191 = vld [vmem:[#allocation2 + $0xfb] sm:$0xff]
      %v7192 = vld [vmem:[#allocation2 + $0x103] sm:$0xff]
      %v7193 = vld [vmem:[#allocation2 + $0x10b] sm:$0xff]
      %v7194 = vld [vmem:[#allocation2 + $0x113] sm:$0xff]
      %v7195 = vld [vmem:[#allocation2 + $0x11b] sm:$0xff]
      %v7196 = vld [vmem:[#allocation2 + $0x123] sm:$0xff]
      %v7197 = vld [vmem:[#allocation2 + $0x12b] sm:$0xff]
      %s7198 = scalar_lea.vmem %s2, 16
      %v7199 = vld [vmem:[%s7198] sm:$0xf]
      %v7201 = vsel %vm895, %v7162, 0
      %v7204 = vsel %vm895, %v7163, 0
      %v7207 = vsel %vm895, %v7164, 0
      %v7210 = vsel %vm895, %v7165, 0
      %v7213 = vsel %vm895, %v7166, 0
      %v7216 = vsel %vm895, %v7167, 0
      %v7219 = vsel %vm895, %v7168, 0
      %v7222 = vsel %vm895, %v7169, 0
      %v7225 = vsel %vm895, %v7170, 0
      %v7228 = vsel %vm895, %v7171, 0
      %v7231 = vsel %vm895, %v7172, 0
      %v7234 = vsel %vm895, %v7173, 0
      %v7237 = vsel %vm895, %v7174, 0
      %v7240 = vsel %vm895, %v7175, 0
      %v7243 = vsel %vm895, %v7176, 0
      %v7246 = vsel %vm895, %v7177, 0
      %v7249 = vsel %vm895, %v7178, 0
      %v7252 = vsel %vm895, %v7179, 0
      %v7255 = vsel %vm895, %v7180, 0
      %v7258 = vsel %vm895, %v7181, 0
      %v7261 = vsel %vm895, %v7182, 0
      %v7264 = vsel %vm895, %v7183, 0
      %v7267 = vsel %vm895, %v7184, 0
      %v7270 = vsel %vm895, %v7185, 0
      %v7273 = vsel %vm895, %v7186, 0
      %v7276 = vsel %vm895, %v7187, 0
      %v7279 = vsel %vm895, %v7188, 0
      %v7282 = vsel %vm895, %v7189, 0
      %v7285 = vsel %vm895, %v7190, 0
      %v7288 = vsel %vm895, %v7191, 0
      %v7291 = vsel %vm895, %v7192, 0
      %v7294 = vsel %vm895, %v7193, 0
      %v7297 = vsel %vm895, %v7194, 0
      %v7300 = vsel %vm895, %v7195, 0
      %v7303 = vsel %vm895, %v7196, 0
      %v7306 = vsel %vm895, %v7197, 0
      %v7309 = vsel %vm1004, %v7199, 0
      %7311 = vmatprep.subr.mxu0 0.0
      %7312 = vmatpush1.msra.mxu0 0.0
      %7313 = vmatprep.subr.mxu0 0.0
      %7314 = vmatpush1.msra.mxu0 0.0
      %7315 = vmatprep.subr.mxu0 0.0
      %7316 = vmatpush1.msra.mxu0 0.0
      %7317 = vmatprep.subr.mxu0 0.0
      %7318 = vmatpush1.msra.mxu0 0.0
      %7319 = vmatprep.subr.mxu0 0.0
      %7320 = vmatpush1.msra.mxu0 0.0
      %7321 = vmatprep.subr.mxu0 0.0
      %7322 = vmatpush1.msra.mxu0 0.0
      %7323 = vmatprep.subr.mxu0 0.0
      %7324 = vmatpush1.msra.mxu0 0.0
      %7325 = vmatprep.subr.mxu0 0.0
      %7326 = vmatpush1.msra.mxu0 0.0
      %7327 = vmatprep.subr.mxu0 0.0
      %7328 = vmatpush1.msra.mxu0 0.0
      %7329 = vmatprep.subr.mxu0 0.0
      %7330 = vmatpush1.msra.mxu0 0.0
      %7331 = vmatprep.subr.mxu0 0.0
      %7332 = vmatpush1.msra.mxu0 0.0
      %7333 = vmatprep.subr.mxu0 0.0
      %7334 = vmatpush1.msra.mxu0 0.0
      %7335 = vmatprep.subr.mxu0 0.0
      %7336 = vmatpush1.msra.mxu0 0.0
      %7337 = vmatprep.subr.mxu0 0.0
      %7338 = vmatpush1.msra.mxu0 0.0
      %7339 = vmatprep.subr.mxu0 0.0
      %7340 = vmatpush1.msra.mxu0 0.0
      %7341 = vmatprep.subr.mxu0 0.0
      %7342 = vmatpush1.msra.mxu0 %v7309
      %7343 = vmatprep.subr.mxu0 0.0
      %7344 = vmatpush2.msra.mxu0 0.0
      %7345 = vmatprep.subr.mxu0 0.0
      %7346 = vmatpush2.msra.mxu0 0.0
      %7347 = vmatprep.subr.mxu0 0.0
      %7348 = vmatpush2.msra.mxu0 0.0
      %7349 = vmatprep.subr.mxu0 0.0
      %7350 = vmatpush2.msra.mxu0 0.0
      %7351 = vmatprep.subr.mxu0 0.0
      %7352 = vmatpush2.msra.mxu0 0.0
      %7353 = vmatprep.subr.mxu0 0.0
      %7354 = vmatpush2.msra.mxu0 0.0
      %7355 = vmatprep.subr.mxu0 0.0
      %7356 = vmatpush2.msra.mxu0 0.0
      %7357 = vmatprep.subr.mxu0 0.0
      %7358 = vmatpush2.msra.mxu0 0.0
      %7359 = vmatprep.subr.mxu0 0.0
      %7360 = vmatpush2.msra.mxu0 0.0
      %7361 = vmatprep.subr.mxu0 0.0
      %7362 = vmatpush2.msra.mxu0 0.0
      %7363 = vmatprep.subr.mxu0 0.0
      %7364 = vmatpush2.msra.mxu0 0.0
      %7365 = vmatprep.subr.mxu0 0.0
      %7366 = vmatpush2.msra.mxu0 0.0
      %7367 = vmatprep.subr.mxu0 0.0
      %7368 = vmatpush2.msra.mxu0 0.0
      %7369 = vmatprep.subr.mxu0 0.0
      %7370 = vmatpush2.msra.mxu0 0.0
      %7371 = vmatprep.subr.mxu0 0.0
      %7372 = vmatpush2.msra.mxu0 0.0
      %7373 = vmatprep.subr.mxu0 0.0
      %7374 = vmatpush2.msra.mxu0 0.0
      %7375 = vmatprep.mubr.f32.mxu0 0.0
      %7376 = vmatmul.mubr.f32.gmra.mxu0 %v7201
      %v7377 = vpop.f32.mrf.mxu0
      %v7378 = vadd.f32 0.0, %v7377
      %v7379 = vpop.f32.mrf.mxu0
      %7380 = vmatprep.mubr.f32.mxu0 0.0
      %7381 = vmatmul.mubr.f32.gmra.mxu0 %v7204
      %v7382 = vpop.f32.mrf.mxu0
      %v7383 = vadd.f32 0.0, %v7382
      %v7384 = vpop.f32.mrf.mxu0
      %7385 = vmatprep.mubr.f32.mxu0 0.0
      %7386 = vmatmul.mubr.f32.gmra.mxu0 %v7207
      %v7387 = vpop.f32.mrf.mxu0
      %v7388 = vadd.f32 0.0, %v7387
      %v7389 = vpop.f32.mrf.mxu0
      %7390 = vmatprep.mubr.f32.mxu0 0.0
      %7391 = vmatmul.mubr.f32.gmra.mxu0 %v7210
      %v7392 = vpop.f32.mrf.mxu0
      %v7393 = vadd.f32 0.0, %v7392
      %v7394 = vpop.f32.mrf.mxu0
      %7395 = vmatprep.mubr.f32.mxu0 0.0
      %7396 = vmatmul.mubr.f32.gmra.mxu0 %v7213
      %v7397 = vpop.f32.mrf.mxu0
      %v7398 = vadd.f32 0.0, %v7397
      %v7399 = vpop.f32.mrf.mxu0
      %7400 = vmatprep.mubr.f32.mxu0 0.0
      %7401 = vmatmul.mubr.f32.gmra.mxu0 %v7216
      %v7402 = vpop.f32.mrf.mxu0
      %v7403 = vadd.f32 0.0, %v7402
      %v7404 = vpop.f32.mrf.mxu0
      %7405 = vmatprep.mubr.f32.mxu0 0.0
      %7406 = vmatmul.mubr.f32.gmra.mxu0 %v7219
      %v7407 = vpop.f32.mrf.mxu0
      %v7408 = vadd.f32 0.0, %v7407
      %v7409 = vpop.f32.mrf.mxu0
      %7410 = vmatprep.mubr.f32.mxu0 0.0
      %7411 = vmatmul.mubr.f32.gmra.mxu0 %v7222
      %v7412 = vpop.f32.mrf.mxu0
      %v7413 = vadd.f32 0.0, %v7412
      %v7414 = vpop.f32.mrf.mxu0
      %7415 = vmatprep.mubr.f32.mxu0 0.0
      %7416 = vmatmul.mubr.f32.gmra.mxu0 %v7225
      %v7417 = vpop.f32.mrf.mxu0
      %v7418 = vadd.f32 0.0, %v7417
      %v7419 = vpop.f32.mrf.mxu0
      %7420 = vmatprep.mubr.f32.mxu0 0.0
      %7421 = vmatmul.mubr.f32.gmra.mxu0 %v7228
      %v7422 = vpop.f32.mrf.mxu0
      %v7423 = vadd.f32 0.0, %v7422
      %v7424 = vpop.f32.mrf.mxu0
      %7425 = vmatprep.mubr.f32.mxu0 0.0
      %7426 = vmatmul.mubr.f32.gmra.mxu0 %v7231
      %v7427 = vpop.f32.mrf.mxu0
      %v7428 = vadd.f32 0.0, %v7427
      %v7429 = vpop.f32.mrf.mxu0
      %7430 = vmatprep.mubr.f32.mxu0 0.0
      %7431 = vmatmul.mubr.f32.gmra.mxu0 %v7234
      %v7432 = vpop.f32.mrf.mxu0
      %v7433 = vadd.f32 0.0, %v7432
      %v7434 = vpop.f32.mrf.mxu0
      %7435 = vmatprep.mubr.f32.mxu0 0.0
      %7436 = vmatmul.mubr.f32.gmra.mxu0 %v7237
      %v7437 = vpop.f32.mrf.mxu0
      %v7438 = vadd.f32 0.0, %v7437
      %v7439 = vpop.f32.mrf.mxu0
      %7440 = vmatprep.mubr.f32.mxu0 0.0
      %7441 = vmatmul.mubr.f32.gmra.mxu0 %v7240
      %v7442 = vpop.f32.mrf.mxu0
      %v7443 = vadd.f32 0.0, %v7442
      %v7444 = vpop.f32.mrf.mxu0
      %7445 = vmatprep.mubr.f32.mxu0 0.0
      %7446 = vmatmul.mubr.f32.gmra.mxu0 %v7243
      %v7447 = vpop.f32.mrf.mxu0
      %v7448 = vadd.f32 0.0, %v7447
      %v7449 = vpop.f32.mrf.mxu0
      %7450 = vmatprep.mubr.f32.mxu0 0.0
      %7451 = vmatmul.mubr.f32.gmra.mxu0 %v7246
      %v7452 = vpop.f32.mrf.mxu0
      %v7453 = vadd.f32 0.0, %v7452
      %v7454 = vpop.f32.mrf.mxu0
      %7455 = vmatprep.mubr.f32.mxu0 0.0
      %7456 = vmatmul.mubr.f32.gmra.mxu0 %v7249
      %v7457 = vpop.f32.mrf.mxu0
      %v7458 = vadd.f32 0.0, %v7457
      %v7459 = vpop.f32.mrf.mxu0
      %7460 = vmatprep.mubr.f32.mxu0 0.0
      %7461 = vmatmul.mubr.f32.gmra.mxu0 %v7252
      %v7462 = vpop.f32.mrf.mxu0
      %v7463 = vadd.f32 0.0, %v7462
      %v7464 = vpop.f32.mrf.mxu0
      %7465 = vmatprep.mubr.f32.mxu0 0.0
      %7466 = vmatmul.mubr.f32.gmra.mxu0 %v7255
      %v7467 = vpop.f32.mrf.mxu0
      %v7468 = vadd.f32 0.0, %v7467
      %v7469 = vpop.f32.mrf.mxu0
      %7470 = vmatprep.mubr.f32.mxu0 0.0
      %7471 = vmatmul.mubr.f32.gmra.mxu0 %v7258
      %v7472 = vpop.f32.mrf.mxu0
      %v7473 = vadd.f32 0.0, %v7472
      %v7474 = vpop.f32.mrf.mxu0
      %7475 = vmatprep.mubr.f32.mxu0 0.0
      %7476 = vmatmul.mubr.f32.gmra.mxu0 %v7261
      %v7477 = vpop.f32.mrf.mxu0
      %v7478 = vadd.f32 0.0, %v7477
      %v7479 = vpop.f32.mrf.mxu0
      %7480 = vmatprep.mubr.f32.mxu0 0.0
      %7481 = vmatmul.mubr.f32.gmra.mxu0 %v7264
      %v7482 = vpop.f32.mrf.mxu0
      %v7483 = vadd.f32 0.0, %v7482
      %v7484 = vpop.f32.mrf.mxu0
      %7485 = vmatprep.mubr.f32.mxu0 0.0
      %7486 = vmatmul.mubr.f32.gmra.mxu0 %v7267
      %v7487 = vpop.f32.mrf.mxu0
      %v7488 = vadd.f32 0.0, %v7487
      %v7489 = vpop.f32.mrf.mxu0
      %7490 = vmatprep.mubr.f32.mxu0 0.0
      %7491 = vmatmul.mubr.f32.gmra.mxu0 %v7270
      %v7492 = vpop.f32.mrf.mxu0
      %v7493 = vadd.f32 0.0, %v7492
      %v7494 = vpop.f32.mrf.mxu0
      %7495 = vmatprep.mubr.f32.mxu0 0.0
      %7496 = vmatmul.mubr.f32.gmra.mxu0 %v7273
      %v7497 = vpop.f32.mrf.mxu0
      %v7498 = vadd.f32 0.0, %v7497
      %v7499 = vpop.f32.mrf.mxu0
      %7500 = vmatprep.mubr.f32.mxu0 0.0
      %7501 = vmatmul.mubr.f32.gmra.mxu0 %v7276
      %v7502 = vpop.f32.mrf.mxu0
      %v7503 = vadd.f32 0.0, %v7502
      %v7504 = vpop.f32.mrf.mxu0
      %7505 = vmatprep.mubr.f32.mxu0 0.0
      %7506 = vmatmul.mubr.f32.gmra.mxu0 %v7279
      %v7507 = vpop.f32.mrf.mxu0
      %v7508 = vadd.f32 0.0, %v7507
      %v7509 = vpop.f32.mrf.mxu0
      %7510 = vmatprep.mubr.f32.mxu0 0.0
      %7511 = vmatmul.mubr.f32.gmra.mxu0 %v7282
      %v7512 = vpop.f32.mrf.mxu0
      %v7513 = vadd.f32 0.0, %v7512
      %v7514 = vpop.f32.mrf.mxu0
      %7515 = vmatprep.mubr.f32.mxu0 0.0
      %7516 = vmatmul.mubr.f32.gmra.mxu0 %v7285
      %v7517 = vpop.f32.mrf.mxu0
      %v7518 = vadd.f32 0.0, %v7517
      %v7519 = vpop.f32.mrf.mxu0
      %7520 = vmatprep.mubr.f32.mxu0 0.0
      %7521 = vmatmul.mubr.f32.gmra.mxu0 %v7288
      %v7522 = vpop.f32.mrf.mxu0
      %v7523 = vadd.f32 0.0, %v7522
      %v7524 = vpop.f32.mrf.mxu0
      %7525 = vmatprep.mubr.f32.mxu0 0.0
      %7526 = vmatmul.mubr.f32.gmra.mxu0 %v7291
      %v7527 = vpop.f32.mrf.mxu0
      %v7528 = vadd.f32 0.0, %v7527
      %v7529 = vpop.f32.mrf.mxu0
      %7530 = vmatprep.mubr.f32.mxu0 0.0
      %7531 = vmatmul.mubr.f32.gmra.mxu0 %v7294
      %v7532 = vpop.f32.mrf.mxu0
      %v7533 = vadd.f32 0.0, %v7532
      %v7534 = vpop.f32.mrf.mxu0
      %7535 = vmatprep.mubr.f32.mxu0 0.0
      %7536 = vmatmul.mubr.f32.gmra.mxu0 %v7297
      %v7537 = vpop.f32.mrf.mxu0
      %v7538 = vadd.f32 0.0, %v7537
      %v7539 = vpop.f32.mrf.mxu0
      %7540 = vmatprep.mubr.f32.mxu0 0.0
      %7541 = vmatmul.mubr.f32.gmra.mxu0 %v7300
      %v7542 = vpop.f32.mrf.mxu0
      %v7543 = vadd.f32 0.0, %v7542
      %v7544 = vpop.f32.mrf.mxu0
      %7545 = vmatprep.mubr.f32.mxu0 0.0
      %7546 = vmatmul.mubr.f32.gmra.mxu0 %v7303
      %v7547 = vpop.f32.mrf.mxu0
      %v7548 = vadd.f32 0.0, %v7547
      %v7549 = vpop.f32.mrf.mxu0
      %7550 = vmatprep.mubr.f32.mxu0 0.0
      %7551 = vmatmul.mubr.f32.gmra.mxu0 %v7306
      %v7552 = vpop.f32.mrf.mxu0
      %v7553 = vadd.f32 0.0, %v7552
      %v7554 = vpop.f32.mrf.mxu0
      %7555 = vdwg.mxu0
      %v7556 = vadd.f32 %v7126, %v7378
      %v7557 = vadd.f32 %v7127, %v7383
      %v7558 = vadd.f32 %v7128, %v7388
      %v7559 = vadd.f32 %v7129, %v7393
      %v7560 = vadd.f32 %v7130, %v7398
      %v7561 = vadd.f32 %v7131, %v7403
      %v7562 = vadd.f32 %v7132, %v7408
      %v7563 = vadd.f32 %v7133, %v7413
      %v7564 = vadd.f32 %v7134, %v7418
      %v7565 = vadd.f32 %v7135, %v7423
      %v7566 = vadd.f32 %v7136, %v7428
      %v7567 = vadd.f32 %v7137, %v7433
      %v7568 = vadd.f32 %v7138, %v7438
      %v7569 = vadd.f32 %v7139, %v7443
      %v7570 = vadd.f32 %v7140, %v7448
      %v7571 = vadd.f32 %v7141, %v7453
      %v7572 = vadd.f32 %v7142, %v7458
      %v7573 = vadd.f32 %v7143, %v7463
      %v7574 = vadd.f32 %v7144, %v7468
      %v7575 = vadd.f32 %v7145, %v7473
      %v7576 = vadd.f32 %v7146, %v7478
      %v7577 = vadd.f32 %v7147, %v7483
      %v7578 = vadd.f32 %v7148, %v7488
      %v7579 = vadd.f32 %v7149, %v7493
      %v7580 = vadd.f32 %v7150, %v7498
      %v7581 = vadd.f32 %v7151, %v7503
      %v7582 = vadd.f32 %v7152, %v7508
      %v7583 = vadd.f32 %v7153, %v7513
      %v7584 = vadd.f32 %v7154, %v7518
      %v7585 = vadd.f32 %v7155, %v7523
      %v7586 = vadd.f32 %v7156, %v7528
      %v7587 = vadd.f32 %v7157, %v7533
      %v7588 = vadd.f32 %v7158, %v7538
      %v7589 = vadd.f32 %v7159, %v7543
      %v7590 = vadd.f32 %v7160, %v7548
      %v7591 = vadd.f32 %v7161, %v7553
      %v7592 = vld [vmem:[#allocation2 + $0x14] sm:$0xff]
      %v7593 = vld [vmem:[#allocation2 + $0x1c] sm:$0xff]
      %v7594 = vld [vmem:[#allocation2 + $0x24] sm:$0xff]
      %v7595 = vld [vmem:[#allocation2 + $0x2c] sm:$0xff]
      %v7596 = vld [vmem:[#allocation2 + $0x34] sm:$0xff]
      %v7597 = vld [vmem:[#allocation2 + $0x3c] sm:$0xff]
      %v7598 = vld [vmem:[#allocation2 + $0x44] sm:$0xff]
      %v7599 = vld [vmem:[#allocation2 + $0x4c] sm:$0xff]
      %v7600 = vld [vmem:[#allocation2 + $0x54] sm:$0xff]
      %v7601 = vld [vmem:[#allocation2 + $0x5c] sm:$0xff]
      %v7602 = vld [vmem:[#allocation2 + $0x64] sm:$0xff]
      %v7603 = vld [vmem:[#allocation2 + $0x6c] sm:$0xff]
      %v7604 = vld [vmem:[#allocation2 + $0x74] sm:$0xff]
      %v7605 = vld [vmem:[#allocation2 + $0x7c] sm:$0xff]
      %v7606 = vld [vmem:[#allocation2 + $0x84] sm:$0xff]
      %v7607 = vld [vmem:[#allocation2 + $0x8c] sm:$0xff]
      %v7608 = vld [vmem:[#allocation2 + $0x94] sm:$0xff]
      %v7609 = vld [vmem:[#allocation2 + $0x9c] sm:$0xff]
      %v7610 = vld [vmem:[#allocation2 + $0xa4] sm:$0xff]
      %v7611 = vld [vmem:[#allocation2 + $0xac] sm:$0xff]
      %v7612 = vld [vmem:[#allocation2 + $0xb4] sm:$0xff]
      %v7613 = vld [vmem:[#allocation2 + $0xbc] sm:$0xff]
      %v7614 = vld [vmem:[#allocation2 + $0xc4] sm:$0xff]
      %v7615 = vld [vmem:[#allocation2 + $0xcc] sm:$0xff]
      %v7616 = vld [vmem:[#allocation2 + $0xd4] sm:$0xff]
      %v7617 = vld [vmem:[#allocation2 + $0xdc] sm:$0xff]
      %v7618 = vld [vmem:[#allocation2 + $0xe4] sm:$0xff]
      %v7619 = vld [vmem:[#allocation2 + $0xec] sm:$0xff]
      %v7620 = vld [vmem:[#allocation2 + $0xf4] sm:$0xff]
      %v7621 = vld [vmem:[#allocation2 + $0xfc] sm:$0xff]
      %v7622 = vld [vmem:[#allocation2 + $0x104] sm:$0xff]
      %v7623 = vld [vmem:[#allocation2 + $0x10c] sm:$0xff]
      %v7624 = vld [vmem:[#allocation2 + $0x114] sm:$0xff]
      %v7625 = vld [vmem:[#allocation2 + $0x11c] sm:$0xff]
      %v7626 = vld [vmem:[#allocation2 + $0x124] sm:$0xff]
      %v7627 = vld [vmem:[#allocation2 + $0x12c] sm:$0xff]
      %s7628 = scalar_lea.vmem %s2, 20
      %v7629 = vld [vmem:[%s7628] sm:$0xf]
      %v7631 = vsel %vm895, %v7592, 0
      %v7634 = vsel %vm895, %v7593, 0
      %v7637 = vsel %vm895, %v7594, 0
      %v7640 = vsel %vm895, %v7595, 0
      %v7643 = vsel %vm895, %v7596, 0
      %v7646 = vsel %vm895, %v7597, 0
      %v7649 = vsel %vm895, %v7598, 0
      %v7652 = vsel %vm895, %v7599, 0
      %v7655 = vsel %vm895, %v7600, 0
      %v7658 = vsel %vm895, %v7601, 0
      %v7661 = vsel %vm895, %v7602, 0
      %v7664 = vsel %vm895, %v7603, 0
      %v7667 = vsel %vm895, %v7604, 0
      %v7670 = vsel %vm895, %v7605, 0
      %v7673 = vsel %vm895, %v7606, 0
      %v7676 = vsel %vm895, %v7607, 0
      %v7679 = vsel %vm895, %v7608, 0
      %v7682 = vsel %vm895, %v7609, 0
      %v7685 = vsel %vm895, %v7610, 0
      %v7688 = vsel %vm895, %v7611, 0
      %v7691 = vsel %vm895, %v7612, 0
      %v7694 = vsel %vm895, %v7613, 0
      %v7697 = vsel %vm895, %v7614, 0
      %v7700 = vsel %vm895, %v7615, 0
      %v7703 = vsel %vm895, %v7616, 0
      %v7706 = vsel %vm895, %v7617, 0
      %v7709 = vsel %vm895, %v7618, 0
      %v7712 = vsel %vm895, %v7619, 0
      %v7715 = vsel %vm895, %v7620, 0
      %v7718 = vsel %vm895, %v7621, 0
      %v7721 = vsel %vm895, %v7622, 0
      %v7724 = vsel %vm895, %v7623, 0
      %v7727 = vsel %vm895, %v7624, 0
      %v7730 = vsel %vm895, %v7625, 0
      %v7733 = vsel %vm895, %v7626, 0
      %v7736 = vsel %vm895, %v7627, 0
      %v7739 = vsel %vm1004, %v7629, 0
      %7741 = vmatprep.subr.mxu0 0.0
      %7742 = vmatpush1.msra.mxu0 0.0
      %7743 = vmatprep.subr.mxu0 0.0
      %7744 = vmatpush1.msra.mxu0 0.0
      %7745 = vmatprep.subr.mxu0 0.0
      %7746 = vmatpush1.msra.mxu0 0.0
      %7747 = vmatprep.subr.mxu0 0.0
      %7748 = vmatpush1.msra.mxu0 0.0
      %7749 = vmatprep.subr.mxu0 0.0
      %7750 = vmatpush1.msra.mxu0 0.0
      %7751 = vmatprep.subr.mxu0 0.0
      %7752 = vmatpush1.msra.mxu0 0.0
      %7753 = vmatprep.subr.mxu0 0.0
      %7754 = vmatpush1.msra.mxu0 0.0
      %7755 = vmatprep.subr.mxu0 0.0
      %7756 = vmatpush1.msra.mxu0 0.0
      %7757 = vmatprep.subr.mxu0 0.0
      %7758 = vmatpush1.msra.mxu0 0.0
      %7759 = vmatprep.subr.mxu0 0.0
      %7760 = vmatpush1.msra.mxu0 0.0
      %7761 = vmatprep.subr.mxu0 0.0
      %7762 = vmatpush1.msra.mxu0 0.0
      %7763 = vmatprep.subr.mxu0 0.0
      %7764 = vmatpush1.msra.mxu0 0.0
      %7765 = vmatprep.subr.mxu0 0.0
      %7766 = vmatpush1.msra.mxu0 0.0
      %7767 = vmatprep.subr.mxu0 0.0
      %7768 = vmatpush1.msra.mxu0 0.0
      %7769 = vmatprep.subr.mxu0 0.0
      %7770 = vmatpush1.msra.mxu0 0.0
      %7771 = vmatprep.subr.mxu0 0.0
      %7772 = vmatpush1.msra.mxu0 %v7739
      %7773 = vmatprep.subr.mxu0 0.0
      %7774 = vmatpush2.msra.mxu0 0.0
      %7775 = vmatprep.subr.mxu0 0.0
      %7776 = vmatpush2.msra.mxu0 0.0
      %7777 = vmatprep.subr.mxu0 0.0
      %7778 = vmatpush2.msra.mxu0 0.0
      %7779 = vmatprep.subr.mxu0 0.0
      %7780 = vmatpush2.msra.mxu0 0.0
      %7781 = vmatprep.subr.mxu0 0.0
      %7782 = vmatpush2.msra.mxu0 0.0
      %7783 = vmatprep.subr.mxu0 0.0
      %7784 = vmatpush2.msra.mxu0 0.0
      %7785 = vmatprep.subr.mxu0 0.0
      %7786 = vmatpush2.msra.mxu0 0.0
      %7787 = vmatprep.subr.mxu0 0.0
      %7788 = vmatpush2.msra.mxu0 0.0
      %7789 = vmatprep.subr.mxu0 0.0
      %7790 = vmatpush2.msra.mxu0 0.0
      %7791 = vmatprep.subr.mxu0 0.0
      %7792 = vmatpush2.msra.mxu0 0.0
      %7793 = vmatprep.subr.mxu0 0.0
      %7794 = vmatpush2.msra.mxu0 0.0
      %7795 = vmatprep.subr.mxu0 0.0
      %7796 = vmatpush2.msra.mxu0 0.0
      %7797 = vmatprep.subr.mxu0 0.0
      %7798 = vmatpush2.msra.mxu0 0.0
      %7799 = vmatprep.subr.mxu0 0.0
      %7800 = vmatpush2.msra.mxu0 0.0
      %7801 = vmatprep.subr.mxu0 0.0
      %7802 = vmatpush2.msra.mxu0 0.0
      %7803 = vmatprep.subr.mxu0 0.0
      %7804 = vmatpush2.msra.mxu0 0.0
      %7805 = vmatprep.mubr.f32.mxu0 0.0
      %7806 = vmatmul.mubr.f32.gmra.mxu0 %v7631
      %v7807 = vpop.f32.mrf.mxu0
      %v7808 = vadd.f32 0.0, %v7807
      %v7809 = vpop.f32.mrf.mxu0
      %7810 = vmatprep.mubr.f32.mxu0 0.0
      %7811 = vmatmul.mubr.f32.gmra.mxu0 %v7634
      %v7812 = vpop.f32.mrf.mxu0
      %v7813 = vadd.f32 0.0, %v7812
      %v7814 = vpop.f32.mrf.mxu0
      %7815 = vmatprep.mubr.f32.mxu0 0.0
      %7816 = vmatmul.mubr.f32.gmra.mxu0 %v7637
      %v7817 = vpop.f32.mrf.mxu0
      %v7818 = vadd.f32 0.0, %v7817
      %v7819 = vpop.f32.mrf.mxu0
      %7820 = vmatprep.mubr.f32.mxu0 0.0
      %7821 = vmatmul.mubr.f32.gmra.mxu0 %v7640
      %v7822 = vpop.f32.mrf.mxu0
      %v7823 = vadd.f32 0.0, %v7822
      %v7824 = vpop.f32.mrf.mxu0
      %7825 = vmatprep.mubr.f32.mxu0 0.0
      %7826 = vmatmul.mubr.f32.gmra.mxu0 %v7643
      %v7827 = vpop.f32.mrf.mxu0
      %v7828 = vadd.f32 0.0, %v7827
      %v7829 = vpop.f32.mrf.mxu0
      %7830 = vmatprep.mubr.f32.mxu0 0.0
      %7831 = vmatmul.mubr.f32.gmra.mxu0 %v7646
      %v7832 = vpop.f32.mrf.mxu0
      %v7833 = vadd.f32 0.0, %v7832
      %v7834 = vpop.f32.mrf.mxu0
      %7835 = vmatprep.mubr.f32.mxu0 0.0
      %7836 = vmatmul.mubr.f32.gmra.mxu0 %v7649
      %v7837 = vpop.f32.mrf.mxu0
      %v7838 = vadd.f32 0.0, %v7837
      %v7839 = vpop.f32.mrf.mxu0
      %7840 = vmatprep.mubr.f32.mxu0 0.0
      %7841 = vmatmul.mubr.f32.gmra.mxu0 %v7652
      %v7842 = vpop.f32.mrf.mxu0
      %v7843 = vadd.f32 0.0, %v7842
      %v7844 = vpop.f32.mrf.mxu0
      %7845 = vmatprep.mubr.f32.mxu0 0.0
      %7846 = vmatmul.mubr.f32.gmra.mxu0 %v7655
      %v7847 = vpop.f32.mrf.mxu0
      %v7848 = vadd.f32 0.0, %v7847
      %v7849 = vpop.f32.mrf.mxu0
      %7850 = vmatprep.mubr.f32.mxu0 0.0
      %7851 = vmatmul.mubr.f32.gmra.mxu0 %v7658
      %v7852 = vpop.f32.mrf.mxu0
      %v7853 = vadd.f32 0.0, %v7852
      %v7854 = vpop.f32.mrf.mxu0
      %7855 = vmatprep.mubr.f32.mxu0 0.0
      %7856 = vmatmul.mubr.f32.gmra.mxu0 %v7661
      %v7857 = vpop.f32.mrf.mxu0
      %v7858 = vadd.f32 0.0, %v7857
      %v7859 = vpop.f32.mrf.mxu0
      %7860 = vmatprep.mubr.f32.mxu0 0.0
      %7861 = vmatmul.mubr.f32.gmra.mxu0 %v7664
      %v7862 = vpop.f32.mrf.mxu0
      %v7863 = vadd.f32 0.0, %v7862
      %v7864 = vpop.f32.mrf.mxu0
      %7865 = vmatprep.mubr.f32.mxu0 0.0
      %7866 = vmatmul.mubr.f32.gmra.mxu0 %v7667
      %v7867 = vpop.f32.mrf.mxu0
      %v7868 = vadd.f32 0.0, %v7867
      %v7869 = vpop.f32.mrf.mxu0
      %7870 = vmatprep.mubr.f32.mxu0 0.0
      %7871 = vmatmul.mubr.f32.gmra.mxu0 %v7670
      %v7872 = vpop.f32.mrf.mxu0
      %v7873 = vadd.f32 0.0, %v7872
      %v7874 = vpop.f32.mrf.mxu0
      %7875 = vmatprep.mubr.f32.mxu0 0.0
      %7876 = vmatmul.mubr.f32.gmra.mxu0 %v7673
      %v7877 = vpop.f32.mrf.mxu0
      %v7878 = vadd.f32 0.0, %v7877
      %v7879 = vpop.f32.mrf.mxu0
      %7880 = vmatprep.mubr.f32.mxu0 0.0
      %7881 = vmatmul.mubr.f32.gmra.mxu0 %v7676
      %v7882 = vpop.f32.mrf.mxu0
      %v7883 = vadd.f32 0.0, %v7882
      %v7884 = vpop.f32.mrf.mxu0
      %7885 = vmatprep.mubr.f32.mxu0 0.0
      %7886 = vmatmul.mubr.f32.gmra.mxu0 %v7679
      %v7887 = vpop.f32.mrf.mxu0
      %v7888 = vadd.f32 0.0, %v7887
      %v7889 = vpop.f32.mrf.mxu0
      %7890 = vmatprep.mubr.f32.mxu0 0.0
      %7891 = vmatmul.mubr.f32.gmra.mxu0 %v7682
      %v7892 = vpop.f32.mrf.mxu0
      %v7893 = vadd.f32 0.0, %v7892
      %v7894 = vpop.f32.mrf.mxu0
      %7895 = vmatprep.mubr.f32.mxu0 0.0
      %7896 = vmatmul.mubr.f32.gmra.mxu0 %v7685
      %v7897 = vpop.f32.mrf.mxu0
      %v7898 = vadd.f32 0.0, %v7897
      %v7899 = vpop.f32.mrf.mxu0
      %7900 = vmatprep.mubr.f32.mxu0 0.0
      %7901 = vmatmul.mubr.f32.gmra.mxu0 %v7688
      %v7902 = vpop.f32.mrf.mxu0
      %v7903 = vadd.f32 0.0, %v7902
      %v7904 = vpop.f32.mrf.mxu0
      %7905 = vmatprep.mubr.f32.mxu0 0.0
      %7906 = vmatmul.mubr.f32.gmra.mxu0 %v7691
      %v7907 = vpop.f32.mrf.mxu0
      %v7908 = vadd.f32 0.0, %v7907
      %v7909 = vpop.f32.mrf.mxu0
      %7910 = vmatprep.mubr.f32.mxu0 0.0
      %7911 = vmatmul.mubr.f32.gmra.mxu0 %v7694
      %v7912 = vpop.f32.mrf.mxu0
      %v7913 = vadd.f32 0.0, %v7912
      %v7914 = vpop.f32.mrf.mxu0
      %7915 = vmatprep.mubr.f32.mxu0 0.0
      %7916 = vmatmul.mubr.f32.gmra.mxu0 %v7697
      %v7917 = vpop.f32.mrf.mxu0
      %v7918 = vadd.f32 0.0, %v7917
      %v7919 = vpop.f32.mrf.mxu0
      %7920 = vmatprep.mubr.f32.mxu0 0.0
      %7921 = vmatmul.mubr.f32.gmra.mxu0 %v7700
      %v7922 = vpop.f32.mrf.mxu0
      %v7923 = vadd.f32 0.0, %v7922
      %v7924 = vpop.f32.mrf.mxu0
      %7925 = vmatprep.mubr.f32.mxu0 0.0
      %7926 = vmatmul.mubr.f32.gmra.mxu0 %v7703
      %v7927 = vpop.f32.mrf.mxu0
      %v7928 = vadd.f32 0.0, %v7927
      %v7929 = vpop.f32.mrf.mxu0
      %7930 = vmatprep.mubr.f32.mxu0 0.0
      %7931 = vmatmul.mubr.f32.gmra.mxu0 %v7706
      %v7932 = vpop.f32.mrf.mxu0
      %v7933 = vadd.f32 0.0, %v7932
      %v7934 = vpop.f32.mrf.mxu0
      %7935 = vmatprep.mubr.f32.mxu0 0.0
      %7936 = vmatmul.mubr.f32.gmra.mxu0 %v7709
      %v7937 = vpop.f32.mrf.mxu0
      %v7938 = vadd.f32 0.0, %v7937
      %v7939 = vpop.f32.mrf.mxu0
      %7940 = vmatprep.mubr.f32.mxu0 0.0
      %7941 = vmatmul.mubr.f32.gmra.mxu0 %v7712
      %v7942 = vpop.f32.mrf.mxu0
      %v7943 = vadd.f32 0.0, %v7942
      %v7944 = vpop.f32.mrf.mxu0
      %7945 = vmatprep.mubr.f32.mxu0 0.0
      %7946 = vmatmul.mubr.f32.gmra.mxu0 %v7715
      %v7947 = vpop.f32.mrf.mxu0
      %v7948 = vadd.f32 0.0, %v7947
      %v7949 = vpop.f32.mrf.mxu0
      %7950 = vmatprep.mubr.f32.mxu0 0.0
      %7951 = vmatmul.mubr.f32.gmra.mxu0 %v7718
      %v7952 = vpop.f32.mrf.mxu0
      %v7953 = vadd.f32 0.0, %v7952
      %v7954 = vpop.f32.mrf.mxu0
      %7955 = vmatprep.mubr.f32.mxu0 0.0
      %7956 = vmatmul.mubr.f32.gmra.mxu0 %v7721
      %v7957 = vpop.f32.mrf.mxu0
      %v7958 = vadd.f32 0.0, %v7957
      %v7959 = vpop.f32.mrf.mxu0
      %7960 = vmatprep.mubr.f32.mxu0 0.0
      %7961 = vmatmul.mubr.f32.gmra.mxu0 %v7724
      %v7962 = vpop.f32.mrf.mxu0
      %v7963 = vadd.f32 0.0, %v7962
      %v7964 = vpop.f32.mrf.mxu0
      %7965 = vmatprep.mubr.f32.mxu0 0.0
      %7966 = vmatmul.mubr.f32.gmra.mxu0 %v7727
      %v7967 = vpop.f32.mrf.mxu0
      %v7968 = vadd.f32 0.0, %v7967
      %v7969 = vpop.f32.mrf.mxu0
      %7970 = vmatprep.mubr.f32.mxu0 0.0
      %7971 = vmatmul.mubr.f32.gmra.mxu0 %v7730
      %v7972 = vpop.f32.mrf.mxu0
      %v7973 = vadd.f32 0.0, %v7972
      %v7974 = vpop.f32.mrf.mxu0
      %7975 = vmatprep.mubr.f32.mxu0 0.0
      %7976 = vmatmul.mubr.f32.gmra.mxu0 %v7733
      %v7977 = vpop.f32.mrf.mxu0
      %v7978 = vadd.f32 0.0, %v7977
      %v7979 = vpop.f32.mrf.mxu0
      %7980 = vmatprep.mubr.f32.mxu0 0.0
      %7981 = vmatmul.mubr.f32.gmra.mxu0 %v7736
      %v7982 = vpop.f32.mrf.mxu0
      %v7983 = vadd.f32 0.0, %v7982
      %v7984 = vpop.f32.mrf.mxu0
      %7985 = vdwg.mxu0
      %v7986 = vadd.f32 %v7556, %v7808
      %v7987 = vadd.f32 %v7557, %v7813
      %v7988 = vadd.f32 %v7558, %v7818
      %v7989 = vadd.f32 %v7559, %v7823
      %v7990 = vadd.f32 %v7560, %v7828
      %v7991 = vadd.f32 %v7561, %v7833
      %v7992 = vadd.f32 %v7562, %v7838
      %v7993 = vadd.f32 %v7563, %v7843
      %v7994 = vadd.f32 %v7564, %v7848
      %v7995 = vadd.f32 %v7565, %v7853
      %v7996 = vadd.f32 %v7566, %v7858
      %v7997 = vadd.f32 %v7567, %v7863
      %v7998 = vadd.f32 %v7568, %v7868
      %v7999 = vadd.f32 %v7569, %v7873
      %v8000 = vadd.f32 %v7570, %v7878
      %v8001 = vadd.f32 %v7571, %v7883
      %v8002 = vadd.f32 %v7572, %v7888
      %v8003 = vadd.f32 %v7573, %v7893
      %v8004 = vadd.f32 %v7574, %v7898
      %v8005 = vadd.f32 %v7575, %v7903
      %v8006 = vadd.f32 %v7576, %v7908
      %v8007 = vadd.f32 %v7577, %v7913
      %v8008 = vadd.f32 %v7578, %v7918
      %v8009 = vadd.f32 %v7579, %v7923
      %v8010 = vadd.f32 %v7580, %v7928
      %v8011 = vadd.f32 %v7581, %v7933
      %v8012 = vadd.f32 %v7582, %v7938
      %v8013 = vadd.f32 %v7583, %v7943
      %v8014 = vadd.f32 %v7584, %v7948
      %v8015 = vadd.f32 %v7585, %v7953
      %v8016 = vadd.f32 %v7586, %v7958
      %v8017 = vadd.f32 %v7587, %v7963
      %v8018 = vadd.f32 %v7588, %v7968
      %v8019 = vadd.f32 %v7589, %v7973
      %v8020 = vadd.f32 %v7590, %v7978
      %v8021 = vadd.f32 %v7591, %v7983
      %v8022 = vld [vmem:[#allocation2 + $0x24] sm:$0xff]
      %v8023 = vld [vmem:[#allocation2 + $0x2c] sm:$0xff]
      %v8024 = vld [vmem:[#allocation2 + $0x34] sm:$0xff]
      %v8025 = vld [vmem:[#allocation2 + $0x3c] sm:$0xff]
      %v8026 = vld [vmem:[#allocation2 + $0x44] sm:$0xff]
      %v8027 = vld [vmem:[#allocation2 + $0x4c] sm:$0xff]
      %v8028 = vld [vmem:[#allocation2 + $0x54] sm:$0xff]
      %v8029 = vld [vmem:[#allocation2 + $0x5c] sm:$0xff]
      %v8030 = vld [vmem:[#allocation2 + $0x64] sm:$0xff]
      %v8031 = vld [vmem:[#allocation2 + $0x6c] sm:$0xff]
      %v8032 = vld [vmem:[#allocation2 + $0x74] sm:$0xff]
      %v8033 = vld [vmem:[#allocation2 + $0x7c] sm:$0xff]
      %v8034 = vld [vmem:[#allocation2 + $0x84] sm:$0xff]
      %v8035 = vld [vmem:[#allocation2 + $0x8c] sm:$0xff]
      %v8036 = vld [vmem:[#allocation2 + $0x94] sm:$0xff]
      %v8037 = vld [vmem:[#allocation2 + $0x9c] sm:$0xff]
      %v8038 = vld [vmem:[#allocation2 + $0xa4] sm:$0xff]
      %v8039 = vld [vmem:[#allocation2 + $0xac] sm:$0xff]
      %v8040 = vld [vmem:[#allocation2 + $0xb4] sm:$0xff]
      %v8041 = vld [vmem:[#allocation2 + $0xbc] sm:$0xff]
      %v8042 = vld [vmem:[#allocation2 + $0xc4] sm:$0xff]
      %v8043 = vld [vmem:[#allocation2 + $0xcc] sm:$0xff]
      %v8044 = vld [vmem:[#allocation2 + $0xd4] sm:$0xff]
      %v8045 = vld [vmem:[#allocation2 + $0xdc] sm:$0xff]
      %v8046 = vld [vmem:[#allocation2 + $0xe4] sm:$0xff]
      %v8047 = vld [vmem:[#allocation2 + $0xec] sm:$0xff]
      %v8048 = vld [vmem:[#allocation2 + $0xf4] sm:$0xff]
      %v8049 = vld [vmem:[#allocation2 + $0xfc] sm:$0xff]
      %v8050 = vld [vmem:[#allocation2 + $0x104] sm:$0xff]
      %v8051 = vld [vmem:[#allocation2 + $0x10c] sm:$0xff]
      %v8052 = vld [vmem:[#allocation2 + $0x114] sm:$0xff]
      %v8053 = vld [vmem:[#allocation2 + $0x11c] sm:$0xff]
      %v8054 = vld [vmem:[#allocation2 + $0x124] sm:$0xff]
      %v8055 = vld [vmem:[#allocation2 + $0x12c] sm:$0xff]
      %v8056 = vld [vmem:[#allocation2 + $0x134] sm:$0xff]
      %v8057 = vld [vmem:[#allocation2 + $0x13c] sm:$0xff]
      %s8058 = scalar_lea.vmem %s2, 24
      %v8059 = vld [vmem:[%s8058] sm:$0xf]
      %v8061 = vsel %vm895, %v8022, 0
      %v8064 = vsel %vm895, %v8023, 0
      %v8067 = vsel %vm895, %v8024, 0
      %v8070 = vsel %vm895, %v8025, 0
      %v8073 = vsel %vm895, %v8026, 0
      %v8076 = vsel %vm895, %v8027, 0
      %v8079 = vsel %vm895, %v8028, 0
      %v8082 = vsel %vm895, %v8029, 0
      %v8085 = vsel %vm895, %v8030, 0
      %v8088 = vsel %vm895, %v8031, 0
      %v8091 = vsel %vm895, %v8032, 0
      %v8094 = vsel %vm895, %v8033, 0
      %v8097 = vsel %vm895, %v8034, 0
      %v8100 = vsel %vm895, %v8035, 0
      %v8103 = vsel %vm895, %v8036, 0
      %v8106 = vsel %vm895, %v8037, 0
      %v8109 = vsel %vm895, %v8038, 0
      %v8112 = vsel %vm895, %v8039, 0
      %v8115 = vsel %vm895, %v8040, 0
      %v8118 = vsel %vm895, %v8041, 0
      %v8121 = vsel %vm895, %v8042, 0
      %v8124 = vsel %vm895, %v8043, 0
      %v8127 = vsel %vm895, %v8044, 0
      %v8130 = vsel %vm895, %v8045, 0
      %v8133 = vsel %vm895, %v8046, 0
      %v8136 = vsel %vm895, %v8047, 0
      %v8139 = vsel %vm895, %v8048, 0
      %v8142 = vsel %vm895, %v8049, 0
      %v8145 = vsel %vm895, %v8050, 0
      %v8148 = vsel %vm895, %v8051, 0
      %v8151 = vsel %vm895, %v8052, 0
      %v8154 = vsel %vm895, %v8053, 0
      %v8157 = vsel %vm895, %v8054, 0
      %v8160 = vsel %vm895, %v8055, 0
      %v8163 = vsel %vm895, %v8056, 0
      %v8166 = vsel %vm895, %v8057, 0
      %v8169 = vsel %vm1004, %v8059, 0
      %8171 = vmatprep.subr.mxu0 0.0
      %8172 = vmatpush1.msra.mxu0 0.0
      %8173 = vmatprep.subr.mxu0 0.0
      %8174 = vmatpush1.msra.mxu0 0.0
      %8175 = vmatprep.subr.mxu0 0.0
      %8176 = vmatpush1.msra.mxu0 0.0
      %8177 = vmatprep.subr.mxu0 0.0
      %8178 = vmatpush1.msra.mxu0 0.0
      %8179 = vmatprep.subr.mxu0 0.0
      %8180 = vmatpush1.msra.mxu0 0.0
      %8181 = vmatprep.subr.mxu0 0.0
      %8182 = vmatpush1.msra.mxu0 0.0
      %8183 = vmatprep.subr.mxu0 0.0
      %8184 = vmatpush1.msra.mxu0 0.0
      %8185 = vmatprep.subr.mxu0 0.0
      %8186 = vmatpush1.msra.mxu0 0.0
      %8187 = vmatprep.subr.mxu0 0.0
      %8188 = vmatpush1.msra.mxu0 0.0
      %8189 = vmatprep.subr.mxu0 0.0
      %8190 = vmatpush1.msra.mxu0 0.0
      %8191 = vmatprep.subr.mxu0 0.0
      %8192 = vmatpush1.msra.mxu0 0.0
      %8193 = vmatprep.subr.mxu0 0.0
      %8194 = vmatpush1.msra.mxu0 0.0
      %8195 = vmatprep.subr.mxu0 0.0
      %8196 = vmatpush1.msra.mxu0 0.0
      %8197 = vmatprep.subr.mxu0 0.0
      %8198 = vmatpush1.msra.mxu0 0.0
      %8199 = vmatprep.subr.mxu0 0.0
      %8200 = vmatpush1.msra.mxu0 0.0
      %8201 = vmatprep.subr.mxu0 0.0
      %8202 = vmatpush1.msra.mxu0 %v8169
      %8203 = vmatprep.subr.mxu0 0.0
      %8204 = vmatpush2.msra.mxu0 0.0
      %8205 = vmatprep.subr.mxu0 0.0
      %8206 = vmatpush2.msra.mxu0 0.0
      %8207 = vmatprep.subr.mxu0 0.0
      %8208 = vmatpush2.msra.mxu0 0.0
      %8209 = vmatprep.subr.mxu0 0.0
      %8210 = vmatpush2.msra.mxu0 0.0
      %8211 = vmatprep.subr.mxu0 0.0
      %8212 = vmatpush2.msra.mxu0 0.0
      %8213 = vmatprep.subr.mxu0 0.0
      %8214 = vmatpush2.msra.mxu0 0.0
      %8215 = vmatprep.subr.mxu0 0.0
      %8216 = vmatpush2.msra.mxu0 0.0
      %8217 = vmatprep.subr.mxu0 0.0
      %8218 = vmatpush2.msra.mxu0 0.0
      %8219 = vmatprep.subr.mxu0 0.0
      %8220 = vmatpush2.msra.mxu0 0.0
      %8221 = vmatprep.subr.mxu0 0.0
      %8222 = vmatpush2.msra.mxu0 0.0
      %8223 = vmatprep.subr.mxu0 0.0
      %8224 = vmatpush2.msra.mxu0 0.0
      %8225 = vmatprep.subr.mxu0 0.0
      %8226 = vmatpush2.msra.mxu0 0.0
      %8227 = vmatprep.subr.mxu0 0.0
      %8228 = vmatpush2.msra.mxu0 0.0
      %8229 = vmatprep.subr.mxu0 0.0
      %8230 = vmatpush2.msra.mxu0 0.0
      %8231 = vmatprep.subr.mxu0 0.0
      %8232 = vmatpush2.msra.mxu0 0.0
      %8233 = vmatprep.subr.mxu0 0.0
      %8234 = vmatpush2.msra.mxu0 0.0
      %8235 = vmatprep.mubr.f32.mxu0 0.0
      %8236 = vmatmul.mubr.f32.gmra.mxu0 %v8061
      %v8237 = vpop.f32.mrf.mxu0
      %v8238 = vadd.f32 0.0, %v8237
      %v8239 = vpop.f32.mrf.mxu0
      %8240 = vmatprep.mubr.f32.mxu0 0.0
      %8241 = vmatmul.mubr.f32.gmra.mxu0 %v8064
      %v8242 = vpop.f32.mrf.mxu0
      %v8243 = vadd.f32 0.0, %v8242
      %v8244 = vpop.f32.mrf.mxu0
      %8245 = vmatprep.mubr.f32.mxu0 0.0
      %8246 = vmatmul.mubr.f32.gmra.mxu0 %v8067
      %v8247 = vpop.f32.mrf.mxu0
      %v8248 = vadd.f32 0.0, %v8247
      %v8249 = vpop.f32.mrf.mxu0
      %8250 = vmatprep.mubr.f32.mxu0 0.0
      %8251 = vmatmul.mubr.f32.gmra.mxu0 %v8070
      %v8252 = vpop.f32.mrf.mxu0
      %v8253 = vadd.f32 0.0, %v8252
      %v8254 = vpop.f32.mrf.mxu0
      %8255 = vmatprep.mubr.f32.mxu0 0.0
      %8256 = vmatmul.mubr.f32.gmra.mxu0 %v8073
      %v8257 = vpop.f32.mrf.mxu0
      %v8258 = vadd.f32 0.0, %v8257
      %v8259 = vpop.f32.mrf.mxu0
      %8260 = vmatprep.mubr.f32.mxu0 0.0
      %8261 = vmatmul.mubr.f32.gmra.mxu0 %v8076
      %v8262 = vpop.f32.mrf.mxu0
      %v8263 = vadd.f32 0.0, %v8262
      %v8264 = vpop.f32.mrf.mxu0
      %8265 = vmatprep.mubr.f32.mxu0 0.0
      %8266 = vmatmul.mubr.f32.gmra.mxu0 %v8079
      %v8267 = vpop.f32.mrf.mxu0
      %v8268 = vadd.f32 0.0, %v8267
      %v8269 = vpop.f32.mrf.mxu0
      %8270 = vmatprep.mubr.f32.mxu0 0.0
      %8271 = vmatmul.mubr.f32.gmra.mxu0 %v8082
      %v8272 = vpop.f32.mrf.mxu0
      %v8273 = vadd.f32 0.0, %v8272
      %v8274 = vpop.f32.mrf.mxu0
      %8275 = vmatprep.mubr.f32.mxu0 0.0
      %8276 = vmatmul.mubr.f32.gmra.mxu0 %v8085
      %v8277 = vpop.f32.mrf.mxu0
      %v8278 = vadd.f32 0.0, %v8277
      %v8279 = vpop.f32.mrf.mxu0
      %8280 = vmatprep.mubr.f32.mxu0 0.0
      %8281 = vmatmul.mubr.f32.gmra.mxu0 %v8088
      %v8282 = vpop.f32.mrf.mxu0
      %v8283 = vadd.f32 0.0, %v8282
      %v8284 = vpop.f32.mrf.mxu0
      %8285 = vmatprep.mubr.f32.mxu0 0.0
      %8286 = vmatmul.mubr.f32.gmra.mxu0 %v8091
      %v8287 = vpop.f32.mrf.mxu0
      %v8288 = vadd.f32 0.0, %v8287
      %v8289 = vpop.f32.mrf.mxu0
      %8290 = vmatprep.mubr.f32.mxu0 0.0
      %8291 = vmatmul.mubr.f32.gmra.mxu0 %v8094
      %v8292 = vpop.f32.mrf.mxu0
      %v8293 = vadd.f32 0.0, %v8292
      %v8294 = vpop.f32.mrf.mxu0
      %8295 = vmatprep.mubr.f32.mxu0 0.0
      %8296 = vmatmul.mubr.f32.gmra.mxu0 %v8097
      %v8297 = vpop.f32.mrf.mxu0
      %v8298 = vadd.f32 0.0, %v8297
      %v8299 = vpop.f32.mrf.mxu0
      %8300 = vmatprep.mubr.f32.mxu0 0.0
      %8301 = vmatmul.mubr.f32.gmra.mxu0 %v8100
      %v8302 = vpop.f32.mrf.mxu0
      %v8303 = vadd.f32 0.0, %v8302
      %v8304 = vpop.f32.mrf.mxu0
      %8305 = vmatprep.mubr.f32.mxu0 0.0
      %8306 = vmatmul.mubr.f32.gmra.mxu0 %v8103
      %v8307 = vpop.f32.mrf.mxu0
      %v8308 = vadd.f32 0.0, %v8307
      %v8309 = vpop.f32.mrf.mxu0
      %8310 = vmatprep.mubr.f32.mxu0 0.0
      %8311 = vmatmul.mubr.f32.gmra.mxu0 %v8106
      %v8312 = vpop.f32.mrf.mxu0
      %v8313 = vadd.f32 0.0, %v8312
      %v8314 = vpop.f32.mrf.mxu0
      %8315 = vmatprep.mubr.f32.mxu0 0.0
      %8316 = vmatmul.mubr.f32.gmra.mxu0 %v8109
      %v8317 = vpop.f32.mrf.mxu0
      %v8318 = vadd.f32 0.0, %v8317
      %v8319 = vpop.f32.mrf.mxu0
      %8320 = vmatprep.mubr.f32.mxu0 0.0
      %8321 = vmatmul.mubr.f32.gmra.mxu0 %v8112
      %v8322 = vpop.f32.mrf.mxu0
      %v8323 = vadd.f32 0.0, %v8322
      %v8324 = vpop.f32.mrf.mxu0
      %8325 = vmatprep.mubr.f32.mxu0 0.0
      %8326 = vmatmul.mubr.f32.gmra.mxu0 %v8115
      %v8327 = vpop.f32.mrf.mxu0
      %v8328 = vadd.f32 0.0, %v8327
      %v8329 = vpop.f32.mrf.mxu0
      %8330 = vmatprep.mubr.f32.mxu0 0.0
      %8331 = vmatmul.mubr.f32.gmra.mxu0 %v8118
      %v8332 = vpop.f32.mrf.mxu0
      %v8333 = vadd.f32 0.0, %v8332
      %v8334 = vpop.f32.mrf.mxu0
      %8335 = vmatprep.mubr.f32.mxu0 0.0
      %8336 = vmatmul.mubr.f32.gmra.mxu0 %v8121
      %v8337 = vpop.f32.mrf.mxu0
      %v8338 = vadd.f32 0.0, %v8337
      %v8339 = vpop.f32.mrf.mxu0
      %8340 = vmatprep.mubr.f32.mxu0 0.0
      %8341 = vmatmul.mubr.f32.gmra.mxu0 %v8124
      %v8342 = vpop.f32.mrf.mxu0
      %v8343 = vadd.f32 0.0, %v8342
      %v8344 = vpop.f32.mrf.mxu0
      %8345 = vmatprep.mubr.f32.mxu0 0.0
      %8346 = vmatmul.mubr.f32.gmra.mxu0 %v8127
      %v8347 = vpop.f32.mrf.mxu0
      %v8348 = vadd.f32 0.0, %v8347
      %v8349 = vpop.f32.mrf.mxu0
      %8350 = vmatprep.mubr.f32.mxu0 0.0
      %8351 = vmatmul.mubr.f32.gmra.mxu0 %v8130
      %v8352 = vpop.f32.mrf.mxu0
      %v8353 = vadd.f32 0.0, %v8352
      %v8354 = vpop.f32.mrf.mxu0
      %8355 = vmatprep.mubr.f32.mxu0 0.0
      %8356 = vmatmul.mubr.f32.gmra.mxu0 %v8133
      %v8357 = vpop.f32.mrf.mxu0
      %v8358 = vadd.f32 0.0, %v8357
      %v8359 = vpop.f32.mrf.mxu0
      %8360 = vmatprep.mubr.f32.mxu0 0.0
      %8361 = vmatmul.mubr.f32.gmra.mxu0 %v8136
      %v8362 = vpop.f32.mrf.mxu0
      %v8363 = vadd.f32 0.0, %v8362
      %v8364 = vpop.f32.mrf.mxu0
      %8365 = vmatprep.mubr.f32.mxu0 0.0
      %8366 = vmatmul.mubr.f32.gmra.mxu0 %v8139
      %v8367 = vpop.f32.mrf.mxu0
      %v8368 = vadd.f32 0.0, %v8367
      %v8369 = vpop.f32.mrf.mxu0
      %8370 = vmatprep.mubr.f32.mxu0 0.0
      %8371 = vmatmul.mubr.f32.gmra.mxu0 %v8142
      %v8372 = vpop.f32.mrf.mxu0
      %v8373 = vadd.f32 0.0, %v8372
      %v8374 = vpop.f32.mrf.mxu0
      %8375 = vmatprep.mubr.f32.mxu0 0.0
      %8376 = vmatmul.mubr.f32.gmra.mxu0 %v8145
      %v8377 = vpop.f32.mrf.mxu0
      %v8378 = vadd.f32 0.0, %v8377
      %v8379 = vpop.f32.mrf.mxu0
      %8380 = vmatprep.mubr.f32.mxu0 0.0
      %8381 = vmatmul.mubr.f32.gmra.mxu0 %v8148
      %v8382 = vpop.f32.mrf.mxu0
      %v8383 = vadd.f32 0.0, %v8382
      %v8384 = vpop.f32.mrf.mxu0
      %8385 = vmatprep.mubr.f32.mxu0 0.0
      %8386 = vmatmul.mubr.f32.gmra.mxu0 %v8151
      %v8387 = vpop.f32.mrf.mxu0
      %v8388 = vadd.f32 0.0, %v8387
      %v8389 = vpop.f32.mrf.mxu0
      %8390 = vmatprep.mubr.f32.mxu0 0.0
      %8391 = vmatmul.mubr.f32.gmra.mxu0 %v8154
      %v8392 = vpop.f32.mrf.mxu0
      %v8393 = vadd.f32 0.0, %v8392
      %v8394 = vpop.f32.mrf.mxu0
      %8395 = vmatprep.mubr.f32.mxu0 0.0
      %8396 = vmatmul.mubr.f32.gmra.mxu0 %v8157
      %v8397 = vpop.f32.mrf.mxu0
      %v8398 = vadd.f32 0.0, %v8397
      %v8399 = vpop.f32.mrf.mxu0
      %8400 = vmatprep.mubr.f32.mxu0 0.0
      %8401 = vmatmul.mubr.f32.gmra.mxu0 %v8160
      %v8402 = vpop.f32.mrf.mxu0
      %v8403 = vadd.f32 0.0, %v8402
      %v8404 = vpop.f32.mrf.mxu0
      %8405 = vmatprep.mubr.f32.mxu0 0.0
      %8406 = vmatmul.mubr.f32.gmra.mxu0 %v8163
      %v8407 = vpop.f32.mrf.mxu0
      %v8408 = vadd.f32 0.0, %v8407
      %v8409 = vpop.f32.mrf.mxu0
      %8410 = vmatprep.mubr.f32.mxu0 0.0
      %8411 = vmatmul.mubr.f32.gmra.mxu0 %v8166
      %v8412 = vpop.f32.mrf.mxu0
      %v8413 = vadd.f32 0.0, %v8412
      %v8414 = vpop.f32.mrf.mxu0
      %8415 = vdwg.mxu0
      %v8416 = vadd.f32 %v7986, %v8238
      %v8417 = vadd.f32 %v7987, %v8243
      %v8418 = vadd.f32 %v7988, %v8248
      %v8419 = vadd.f32 %v7989, %v8253
      %v8420 = vadd.f32 %v7990, %v8258
      %v8421 = vadd.f32 %v7991, %v8263
      %v8422 = vadd.f32 %v7992, %v8268
      %v8423 = vadd.f32 %v7993, %v8273
      %v8424 = vadd.f32 %v7994, %v8278
      %v8425 = vadd.f32 %v7995, %v8283
      %v8426 = vadd.f32 %v7996, %v8288
      %v8427 = vadd.f32 %v7997, %v8293
      %v8428 = vadd.f32 %v7998, %v8298
      %v8429 = vadd.f32 %v7999, %v8303
      %v8430 = vadd.f32 %v8000, %v8308
      %v8431 = vadd.f32 %v8001, %v8313
      %v8432 = vadd.f32 %v8002, %v8318
      %v8433 = vadd.f32 %v8003, %v8323
      %v8434 = vadd.f32 %v8004, %v8328
      %v8435 = vadd.f32 %v8005, %v8333
      %v8436 = vadd.f32 %v8006, %v8338
      %v8437 = vadd.f32 %v8007, %v8343
      %v8438 = vadd.f32 %v8008, %v8348
      %v8439 = vadd.f32 %v8009, %v8353
      %v8440 = vadd.f32 %v8010, %v8358
      %v8441 = vadd.f32 %v8011, %v8363
      %v8442 = vadd.f32 %v8012, %v8368
      %v8443 = vadd.f32 %v8013, %v8373
      %v8444 = vadd.f32 %v8014, %v8378
      %v8445 = vadd.f32 %v8015, %v8383
      %v8446 = vadd.f32 %v8016, %v8388
      %v8447 = vadd.f32 %v8017, %v8393
      %v8448 = vadd.f32 %v8018, %v8398
      %v8449 = vadd.f32 %v8019, %v8403
      %v8450 = vadd.f32 %v8020, %v8408
      %v8451 = vadd.f32 %v8021, %v8413
      %v8452 = vld [vmem:[#allocation2 + $0x25] sm:$0xff]
      %v8453 = vld [vmem:[#allocation2 + $0x2d] sm:$0xff]
      %v8454 = vld [vmem:[#allocation2 + $0x35] sm:$0xff]
      %v8455 = vld [vmem:[#allocation2 + $0x3d] sm:$0xff]
      %v8456 = vld [vmem:[#allocation2 + $0x45] sm:$0xff]
      %v8457 = vld [vmem:[#allocation2 + $0x4d] sm:$0xff]
      %v8458 = vld [vmem:[#allocation2 + $0x55] sm:$0xff]
      %v8459 = vld [vmem:[#allocation2 + $0x5d] sm:$0xff]
      %v8460 = vld [vmem:[#allocation2 + $0x65] sm:$0xff]
      %v8461 = vld [vmem:[#allocation2 + $0x6d] sm:$0xff]
      %v8462 = vld [vmem:[#allocation2 + $0x75] sm:$0xff]
      %v8463 = vld [vmem:[#allocation2 + $0x7d] sm:$0xff]
      %v8464 = vld [vmem:[#allocation2 + $0x85] sm:$0xff]
      %v8465 = vld [vmem:[#allocation2 + $0x8d] sm:$0xff]
      %v8466 = vld [vmem:[#allocation2 + $0x95] sm:$0xff]
      %v8467 = vld [vmem:[#allocation2 + $0x9d] sm:$0xff]
      %v8468 = vld [vmem:[#allocation2 + $0xa5] sm:$0xff]
      %v8469 = vld [vmem:[#allocation2 + $0xad] sm:$0xff]
      %v8470 = vld [vmem:[#allocation2 + $0xb5] sm:$0xff]
      %v8471 = vld [vmem:[#allocation2 + $0xbd] sm:$0xff]
      %v8472 = vld [vmem:[#allocation2 + $0xc5] sm:$0xff]
      %v8473 = vld [vmem:[#allocation2 + $0xcd] sm:$0xff]
      %v8474 = vld [vmem:[#allocation2 + $0xd5] sm:$0xff]
      %v8475 = vld [vmem:[#allocation2 + $0xdd] sm:$0xff]
      %v8476 = vld [vmem:[#allocation2 + $0xe5] sm:$0xff]
      %v8477 = vld [vmem:[#allocation2 + $0xed] sm:$0xff]
      %v8478 = vld [vmem:[#allocation2 + $0xf5] sm:$0xff]
      %v8479 = vld [vmem:[#allocation2 + $0xfd] sm:$0xff]
      %v8480 = vld [vmem:[#allocation2 + $0x105] sm:$0xff]
      %v8481 = vld [vmem:[#allocation2 + $0x10d] sm:$0xff]
      %v8482 = vld [vmem:[#allocation2 + $0x115] sm:$0xff]
      %v8483 = vld [vmem:[#allocation2 + $0x11d] sm:$0xff]
      %v8484 = vld [vmem:[#allocation2 + $0x125] sm:$0xff]
      %v8485 = vld [vmem:[#allocation2 + $0x12d] sm:$0xff]
      %v8486 = vld [vmem:[#allocation2 + $0x135] sm:$0xff]
      %v8487 = vld [vmem:[#allocation2 + $0x13d] sm:$0xff]
      %s8488 = scalar_lea.vmem %s2, 28
      %v8489 = vld [vmem:[%s8488] sm:$0xf]
      %v8491 = vsel %vm895, %v8452, 0
      %v8494 = vsel %vm895, %v8453, 0
      %v8497 = vsel %vm895, %v8454, 0
      %v8500 = vsel %vm895, %v8455, 0
      %v8503 = vsel %vm895, %v8456, 0
      %v8506 = vsel %vm895, %v8457, 0
      %v8509 = vsel %vm895, %v8458, 0
      %v8512 = vsel %vm895, %v8459, 0
      %v8515 = vsel %vm895, %v8460, 0
      %v8518 = vsel %vm895, %v8461, 0
      %v8521 = vsel %vm895, %v8462, 0
      %v8524 = vsel %vm895, %v8463, 0
      %v8527 = vsel %vm895, %v8464, 0
      %v8530 = vsel %vm895, %v8465, 0
      %v8533 = vsel %vm895, %v8466, 0
      %v8536 = vsel %vm895, %v8467, 0
      %v8539 = vsel %vm895, %v8468, 0
      %v8542 = vsel %vm895, %v8469, 0
      %v8545 = vsel %vm895, %v8470, 0
      %v8548 = vsel %vm895, %v8471, 0
      %v8551 = vsel %vm895, %v8472, 0
      %v8554 = vsel %vm895, %v8473, 0
      %v8557 = vsel %vm895, %v8474, 0
      %v8560 = vsel %vm895, %v8475, 0
      %v8563 = vsel %vm895, %v8476, 0
      %v8566 = vsel %vm895, %v8477, 0
      %v8569 = vsel %vm895, %v8478, 0
      %v8572 = vsel %vm895, %v8479, 0
      %v8575 = vsel %vm895, %v8480, 0
      %v8578 = vsel %vm895, %v8481, 0
      %v8581 = vsel %vm895, %v8482, 0
      %v8584 = vsel %vm895, %v8483, 0
      %v8587 = vsel %vm895, %v8484, 0
      %v8590 = vsel %vm895, %v8485, 0
      %v8593 = vsel %vm895, %v8486, 0
      %v8596 = vsel %vm895, %v8487, 0
      %v8599 = vsel %vm1004, %v8489, 0
      %8601 = vmatprep.subr.mxu0 0.0
      %8602 = vmatpush1.msra.mxu0 0.0
      %8603 = vmatprep.subr.mxu0 0.0
      %8604 = vmatpush1.msra.mxu0 0.0
      %8605 = vmatprep.subr.mxu0 0.0
      %8606 = vmatpush1.msra.mxu0 0.0
      %8607 = vmatprep.subr.mxu0 0.0
      %8608 = vmatpush1.msra.mxu0 0.0
      %8609 = vmatprep.subr.mxu0 0.0
      %8610 = vmatpush1.msra.mxu0 0.0
      %8611 = vmatprep.subr.mxu0 0.0
      %8612 = vmatpush1.msra.mxu0 0.0
      %8613 = vmatprep.subr.mxu0 0.0
      %8614 = vmatpush1.msra.mxu0 0.0
      %8615 = vmatprep.subr.mxu0 0.0
      %8616 = vmatpush1.msra.mxu0 0.0
      %8617 = vmatprep.subr.mxu0 0.0
      %8618 = vmatpush1.msra.mxu0 0.0
      %8619 = vmatprep.subr.mxu0 0.0
      %8620 = vmatpush1.msra.mxu0 0.0
      %8621 = vmatprep.subr.mxu0 0.0
      %8622 = vmatpush1.msra.mxu0 0.0
      %8623 = vmatprep.subr.mxu0 0.0
      %8624 = vmatpush1.msra.mxu0 0.0
      %8625 = vmatprep.subr.mxu0 0.0
      %8626 = vmatpush1.msra.mxu0 0.0
      %8627 = vmatprep.subr.mxu0 0.0
      %8628 = vmatpush1.msra.mxu0 0.0
      %8629 = vmatprep.subr.mxu0 0.0
      %8630 = vmatpush1.msra.mxu0 0.0
      %8631 = vmatprep.subr.mxu0 0.0
      %8632 = vmatpush1.msra.mxu0 %v8599
      %8633 = vmatprep.subr.mxu0 0.0
      %8634 = vmatpush2.msra.mxu0 0.0
      %8635 = vmatprep.subr.mxu0 0.0
      %8636 = vmatpush2.msra.mxu0 0.0
      %8637 = vmatprep.subr.mxu0 0.0
      %8638 = vmatpush2.msra.mxu0 0.0
      %8639 = vmatprep.subr.mxu0 0.0
      %8640 = vmatpush2.msra.mxu0 0.0
      %8641 = vmatprep.subr.mxu0 0.0
      %8642 = vmatpush2.msra.mxu0 0.0
      %8643 = vmatprep.subr.mxu0 0.0
      %8644 = vmatpush2.msra.mxu0 0.0
      %8645 = vmatprep.subr.mxu0 0.0
      %8646 = vmatpush2.msra.mxu0 0.0
      %8647 = vmatprep.subr.mxu0 0.0
      %8648 = vmatpush2.msra.mxu0 0.0
      %8649 = vmatprep.subr.mxu0 0.0
      %8650 = vmatpush2.msra.mxu0 0.0
      %8651 = vmatprep.subr.mxu0 0.0
      %8652 = vmatpush2.msra.mxu0 0.0
      %8653 = vmatprep.subr.mxu0 0.0
      %8654 = vmatpush2.msra.mxu0 0.0
      %8655 = vmatprep.subr.mxu0 0.0
      %8656 = vmatpush2.msra.mxu0 0.0
      %8657 = vmatprep.subr.mxu0 0.0
      %8658 = vmatpush2.msra.mxu0 0.0
      %8659 = vmatprep.subr.mxu0 0.0
      %8660 = vmatpush2.msra.mxu0 0.0
      %8661 = vmatprep.subr.mxu0 0.0
      %8662 = vmatpush2.msra.mxu0 0.0
      %8663 = vmatprep.subr.mxu0 0.0
      %8664 = vmatpush2.msra.mxu0 0.0
      %8665 = vmatprep.mubr.f32.mxu0 0.0
      %8666 = vmatmul.mubr.f32.gmra.mxu0 %v8491
      %v8667 = vpop.f32.mrf.mxu0
      %v8668 = vadd.f32 0.0, %v8667
      %v8669 = vpop.f32.mrf.mxu0
      %8670 = vmatprep.mubr.f32.mxu0 0.0
      %8671 = vmatmul.mubr.f32.gmra.mxu0 %v8494
      %v8672 = vpop.f32.mrf.mxu0
      %v8673 = vadd.f32 0.0, %v8672
      %v8674 = vpop.f32.mrf.mxu0
      %8675 = vmatprep.mubr.f32.mxu0 0.0
      %8676 = vmatmul.mubr.f32.gmra.mxu0 %v8497
      %v8677 = vpop.f32.mrf.mxu0
      %v8678 = vadd.f32 0.0, %v8677
      %v8679 = vpop.f32.mrf.mxu0
      %8680 = vmatprep.mubr.f32.mxu0 0.0
      %8681 = vmatmul.mubr.f32.gmra.mxu0 %v8500
      %v8682 = vpop.f32.mrf.mxu0
      %v8683 = vadd.f32 0.0, %v8682
      %v8684 = vpop.f32.mrf.mxu0
      %8685 = vmatprep.mubr.f32.mxu0 0.0
      %8686 = vmatmul.mubr.f32.gmra.mxu0 %v8503
      %v8687 = vpop.f32.mrf.mxu0
      %v8688 = vadd.f32 0.0, %v8687
      %v8689 = vpop.f32.mrf.mxu0
      %8690 = vmatprep.mubr.f32.mxu0 0.0
      %8691 = vmatmul.mubr.f32.gmra.mxu0 %v8506
      %v8692 = vpop.f32.mrf.mxu0
      %v8693 = vadd.f32 0.0, %v8692
      %v8694 = vpop.f32.mrf.mxu0
      %8695 = vmatprep.mubr.f32.mxu0 0.0
      %8696 = vmatmul.mubr.f32.gmra.mxu0 %v8509
      %v8697 = vpop.f32.mrf.mxu0
      %v8698 = vadd.f32 0.0, %v8697
      %v8699 = vpop.f32.mrf.mxu0
      %8700 = vmatprep.mubr.f32.mxu0 0.0
      %8701 = vmatmul.mubr.f32.gmra.mxu0 %v8512
      %v8702 = vpop.f32.mrf.mxu0
      %v8703 = vadd.f32 0.0, %v8702
      %v8704 = vpop.f32.mrf.mxu0
      %8705 = vmatprep.mubr.f32.mxu0 0.0
      %8706 = vmatmul.mubr.f32.gmra.mxu0 %v8515
      %v8707 = vpop.f32.mrf.mxu0
      %v8708 = vadd.f32 0.0, %v8707
      %v8709 = vpop.f32.mrf.mxu0
      %8710 = vmatprep.mubr.f32.mxu0 0.0
      %8711 = vmatmul.mubr.f32.gmra.mxu0 %v8518
      %v8712 = vpop.f32.mrf.mxu0
      %v8713 = vadd.f32 0.0, %v8712
      %v8714 = vpop.f32.mrf.mxu0
      %8715 = vmatprep.mubr.f32.mxu0 0.0
      %8716 = vmatmul.mubr.f32.gmra.mxu0 %v8521
      %v8717 = vpop.f32.mrf.mxu0
      %v8718 = vadd.f32 0.0, %v8717
      %v8719 = vpop.f32.mrf.mxu0
      %8720 = vmatprep.mubr.f32.mxu0 0.0
      %8721 = vmatmul.mubr.f32.gmra.mxu0 %v8524
      %v8722 = vpop.f32.mrf.mxu0
      %v8723 = vadd.f32 0.0, %v8722
      %v8724 = vpop.f32.mrf.mxu0
      %8725 = vmatprep.mubr.f32.mxu0 0.0
      %8726 = vmatmul.mubr.f32.gmra.mxu0 %v8527
      %v8727 = vpop.f32.mrf.mxu0
      %v8728 = vadd.f32 0.0, %v8727
      %v8729 = vpop.f32.mrf.mxu0
      %8730 = vmatprep.mubr.f32.mxu0 0.0
      %8731 = vmatmul.mubr.f32.gmra.mxu0 %v8530
      %v8732 = vpop.f32.mrf.mxu0
      %v8733 = vadd.f32 0.0, %v8732
      %v8734 = vpop.f32.mrf.mxu0
      %8735 = vmatprep.mubr.f32.mxu0 0.0
      %8736 = vmatmul.mubr.f32.gmra.mxu0 %v8533
      %v8737 = vpop.f32.mrf.mxu0
      %v8738 = vadd.f32 0.0, %v8737
      %v8739 = vpop.f32.mrf.mxu0
      %8740 = vmatprep.mubr.f32.mxu0 0.0
      %8741 = vmatmul.mubr.f32.gmra.mxu0 %v8536
      %v8742 = vpop.f32.mrf.mxu0
      %v8743 = vadd.f32 0.0, %v8742
      %v8744 = vpop.f32.mrf.mxu0
      %8745 = vmatprep.mubr.f32.mxu0 0.0
      %8746 = vmatmul.mubr.f32.gmra.mxu0 %v8539
      %v8747 = vpop.f32.mrf.mxu0
      %v8748 = vadd.f32 0.0, %v8747
      %v8749 = vpop.f32.mrf.mxu0
      %8750 = vmatprep.mubr.f32.mxu0 0.0
      %8751 = vmatmul.mubr.f32.gmra.mxu0 %v8542
      %v8752 = vpop.f32.mrf.mxu0
      %v8753 = vadd.f32 0.0, %v8752
      %v8754 = vpop.f32.mrf.mxu0
      %8755 = vmatprep.mubr.f32.mxu0 0.0
      %8756 = vmatmul.mubr.f32.gmra.mxu0 %v8545
      %v8757 = vpop.f32.mrf.mxu0
      %v8758 = vadd.f32 0.0, %v8757
      %v8759 = vpop.f32.mrf.mxu0
      %8760 = vmatprep.mubr.f32.mxu0 0.0
      %8761 = vmatmul.mubr.f32.gmra.mxu0 %v8548
      %v8762 = vpop.f32.mrf.mxu0
      %v8763 = vadd.f32 0.0, %v8762
      %v8764 = vpop.f32.mrf.mxu0
      %8765 = vmatprep.mubr.f32.mxu0 0.0
      %8766 = vmatmul.mubr.f32.gmra.mxu0 %v8551
      %v8767 = vpop.f32.mrf.mxu0
      %v8768 = vadd.f32 0.0, %v8767
      %v8769 = vpop.f32.mrf.mxu0
      %8770 = vmatprep.mubr.f32.mxu0 0.0
      %8771 = vmatmul.mubr.f32.gmra.mxu0 %v8554
      %v8772 = vpop.f32.mrf.mxu0
      %v8773 = vadd.f32 0.0, %v8772
      %v8774 = vpop.f32.mrf.mxu0
      %8775 = vmatprep.mubr.f32.mxu0 0.0
      %8776 = vmatmul.mubr.f32.gmra.mxu0 %v8557
      %v8777 = vpop.f32.mrf.mxu0
      %v8778 = vadd.f32 0.0, %v8777
      %v8779 = vpop.f32.mrf.mxu0
      %8780 = vmatprep.mubr.f32.mxu0 0.0
      %8781 = vmatmul.mubr.f32.gmra.mxu0 %v8560
      %v8782 = vpop.f32.mrf.mxu0
      %v8783 = vadd.f32 0.0, %v8782
      %v8784 = vpop.f32.mrf.mxu0
      %8785 = vmatprep.mubr.f32.mxu0 0.0
      %8786 = vmatmul.mubr.f32.gmra.mxu0 %v8563
      %v8787 = vpop.f32.mrf.mxu0
      %v8788 = vadd.f32 0.0, %v8787
      %v8789 = vpop.f32.mrf.mxu0
      %8790 = vmatprep.mubr.f32.mxu0 0.0
      %8791 = vmatmul.mubr.f32.gmra.mxu0 %v8566
      %v8792 = vpop.f32.mrf.mxu0
      %v8793 = vadd.f32 0.0, %v8792
      %v8794 = vpop.f32.mrf.mxu0
      %8795 = vmatprep.mubr.f32.mxu0 0.0
      %8796 = vmatmul.mubr.f32.gmra.mxu0 %v8569
      %v8797 = vpop.f32.mrf.mxu0
      %v8798 = vadd.f32 0.0, %v8797
      %v8799 = vpop.f32.mrf.mxu0
      %8800 = vmatprep.mubr.f32.mxu0 0.0
      %8801 = vmatmul.mubr.f32.gmra.mxu0 %v8572
      %v8802 = vpop.f32.mrf.mxu0
      %v8803 = vadd.f32 0.0, %v8802
      %v8804 = vpop.f32.mrf.mxu0
      %8805 = vmatprep.mubr.f32.mxu0 0.0
      %8806 = vmatmul.mubr.f32.gmra.mxu0 %v8575
      %v8807 = vpop.f32.mrf.mxu0
      %v8808 = vadd.f32 0.0, %v8807
      %v8809 = vpop.f32.mrf.mxu0
      %8810 = vmatprep.mubr.f32.mxu0 0.0
      %8811 = vmatmul.mubr.f32.gmra.mxu0 %v8578
      %v8812 = vpop.f32.mrf.mxu0
      %v8813 = vadd.f32 0.0, %v8812
      %v8814 = vpop.f32.mrf.mxu0
      %8815 = vmatprep.mubr.f32.mxu0 0.0
      %8816 = vmatmul.mubr.f32.gmra.mxu0 %v8581
      %v8817 = vpop.f32.mrf.mxu0
      %v8818 = vadd.f32 0.0, %v8817
      %v8819 = vpop.f32.mrf.mxu0
      %8820 = vmatprep.mubr.f32.mxu0 0.0
      %8821 = vmatmul.mubr.f32.gmra.mxu0 %v8584
      %v8822 = vpop.f32.mrf.mxu0
      %v8823 = vadd.f32 0.0, %v8822
      %v8824 = vpop.f32.mrf.mxu0
      %8825 = vmatprep.mubr.f32.mxu0 0.0
      %8826 = vmatmul.mubr.f32.gmra.mxu0 %v8587
      %v8827 = vpop.f32.mrf.mxu0
      %v8828 = vadd.f32 0.0, %v8827
      %v8829 = vpop.f32.mrf.mxu0
      %8830 = vmatprep.mubr.f32.mxu0 0.0
      %8831 = vmatmul.mubr.f32.gmra.mxu0 %v8590
      %v8832 = vpop.f32.mrf.mxu0
      %v8833 = vadd.f32 0.0, %v8832
      %v8834 = vpop.f32.mrf.mxu0
      %8835 = vmatprep.mubr.f32.mxu0 0.0
      %8836 = vmatmul.mubr.f32.gmra.mxu0 %v8593
      %v8837 = vpop.f32.mrf.mxu0
      %v8838 = vadd.f32 0.0, %v8837
      %v8839 = vpop.f32.mrf.mxu0
      %8840 = vmatprep.mubr.f32.mxu0 0.0
      %8841 = vmatmul.mubr.f32.gmra.mxu0 %v8596
      %v8842 = vpop.f32.mrf.mxu0
      %v8843 = vadd.f32 0.0, %v8842
      %v8844 = vpop.f32.mrf.mxu0
      %8845 = vdwg.mxu0
      %v8846 = vadd.f32 %v8416, %v8668
      %v8847 = vadd.f32 %v8417, %v8673
      %v8848 = vadd.f32 %v8418, %v8678
      %v8849 = vadd.f32 %v8419, %v8683
      %v8850 = vadd.f32 %v8420, %v8688
      %v8851 = vadd.f32 %v8421, %v8693
      %v8852 = vadd.f32 %v8422, %v8698
      %v8853 = vadd.f32 %v8423, %v8703
      %v8854 = vadd.f32 %v8424, %v8708
      %v8855 = vadd.f32 %v8425, %v8713
      %v8856 = vadd.f32 %v8426, %v8718
      %v8857 = vadd.f32 %v8427, %v8723
      %v8858 = vadd.f32 %v8428, %v8728
      %v8859 = vadd.f32 %v8429, %v8733
      %v8860 = vadd.f32 %v8430, %v8738
      %v8861 = vadd.f32 %v8431, %v8743
      %v8862 = vadd.f32 %v8432, %v8748
      %v8863 = vadd.f32 %v8433, %v8753
      %v8864 = vadd.f32 %v8434, %v8758
      %v8865 = vadd.f32 %v8435, %v8763
      %v8866 = vadd.f32 %v8436, %v8768
      %v8867 = vadd.f32 %v8437, %v8773
      %v8868 = vadd.f32 %v8438, %v8778
      %v8869 = vadd.f32 %v8439, %v8783
      %v8870 = vadd.f32 %v8440, %v8788
      %v8871 = vadd.f32 %v8441, %v8793
      %v8872 = vadd.f32 %v8442, %v8798
      %v8873 = vadd.f32 %v8443, %v8803
      %v8874 = vadd.f32 %v8444, %v8808
      %v8875 = vadd.f32 %v8445, %v8813
      %v8876 = vadd.f32 %v8446, %v8818
      %v8877 = vadd.f32 %v8447, %v8823
      %v8878 = vadd.f32 %v8448, %v8828
      %v8879 = vadd.f32 %v8449, %v8833
      %v8880 = vadd.f32 %v8450, %v8838
      %v8881 = vadd.f32 %v8451, %v8843
      %v8882 = vld [vmem:[#allocation2 + $0x26] sm:$0xff]
      %v8883 = vld [vmem:[#allocation2 + $0x2e] sm:$0xff]
      %v8884 = vld [vmem:[#allocation2 + $0x36] sm:$0xff]
      %v8885 = vld [vmem:[#allocation2 + $0x3e] sm:$0xff]
      %v8886 = vld [vmem:[#allocation2 + $0x46] sm:$0xff]
      %v8887 = vld [vmem:[#allocation2 + $0x4e] sm:$0xff]
      %v8888 = vld [vmem:[#allocation2 + $0x56] sm:$0xff]
      %v8889 = vld [vmem:[#allocation2 + $0x5e] sm:$0xff]
      %v8890 = vld [vmem:[#allocation2 + $0x66] sm:$0xff]
      %v8891 = vld [vmem:[#allocation2 + $0x6e] sm:$0xff]
      %v8892 = vld [vmem:[#allocation2 + $0x76] sm:$0xff]
      %v8893 = vld [vmem:[#allocation2 + $0x7e] sm:$0xff]
      %v8894 = vld [vmem:[#allocation2 + $0x86] sm:$0xff]
      %v8895 = vld [vmem:[#allocation2 + $0x8e] sm:$0xff]
      %v8896 = vld [vmem:[#allocation2 + $0x96] sm:$0xff]
      %v8897 = vld [vmem:[#allocation2 + $0x9e] sm:$0xff]
      %v8898 = vld [vmem:[#allocation2 + $0xa6] sm:$0xff]
      %v8899 = vld [vmem:[#allocation2 + $0xae] sm:$0xff]
      %v8900 = vld [vmem:[#allocation2 + $0xb6] sm:$0xff]
      %v8901 = vld [vmem:[#allocation2 + $0xbe] sm:$0xff]
      %v8902 = vld [vmem:[#allocation2 + $0xc6] sm:$0xff]
      %v8903 = vld [vmem:[#allocation2 + $0xce] sm:$0xff]
      %v8904 = vld [vmem:[#allocation2 + $0xd6] sm:$0xff]
      %v8905 = vld [vmem:[#allocation2 + $0xde] sm:$0xff]
      %v8906 = vld [vmem:[#allocation2 + $0xe6] sm:$0xff]
      %v8907 = vld [vmem:[#allocation2 + $0xee] sm:$0xff]
      %v8908 = vld [vmem:[#allocation2 + $0xf6] sm:$0xff]
      %v8909 = vld [vmem:[#allocation2 + $0xfe] sm:$0xff]
      %v8910 = vld [vmem:[#allocation2 + $0x106] sm:$0xff]
      %v8911 = vld [vmem:[#allocation2 + $0x10e] sm:$0xff]
      %v8912 = vld [vmem:[#allocation2 + $0x116] sm:$0xff]
      %v8913 = vld [vmem:[#allocation2 + $0x11e] sm:$0xff]
      %v8914 = vld [vmem:[#allocation2 + $0x126] sm:$0xff]
      %v8915 = vld [vmem:[#allocation2 + $0x12e] sm:$0xff]
      %v8916 = vld [vmem:[#allocation2 + $0x136] sm:$0xff]
      %v8917 = vld [vmem:[#allocation2 + $0x13e] sm:$0xff]
      %s8918 = scalar_lea.vmem %s2, 32
      %v8919 = vld [vmem:[%s8918] sm:$0xf]
      %v8921 = vsel %vm895, %v8882, 0
      %v8924 = vsel %vm895, %v8883, 0
      %v8927 = vsel %vm895, %v8884, 0
      %v8930 = vsel %vm895, %v8885, 0
      %v8933 = vsel %vm895, %v8886, 0
      %v8936 = vsel %vm895, %v8887, 0
      %v8939 = vsel %vm895, %v8888, 0
      %v8942 = vsel %vm895, %v8889, 0
      %v8945 = vsel %vm895, %v8890, 0
      %v8948 = vsel %vm895, %v8891, 0
      %v8951 = vsel %vm895, %v8892, 0
      %v8954 = vsel %vm895, %v8893, 0
      %v8957 = vsel %vm895, %v8894, 0
      %v8960 = vsel %vm895, %v8895, 0
      %v8963 = vsel %vm895, %v8896, 0
      %v8966 = vsel %vm895, %v8897, 0
      %v8969 = vsel %vm895, %v8898, 0
      %v8972 = vsel %vm895, %v8899, 0
      %v8975 = vsel %vm895, %v8900, 0
      %v8978 = vsel %vm895, %v8901, 0
      %v8981 = vsel %vm895, %v8902, 0
      %v8984 = vsel %vm895, %v8903, 0
      %v8987 = vsel %vm895, %v8904, 0
      %v8990 = vsel %vm895, %v8905, 0
      %v8993 = vsel %vm895, %v8906, 0
      %v8996 = vsel %vm895, %v8907, 0
      %v8999 = vsel %vm895, %v8908, 0
      %v9002 = vsel %vm895, %v8909, 0
      %v9005 = vsel %vm895, %v8910, 0
      %v9008 = vsel %vm895, %v8911, 0
      %v9011 = vsel %vm895, %v8912, 0
      %v9014 = vsel %vm895, %v8913, 0
      %v9017 = vsel %vm895, %v8914, 0
      %v9020 = vsel %vm895, %v8915, 0
      %v9023 = vsel %vm895, %v8916, 0
      %v9026 = vsel %vm895, %v8917, 0
      %v9029 = vsel %vm1004, %v8919, 0
      %9031 = vmatprep.subr.mxu0 0.0
      %9032 = vmatpush1.msra.mxu0 0.0
      %9033 = vmatprep.subr.mxu0 0.0
      %9034 = vmatpush1.msra.mxu0 0.0
      %9035 = vmatprep.subr.mxu0 0.0
      %9036 = vmatpush1.msra.mxu0 0.0
      %9037 = vmatprep.subr.mxu0 0.0
      %9038 = vmatpush1.msra.mxu0 0.0
      %9039 = vmatprep.subr.mxu0 0.0
      %9040 = vmatpush1.msra.mxu0 0.0
      %9041 = vmatprep.subr.mxu0 0.0
      %9042 = vmatpush1.msra.mxu0 0.0
      %9043 = vmatprep.subr.mxu0 0.0
      %9044 = vmatpush1.msra.mxu0 0.0
      %9045 = vmatprep.subr.mxu0 0.0
      %9046 = vmatpush1.msra.mxu0 0.0
      %9047 = vmatprep.subr.mxu0 0.0
      %9048 = vmatpush1.msra.mxu0 0.0
      %9049 = vmatprep.subr.mxu0 0.0
      %9050 = vmatpush1.msra.mxu0 0.0
      %9051 = vmatprep.subr.mxu0 0.0
      %9052 = vmatpush1.msra.mxu0 0.0
      %9053 = vmatprep.subr.mxu0 0.0
      %9054 = vmatpush1.msra.mxu0 0.0
      %9055 = vmatprep.subr.mxu0 0.0
      %9056 = vmatpush1.msra.mxu0 0.0
      %9057 = vmatprep.subr.mxu0 0.0
      %9058 = vmatpush1.msra.mxu0 0.0
      %9059 = vmatprep.subr.mxu0 0.0
      %9060 = vmatpush1.msra.mxu0 0.0
      %9061 = vmatprep.subr.mxu0 0.0
      %9062 = vmatpush1.msra.mxu0 %v9029
      %9063 = vmatprep.subr.mxu0 0.0
      %9064 = vmatpush2.msra.mxu0 0.0
      %9065 = vmatprep.subr.mxu0 0.0
      %9066 = vmatpush2.msra.mxu0 0.0
      %9067 = vmatprep.subr.mxu0 0.0
      %9068 = vmatpush2.msra.mxu0 0.0
      %9069 = vmatprep.subr.mxu0 0.0
      %9070 = vmatpush2.msra.mxu0 0.0
      %9071 = vmatprep.subr.mxu0 0.0
      %9072 = vmatpush2.msra.mxu0 0.0
      %9073 = vmatprep.subr.mxu0 0.0
      %9074 = vmatpush2.msra.mxu0 0.0
      %9075 = vmatprep.subr.mxu0 0.0
      %9076 = vmatpush2.msra.mxu0 0.0
      %9077 = vmatprep.subr.mxu0 0.0
      %9078 = vmatpush2.msra.mxu0 0.0
      %9079 = vmatprep.subr.mxu0 0.0
      %9080 = vmatpush2.msra.mxu0 0.0
      %9081 = vmatprep.subr.mxu0 0.0
      %9082 = vmatpush2.msra.mxu0 0.0
      %9083 = vmatprep.subr.mxu0 0.0
      %9084 = vmatpush2.msra.mxu0 0.0
      %9085 = vmatprep.subr.mxu0 0.0
      %9086 = vmatpush2.msra.mxu0 0.0
      %9087 = vmatprep.subr.mxu0 0.0
      %9088 = vmatpush2.msra.mxu0 0.0
      %9089 = vmatprep.subr.mxu0 0.0
      %9090 = vmatpush2.msra.mxu0 0.0
      %9091 = vmatprep.subr.mxu0 0.0
      %9092 = vmatpush2.msra.mxu0 0.0
      %9093 = vmatprep.subr.mxu0 0.0
      %9094 = vmatpush2.msra.mxu0 0.0
      %9095 = vmatprep.mubr.f32.mxu0 0.0
      %9096 = vmatmul.mubr.f32.gmra.mxu0 %v8921
      %v9097 = vpop.f32.mrf.mxu0
      %v9098 = vadd.f32 0.0, %v9097
      %v9099 = vpop.f32.mrf.mxu0
      %9100 = vmatprep.mubr.f32.mxu0 0.0
      %9101 = vmatmul.mubr.f32.gmra.mxu0 %v8924
      %v9102 = vpop.f32.mrf.mxu0
      %v9103 = vadd.f32 0.0, %v9102
      %v9104 = vpop.f32.mrf.mxu0
      %9105 = vmatprep.mubr.f32.mxu0 0.0
      %9106 = vmatmul.mubr.f32.gmra.mxu0 %v8927
      %v9107 = vpop.f32.mrf.mxu0
      %v9108 = vadd.f32 0.0, %v9107
      %v9109 = vpop.f32.mrf.mxu0
      %9110 = vmatprep.mubr.f32.mxu0 0.0
      %9111 = vmatmul.mubr.f32.gmra.mxu0 %v8930
      %v9112 = vpop.f32.mrf.mxu0
      %v9113 = vadd.f32 0.0, %v9112
      %v9114 = vpop.f32.mrf.mxu0
      %9115 = vmatprep.mubr.f32.mxu0 0.0
      %9116 = vmatmul.mubr.f32.gmra.mxu0 %v8933
      %v9117 = vpop.f32.mrf.mxu0
      %v9118 = vadd.f32 0.0, %v9117
      %v9119 = vpop.f32.mrf.mxu0
      %9120 = vmatprep.mubr.f32.mxu0 0.0
      %9121 = vmatmul.mubr.f32.gmra.mxu0 %v8936
      %v9122 = vpop.f32.mrf.mxu0
      %v9123 = vadd.f32 0.0, %v9122
      %v9124 = vpop.f32.mrf.mxu0
      %9125 = vmatprep.mubr.f32.mxu0 0.0
      %9126 = vmatmul.mubr.f32.gmra.mxu0 %v8939
      %v9127 = vpop.f32.mrf.mxu0
      %v9128 = vadd.f32 0.0, %v9127
      %v9129 = vpop.f32.mrf.mxu0
      %9130 = vmatprep.mubr.f32.mxu0 0.0
      %9131 = vmatmul.mubr.f32.gmra.mxu0 %v8942
      %v9132 = vpop.f32.mrf.mxu0
      %v9133 = vadd.f32 0.0, %v9132
      %v9134 = vpop.f32.mrf.mxu0
      %9135 = vmatprep.mubr.f32.mxu0 0.0
      %9136 = vmatmul.mubr.f32.gmra.mxu0 %v8945
      %v9137 = vpop.f32.mrf.mxu0
      %v9138 = vadd.f32 0.0, %v9137
      %v9139 = vpop.f32.mrf.mxu0
      %9140 = vmatprep.mubr.f32.mxu0 0.0
      %9141 = vmatmul.mubr.f32.gmra.mxu0 %v8948
      %v9142 = vpop.f32.mrf.mxu0
      %v9143 = vadd.f32 0.0, %v9142
      %v9144 = vpop.f32.mrf.mxu0
      %9145 = vmatprep.mubr.f32.mxu0 0.0
      %9146 = vmatmul.mubr.f32.gmra.mxu0 %v8951
      %v9147 = vpop.f32.mrf.mxu0
      %v9148 = vadd.f32 0.0, %v9147
      %v9149 = vpop.f32.mrf.mxu0
      %9150 = vmatprep.mubr.f32.mxu0 0.0
      %9151 = vmatmul.mubr.f32.gmra.mxu0 %v8954
      %v9152 = vpop.f32.mrf.mxu0
      %v9153 = vadd.f32 0.0, %v9152
      %v9154 = vpop.f32.mrf.mxu0
      %9155 = vmatprep.mubr.f32.mxu0 0.0
      %9156 = vmatmul.mubr.f32.gmra.mxu0 %v8957
      %v9157 = vpop.f32.mrf.mxu0
      %v9158 = vadd.f32 0.0, %v9157
      %v9159 = vpop.f32.mrf.mxu0
      %9160 = vmatprep.mubr.f32.mxu0 0.0
      %9161 = vmatmul.mubr.f32.gmra.mxu0 %v8960
      %v9162 = vpop.f32.mrf.mxu0
      %v9163 = vadd.f32 0.0, %v9162
      %v9164 = vpop.f32.mrf.mxu0
      %9165 = vmatprep.mubr.f32.mxu0 0.0
      %9166 = vmatmul.mubr.f32.gmra.mxu0 %v8963
      %v9167 = vpop.f32.mrf.mxu0
      %v9168 = vadd.f32 0.0, %v9167
      %v9169 = vpop.f32.mrf.mxu0
      %9170 = vmatprep.mubr.f32.mxu0 0.0
      %9171 = vmatmul.mubr.f32.gmra.mxu0 %v8966
      %v9172 = vpop.f32.mrf.mxu0
      %v9173 = vadd.f32 0.0, %v9172
      %v9174 = vpop.f32.mrf.mxu0
      %9175 = vmatprep.mubr.f32.mxu0 0.0
      %9176 = vmatmul.mubr.f32.gmra.mxu0 %v8969
      %v9177 = vpop.f32.mrf.mxu0
      %v9178 = vadd.f32 0.0, %v9177
      %v9179 = vpop.f32.mrf.mxu0
      %9180 = vmatprep.mubr.f32.mxu0 0.0
      %9181 = vmatmul.mubr.f32.gmra.mxu0 %v8972
      %v9182 = vpop.f32.mrf.mxu0
      %v9183 = vadd.f32 0.0, %v9182
      %v9184 = vpop.f32.mrf.mxu0
      %9185 = vmatprep.mubr.f32.mxu0 0.0
      %9186 = vmatmul.mubr.f32.gmra.mxu0 %v8975
      %v9187 = vpop.f32.mrf.mxu0
      %v9188 = vadd.f32 0.0, %v9187
      %v9189 = vpop.f32.mrf.mxu0
      %9190 = vmatprep.mubr.f32.mxu0 0.0
      %9191 = vmatmul.mubr.f32.gmra.mxu0 %v8978
      %v9192 = vpop.f32.mrf.mxu0
      %v9193 = vadd.f32 0.0, %v9192
      %v9194 = vpop.f32.mrf.mxu0
      %9195 = vmatprep.mubr.f32.mxu0 0.0
      %9196 = vmatmul.mubr.f32.gmra.mxu0 %v8981
      %v9197 = vpop.f32.mrf.mxu0
      %v9198 = vadd.f32 0.0, %v9197
      %v9199 = vpop.f32.mrf.mxu0
      %9200 = vmatprep.mubr.f32.mxu0 0.0
      %9201 = vmatmul.mubr.f32.gmra.mxu0 %v8984
      %v9202 = vpop.f32.mrf.mxu0
      %v9203 = vadd.f32 0.0, %v9202
      %v9204 = vpop.f32.mrf.mxu0
      %9205 = vmatprep.mubr.f32.mxu0 0.0
      %9206 = vmatmul.mubr.f32.gmra.mxu0 %v8987
      %v9207 = vpop.f32.mrf.mxu0
      %v9208 = vadd.f32 0.0, %v9207
      %v9209 = vpop.f32.mrf.mxu0
      %9210 = vmatprep.mubr.f32.mxu0 0.0
      %9211 = vmatmul.mubr.f32.gmra.mxu0 %v8990
      %v9212 = vpop.f32.mrf.mxu0
      %v9213 = vadd.f32 0.0, %v9212
      %v9214 = vpop.f32.mrf.mxu0
      %9215 = vmatprep.mubr.f32.mxu0 0.0
      %9216 = vmatmul.mubr.f32.gmra.mxu0 %v8993
      %v9217 = vpop.f32.mrf.mxu0
      %v9218 = vadd.f32 0.0, %v9217
      %v9219 = vpop.f32.mrf.mxu0
      %9220 = vmatprep.mubr.f32.mxu0 0.0
      %9221 = vmatmul.mubr.f32.gmra.mxu0 %v8996
      %v9222 = vpop.f32.mrf.mxu0
      %v9223 = vadd.f32 0.0, %v9222
      %v9224 = vpop.f32.mrf.mxu0
      %9225 = vmatprep.mubr.f32.mxu0 0.0
      %9226 = vmatmul.mubr.f32.gmra.mxu0 %v8999
      %v9227 = vpop.f32.mrf.mxu0
      %v9228 = vadd.f32 0.0, %v9227
      %v9229 = vpop.f32.mrf.mxu0
      %9230 = vmatprep.mubr.f32.mxu0 0.0
      %9231 = vmatmul.mubr.f32.gmra.mxu0 %v9002
      %v9232 = vpop.f32.mrf.mxu0
      %v9233 = vadd.f32 0.0, %v9232
      %v9234 = vpop.f32.mrf.mxu0
      %9235 = vmatprep.mubr.f32.mxu0 0.0
      %9236 = vmatmul.mubr.f32.gmra.mxu0 %v9005
      %v9237 = vpop.f32.mrf.mxu0
      %v9238 = vadd.f32 0.0, %v9237
      %v9239 = vpop.f32.mrf.mxu0
      %9240 = vmatprep.mubr.f32.mxu0 0.0
      %9241 = vmatmul.mubr.f32.gmra.mxu0 %v9008
      %v9242 = vpop.f32.mrf.mxu0
      %v9243 = vadd.f32 0.0, %v9242
      %v9244 = vpop.f32.mrf.mxu0
      %9245 = vmatprep.mubr.f32.mxu0 0.0
      %9246 = vmatmul.mubr.f32.gmra.mxu0 %v9011
      %v9247 = vpop.f32.mrf.mxu0
      %v9248 = vadd.f32 0.0, %v9247
      %v9249 = vpop.f32.mrf.mxu0
      %9250 = vmatprep.mubr.f32.mxu0 0.0
      %9251 = vmatmul.mubr.f32.gmra.mxu0 %v9014
      %v9252 = vpop.f32.mrf.mxu0
      %v9253 = vadd.f32 0.0, %v9252
      %v9254 = vpop.f32.mrf.mxu0
      %9255 = vmatprep.mubr.f32.mxu0 0.0
      %9256 = vmatmul.mubr.f32.gmra.mxu0 %v9017
      %v9257 = vpop.f32.mrf.mxu0
      %v9258 = vadd.f32 0.0, %v9257
      %v9259 = vpop.f32.mrf.mxu0
      %9260 = vmatprep.mubr.f32.mxu0 0.0
      %9261 = vmatmul.mubr.f32.gmra.mxu0 %v9020
      %v9262 = vpop.f32.mrf.mxu0
      %v9263 = vadd.f32 0.0, %v9262
      %v9264 = vpop.f32.mrf.mxu0
      %9265 = vmatprep.mubr.f32.mxu0 0.0
      %9266 = vmatmul.mubr.f32.gmra.mxu0 %v9023
      %v9267 = vpop.f32.mrf.mxu0
      %v9268 = vadd.f32 0.0, %v9267
      %v9269 = vpop.f32.mrf.mxu0
      %9270 = vmatprep.mubr.f32.mxu0 0.0
      %9271 = vmatmul.mubr.f32.gmra.mxu0 %v9026
      %v9272 = vpop.f32.mrf.mxu0
      %v9273 = vadd.f32 0.0, %v9272
      %v9274 = vpop.f32.mrf.mxu0
      %9275 = vdwg.mxu0
      %v9276 = vadd.f32 %v8846, %v9098
      %v9277 = vadd.f32 %v8847, %v9103
      %v9278 = vadd.f32 %v8848, %v9108
      %v9279 = vadd.f32 %v8849, %v9113
      %v9280 = vadd.f32 %v8850, %v9118
      %v9281 = vadd.f32 %v8851, %v9123
      %v9282 = vadd.f32 %v8852, %v9128
      %v9283 = vadd.f32 %v8853, %v9133
      %v9284 = vadd.f32 %v8854, %v9138
      %v9285 = vadd.f32 %v8855, %v9143
      %v9286 = vadd.f32 %v8856, %v9148
      %v9287 = vadd.f32 %v8857, %v9153
      %v9288 = vadd.f32 %v8858, %v9158
      %v9289 = vadd.f32 %v8859, %v9163
      %v9290 = vadd.f32 %v8860, %v9168
      %v9291 = vadd.f32 %v8861, %v9173
      %v9292 = vadd.f32 %v8862, %v9178
      %v9293 = vadd.f32 %v8863, %v9183
      %v9294 = vadd.f32 %v8864, %v9188
      %v9295 = vadd.f32 %v8865, %v9193
      %v9296 = vadd.f32 %v8866, %v9198
      %v9297 = vadd.f32 %v8867, %v9203
      %v9298 = vadd.f32 %v8868, %v9208
      %v9299 = vadd.f32 %v8869, %v9213
      %v9300 = vadd.f32 %v8870, %v9218
      %v9301 = vadd.f32 %v8871, %v9223
      %v9302 = vadd.f32 %v8872, %v9228
      %v9303 = vadd.f32 %v8873, %v9233
      %v9304 = vadd.f32 %v8874, %v9238
      %v9305 = vadd.f32 %v8875, %v9243
      %v9306 = vadd.f32 %v8876, %v9248
      %v9307 = vadd.f32 %v8877, %v9253
      %v9308 = vadd.f32 %v8878, %v9258
      %v9309 = vadd.f32 %v8879, %v9263
      %v9310 = vadd.f32 %v8880, %v9268
      %v9311 = vadd.f32 %v8881, %v9273
      %v9312 = vsel %vm4655, %v9276, 0.0
      %v9313 = vsel %vm4656, %v9277, 0.0
      %v9314 = vsel %vm4657, %v9278, 0.0
      %v9315 = vsel %vm4658, %v9279, 0.0
      %v9316 = vsel %vm4659, %v9280, 0.0
      %v9317 = vsel %vm4660, %v9281, 0.0
      %v9318 = vsel %vm4661, %v9282, 0.0
      %v9319 = vsel %vm4662, %v9283, 0.0
      %v9320 = vsel %vm4663, %v9284, 0.0
      %v9321 = vsel %vm4664, %v9285, 0.0
      %v9322 = vsel %vm4665, %v9286, 0.0
      %v9323 = vsel %vm4666, %v9287, 0.0
      %v9324 = vsel %vm4667, %v9288, 0.0
      %v9325 = vsel %vm4668, %v9289, 0.0
      %v9326 = vsel %vm4669, %v9290, 0.0
      %v9327 = vsel %vm4670, %v9291, 0.0
      %v9328 = vsel %vm4671, %v9292, 0.0
      %v9329 = vsel %vm4672, %v9293, 0.0
      %v9330 = vsel %vm4673, %v9294, 0.0
      %v9331 = vsel %vm4674, %v9295, 0.0
      %v9332 = vsel %vm4675, %v9296, 0.0
      %v9333 = vsel %vm4676, %v9297, 0.0
      %v9334 = vsel %vm4677, %v9298, 0.0
      %v9335 = vsel %vm4678, %v9299, 0.0
      %v9336 = vsel %vm4679, %v9300, 0.0
      %v9337 = vsel %vm4680, %v9301, 0.0
      %v9338 = vsel %vm4681, %v9302, 0.0
      %v9339 = vsel %vm4682, %v9303, 0.0
      %v9340 = vsel %vm4683, %v9304, 0.0
      %v9341 = vsel %vm4684, %v9305, 0.0
      %v9342 = vsel %vm4685, %v9306, 0.0
      %v9343 = vsel %vm4686, %v9307, 0.0
      %v9344 = vsel %vm4687, %v9308, 0.0
      %v9345 = vsel %vm4688, %v9309, 0.0
      %v9346 = vsel %vm4689, %v9310, 0.0
      %v9347 = vsel %vm4690, %v9311, 0.0
      %v9348 = vsel %vm895, %v9312, 0.0
      %v9349 = vsel %vm895, %v9313, 0.0
      %v9350 = vadd.f32 %v9348, %v9349
      %v9351 = vsel %vm895, %v9314, 0.0
      %v9352 = vadd.f32 %v9350, %v9351
      %v9353 = vsel %vm895, %v9315, 0.0
      %v9354 = vadd.f32 %v9352, %v9353
      %v9355 = vsel %vm895, %v9316, 0.0
      %v9356 = vadd.f32 %v9354, %v9355
      %v9357 = vsel %vm895, %v9317, 0.0
      %v9358 = vadd.f32 %v9356, %v9357
      %v9359 = vsel %vm895, %v9318, 0.0
      %v9360 = vadd.f32 %v9358, %v9359
      %v9361 = vsel %vm895, %v9319, 0.0
      %v9362 = vadd.f32 %v9360, %v9361
      %v9363 = vsel %vm895, %v9320, 0.0
      %v9364 = vadd.f32 %v9362, %v9363
      %v9365 = vsel %vm895, %v9321, 0.0
      %v9366 = vadd.f32 %v9364, %v9365
      %v9367 = vsel %vm895, %v9322, 0.0
      %v9368 = vadd.f32 %v9366, %v9367
      %v9369 = vsel %vm895, %v9323, 0.0
      %v9370 = vadd.f32 %v9368, %v9369
      %v9371 = vsel %vm895, %v9324, 0.0
      %v9372 = vadd.f32 %v9370, %v9371
      %v9373 = vsel %vm895, %v9325, 0.0
      %v9374 = vadd.f32 %v9372, %v9373
      %v9375 = vsel %vm895, %v9326, 0.0
      %v9376 = vadd.f32 %v9374, %v9375
      %v9377 = vsel %vm895, %v9327, 0.0
      %v9378 = vadd.f32 %v9376, %v9377
      %v9379 = vsel %vm895, %v9328, 0.0
      %v9380 = vadd.f32 %v9378, %v9379
      %v9381 = vsel %vm895, %v9329, 0.0
      %v9382 = vadd.f32 %v9380, %v9381
      %v9383 = vsel %vm895, %v9330, 0.0
      %v9384 = vadd.f32 %v9382, %v9383
      %v9385 = vsel %vm895, %v9331, 0.0
      %v9386 = vadd.f32 %v9384, %v9385
      %v9387 = vsel %vm895, %v9332, 0.0
      %v9388 = vadd.f32 %v9386, %v9387
      %v9389 = vsel %vm895, %v9333, 0.0
      %v9390 = vadd.f32 %v9388, %v9389
      %v9391 = vsel %vm895, %v9334, 0.0
      %v9392 = vadd.f32 %v9390, %v9391
      %v9393 = vsel %vm895, %v9335, 0.0
      %v9394 = vadd.f32 %v9392, %v9393
      %v9395 = vsel %vm895, %v9336, 0.0
      %v9396 = vadd.f32 %v9394, %v9395
      %v9397 = vsel %vm895, %v9337, 0.0
      %v9398 = vadd.f32 %v9396, %v9397
      %v9399 = vsel %vm895, %v9338, 0.0
      %v9400 = vadd.f32 %v9398, %v9399
      %v9401 = vsel %vm895, %v9339, 0.0
      %v9402 = vadd.f32 %v9400, %v9401
      %v9403 = vsel %vm895, %v9340, 0.0
      %v9404 = vadd.f32 %v9402, %v9403
      %v9405 = vsel %vm895, %v9341, 0.0
      %v9406 = vadd.f32 %v9404, %v9405
      %v9407 = vsel %vm895, %v9342, 0.0
      %v9408 = vadd.f32 %v9406, %v9407
      %v9409 = vsel %vm895, %v9343, 0.0
      %v9410 = vadd.f32 %v9408, %v9409
      %v9411 = vsel %vm895, %v9344, 0.0
      %v9412 = vadd.f32 %v9410, %v9411
      %v9413 = vsel %vm895, %v9345, 0.0
      %v9414 = vadd.f32 %v9412, %v9413
      %v9415 = vsel %vm895, %v9346, 0.0
      %v9416 = vadd.f32 %v9414, %v9415
      %v9417 = vsel %vm895, %v9347, 0.0
      %v9418 = vadd.f32 %v9416, %v9417
      %v9419 = vrot.slane %v9418, 4
      %v9420 = vadd.f32 %v9418, %v9419
      %v9421 = vrot.slane %v9420, 2
      %v9422 = vadd.f32 %v9420, %v9421
      %v9423 = vrot.slane %v9422, 1
      %v9424 = vadd.f32 %v9422, %v9423
      %v9425 = vmul.f32 %v9424, 0.00390625
      %v9426 = vmul.f32 %v9312, %v9312
      %v9427 = vmul.f32 %v9313, %v9313
      %v9428 = vmul.f32 %v9314, %v9314
      %v9429 = vmul.f32 %v9315, %v9315
      %v9430 = vmul.f32 %v9316, %v9316
      %v9431 = vmul.f32 %v9317, %v9317
      %v9432 = vmul.f32 %v9318, %v9318
      %v9433 = vmul.f32 %v9319, %v9319
      %v9434 = vmul.f32 %v9320, %v9320
      %v9435 = vmul.f32 %v9321, %v9321
      %v9436 = vmul.f32 %v9322, %v9322
      %v9437 = vmul.f32 %v9323, %v9323
      %v9438 = vmul.f32 %v9324, %v9324
      %v9439 = vmul.f32 %v9325, %v9325
      %v9440 = vmul.f32 %v9326, %v9326
      %v9441 = vmul.f32 %v9327, %v9327
      %v9442 = vmul.f32 %v9328, %v9328
      %v9443 = vmul.f32 %v9329, %v9329
      %v9444 = vmul.f32 %v9330, %v9330
      %v9445 = vmul.f32 %v9331, %v9331
      %v9446 = vmul.f32 %v9332, %v9332
      %v9447 = vmul.f32 %v9333, %v9333
      %v9448 = vmul.f32 %v9334, %v9334
      %v9449 = vmul.f32 %v9335, %v9335
      %v9450 = vmul.f32 %v9336, %v9336
      %v9451 = vmul.f32 %v9337, %v9337
      %v9452 = vmul.f32 %v9338, %v9338
      %v9453 = vmul.f32 %v9339, %v9339
      %v9454 = vmul.f32 %v9340, %v9340
      %v9455 = vmul.f32 %v9341, %v9341
      %v9456 = vmul.f32 %v9342, %v9342
      %v9457 = vmul.f32 %v9343, %v9343
      %v9458 = vmul.f32 %v9344, %v9344
      %v9459 = vmul.f32 %v9345, %v9345
      %v9460 = vmul.f32 %v9346, %v9346
      %v9461 = vmul.f32 %v9347, %v9347
      %v9462 = vsel %vm895, %v9426, 0.0
      %v9463 = vsel %vm895, %v9427, 0.0
      %v9464 = vadd.f32 %v9462, %v9463
      %v9465 = vsel %vm895, %v9428, 0.0
      %v9466 = vadd.f32 %v9464, %v9465
      %v9467 = vsel %vm895, %v9429, 0.0
      %v9468 = vadd.f32 %v9466, %v9467
      %v9469 = vsel %vm895, %v9430, 0.0
      %v9470 = vadd.f32 %v9468, %v9469
      %v9471 = vsel %vm895, %v9431, 0.0
      %v9472 = vadd.f32 %v9470, %v9471
      %v9473 = vsel %vm895, %v9432, 0.0
      %v9474 = vadd.f32 %v9472, %v9473
      %v9475 = vsel %vm895, %v9433, 0.0
      %v9476 = vadd.f32 %v9474, %v9475
      %v9477 = vsel %vm895, %v9434, 0.0
      %v9478 = vadd.f32 %v9476, %v9477
      %v9479 = vsel %vm895, %v9435, 0.0
      %v9480 = vadd.f32 %v9478, %v9479
      %v9481 = vsel %vm895, %v9436, 0.0
      %v9482 = vadd.f32 %v9480, %v9481
      %v9483 = vsel %vm895, %v9437, 0.0
      %v9484 = vadd.f32 %v9482, %v9483
      %v9485 = vsel %vm895, %v9438, 0.0
      %v9486 = vadd.f32 %v9484, %v9485
      %v9487 = vsel %vm895, %v9439, 0.0
      %v9488 = vadd.f32 %v9486, %v9487
      %v9489 = vsel %vm895, %v9440, 0.0
      %v9490 = vadd.f32 %v9488, %v9489
      %v9491 = vsel %vm895, %v9441, 0.0
      %v9492 = vadd.f32 %v9490, %v9491
      %v9493 = vsel %vm895, %v9442, 0.0
      %v9494 = vadd.f32 %v9492, %v9493
      %v9495 = vsel %vm895, %v9443, 0.0
      %v9496 = vadd.f32 %v9494, %v9495
      %v9497 = vsel %vm895, %v9444, 0.0
      %v9498 = vadd.f32 %v9496, %v9497
      %v9499 = vsel %vm895, %v9445, 0.0
      %v9500 = vadd.f32 %v9498, %v9499
      %v9501 = vsel %vm895, %v9446, 0.0
      %v9502 = vadd.f32 %v9500, %v9501
      %v9503 = vsel %vm895, %v9447, 0.0
      %v9504 = vadd.f32 %v9502, %v9503
      %v9505 = vsel %vm895, %v9448, 0.0
      %v9506 = vadd.f32 %v9504, %v9505
      %v9507 = vsel %vm895, %v9449, 0.0
      %v9508 = vadd.f32 %v9506, %v9507
      %v9509 = vsel %vm895, %v9450, 0.0
      %v9510 = vadd.f32 %v9508, %v9509
      %v9511 = vsel %vm895, %v9451, 0.0
      %v9512 = vadd.f32 %v9510, %v9511
      %v9513 = vsel %vm895, %v9452, 0.0
      %v9514 = vadd.f32 %v9512, %v9513
      %v9515 = vsel %vm895, %v9453, 0.0
      %v9516 = vadd.f32 %v9514, %v9515
      %v9517 = vsel %vm895, %v9454, 0.0
      %v9518 = vadd.f32 %v9516, %v9517
      %v9519 = vsel %vm895, %v9455, 0.0
      %v9520 = vadd.f32 %v9518, %v9519
      %v9521 = vsel %vm895, %v9456, 0.0
      %v9522 = vadd.f32 %v9520, %v9521
      %v9523 = vsel %vm895, %v9457, 0.0
      %v9524 = vadd.f32 %v9522, %v9523
      %v9525 = vsel %vm895, %v9458, 0.0
      %v9526 = vadd.f32 %v9524, %v9525
      %v9527 = vsel %vm895, %v9459, 0.0
      %v9528 = vadd.f32 %v9526, %v9527
      %v9529 = vsel %vm895, %v9460, 0.0
      %v9530 = vadd.f32 %v9528, %v9529
      %v9531 = vsel %vm895, %v9461, 0.0
      %v9532 = vadd.f32 %v9530, %v9531
      %v9533 = vrot.slane %v9532, 4
      %v9534 = vadd.f32 %v9532, %v9533
      %v9535 = vrot.slane %v9534, 2
      %v9536 = vadd.f32 %v9534, %v9535
      %v9537 = vrot.slane %v9536, 1
      %v9538 = vadd.f32 %v9536, %v9537
      %v9539 = vmul.f32 %v9538, 0.00390625
      %v9540 = vmul.f32 %v9425, %v9425
      %v9541 = vsub.f32 %v9539, %v9540
      %v9542 = vmax.f32 %v9541, 0.0
      %v9543 = vadd.f32 %v9542, 1e-05
      %v9544 = vrsqrt.pop %v9543
      %v9545 = vmul.f32 %v9276, %v9544
      %v9546 = vmul.f32 %v9277, %v9544
      %v9547 = vmul.f32 %v9278, %v9544
      %v9548 = vmul.f32 %v9279, %v9544
      %v9549 = vmul.f32 %v9280, %v9544
      %v9550 = vmul.f32 %v9281, %v9544
      %v9551 = vmul.f32 %v9282, %v9544
      %v9552 = vmul.f32 %v9283, %v9544
      %v9553 = vmul.f32 %v9284, %v9544
      %v9554 = vmul.f32 %v9285, %v9544
      %v9555 = vmul.f32 %v9286, %v9544
      %v9556 = vmul.f32 %v9287, %v9544
      %v9557 = vmul.f32 %v9288, %v9544
      %v9558 = vmul.f32 %v9289, %v9544
      %v9559 = vmul.f32 %v9290, %v9544
      %v9560 = vmul.f32 %v9291, %v9544
      %v9561 = vmul.f32 %v9292, %v9544
      %v9562 = vmul.f32 %v9293, %v9544
      %v9563 = vmul.f32 %v9294, %v9544
      %v9564 = vmul.f32 %v9295, %v9544
      %v9565 = vmul.f32 %v9296, %v9544
      %v9566 = vmul.f32 %v9297, %v9544
      %v9567 = vmul.f32 %v9298, %v9544
      %v9568 = vmul.f32 %v9299, %v9544
      %v9569 = vmul.f32 %v9300, %v9544
      %v9570 = vmul.f32 %v9301, %v9544
      %v9571 = vmul.f32 %v9302, %v9544
      %v9572 = vmul.f32 %v9303, %v9544
      %v9573 = vmul.f32 %v9304, %v9544
      %v9574 = vmul.f32 %v9305, %v9544
      %v9575 = vmul.f32 %v9306, %v9544
      %v9576 = vmul.f32 %v9307, %v9544
      %v9577 = vmul.f32 %v9308, %v9544
      %v9578 = vmul.f32 %v9309, %v9544
      %v9579 = vmul.f32 %v9310, %v9544
      %v9580 = vmul.f32 %v9311, %v9544
      %v9581 = vmul.f32 %v9425, %v9544
      %v9582 = vsub.f32 %v9545, %v9581
      %v9583 = vsub.f32 %v9546, %v9581
      %v9584 = vsub.f32 %v9547, %v9581
      %v9585 = vsub.f32 %v9548, %v9581
      %v9586 = vsub.f32 %v9549, %v9581
      %v9587 = vsub.f32 %v9550, %v9581
      %v9588 = vsub.f32 %v9551, %v9581
      %v9589 = vsub.f32 %v9552, %v9581
      %v9590 = vsub.f32 %v9553, %v9581
      %v9591 = vsub.f32 %v9554, %v9581
      %v9592 = vsub.f32 %v9555, %v9581
      %v9593 = vsub.f32 %v9556, %v9581
      %v9594 = vsub.f32 %v9557, %v9581
      %v9595 = vsub.f32 %v9558, %v9581
      %v9596 = vsub.f32 %v9559, %v9581
      %v9597 = vsub.f32 %v9560, %v9581
      %v9598 = vsub.f32 %v9561, %v9581
      %v9599 = vsub.f32 %v9562, %v9581
      %v9600 = vsub.f32 %v9563, %v9581
      %v9601 = vsub.f32 %v9564, %v9581
      %v9602 = vsub.f32 %v9565, %v9581
      %v9603 = vsub.f32 %v9566, %v9581
      %v9604 = vsub.f32 %v9567, %v9581
      %v9605 = vsub.f32 %v9568, %v9581
      %v9606 = vsub.f32 %v9569, %v9581
      %v9607 = vsub.f32 %v9570, %v9581
      %v9608 = vsub.f32 %v9571, %v9581
      %v9609 = vsub.f32 %v9572, %v9581
      %v9610 = vsub.f32 %v9573, %v9581
      %v9611 = vsub.f32 %v9574, %v9581
      %v9612 = vsub.f32 %v9575, %v9581
      %v9613 = vsub.f32 %v9576, %v9581
      %v9614 = vsub.f32 %v9577, %v9581
      %v9615 = vsub.f32 %v9578, %v9581
      %v9616 = vsub.f32 %v9579, %v9581
      %v9617 = vsub.f32 %v9580, %v9581
      %v9618 = vld [vmem:[%s165 + $0x13] sm:$0xff]
      %v9619 = vld [vmem:[%s165 + $0x1b] sm:$0xff]
      %v9620 = vld [vmem:[%s165 + $0x23] sm:$0xff]
      %v9621 = vld [vmem:[%s165 + $0x2b] sm:$0xff]
      %v9622 = vld [vmem:[%s165 + $0x33] sm:$0xff]
      %v9623 = vld [vmem:[%s165 + $0x3b] sm:$0xff]
      %v9624 = vld [vmem:[%s165 + $0x43] sm:$0xff]
      %v9625 = vld [vmem:[%s165 + $0x4b] sm:$0xff]
      %v9626 = vld [vmem:[%s165 + $0x53] sm:$0xff]
      %v9627 = vld [vmem:[%s165 + $0x5b] sm:$0xff]
      %v9628 = vld [vmem:[%s165 + $0x63] sm:$0xff]
      %v9629 = vld [vmem:[%s165 + $0x6b] sm:$0xff]
      %v9630 = vld [vmem:[%s165 + $0x73] sm:$0xff]
      %v9631 = vld [vmem:[%s165 + $0x7b] sm:$0xff]
      %v9632 = vld [vmem:[%s165 + $0x83] sm:$0xff]
      %v9633 = vld [vmem:[%s165 + $0x8b] sm:$0xff]
      %v9634 = vld [vmem:[%s165 + $0x93] sm:$0xff]
      %v9635 = vld [vmem:[%s165 + $0x9b] sm:$0xff]
      %v9636 = vld [vmem:[%s165 + $0xa3] sm:$0xff]
      %v9637 = vld [vmem:[%s165 + $0xab] sm:$0xff]
      %v9638 = vld [vmem:[%s165 + $0xb3] sm:$0xff]
      %v9639 = vld [vmem:[%s165 + $0xbb] sm:$0xff]
      %v9640 = vld [vmem:[%s165 + $0xc3] sm:$0xff]
      %v9641 = vld [vmem:[%s165 + $0xcb] sm:$0xff]
      %v9642 = vld [vmem:[%s165 + $0xd3] sm:$0xff]
      %v9643 = vld [vmem:[%s165 + $0xdb] sm:$0xff]
      %v9644 = vld [vmem:[%s165 + $0xe3] sm:$0xff]
      %v9645 = vld [vmem:[%s165 + $0xeb] sm:$0xff]
      %v9646 = vld [vmem:[%s165 + $0xf3] sm:$0xff]
      %v9647 = vld [vmem:[%s165 + $0xfb] sm:$0xff]
      %v9648 = vld [vmem:[%s165 + $0x103] sm:$0xff]
      %v9649 = vld [vmem:[%s165 + $0x10b] sm:$0xff]
      %v9650 = vld [vmem:[%s165 + $0x113] sm:$0xff]
      %v9651 = vld [vmem:[%s165 + $0x11b] sm:$0xff]
      %v9652 = vld [vmem:[%s165 + $0x123] sm:$0xff]
      %v9653 = vld [vmem:[%s165 + $0x12b] sm:$0xff]
      %v9654 = vadd.f32 %v9582, %v9618
      %v9655 = vadd.f32 %v9583, %v9619
      %v9656 = vadd.f32 %v9584, %v9620
      %v9657 = vadd.f32 %v9585, %v9621
      %v9658 = vadd.f32 %v9586, %v9622
      %v9659 = vadd.f32 %v9587, %v9623
      %v9660 = vadd.f32 %v9588, %v9624
      %v9661 = vadd.f32 %v9589, %v9625
      %v9662 = vadd.f32 %v9590, %v9626
      %v9663 = vadd.f32 %v9591, %v9627
      %v9664 = vadd.f32 %v9592, %v9628
      %v9665 = vadd.f32 %v9593, %v9629
      %v9666 = vadd.f32 %v9594, %v9630
      %v9667 = vadd.f32 %v9595, %v9631
      %v9668 = vadd.f32 %v9596, %v9632
      %v9669 = vadd.f32 %v9597, %v9633
      %v9670 = vadd.f32 %v9598, %v9634
      %v9671 = vadd.f32 %v9599, %v9635
      %v9672 = vadd.f32 %v9600, %v9636
      %v9673 = vadd.f32 %v9601, %v9637
      %v9674 = vadd.f32 %v9602, %v9638
      %v9675 = vadd.f32 %v9603, %v9639
      %v9676 = vadd.f32 %v9604, %v9640
      %v9677 = vadd.f32 %v9605, %v9641
      %v9678 = vadd.f32 %v9606, %v9642
      %v9679 = vadd.f32 %v9607, %v9643
      %v9680 = vadd.f32 %v9608, %v9644
      %v9681 = vadd.f32 %v9609, %v9645
      %v9682 = vadd.f32 %v9610, %v9646
      %v9683 = vadd.f32 %v9611, %v9647
      %v9684 = vadd.f32 %v9612, %v9648
      %v9685 = vadd.f32 %v9613, %v9649
      %v9686 = vadd.f32 %v9614, %v9650
      %v9687 = vadd.f32 %v9615, %v9651
      %v9688 = vadd.f32 %v9616, %v9652
      %v9689 = vadd.f32 %v9617, %v9653
      %9690 = vst.msk [vmem:[%s170] sm:$0xff] %vm895, %v9654
      %9691 = vst.msk [vmem:[%s170 + $0x8] sm:$0xff] %vm895, %v9655
      %9692 = vst.msk [vmem:[%s170 + $0x10] sm:$0xff] %vm895, %v9656
      %9693 = vst.msk [vmem:[%s170 + $0x18] sm:$0xff] %vm895, %v9657
      %9694 = vst.msk [vmem:[%s170 + $0x20] sm:$0xff] %vm895, %v9658
      %9695 = vst.msk [vmem:[%s170 + $0x28] sm:$0xff] %vm895, %v9659
      %9696 = vst.msk [vmem:[%s170 + $0x30] sm:$0xff] %vm895, %v9660
      %9697 = vst.msk [vmem:[%s170 + $0x38] sm:$0xff] %vm895, %v9661
      %9698 = vst.msk [vmem:[%s170 + $0x40] sm:$0xff] %vm895, %v9662
      %9699 = vst.msk [vmem:[%s170 + $0x48] sm:$0xff] %vm895, %v9663
      %9700 = vst.msk [vmem:[%s170 + $0x50] sm:$0xff] %vm895, %v9664
      %9701 = vst.msk [vmem:[%s170 + $0x58] sm:$0xff] %vm895, %v9665
      %9702 = vst.msk [vmem:[%s170 + $0x60] sm:$0xff] %vm895, %v9666
      %9703 = vst.msk [vmem:[%s170 + $0x68] sm:$0xff] %vm895, %v9667
      %9704 = vst.msk [vmem:[%s170 + $0x70] sm:$0xff] %vm895, %v9668
      %9705 = vst.msk [vmem:[%s170 + $0x78] sm:$0xff] %vm895, %v9669
      %9706 = vst.msk [vmem:[%s170 + $0x80] sm:$0xff] %vm895, %v9670
      %9707 = vst.msk [vmem:[%s170 + $0x88] sm:$0xff] %vm895, %v9671
      %9708 = vst.msk [vmem:[%s170 + $0x90] sm:$0xff] %vm895, %v9672
      %9709 = vst.msk [vmem:[%s170 + $0x98] sm:$0xff] %vm895, %v9673
      %9710 = vst.msk [vmem:[%s170 + $0xa0] sm:$0xff] %vm895, %v9674
      %9711 = vst.msk [vmem:[%s170 + $0xa8] sm:$0xff] %vm895, %v9675
      %9712 = vst.msk [vmem:[%s170 + $0xb0] sm:$0xff] %vm895, %v9676
      %9713 = vst.msk [vmem:[%s170 + $0xb8] sm:$0xff] %vm895, %v9677
      %9714 = vst.msk [vmem:[%s170 + $0xc0] sm:$0xff] %vm895, %v9678
      %9715 = vst.msk [vmem:[%s170 + $0xc8] sm:$0xff] %vm895, %v9679
      %9716 = vst.msk [vmem:[%s170 + $0xd0] sm:$0xff] %vm895, %v9680
      %9717 = vst.msk [vmem:[%s170 + $0xd8] sm:$0xff] %vm895, %v9681
      %9718 = vst.msk [vmem:[%s170 + $0xe0] sm:$0xff] %vm895, %v9682
      %9719 = vst.msk [vmem:[%s170 + $0xe8] sm:$0xff] %vm895, %v9683
      %9720 = vst.msk [vmem:[%s170 + $0xf0] sm:$0xff] %vm895, %v9684
      %9721 = vst.msk [vmem:[%s170 + $0xf8] sm:$0xff] %vm895, %v9685
      %9722 = vst.msk [vmem:[%s170 + $0x100] sm:$0xff] %vm895, %v9686
      %9723 = vst.msk [vmem:[%s170 + $0x108] sm:$0xff] %vm895, %v9687
      %9724 = vst.msk [vmem:[%s170 + $0x110] sm:$0xff] %vm895, %v9688
      %9725 = vst.msk [vmem:[%s170 + $0x118] sm:$0xff] %vm895, %v9689
      %p9726 = scmp.lt.s32.totalorder %s14, 1
      %s9727 = scalar_select %p9726, %s14, 1
      %s9728 = smul.addr %s9727, 36
      %s9729 = smul.addr %s9728, 8
      %s9730 = scalar_lea.vmem %s3, %s9729
      // Predicated region
      $region33: #{residual_block.1} parent=31 // pred_check
        %p9731 = pneg %p100
      $region34: #{residual_block.1} parent=31 // pred_check_branch
        %9733 = sbr.rel (%p9731) target = $region36
      $region35: #{residual_block.1} parent=31 // pred_region
        _
      $region36: #{residual_block.1} parent=31 // pred_fallthru
        _
    $region32: #{residual_block.1} parent=5 // pred_fallthru
      _
    %p9734 = scmp.le.s32.totalorder 2, %s9
    // Predicated region
    $region37: #{residual_block.1} parent=5 // pred_check
      %p9735 = pneg %p9734
    $region38: #{residual_block.1} parent=5 // pred_check_branch
      %9737 = sbr.rel (%p9735) target = $region40
    $region39: #{residual_block.1} parent=5 // pred_region
      %s9738 = ssub.s32 %s9, 2
      // Predicated region
      $region41: #{residual_block.1} parent=39 // pred_check
        %p9739 = pneg %p106
      $region42: #{residual_block.1} parent=39 // pred_check_branch
        %9741 = sbr.rel (%p9739) target = $region44
      $region43: #{residual_block.1} parent=39 // pred_region
        %p9742 = scmp.lt.s32.totalorder %s15, 1
        %s9743 = scalar_select %p9742, %s15, 1
        %s9744 = smul.addr %s9743, 36
        %s9745 = smul.addr %s9744, 8
        %s9746 = scalar_lea.vmem %s3, %s9745
      $region44: #{residual_block.1} parent=39 // pred_fallthru
        _
    $region40: #{residual_block.1} parent=5 // pred_fallthru
      _
  $region6: #{residual_block.1} parent=0 // loop_footer
    %s13 = sadd.s32 1, %s9
  $region7: #{residual_block.1} parent=0 // loop_footer_branch
    %8 = sbr.rel target = $region3
  $region8: #{residual_block.1} parent=0 // loop_exit
    _

</llo_original>
